<compile_context>
chip_gen: v7x
topology: tpu7x:2x2x1
jax: 0.10.0
libtpu: 0.0.40
codegen_flags: <defaults>
</compile_context>

<pallas_src>
import jax
import jax.numpy as jnp
import numpy as np
from jax.experimental import pallas as pl
from jax.experimental.pallas import tpu as pltpu

# Architecture (from the PyTorch module):
#   conv3: ConvTranspose2d(128, 64, 5, stride=2):  1x1  ->  5x5
#   conv2: ConvTranspose2d( 64, 32, 5, stride=2):  5x5  -> 13x13
#   conv1: ConvTranspose2d( 32,  1, 4, stride=2): 13x13 -> 28x28
_STRIDE = 2
_MAX_CHUNK = 128          # samples per grid step (VMEM-safe on v5e/v6e/v7x)


# ---------------------------------------------------------------------------
# Fused kernel: all three ConvTranspose2d + tanh layers for one batch chunk.
# ---------------------------------------------------------------------------
def _fused_forward_kernel(x_ref, w3_ref, b3_ref, w2_ref, b2_ref, w1_ref,
                          b1_ref, out_ref, a3_ref, acc_e_ref, acc_o_ref):
    nb = x_ref.shape[0]                       # samples in this chunk (mult of 16)

    # ---- Layer 3: ConvT(128->64, k=5, s=2), 1x1 -> 5x5.
    # hin == 1 => no output-height overlap: each kh writes its own output row
    # block directly (no zero-init, no read-modify-write).
    x = x_ref[...]
    b3 = b3_ref[...]
    for kh in range(5):
        p = jnp.dot(x, w3_ref[kh], preferred_element_type=jnp.float32)
        a3_ref[kh * nb:(kh + 1) * nb, :] = jnp.tanh(p + b3).astype(jnp.bfloat16)

    # ---- Layer 2: ConvT(64->32, k=5, s=2), 5x5 -> 13x13.
    # Parity accumulators: oh = 2*ih + kh shares kh's parity, so each kh's
    # full matmul result is a single contiguous 5-block add at offset kh//2.
    # Accumulators are bias-initialized (bias added exactly once per row).
    a3 = a3_ref[...]
    b2 = b2_ref[...]
    acc_e_ref[...] = jnp.broadcast_to(b2, acc_e_ref.shape)     # even oh: 7 blocks
    acc_o_ref[...] = jnp.broadcast_to(b2, acc_o_ref.shape)     # odd  oh: 6 blocks
    for kh in range(5):
        p = jnp.dot(a3, w2_ref[kh], preferred_element_type=jnp.float32)
        off = (kh // 2) * nb
        if kh % 2 == 0:
            acc_e_ref[off:off + 5 * nb, :] += p
        else:
            acc_o_ref[off:off + 5 * nb, :] += p

    # ---- Layer 1: ConvT(32->1, k=4, s=2), 13x13 -> 28x28, kh-merged.
    # w1_ref is (416, 128): lane group [32*kh, 32*kh+28) holds kh's 28 output
    # widths (padded to 32).  Layer 1 consumes the parity-grouped layer-2
    # output directly (no height interleave): two matmuls (even / odd input
    # heights), one 64-lane roll, and 7 lane-dense stores of 4 output heights.
    a2_e = jnp.tanh(acc_e_ref[...]).astype(jnp.bfloat16)       # ih = 0,2,...,12
    a2_o = jnp.tanh(acc_o_ref[...]).astype(jnp.bfloat16)       # ih = 1,3,...,11
    w1 = w1_ref[...]
    p_e = jnp.dot(a2_e, w1, preferred_element_type=jnp.float32)   # (7nb, 128)
    p_o = jnp.dot(a2_o, w1, preferred_element_type=jnp.float32)   # (6nb, 128)
    pr_o = pltpu.roll(p_o, shift=64, axis=1)   # lane groups [kh2,kh3,kh0,kh1]

    lane = jax.lax.broadcasted_iota(jnp.int32, (nb, 128), 1)
    lo = lane < 64
    b1 = b1_ref[...]
    zero = jnp.zeros((nb, 128), jnp.float32)
    for q in range(7):                         # output heights 4q .. 4q+3
        t = p_e[q * nb:(q + 1) * nb, :]                              # ih = 2q
        left = pr_o[(q - 1) * nb:q * nb, :] if q >= 1 else zero      # ih = 2q-1
        right = pr_o[q * nb:(q + 1) * nb, :] if q <= 5 else zero     # ih = 2q+1
        out_ref[q * nb:(q + 1) * nb, :] = jnp.tanh(
            t + jnp.where(lo, left, right) + b1)


# ---------------------------------------------------------------------------
# Forward wrapper (hot path = one pallas_call + tiny pad / reshape glue)
# ---------------------------------------------------------------------------
def _round_up(x, m):
    return ((x + m - 1) // m) * m


def _choose_chunk(batch):
    num_chunks = -(-batch // _MAX_CHUNK)                   # ceil
    return _round_up(-(-batch // num_chunks), 16)          # 16-aligned even split


def deconv_lenet5_forward(dh, params):
    """dh: (B, 128) f32 -> (B, 1, 28, 28) f32 == tanh(conv1(tanh(conv2(tanh(conv3(x))))))."""
    w3, b3, w2, b2, w1m, b1t = params
    batch = dh.shape[0]
    nb = _choose_chunk(batch)                              # samples per grid step
    n_pad = _round_up(batch, nb)
    num_chunks = n_pad // nb
    x = jnp.zeros((n_pad, 128), jnp.bfloat16).at[:batch].set(dh.astype(jnp.bfloat16))

    # Advisory cost estimate so XLA schedules the surrounding glue around us.
    flops = 2 * n_pad * (1 * 128 * 1600 + 5 * 320 * 416 * 5 + 13 * 416 * 128)
    transcendentals = n_pad * (5 * 320 + 13 * 416 + 7 * 128)
    weight_bytes = (w3.size + w2.size + w1m.size) * 2 + (b3.size + b2.size + b1t.size) * 4
    bytes_accessed = int(weight_bytes) + n_pad * 128 * 2 + n_pad * 7 * 128 * 4

    out = pl.pallas_call(
        _fused_forward_kernel,
        out_shape=jax.ShapeDtypeStruct((num_chunks * 7 * nb, 128), jnp.float32),
        grid_spec=pltpu.PrefetchScalarGridSpec(
            num_scalar_prefetch=0,
            grid=(num_chunks,),
            in_specs=[
                pl.BlockSpec((nb, 128), lambda i: (i, 0)),        # x: per-chunk
                pl.BlockSpec(w3.shape, lambda i: (0, 0, 0)),      # weights: resident
                pl.BlockSpec(b3.shape, lambda i: (0, 0)),
                pl.BlockSpec(w2.shape, lambda i: (0, 0, 0)),
                pl.BlockSpec(b2.shape, lambda i: (0, 0)),
                pl.BlockSpec(w1m.shape, lambda i: (0, 0)),
                pl.BlockSpec(b1t.shape, lambda i: (0, 0)),
            ],
            out_specs=pl.BlockSpec((7 * nb, 128), lambda i: (i, 0)),
            scratch_shapes=[
                pltpu.VMEM((5 * nb, 5 * 64), jnp.bfloat16),   # layer-3 output (a3)
                pltpu.VMEM((7 * nb, 13 * 32), jnp.float32),   # layer-2 even-oh acc
                pltpu.VMEM((6 * nb, 13 * 32), jnp.float32),   # layer-2 odd-oh acc
            ],
        ),
        compiler_params=pltpu.CompilerParams(
            dimension_semantics=("parallel",),                # v7x: shard chunks on both TCs
            vmem_limit_bytes=32 * 1024 * 1024),               # v5e default (16 MiB) headroom
        cost_estimate=pl.CostEstimate(
            flops=flops, transcendentals=transcendentals,
            bytes_accessed=bytes_accessed),
    )(x, w3, b3, w2, b2, w1m, b1t)

    # Kernel layout: rows = (chunk, q, sample), lanes = (r, ow32) with
    # output height oh = 4*q + r and the 28 widths padded to 32 lanes.
    img = out.reshape(num_chunks, 7, nb, 4, 32)[..., :28]
    img = img.transpose(0, 2, 1, 3, 4).reshape(n_pad, 28, 28)[:batch]
    return img.reshape(batch, 1, 28, 28)


# ---------------------------------------------------------------------------
# Parameter setup (all packing / tiling / bf16 casting happens once, here)
# ---------------------------------------------------------------------------
def _xavier_uniform(key, shape, gain):
    # PyTorch fan convention for ConvTranspose2d weight (Cin, Cout, K, K).
    fan_in = shape[1] * shape[2] * shape[3]
    fan_out = shape[0] * shape[2] * shape[3]
    bound = gain * (6.0 / (fan_in + fan_out)) ** 0.5
    return jax.random.uniform(key, shape, jnp.float32, -bound, bound)


def _bias_init(key, cout, fan_in):
    bound = 1.0 / (fan_in ** 0.5)
    return jax.random.uniform(key, (cout,), jnp.float32, -bound, bound)


def _pack_deconv_weight(w, win, stride):
    """ConvTranspose2d weight (Cin,Cout,K,K) -> (K, win*Cin, wout*Cout).

    out[kh, iw*Cin + ci, ow*Cout + co] = w[ci, co, kh, ow - stride*iw]  (0 if invalid)
    """
    w = np.asarray(w, np.float32)
    cin, cout, k, _ = w.shape
    wout = (win - 1) * stride + k
    m = np.zeros((k, win * cin, wout * cout), np.float32)
    for kh in range(k):
        for iw in range(win):
            for kw in range(k):
                ow = stride * iw + kw
                m[kh, iw * cin:(iw + 1) * cin,
                  ow * cout:(ow + 1) * cout] = w[:, :, kh, kw]
    return m


def _pack_w1_kh_merged(w, win, stride):
    """ConvTranspose2d(32->1, k=4) weight -> (win*Cin, 4*32) kh-merged.

    Column group kh occupies lanes [32*kh, 32*kh+28); the last 4 lanes of each
    group are zero padding so the merged N dimension is exactly 128 lanes.
    """
    w = np.asarray(w, np.float32)
    cin, cout, k, _ = w.shape
    assert cout == 1
    m = np.zeros((win * cin, k * 32), np.float32)
    for kh in range(k):
        for iw in range(win):
            for kw in range(k):
                ow = stride * iw + kw                    # 0..27
                m[iw * cin:(iw + 1) * cin, kh * 32 + ow] = w[:, 0, kh, kw]
    return m


def make_params(key):
    k3, k2, k1, kb3, kb2, kb1 = jax.random.split(key, 6)
    gain = 1.414
    w3 = _xavier_uniform(k3, (128, 64, 5, 5), gain)
    w2 = _xavier_uniform(k2, (64, 32, 5, 5), gain)
    w1 = _xavier_uniform(k1, (32, 1, 4, 4), gain)
    b3 = _bias_init(kb3, 64, 64 * 5 * 5)
    b2 = _bias_init(kb2, 32, 32 * 5 * 5)
    b1 = _bias_init(kb1, 1, 1 * 4 * 4)

    packed = (
        jnp.asarray(_pack_deconv_weight(w3, 1, _STRIDE), jnp.bfloat16),    # (5, 128, 320)
        jnp.tile(b3, 5).reshape(1, 5 * 64).astype(jnp.float32),
        jnp.asarray(_pack_deconv_weight(w2, 5, _STRIDE), jnp.bfloat16),    # (5, 320, 416)
        jnp.tile(b2, 13).reshape(1, 13 * 32).astype(jnp.float32),
        jnp.asarray(_pack_w1_kh_merged(w1, 13, _STRIDE), jnp.bfloat16),    # (416, 128)
        jnp.full((1, 128), b1[0], jnp.float32),                            # cout=1 bias
    )
    raw = dict(w3=w3, b3=b3, w2=w2, b2=b2, w1=w1, b1=b1)
    return packed, raw


# ---------------------------------------------------------------------------
# Pure-JAX reference (independent conv_transpose path, mirrors bf16 rounding)
# ---------------------------------------------------------------------------
def reference_forward(dh, raw):
    def deconv(x, w, b, stride):
        k = w.shape[2]
        w_conv = jnp.flip(w, (2, 3)).transpose(1, 0, 2, 3)    # (Cout, Cin, K, K)
        y = jax.lax.conv_general_dilated(
            x, w_conv, window_strides=(1, 1),
            padding=[(k - 1, k - 1), (k - 1, k - 1)],
            lhs_dilation=(stride, stride),
            dimension_numbers=("NCHW", "OIHW", "NCHW"),
            precision=jax.lax.Precision.HIGHEST)
        return y + b.reshape(1, -1, 1, 1)

    q = lambda a: a.astype(jnp.bfloat16).astype(jnp.float32)
    x = q(dh).reshape(-1, 128, 1, 1)
    x = q(jnp.tanh(deconv(x, q(raw["w3"]), raw["b3"], _STRIDE)))
    x = q(jnp.tanh(deconv(x, q(raw["w2"]), raw["b2"], _STRIDE)))
    x = jnp.tanh(deconv(x, q(raw["w1"]), raw["b1"], _STRIDE))
    return x


# TODO(synk): batch_tree.get('dh') / batch_tree.set('pred') container plumbing
# and the loss()/gaussian_likelihood()/log_scale training utilities are not
# part of the forward compute and are replaced by a plain array interface.

if __name__ == "__main__":
    key = jax.random.PRNGKey(0)
    kp, kx = jax.random.split(key, 2)

    params, raw = make_params(kp)

    batch = 4
    dh = jax.random.normal(kx, (batch, 128), jnp.float32)

    fwd = jax.jit(deconv_lenet5_forward)
    out = jax.block_until_ready(fwd(dh, params))
    assert out.shape == (batch, 1, 28, 28), out.shape

    ref = reference_forward(dh, raw)
    max_err = float(jnp.max(jnp.abs(out - ref)))
    assert max_err < 2e-2, max_err

    print("KERNEL_OK")
</pallas_src>

<mosaic_0001>
module attributes {stable_mosaic.version = 11 : i64} {
  func.func @_fused_forward_kernel(%arg0: i32, %arg1: memref<16x128xbf16, #tpu.memory_space<vmem>>, %arg2: memref<5x128x320xbf16, #tpu.memory_space<vmem>>, %arg3: memref<1x320xf32, #tpu.memory_space<vmem>>, %arg4: memref<5x320x416xbf16, #tpu.memory_space<vmem>>, %arg5: memref<1x416xf32, #tpu.memory_space<vmem>>, %arg6: memref<416x128xbf16, #tpu.memory_space<vmem>>, %arg7: memref<1x128xf32, #tpu.memory_space<vmem>>, %arg8: memref<112x128xf32, #tpu.memory_space<vmem>>, %arg9: memref<80x320xbf16, #tpu.memory_space<vmem>>, %arg10: memref<112x416xf32, #tpu.memory_space<vmem>>, %arg11: memref<96x416xf32, #tpu.memory_space<vmem>>) attributes {dimension_semantics = [#tpu.dimension_semantics<parallel>], iteration_bounds = array<i64: 1>, scalar_prefetch = 0 : i64, scratch_operands = 3 : i64, tpu.core_type = #tpu.core_type<tc>, window_params = [{transform_indices = @transform_0, window_bounds = array<i64: 16, 128>}, {pipeline_mode = #tpu.pipeline_mode<synchronous>, transform_indices = @transform_1, window_bounds = array<i64: 5, 128, 320>}, {pipeline_mode = #tpu.pipeline_mode<synchronous>, transform_indices = @transform_2, window_bounds = array<i64: 1, 320>}, {pipeline_mode = #tpu.pipeline_mode<synchronous>, transform_indices = @transform_3, window_bounds = array<i64: 5, 320, 416>}, {pipeline_mode = #tpu.pipeline_mode<synchronous>, transform_indices = @transform_4, window_bounds = array<i64: 1, 416>}, {pipeline_mode = #tpu.pipeline_mode<synchronous>, transform_indices = @transform_5, window_bounds = array<i64: 416, 128>}, {pipeline_mode = #tpu.pipeline_mode<synchronous>, transform_indices = @transform_6, window_bounds = array<i64: 1, 128>}, {transform_indices = @transform_7, window_bounds = array<i64: 112, 128>}]} {
    %c0 = arith.constant 0 : index
    %c0_0 = arith.constant 0 : index
    %0 = vector.load %arg1[%c0, %c0_0] : memref<16x128xbf16, #tpu.memory_space<vmem>>, vector<16x128xbf16>
    %c0_1 = arith.constant 0 : index
    %c0_2 = arith.constant 0 : index
    %1 = vector.load %arg3[%c0_1, %c0_2] : memref<1x320xf32, #tpu.memory_space<vmem>>, vector<1x320xf32>
    %c0_3 = arith.constant 0 : index
    %c0_4 = arith.constant 0 : index
    %c0_5 = arith.constant 0 : index
    %2 = vector.load %arg2[%c0_3, %c0_4, %c0_5] : memref<5x128x320xbf16, #tpu.memory_space<vmem>>, vector<1x128x320xbf16>
    %3 = vector.shape_cast %2 : vector<1x128x320xbf16> to vector<128x320xbf16>
    %cst = arith.constant dense<0.000000e+00> : vector<16x320xf32>
    %4 = tpu.matmul %0, %3, %cst {dimension_numbers = #tpu.dot_dimension_numbers<[1], [0], [0], [1], [0, 0, 1, 1], [], []>} : vector<16x128xbf16>, vector<128x320xbf16>, vector<16x320xf32> -> vector<16x320xf32>
    %5 = vector.broadcast %1 : vector<1x320xf32> to vector<16x320xf32>
    %6 = arith.addf %4, %5 : vector<16x320xf32>
    %7 = math.tanh %6 : vector<16x320xf32>
    %8 = arith.truncf %7 : vector<16x320xf32> to vector<16x320xbf16>
    %c0_6 = arith.constant 0 : index
    %c0_7 = arith.constant 0 : index
    %9 = vector.load %arg9[%c0_6, %c0_7] : memref<80x320xbf16, #tpu.memory_space<vmem>>, vector<16x320xbf16>
    tpu.vector_store %arg9[%c0_6, %c0_7], %8 {strides = array<i32>} : memref<80x320xbf16, #tpu.memory_space<vmem>>, vector<16x320xbf16>,
    %c1 = arith.constant 1 : index
    %c0_8 = arith.constant 0 : index
    %c0_9 = arith.constant 0 : index
    %10 = vector.load %arg2[%c1, %c0_8, %c0_9] : memref<5x128x320xbf16, #tpu.memory_space<vmem>>, vector<1x128x320xbf16>
    %11 = vector.shape_cast %10 : vector<1x128x320xbf16> to vector<128x320xbf16>
    %cst_10 = arith.constant dense<0.000000e+00> : vector<16x320xf32>
    %12 = tpu.matmul %0, %11, %cst_10 {dimension_numbers = #tpu.dot_dimension_numbers<[1], [0], [0], [1], [0, 0, 1, 1], [], []>} : vector<16x128xbf16>, vector<128x320xbf16>, vector<16x320xf32> -> vector<16x320xf32>
    %13 = vector.broadcast %1 : vector<1x320xf32> to vector<16x320xf32>
    %14 = arith.addf %12, %13 : vector<16x320xf32>
    %15 = math.tanh %14 : vector<16x320xf32>
    %16 = arith.truncf %15 : vector<16x320xf32> to vector<16x320xbf16>
    %c16 = arith.constant 16 : index
    %c0_11 = arith.constant 0 : index
    %17 = vector.load %arg9[%c16, %c0_11] : memref<80x320xbf16, #tpu.memory_space<vmem>>, vector<16x320xbf16>
    tpu.vector_store %arg9[%c16, %c0_11], %16 {strides = array<i32>} : memref<80x320xbf16, #tpu.memory_space<vmem>>, vector<16x320xbf16>,
    %c2 = arith.constant 2 : index
    %c0_12 = arith.constant 0 : index
    %c0_13 = arith.constant 0 : index
    %18 = vector.load %arg2[%c2, %c0_12, %c0_13] : memref<5x128x320xbf16, #tpu.memory_space<vmem>>, vector<1x128x320xbf16>
    %19 = vector.shape_cast %18 : vector<1x128x320xbf16> to vector<128x320xbf16>
    %cst_14 = arith.constant dense<0.000000e+00> : vector<16x320xf32>
    %20 = tpu.matmul %0, %19, %cst_14 {dimension_numbers = #tpu.dot_dimension_numbers<[1], [0], [0], [1], [0, 0, 1, 1], [], []>} : vector<16x128xbf16>, vector<128x320xbf16>, vector<16x320xf32> -> vector<16x320xf32>
    %21 = vector.broadcast %1 : vector<1x320xf32> to vector<16x320xf32>
    %22 = arith.addf %20, %21 : vector<16x320xf32>
    %23 = math.tanh %22 : vector<16x320xf32>
    %24 = arith.truncf %23 : vector<16x320xf32> to vector<16x320xbf16>
    %c32 = arith.constant 32 : index
    %c0_15 = arith.constant 0 : index
    %25 = vector.load %arg9[%c32, %c0_15] : memref<80x320xbf16, #tpu.memory_space<vmem>>, vector<16x320xbf16>
    tpu.vector_store %arg9[%c32, %c0_15], %24 {strides = array<i32>} : memref<80x320xbf16, #tpu.memory_space<vmem>>, vector<16x320xbf16>,
    %c3 = arith.constant 3 : index
    %c0_16 = arith.constant 0 : index
    %c0_17 = arith.constant 0 : index
    %26 = vector.load %arg2[%c3, %c0_16, %c0_17] : memref<5x128x320xbf16, #tpu.memory_space<vmem>>, vector<1x128x320xbf16>
    %27 = vector.shape_cast %26 : vector<1x128x320xbf16> to vector<128x320xbf16>
    %cst_18 = arith.constant dense<0.000000e+00> : vector<16x320xf32>
    %28 = tpu.matmul %0, %27, %cst_18 {dimension_numbers = #tpu.dot_dimension_numbers<[1], [0], [0], [1], [0, 0, 1, 1], [], []>} : vector<16x128xbf16>, vector<128x320xbf16>, vector<16x320xf32> -> vector<16x320xf32>
    %29 = vector.broadcast %1 : vector<1x320xf32> to vector<16x320xf32>
    %30 = arith.addf %28, %29 : vector<16x320xf32>
    %31 = math.tanh %30 : vector<16x320xf32>
    %32 = arith.truncf %31 : vector<16x320xf32> to vector<16x320xbf16>
    %c48 = arith.constant 48 : index
    %c0_19 = arith.constant 0 : index
    %33 = vector.load %arg9[%c48, %c0_19] : memref<80x320xbf16, #tpu.memory_space<vmem>>, vector<16x320xbf16>
    tpu.vector_store %arg9[%c48, %c0_19], %32 {strides = array<i32>} : memref<80x320xbf16, #tpu.memory_space<vmem>>, vector<16x320xbf16>,
    %c4 = arith.constant 4 : index
    %c0_20 = arith.constant 0 : index
    %c0_21 = arith.constant 0 : index
    %34 = vector.load %arg2[%c4, %c0_20, %c0_21] : memref<5x128x320xbf16, #tpu.memory_space<vmem>>, vector<1x128x320xbf16>
    %35 = vector.shape_cast %34 : vector<1x128x320xbf16> to vector<128x320xbf16>
    %cst_22 = arith.constant dense<0.000000e+00> : vector<16x320xf32>
    %36 = tpu.matmul %0, %35, %cst_22 {dimension_numbers = #tpu.dot_dimension_numbers<[1], [0], [0], [1], [0, 0, 1, 1], [], []>} : vector<16x128xbf16>, vector<128x320xbf16>, vector<16x320xf32> -> vector<16x320xf32>
    %37 = vector.broadcast %1 : vector<1x320xf32> to vector<16x320xf32>
    %38 = arith.addf %36, %37 : vector<16x320xf32>
    %39 = math.tanh %38 : vector<16x320xf32>
    %40 = arith.truncf %39 : vector<16x320xf32> to vector<16x320xbf16>
    %c64 = arith.constant 64 : index
    %c0_23 = arith.constant 0 : index
    %41 = vector.load %arg9[%c64, %c0_23] : memref<80x320xbf16, #tpu.memory_space<vmem>>, vector<16x320xbf16>
    tpu.vector_store %arg9[%c64, %c0_23], %40 {strides = array<i32>} : memref<80x320xbf16, #tpu.memory_space<vmem>>, vector<16x320xbf16>,
    %c0_24 = arith.constant 0 : index
    %c0_25 = arith.constant 0 : index
    %42 = vector.load %arg9[%c0_24, %c0_25] : memref<80x320xbf16, #tpu.memory_space<vmem>>, vector<80x320xbf16>
    %c0_26 = arith.constant 0 : index
    %c0_27 = arith.constant 0 : index
    %43 = vector.load %arg5[%c0_26, %c0_27] : memref<1x416xf32, #tpu.memory_space<vmem>>, vector<1x416xf32>
    %44 = vector.shape_cast %43 : vector<1x416xf32> to vector<1x416xf32>
    %45 = vector.broadcast %44 : vector<1x416xf32> to vector<112x416xf32>
    %c0_28 = arith.constant 0 : index
    %c0_29 = arith.constant 0 : index
    %46 = vector.load %arg10[%c0_28, %c0_29] : memref<112x416xf32, #tpu.memory_space<vmem>>, vector<112x416xf32>
    tpu.vector_store %arg10[%c0_28, %c0_29], %45 {strides = array<i32>} : memref<112x416xf32, #tpu.memory_space<vmem>>, vector<112x416xf32>,
    %47 = vector.shape_cast %43 : vector<1x416xf32> to vector<1x416xf32>
    %48 = vector.broadcast %47 : vector<1x416xf32> to vector<96x416xf32>
    %c0_30 = arith.constant 0 : index
    %c0_31 = arith.constant 0 : index
    %49 = vector.load %arg11[%c0_30, %c0_31] : memref<96x416xf32, #tpu.memory_space<vmem>>, vector<96x416xf32>
    tpu.vector_store %arg11[%c0_30, %c0_31], %48 {strides = array<i32>} : memref<96x416xf32, #tpu.memory_space<vmem>>, vector<96x416xf32>,
    %c0_32 = arith.constant 0 : index
    %c0_33 = arith.constant 0 : index
    %c0_34 = arith.constant 0 : index
    %50 = vector.load %arg4[%c0_32, %c0_33, %c0_34] : memref<5x320x416xbf16, #tpu.memory_space<vmem>>, vector<1x320x416xbf16>
    %51 = vector.shape_cast %50 : vector<1x320x416xbf16> to vector<320x416xbf16>
    %cst_35 = arith.constant dense<0.000000e+00> : vector<80x416xf32>
    %52 = tpu.matmul %42, %51, %cst_35 {dimension_numbers = #tpu.dot_dimension_numbers<[1], [0], [0], [1], [0, 0, 1, 1], [], []>} : vector<80x320xbf16>, vector<320x416xbf16>, vector<80x416xf32> -> vector<80x416xf32>
    %c0_36 = arith.constant 0 : index
    %c0_37 = arith.constant 0 : index
    %53 = vector.load %arg10[%c0_36, %c0_37] : memref<112x416xf32, #tpu.memory_space<vmem>>, vector<80x416xf32>
    %54 = arith.addf %53, %52 : vector<80x416xf32>
    %c0_38 = arith.constant 0 : index
    %c0_39 = arith.constant 0 : index
    %55 = vector.load %arg10[%c0_38, %c0_39] : memref<112x416xf32, #tpu.memory_space<vmem>>, vector<80x416xf32>
    tpu.vector_store %arg10[%c0_38, %c0_39], %54 {strides = array<i32>} : memref<112x416xf32, #tpu.memory_space<vmem>>, vector<80x416xf32>,
    %c1_40 = arith.constant 1 : index
    %c0_41 = arith.constant 0 : index
    %c0_42 = arith.constant 0 : index
    %56 = vector.load %arg4[%c1_40, %c0_41, %c0_42] : memref<5x320x416xbf16, #tpu.memory_space<vmem>>, vector<1x320x416xbf16>
    %57 = vector.shape_cast %56 : vector<1x320x416xbf16> to vector<320x416xbf16>
    %cst_43 = arith.constant dense<0.000000e+00> : vector<80x416xf32>
    %58 = tpu.matmul %42, %57, %cst_43 {dimension_numbers = #tpu.dot_dimension_numbers<[1], [0], [0], [1], [0, 0, 1, 1], [], []>} : vector<80x320xbf16>, vector<320x416xbf16>, vector<80x416xf32> -> vector<80x416xf32>
    %c0_44 = arith.constant 0 : index
    %c0_45 = arith.constant 0 : index
    %59 = vector.load %arg11[%c0_44, %c0_45] : memref<96x416xf32, #tpu.memory_space<vmem>>, vector<80x416xf32>
    %60 = arith.addf %59, %58 : vector<80x416xf32>
    %c0_46 = arith.constant 0 : index
    %c0_47 = arith.constant 0 : index
    %61 = vector.load %arg11[%c0_46, %c0_47] : memref<96x416xf32, #tpu.memory_space<vmem>>, vector<80x416xf32>
    tpu.vector_store %arg11[%c0_46, %c0_47], %60 {strides = array<i32>} : memref<96x416xf32, #tpu.memory_space<vmem>>, vector<80x416xf32>,
    %c2_48 = arith.constant 2 : index
    %c0_49 = arith.constant 0 : index
    %c0_50 = arith.constant 0 : index
    %62 = vector.load %arg4[%c2_48, %c0_49, %c0_50] : memref<5x320x416xbf16, #tpu.memory_space<vmem>>, vector<1x320x416xbf16>
    %63 = vector.shape_cast %62 : vector<1x320x416xbf16> to vector<320x416xbf16>
    %cst_51 = arith.constant dense<0.000000e+00> : vector<80x416xf32>
    %64 = tpu.matmul %42, %63, %cst_51 {dimension_numbers = #tpu.dot_dimension_numbers<[1], [0], [0], [1], [0, 0, 1, 1], [], []>} : vector<80x320xbf16>, vector<320x416xbf16>, vector<80x416xf32> -> vector<80x416xf32>
    %c16_52 = arith.constant 16 : index
    %c0_53 = arith.constant 0 : index
    %65 = vector.load %arg10[%c16_52, %c0_53] : memref<112x416xf32, #tpu.memory_space<vmem>>, vector<80x416xf32>
    %66 = arith.addf %65, %64 : vector<80x416xf32>
    %c16_54 = arith.constant 16 : index
    %c0_55 = arith.constant 0 : index
    %67 = vector.load %arg10[%c16_54, %c0_55] : memref<112x416xf32, #tpu.memory_space<vmem>>, vector<80x416xf32>
    tpu.vector_store %arg10[%c16_54, %c0_55], %66 {strides = array<i32>} : memref<112x416xf32, #tpu.memory_space<vmem>>, vector<80x416xf32>,
    %c3_56 = arith.constant 3 : index
    %c0_57 = arith.constant 0 : index
    %c0_58 = arith.constant 0 : index
    %68 = vector.load %arg4[%c3_56, %c0_57, %c0_58] : memref<5x320x416xbf16, #tpu.memory_space<vmem>>, vector<1x320x416xbf16>
    %69 = vector.shape_cast %68 : vector<1x320x416xbf16> to vector<320x416xbf16>
    %cst_59 = arith.constant dense<0.000000e+00> : vector<80x416xf32>
    %70 = tpu.matmul %42, %69, %cst_59 {dimension_numbers = #tpu.dot_dimension_numbers<[1], [0], [0], [1], [0, 0, 1, 1], [], []>} : vector<80x320xbf16>, vector<320x416xbf16>, vector<80x416xf32> -> vector<80x416xf32>
    %c16_60 = arith.constant 16 : index
    %c0_61 = arith.constant 0 : index
    %71 = vector.load %arg11[%c16_60, %c0_61] : memref<96x416xf32, #tpu.memory_space<vmem>>, vector<80x416xf32>
    %72 = arith.addf %71, %70 : vector<80x416xf32>
    %c16_62 = arith.constant 16 : index
    %c0_63 = arith.constant 0 : index
    %73 = vector.load %arg11[%c16_62, %c0_63] : memref<96x416xf32, #tpu.memory_space<vmem>>, vector<80x416xf32>
    tpu.vector_store %arg11[%c16_62, %c0_63], %72 {strides = array<i32>} : memref<96x416xf32, #tpu.memory_space<vmem>>, vector<80x416xf32>,
    %c4_64 = arith.constant 4 : index
    %c0_65 = arith.constant 0 : index
    %c0_66 = arith.constant 0 : index
    %74 = vector.load %arg4[%c4_64, %c0_65, %c0_66] : memref<5x320x416xbf16, #tpu.memory_space<vmem>>, vector<1x320x416xbf16>
    %75 = vector.shape_cast %74 : vector<1x320x416xbf16> to vector<320x416xbf16>
    %cst_67 = arith.constant dense<0.000000e+00> : vector<80x416xf32>
    %76 = tpu.matmul %42, %75, %cst_67 {dimension_numbers = #tpu.dot_dimension_numbers<[1], [0], [0], [1], [0, 0, 1, 1], [], []>} : vector<80x320xbf16>, vector<320x416xbf16>, vector<80x416xf32> -> vector<80x416xf32>
    %c32_68 = arith.constant 32 : index
    %c0_69 = arith.constant 0 : index
    %77 = vector.load %arg10[%c32_68, %c0_69] : memref<112x416xf32, #tpu.memory_space<vmem>>, vector<80x416xf32>
    %78 = arith.addf %77, %76 : vector<80x416xf32>
    %c32_70 = arith.constant 32 : index
    %c0_71 = arith.constant 0 : index
    %79 = vector.load %arg10[%c32_70, %c0_71] : memref<112x416xf32, #tpu.memory_space<vmem>>, vector<80x416xf32>
    tpu.vector_store %arg10[%c32_70, %c0_71], %78 {strides = array<i32>} : memref<112x416xf32, #tpu.memory_space<vmem>>, vector<80x416xf32>,
    %c0_72 = arith.constant 0 : index
    %c0_73 = arith.constant 0 : index
    %80 = vector.load %arg10[%c0_72, %c0_73] : memref<112x416xf32, #tpu.memory_space<vmem>>, vector<112x416xf32>
    %81 = math.tanh %80 : vector<112x416xf32>
    %82 = arith.truncf %81 : vector<112x416xf32> to vector<112x416xbf16>
    %c0_74 = arith.constant 0 : index
    %c0_75 = arith.constant 0 : index
    %83 = vector.load %arg11[%c0_74, %c0_75] : memref<96x416xf32, #tpu.memory_space<vmem>>, vector<96x416xf32>
    %84 = math.tanh %83 : vector<96x416xf32>
    %85 = arith.truncf %84 : vector<96x416xf32> to vector<96x416xbf16>
    %c0_76 = arith.constant 0 : index
    %c0_77 = arith.constant 0 : index
    %86 = vector.load %arg6[%c0_76, %c0_77] : memref<416x128xbf16, #tpu.memory_space<vmem>>, vector<416x128xbf16>
    %cst_78 = arith.constant dense<0.000000e+00> : vector<112x128xf32>
    %87 = tpu.matmul %82, %86, %cst_78 {dimension_numbers = #tpu.dot_dimension_numbers<[1], [0], [0], [1], [0, 0, 1, 1], [], []>} : vector<112x416xbf16>, vector<416x128xbf16>, vector<112x128xf32> -> vector<112x128xf32>
    %cst_79 = arith.constant dense<0.000000e+00> : vector<96x128xf32>
    %88 = tpu.matmul %85, %86, %cst_79 {dimension_numbers = #tpu.dot_dimension_numbers<[1], [0], [0], [1], [0, 0, 1, 1], [], []>} : vector<96x416xbf16>, vector<416x128xbf16>, vector<96x128xf32> -> vector<96x128xf32>
    %c64_i32 = arith.constant 64 : i32
    %89 = tpu.dynamic_rotate %88 by %c64_i32 dim 1 : vector<96x128xf32>, i32 -> vector<96x128xf32>
    %90 = tpu.iota {dimensions = array<i32: 1>} : vector<16x128xi32>
    %c64_i32_80 = arith.constant 64 : i32
    %91 = vector.broadcast %c64_i32_80 : i32 to vector<16x128xi32>
    %92 = arith.cmpi slt, %90, %91 : vector<16x128xi32>
    %c0_81 = arith.constant 0 : index
    %c0_82 = arith.constant 0 : index
    %93 = vector.load %arg7[%c0_81, %c0_82] : memref<1x128xf32, #tpu.memory_space<vmem>>, vector<1x128xf32>
    %cst_83 = arith.constant 0.000000e+00 : f32
    %94 = vector.broadcast %cst_83 : f32 to vector<16x128xf32>
    %95 = vector.extract_strided_slice %87 {offsets = [0, 0], sizes = [16, 128], strides = [1, 1]} : vector<112x128xf32> to vector<16x128xf32>
    %96 = vector.extract_strided_slice %89 {offsets = [0, 0], sizes = [16, 128], strides = [1, 1]} : vector<96x128xf32> to vector<16x128xf32>
    %97 = arith.select %92, %94, %96 : vector<16x128xi1>, vector<16x128xf32>
    %98 = arith.addf %95, %97 : vector<16x128xf32>
    %99 = vector.broadcast %93 : vector<1x128xf32> to vector<16x128xf32>
    %100 = arith.addf %98, %99 : vector<16x128xf32>
    %101 = math.tanh %100 : vector<16x128xf32>
    %c0_84 = arith.constant 0 : index
    %c0_85 = arith.constant 0 : index
    %102 = vector.load %arg8[%c0_84, %c0_85] : memref<112x128xf32, #tpu.memory_space<vmem>>, vector<16x128xf32>
    tpu.vector_store %arg8[%c0_84, %c0_85], %101 {strides = array<i32>} : memref<112x128xf32, #tpu.memory_space<vmem>>, vector<16x128xf32>,
    %103 = vector.extract_strided_slice %87 {offsets = [16, 0], sizes = [16, 128], strides = [1, 1]} : vector<112x128xf32> to vector<16x128xf32>
    %104 = vector.extract_strided_slice %89 {offsets = [0, 0], sizes = [16, 128], strides = [1, 1]} : vector<96x128xf32> to vector<16x128xf32>
    %105 = vector.extract_strided_slice %89 {offsets = [16, 0], sizes = [16, 128], strides = [1, 1]} : vector<96x128xf32> to vector<16x128xf32>
    %106 = arith.select %92, %104, %105 : vector<16x128xi1>, vector<16x128xf32>
    %107 = arith.addf %103, %106 : vector<16x128xf32>
    %108 = vector.broadcast %93 : vector<1x128xf32> to vector<16x128xf32>
    %109 = arith.addf %107, %108 : vector<16x128xf32>
    %110 = math.tanh %109 : vector<16x128xf32>
    %c16_86 = arith.constant 16 : index
    %c0_87 = arith.constant 0 : index
    %111 = vector.load %arg8[%c16_86, %c0_87] : memref<112x128xf32, #tpu.memory_space<vmem>>, vector<16x128xf32>
    tpu.vector_store %arg8[%c16_86, %c0_87], %110 {strides = array<i32>} : memref<112x128xf32, #tpu.memory_space<vmem>>, vector<16x128xf32>,
    %112 = vector.extract_strided_slice %87 {offsets = [32, 0], sizes = [16, 128], strides = [1, 1]} : vector<112x128xf32> to vector<16x128xf32>
    %113 = vector.extract_strided_slice %89 {offsets = [16, 0], sizes = [16, 128], strides = [1, 1]} : vector<96x128xf32> to vector<16x128xf32>
    %114 = vector.extract_strided_slice %89 {offsets = [32, 0], sizes = [16, 128], strides = [1, 1]} : vector<96x128xf32> to vector<16x128xf32>
    %115 = arith.select %92, %113, %114 : vector<16x128xi1>, vector<16x128xf32>
    %116 = arith.addf %112, %115 : vector<16x128xf32>
    %117 = vector.broadcast %93 : vector<1x128xf32> to vector<16x128xf32>
    %118 = arith.addf %116, %117 : vector<16x128xf32>
    %119 = math.tanh %118 : vector<16x128xf32>
    %c32_88 = arith.constant 32 : index
    %c0_89 = arith.constant 0 : index
    %120 = vector.load %arg8[%c32_88, %c0_89] : memref<112x128xf32, #tpu.memory_space<vmem>>, vector<16x128xf32>
    tpu.vector_store %arg8[%c32_88, %c0_89], %119 {strides = array<i32>} : memref<112x128xf32, #tpu.memory_space<vmem>>, vector<16x128xf32>,
    %121 = vector.extract_strided_slice %87 {offsets = [48, 0], sizes = [16, 128], strides = [1, 1]} : vector<112x128xf32> to vector<16x128xf32>
    %122 = vector.extract_strided_slice %89 {offsets = [32, 0], sizes = [16, 128], strides = [1, 1]} : vector<96x128xf32> to vector<16x128xf32>
    %123 = vector.extract_strided_slice %89 {offsets = [48, 0], sizes = [16, 128], strides = [1, 1]} : vector<96x128xf32> to vector<16x128xf32>
    %124 = arith.select %92, %122, %123 : vector<16x128xi1>, vector<16x128xf32>
    %125 = arith.addf %121, %124 : vector<16x128xf32>
    %126 = vector.broadcast %93 : vector<1x128xf32> to vector<16x128xf32>
    %127 = arith.addf %125, %126 : vector<16x128xf32>
    %128 = math.tanh %127 : vector<16x128xf32>
    %c48_90 = arith.constant 48 : index
    %c0_91 = arith.constant 0 : index
    %129 = vector.load %arg8[%c48_90, %c0_91] : memref<112x128xf32, #tpu.memory_space<vmem>>, vector<16x128xf32>
    tpu.vector_store %arg8[%c48_90, %c0_91], %128 {strides = array<i32>} : memref<112x128xf32, #tpu.memory_space<vmem>>, vector<16x128xf32>,
    %130 = vector.extract_strided_slice %87 {offsets = [64, 0], sizes = [16, 128], strides = [1, 1]} : vector<112x128xf32> to vector<16x128xf32>
    %131 = vector.extract_strided_slice %89 {offsets = [48, 0], sizes = [16, 128], strides = [1, 1]} : vector<96x128xf32> to vector<16x128xf32>
    %132 = vector.extract_strided_slice %89 {offsets = [64, 0], sizes = [16, 128], strides = [1, 1]} : vector<96x128xf32> to vector<16x128xf32>
    %133 = arith.select %92, %131, %132 : vector<16x128xi1>, vector<16x128xf32>
    %134 = arith.addf %130, %133 : vector<16x128xf32>
    %135 = vector.broadcast %93 : vector<1x128xf32> to vector<16x128xf32>
    %136 = arith.addf %134, %135 : vector<16x128xf32>
    %137 = math.tanh %136 : vector<16x128xf32>
    %c64_92 = arith.constant 64 : index
    %c0_93 = arith.constant 0 : index
    %138 = vector.load %arg8[%c64_92, %c0_93] : memref<112x128xf32, #tpu.memory_space<vmem>>, vector<16x128xf32>
    tpu.vector_store %arg8[%c64_92, %c0_93], %137 {strides = array<i32>} : memref<112x128xf32, #tpu.memory_space<vmem>>, vector<16x128xf32>,
    %139 = vector.extract_strided_slice %87 {offsets = [80, 0], sizes = [16, 128], strides = [1, 1]} : vector<112x128xf32> to vector<16x128xf32>
    %140 = vector.extract_strided_slice %89 {offsets = [64, 0], sizes = [16, 128], strides = [1, 1]} : vector<96x128xf32> to vector<16x128xf32>
    %141 = vector.extract_strided_slice %89 {offsets = [80, 0], sizes = [16, 128], strides = [1, 1]} : vector<96x128xf32> to vector<16x128xf32>
    %142 = arith.select %92, %140, %141 : vector<16x128xi1>, vector<16x128xf32>
    %143 = arith.addf %139, %142 : vector<16x128xf32>
    %144 = vector.broadcast %93 : vector<1x128xf32> to vector<16x128xf32>
    %145 = arith.addf %143, %144 : vector<16x128xf32>
    %146 = math.tanh %145 : vector<16x128xf32>
    %c80 = arith.constant 80 : index
    %c0_94 = arith.constant 0 : index
    %147 = vector.load %arg8[%c80, %c0_94] : memref<112x128xf32, #tpu.memory_space<vmem>>, vector<16x128xf32>
    tpu.vector_store %arg8[%c80, %c0_94], %146 {strides = array<i32>} : memref<112x128xf32, #tpu.memory_space<vmem>>, vector<16x128xf32>,
    %148 = vector.extract_strided_slice %87 {offsets = [96, 0], sizes = [16, 128], strides = [1, 1]} : vector<112x128xf32> to vector<16x128xf32>
    %149 = vector.extract_strided_slice %89 {offsets = [80, 0], sizes = [16, 128], strides = [1, 1]} : vector<96x128xf32> to vector<16x128xf32>
    %150 = arith.select %92, %149, %94 : vector<16x128xi1>, vector<16x128xf32>
    %151 = arith.addf %148, %150 : vector<16x128xf32>
    %152 = vector.broadcast %93 : vector<1x128xf32> to vector<16x128xf32>
    %153 = arith.addf %151, %152 : vector<16x128xf32>
    %154 = math.tanh %153 : vector<16x128xf32>
    %c96 = arith.constant 96 : index
    %c0_95 = arith.constant 0 : index
    %155 = vector.load %arg8[%c96, %c0_95] : memref<112x128xf32, #tpu.memory_space<vmem>>, vector<16x128xf32>
    tpu.vector_store %arg8[%c96, %c0_95], %154 {strides = array<i32>} : memref<112x128xf32, #tpu.memory_space<vmem>>, vector<16x128xf32>,
    return
  }
  func.func @transform_0(%arg0: i32) -> (i32, i32) {
    %c0_i32 = arith.constant 0 : i32
    %c0_i32_0 = arith.constant 0 : i32
    return %arg0, %c0_i32 : i32, i32
  }
  func.func @transform_1(%arg0: i32) -> (i32, i32, i32) {
    %c0_i32 = arith.constant 0 : i32
    %c0_i32_0 = arith.constant 0 : i32
    %c0_i32_1 = arith.constant 0 : i32
    %c0_i32_2 = arith.constant 0 : i32
    return %c0_i32, %c0_i32_0, %c0_i32_1 : i32, i32, i32
  }
  func.func @transform_2(%arg0: i32) -> (i32, i32) {
    %c0_i32 = arith.constant 0 : i32
    %c0_i32_0 = arith.constant 0 : i32
    %c0_i32_1 = arith.constant 0 : i32
    return %c0_i32, %c0_i32_0 : i32, i32
  }
  func.func @transform_3(%arg0: i32) -> (i32, i32, i32) {
    %c0_i32 = arith.constant 0 : i32
    %c0_i32_0 = arith.constant 0 : i32
    %c0_i32_1 = arith.constant 0 : i32
    %c0_i32_2 = arith.constant 0 : i32
    return %c0_i32, %c0_i32_0, %c0_i32_1 : i32, i32, i32
  }
  func.func @transform_4(%arg0: i32) -> (i32, i32) {
    %c0_i32 = arith.constant 0 : i32
    %c0_i32_0 = arith.constant 0 : i32
    %c0_i32_1 = arith.constant 0 : i32
    return %c0_i32, %c0_i32_0 : i32, i32
  }
  func.func @transform_5(%arg0: i32) -> (i32, i32) {
    %c0_i32 = arith.constant 0 : i32
    %c0_i32_0 = arith.constant 0 : i32
    %c0_i32_1 = arith.constant 0 : i32
    return %c0_i32, %c0_i32_0 : i32, i32
  }
  func.func @transform_6(%arg0: i32) -> (i32, i32) {
    %c0_i32 = arith.constant 0 : i32
    %c0_i32_0 = arith.constant 0 : i32
    %c0_i32_1 = arith.constant 0 : i32
    return %c0_i32, %c0_i32_0 : i32, i32
  }
  func.func @transform_7(%arg0: i32) -> (i32, i32) {
    %c0_i32 = arith.constant 0 : i32
    %c0_i32_0 = arith.constant 0 : i32
    return %arg0, %c0_i32 : i32, i32
  }
}

</mosaic_0001>

<llo_original>
// kernel: deconv_lenet5_forward.1
$region0: #{deconv_lenet5_forward.1}
  #allocation0 [shape = 'u32[]', space=smem, size = 0x4, offset = 0x4, fixed_abs, tag = 'smem constant byte address 0x4 - core index']
  #allocation1 [shape = 'u32[144,128]{1,0:T(1,128)}', space=vmem, size = 0x12000, scoped, tag = 'internal scratch']
  #allocation2 [shape = 'bf16[80,320]{1,0:T(16,128)(2,1)}', space=vmem, size = 0xf000, scoped, tag = 'scratch operand']
  #allocation3 [shape = 'f32[112,416]{1,0:T(8,128)}', space=vmem, size = 0x38000, scoped, tag = 'scratch operand']
  #allocation4 [shape = 'f32[96,416]{1,0:T(8,128)}', space=vmem, size = 0x30000, scoped, tag = 'scratch operand']
  %s0 = inlined_call_operand.vmem [shape: bf16[16,128], index: 0, kind: input, shape index: {}]
  %s1 = inlined_call_operand.vmem [shape: bf16[5,128,320], index: 1, kind: input, shape index: {}]
  %s2 = inlined_call_operand.vmem [shape: f32[1,320], index: 2, kind: input, shape index: {}]
  %s3 = inlined_call_operand.vmem [shape: bf16[5,320,416], index: 3, kind: input, shape index: {}]
  %s4 = inlined_call_operand.vmem [shape: f32[1,416], index: 4, kind: input, shape index: {}]
  %s5 = inlined_call_operand.vmem [shape: bf16[416,128], index: 5, kind: input, shape index: {}]
  %s6 = inlined_call_operand.vmem [shape: f32[1,128], index: 6, kind: input, shape index: {}]
  %s7 = inlined_call_operand.vmem [shape: f32[112,128], index: 7, kind: output, shape index: {}]
  %s8 = sld [smem:[#allocation0]]
  $region38: #{deconv_lenet5_forward.1} parent=0
    _
  %s10 = ssub.s32 1, %s8
  %s11 = scalar_select 0, %s10, %s8
  // Predicated region
  $region2: #{deconv_lenet5_forward.1} parent=0 // pred_check
    _
  $region3: #{deconv_lenet5_forward.1} parent=0 // pred_check_branch
    %13 = sbr.rel (0) target = $region5
  $region4: #{deconv_lenet5_forward.1} parent=0 // pred_region
    _
  $region5: #{deconv_lenet5_forward.1} parent=0 // pred_fallthru
    _
  // Predicated region
  $region6: #{deconv_lenet5_forward.1} parent=0 // pred_check
    _
  $region7: #{deconv_lenet5_forward.1} parent=0 // pred_check_branch
    %15 = sbr.rel (0) target = $region9
  $region8: #{deconv_lenet5_forward.1} parent=0 // pred_region
    _
  $region9: #{deconv_lenet5_forward.1} parent=0 // pred_fallthru
    _
  // Predicated region
  $region10: #{deconv_lenet5_forward.1} parent=0 // pred_check
    _
  $region11: #{deconv_lenet5_forward.1} parent=0 // pred_check_branch
    %17 = sbr.rel (0) target = $region13
  $region12: #{deconv_lenet5_forward.1} parent=0 // pred_region
    _
  $region13: #{deconv_lenet5_forward.1} parent=0 // pred_fallthru
    _
  // Predicated region
  $region14: #{deconv_lenet5_forward.1} parent=0 // pred_check
    _
  $region15: #{deconv_lenet5_forward.1} parent=0 // pred_check_branch
    %19 = sbr.rel (0) target = $region17
  $region16: #{deconv_lenet5_forward.1} parent=0 // pred_region
    _
  $region17: #{deconv_lenet5_forward.1} parent=0 // pred_fallthru
    _
  // Predicated region
  $region18: #{deconv_lenet5_forward.1} parent=0 // pred_check
    _
  $region19: #{deconv_lenet5_forward.1} parent=0 // pred_check_branch
    %21 = sbr.rel (0) target = $region21
  $region20: #{deconv_lenet5_forward.1} parent=0 // pred_region
    _
  $region21: #{deconv_lenet5_forward.1} parent=0 // pred_fallthru
    _
  // Predicated region
  $region22: #{deconv_lenet5_forward.1} parent=0 // pred_check
    _
  $region23: #{deconv_lenet5_forward.1} parent=0 // pred_check_branch
    %23 = sbr.rel (0) target = $region25
  $region24: #{deconv_lenet5_forward.1} parent=0 // pred_region
    _
  $region25: #{deconv_lenet5_forward.1} parent=0 // pred_fallthru
    _
  // Predicated region
  $region26: #{deconv_lenet5_forward.1} parent=0 // pred_check
    _
  $region27: #{deconv_lenet5_forward.1} parent=0 // pred_check_branch
    %25 = sbr.rel (0) target = $region29
  $region28: #{deconv_lenet5_forward.1} parent=0 // pred_region
    _
  $region29: #{deconv_lenet5_forward.1} parent=0 // pred_fallthru
    _
  %v27 = vld [vmem:[%s0] sm:$0xf]
  %v28 = vld [vmem:[%s0 + $0x4] sm:$0xf]
  %v29 = vld [vmem:[%s2] sm:$0x7]
  %v30 = vld [vmem:[%s1] sm:$0xff]
  %v31 = vld [vmem:[%s1 + $0x8] sm:$0xf]
  %v32 = vld [vmem:[%s1 + $0xc] sm:$0xff]
  %v33 = vld [vmem:[%s1 + $0x14] sm:$0xf]
  %v34 = vld [vmem:[%s1 + $0x18] sm:$0xff]
  %v35 = vld [vmem:[%s1 + $0x20] sm:$0xf]
  %v36 = vld [vmem:[%s1 + $0x24] sm:$0xff]
  %v37 = vld [vmem:[%s1 + $0x2c] sm:$0xf]
  %v38 = vld [vmem:[%s1 + $0x30] sm:$0xff]
  %v39 = vld [vmem:[%s1 + $0x38] sm:$0xf]
  %v40 = vld [vmem:[%s1 + $0x3c] sm:$0xff]
  %v41 = vld [vmem:[%s1 + $0x44] sm:$0xf]
  %v42 = vld [vmem:[%s1 + $0x48] sm:$0xff]
  %v43 = vld [vmem:[%s1 + $0x50] sm:$0xf]
  %v44 = vld [vmem:[%s1 + $0x54] sm:$0xff]
  %v45 = vld [vmem:[%s1 + $0x5c] sm:$0xf]
  %v46 = vld [vmem:[%s1 + $0x60] sm:$0xff]
  %v47 = vld [vmem:[%s1 + $0x68] sm:$0xf]
  %v48 = vld [vmem:[%s1 + $0x6c] sm:$0xff]
  %v49 = vld [vmem:[%s1 + $0x74] sm:$0xf]
  %v50 = vld [vmem:[%s1 + $0x78] sm:$0xff]
  %v51 = vld [vmem:[%s1 + $0x80] sm:$0xf]
  %v52 = vld [vmem:[%s1 + $0x84] sm:$0xff]
  %v53 = vld [vmem:[%s1 + $0x8c] sm:$0xf]
  %v54 = vld [vmem:[%s1 + $0x90] sm:$0xff]
  %v55 = vld [vmem:[%s1 + $0x98] sm:$0xf]
  %v56 = vld [vmem:[%s1 + $0x9c] sm:$0xff]
  %v57 = vld [vmem:[%s1 + $0xa4] sm:$0xf]
  %v58 = vld [vmem:[%s1 + $0xa8] sm:$0xff]
  %v59 = vld [vmem:[%s1 + $0xb0] sm:$0xf]
  %v60 = vld [vmem:[%s1 + $0xb4] sm:$0xff]
  %v61 = vld [vmem:[%s1 + $0xbc] sm:$0xf]
  %v63 = vlaneseq
  %v64 = vshrl.u32 %v63, 7
  %v65 = vsub.s32 0, %v64
  %v66 = vrot.slane %v29, %v65
  %v67 = vlaneseq
  %v68 = vshrl.u32 %v67, 7
  %v69 = vsub.s32 1, %v68
  %v70 = vrot.slane %v29, %v69
  %v71 = vlaneseq
  %v72 = vshrl.u32 %v71, 7
  %v73 = vsub.s32 2, %v72
  %v74 = vrot.slane %v29, %v73
  %v80 = vunpack.c.l.b16 %v27
  %v81 = vunpack.c.l.b16 %v28
  %v82 = vpack.c.b16 %v81, %v80
  %v116 = vunpack.c.l.b16 %v30
  %v117 = vunpack.c.h.b16 %v30
  %v118 = vunpack.c.l.b16 %v31
  %v119 = vunpack.c.l.b16 %v32
  %v120 = vunpack.c.h.b16 %v32
  %v121 = vunpack.c.l.b16 %v33
  %v122 = vunpack.c.l.b16 %v34
  %v123 = vunpack.c.h.b16 %v34
  %v124 = vunpack.c.l.b16 %v35
  %v125 = vunpack.c.l.b16 %v36
  %v126 = vunpack.c.h.b16 %v36
  %v127 = vunpack.c.l.b16 %v37
  %v128 = vunpack.c.l.b16 %v38
  %v129 = vunpack.c.h.b16 %v38
  %v130 = vunpack.c.l.b16 %v39
  %v131 = vunpack.c.l.b16 %v40
  %v132 = vunpack.c.h.b16 %v40
  %v133 = vunpack.c.l.b16 %v41
  %v134 = vunpack.c.l.b16 %v42
  %v135 = vunpack.c.h.b16 %v42
  %v136 = vunpack.c.l.b16 %v43
  %v137 = vunpack.c.l.b16 %v44
  %v138 = vunpack.c.h.b16 %v44
  %v139 = vunpack.c.l.b16 %v45
  %v140 = vunpack.c.l.b16 %v46
  %v141 = vunpack.c.h.b16 %v46
  %v142 = vunpack.c.l.b16 %v47
  %v143 = vunpack.c.l.b16 %v48
  %v144 = vunpack.c.h.b16 %v48
  %v145 = vunpack.c.l.b16 %v49
  %v146 = vunpack.c.l.b16 %v50
  %v147 = vunpack.c.h.b16 %v50
  %v148 = vunpack.c.l.b16 %v51
  %v149 = vunpack.c.l.b16 %v52
  %v150 = vunpack.c.h.b16 %v52
  %v151 = vunpack.c.l.b16 %v53
  %v152 = vunpack.c.l.b16 %v54
  %v153 = vunpack.c.h.b16 %v54
  %v154 = vunpack.c.l.b16 %v55
  %v155 = vunpack.c.l.b16 %v56
  %v156 = vunpack.c.h.b16 %v56
  %v157 = vunpack.c.l.b16 %v57
  %v158 = vunpack.c.l.b16 %v58
  %v159 = vunpack.c.h.b16 %v58
  %v160 = vunpack.c.l.b16 %v59
  %v161 = vunpack.c.l.b16 %v60
  %v162 = vunpack.c.h.b16 %v60
  %v163 = vunpack.c.l.b16 %v61
  %v164 = vpack.c.b16 %v119, %v116
  %v165 = vpack.c.b16 %v120, %v117
  %v166 = vpack.c.b16 %v121, %v118
  %v167 = vpack.c.b16 %v125, %v122
  %v168 = vpack.c.b16 %v126, %v123
  %v169 = vpack.c.b16 %v127, %v124
  %v170 = vpack.c.b16 %v131, %v128
  %v171 = vpack.c.b16 %v132, %v129
  %v172 = vpack.c.b16 %v133, %v130
  %v173 = vpack.c.b16 %v137, %v134
  %v174 = vpack.c.b16 %v138, %v135
  %v175 = vpack.c.b16 %v139, %v136
  %v176 = vpack.c.b16 %v143, %v140
  %v177 = vpack.c.b16 %v144, %v141
  %v178 = vpack.c.b16 %v145, %v142
  %v179 = vpack.c.b16 %v149, %v146
  %v180 = vpack.c.b16 %v150, %v147
  %v181 = vpack.c.b16 %v151, %v148
  %v182 = vpack.c.b16 %v155, %v152
  %v183 = vpack.c.b16 %v156, %v153
  %v184 = vpack.c.b16 %v157, %v154
  %v185 = vpack.c.b16 %v161, %v158
  %v186 = vpack.c.b16 %v162, %v159
  %v187 = vpack.c.b16 %v163, %v160
  %212 = vmatprep.subr.bf16.mxu0 %v165
  %213 = vmatpush1.bf16.msra.mxu0 %v164
  %214 = vmatprep.subr.bf16.mxu0 %v168
  %215 = vmatpush1.bf16.msra.mxu0 %v167
  %216 = vmatprep.subr.bf16.mxu0 %v171
  %217 = vmatpush1.bf16.msra.mxu0 %v170
  %218 = vmatprep.subr.bf16.mxu0 %v174
  %219 = vmatpush1.bf16.msra.mxu0 %v173
  %220 = vmatprep.subr.bf16.mxu0 %v177
  %221 = vmatpush1.bf16.msra.mxu0 %v176
  %222 = vmatprep.subr.bf16.mxu0 %v180
  %223 = vmatpush1.bf16.msra.mxu0 %v179
  %224 = vmatprep.subr.bf16.mxu0 %v183
  %225 = vmatpush1.bf16.msra.mxu0 %v182
  %226 = vmatprep.subr.bf16.mxu0 %v186
  %227 = vmatpush1.bf16.msra.mxu0 %v185
  %228 = vmatprep.subr.bf16.mxu0 0
  %229 = vmatpush1.bf16.msra.mxu0 0
  %230 = vmatprep.subr.bf16.mxu0 0
  %231 = vmatpush1.bf16.msra.mxu0 0
  %232 = vmatprep.subr.bf16.mxu0 0
  %233 = vmatpush1.bf16.msra.mxu0 0
  %234 = vmatprep.subr.bf16.mxu0 0
  %235 = vmatpush1.bf16.msra.mxu0 0
  %236 = vmatprep.subr.bf16.mxu0 0
  %237 = vmatpush1.bf16.msra.mxu0 0
  %238 = vmatprep.subr.bf16.mxu0 0
  %239 = vmatpush1.bf16.msra.mxu0 0
  %240 = vmatprep.subr.bf16.mxu0 0
  %241 = vmatpush1.bf16.msra.mxu0 0
  %242 = vmatprep.subr.bf16.mxu0 0
  %243 = vmatpush1.bf16.msra.mxu0 0
  %244 = vmatprep.mubr.bf16.mxu0 0
  %245 = vmatmul.mubr.bf16.gmra.mrb[0].mxu0 %v82
  %v246 = vpop.f32.mrb[0].mxu0
  %v247 = vadd.f32 %v66, %v246
  %v248 = vpop.f32.mrb[0].mxu0
  %v249 = vadd.f32 %v70, %v248
  %v250 = vpop.f32.mrb[0].mxu0
  %v251 = vadd.f32 %v66, %v250
  %v252 = vpop.f32.mrb[0].mxu0
  %v253 = vadd.f32 %v70, %v252
  %254 = vdwg.mxu0
  %255 = vmatprep.subr.bf16.mxu0 0
  %256 = vmatpush1.bf16.msra.mxu0 %v166
  %257 = vmatprep.subr.bf16.mxu0 0
  %258 = vmatpush1.bf16.msra.mxu0 %v169
  %259 = vmatprep.subr.bf16.mxu0 0
  %260 = vmatpush1.bf16.msra.mxu0 %v172
  %261 = vmatprep.subr.bf16.mxu0 0
  %262 = vmatpush1.bf16.msra.mxu0 %v175
  %263 = vmatprep.subr.bf16.mxu0 0
  %264 = vmatpush1.bf16.msra.mxu0 %v178
  %265 = vmatprep.subr.bf16.mxu0 0
  %266 = vmatpush1.bf16.msra.mxu0 %v181
  %267 = vmatprep.subr.bf16.mxu0 0
  %268 = vmatpush1.bf16.msra.mxu0 %v184
  %269 = vmatprep.subr.bf16.mxu0 0
  %270 = vmatpush1.bf16.msra.mxu0 %v187
  %271 = vmatprep.subr.bf16.mxu0 0
  %272 = vmatpush1.bf16.msra.mxu0 0
  %273 = vmatprep.subr.bf16.mxu0 0
  %274 = vmatpush1.bf16.msra.mxu0 0
  %275 = vmatprep.subr.bf16.mxu0 0
  %276 = vmatpush1.bf16.msra.mxu0 0
  %277 = vmatprep.subr.bf16.mxu0 0
  %278 = vmatpush1.bf16.msra.mxu0 0
  %279 = vmatprep.subr.bf16.mxu0 0
  %280 = vmatpush1.bf16.msra.mxu0 0
  %281 = vmatprep.subr.bf16.mxu0 0
  %282 = vmatpush1.bf16.msra.mxu0 0
  %283 = vmatprep.subr.bf16.mxu0 0
  %284 = vmatpush1.bf16.msra.mxu0 0
  %285 = vmatprep.subr.bf16.mxu0 0
  %286 = vmatpush1.bf16.msra.mxu0 0
  %287 = vmatprep.mubr.bf16.mxu0 0
  %288 = vmatmul.mubr.bf16.gmra.mrb[0].mxu0 %v82
  %v289 = vpop.f32.mrb[0].mxu0
  %v290 = vadd.f32 %v74, %v289
  %v291 = vpop.f32.mrb[0].mxu0
  %v292 = vpop.f32.mrb[0].mxu0
  %v293 = vadd.f32 %v74, %v292
  %v294 = vpop.f32.mrb[0].mxu0
  %295 = vdwg.mxu0
  %v296 = vtanh.pop %v247
  %v297 = vtanh.pop %v249
  %v298 = vtanh.pop %v290
  %v299 = vtanh.pop %v251
  %v300 = vtanh.pop %v253
  %v301 = vtanh.pop %v293
  %v302 = vpack.c.bf16 %v299, %v296
  %v303 = vpack.c.bf16 %v300, %v297
  %v304 = vpack.c.bf16 %v301, %v298
  %305 = vst [vmem:[#allocation2] sm:$0xff] %v302
  %306 = vst [vmem:[#allocation2 + $0x8] sm:$0xff] %v303
  %vm307 = vcmask 523264
  %308 = vst.msk [vmem:[#allocation2 + $0x10] sm:$0xff] %vm307, %v304
  %s309 = scalar_lea.vmem %s1, 192
  %v310 = vld [vmem:[%s309] sm:$0xff]
  %v311 = vld [vmem:[%s309 + $0x8] sm:$0xf]
  %v312 = vld [vmem:[%s309 + $0xc] sm:$0xff]
  %v313 = vld [vmem:[%s309 + $0x14] sm:$0xf]
  %v314 = vld [vmem:[%s309 + $0x18] sm:$0xff]
  %v315 = vld [vmem:[%s309 + $0x20] sm:$0xf]
  %v316 = vld [vmem:[%s309 + $0x24] sm:$0xff]
  %v317 = vld [vmem:[%s309 + $0x2c] sm:$0xf]
  %v318 = vld [vmem:[%s309 + $0x30] sm:$0xff]
  %v319 = vld [vmem:[%s309 + $0x38] sm:$0xf]
  %v320 = vld [vmem:[%s309 + $0x3c] sm:$0xff]
  %v321 = vld [vmem:[%s309 + $0x44] sm:$0xf]
  %v322 = vld [vmem:[%s309 + $0x48] sm:$0xff]
  %v323 = vld [vmem:[%s309 + $0x50] sm:$0xf]
  %v324 = vld [vmem:[%s309 + $0x54] sm:$0xff]
  %v325 = vld [vmem:[%s309 + $0x5c] sm:$0xf]
  %v326 = vld [vmem:[%s309 + $0x60] sm:$0xff]
  %v327 = vld [vmem:[%s309 + $0x68] sm:$0xf]
  %v328 = vld [vmem:[%s309 + $0x6c] sm:$0xff]
  %v329 = vld [vmem:[%s309 + $0x74] sm:$0xf]
  %v330 = vld [vmem:[%s309 + $0x78] sm:$0xff]
  %v331 = vld [vmem:[%s309 + $0x80] sm:$0xf]
  %v332 = vld [vmem:[%s309 + $0x84] sm:$0xff]
  %v333 = vld [vmem:[%s309 + $0x8c] sm:$0xf]
  %v334 = vld [vmem:[%s309 + $0x90] sm:$0xff]
  %v335 = vld [vmem:[%s309 + $0x98] sm:$0xf]
  %v336 = vld [vmem:[%s309 + $0x9c] sm:$0xff]
  %v337 = vld [vmem:[%s309 + $0xa4] sm:$0xf]
  %v338 = vld [vmem:[%s309 + $0xa8] sm:$0xff]
  %v339 = vld [vmem:[%s309 + $0xb0] sm:$0xf]
  %v340 = vld [vmem:[%s309 + $0xb4] sm:$0xff]
  %v341 = vld [vmem:[%s309 + $0xbc] sm:$0xf]
  %v374 = vunpack.c.l.b16 %v310
  %v375 = vunpack.c.h.b16 %v310
  %v376 = vunpack.c.l.b16 %v311
  %v377 = vunpack.c.l.b16 %v312
  %v378 = vunpack.c.h.b16 %v312
  %v379 = vunpack.c.l.b16 %v313
  %v380 = vunpack.c.l.b16 %v314
  %v381 = vunpack.c.h.b16 %v314
  %v382 = vunpack.c.l.b16 %v315
  %v383 = vunpack.c.l.b16 %v316
  %v384 = vunpack.c.h.b16 %v316
  %v385 = vunpack.c.l.b16 %v317
  %v386 = vunpack.c.l.b16 %v318
  %v387 = vunpack.c.h.b16 %v318
  %v388 = vunpack.c.l.b16 %v319
  %v389 = vunpack.c.l.b16 %v320
  %v390 = vunpack.c.h.b16 %v320
  %v391 = vunpack.c.l.b16 %v321
  %v392 = vunpack.c.l.b16 %v322
  %v393 = vunpack.c.h.b16 %v322
  %v394 = vunpack.c.l.b16 %v323
  %v395 = vunpack.c.l.b16 %v324
  %v396 = vunpack.c.h.b16 %v324
  %v397 = vunpack.c.l.b16 %v325
  %v398 = vunpack.c.l.b16 %v326
  %v399 = vunpack.c.h.b16 %v326
  %v400 = vunpack.c.l.b16 %v327
  %v401 = vunpack.c.l.b16 %v328
  %v402 = vunpack.c.h.b16 %v328
  %v403 = vunpack.c.l.b16 %v329
  %v404 = vunpack.c.l.b16 %v330
  %v405 = vunpack.c.h.b16 %v330
  %v406 = vunpack.c.l.b16 %v331
  %v407 = vunpack.c.l.b16 %v332
  %v408 = vunpack.c.h.b16 %v332
  %v409 = vunpack.c.l.b16 %v333
  %v410 = vunpack.c.l.b16 %v334
  %v411 = vunpack.c.h.b16 %v334
  %v412 = vunpack.c.l.b16 %v335
  %v413 = vunpack.c.l.b16 %v336
  %v414 = vunpack.c.h.b16 %v336
  %v415 = vunpack.c.l.b16 %v337
  %v416 = vunpack.c.l.b16 %v338
  %v417 = vunpack.c.h.b16 %v338
  %v418 = vunpack.c.l.b16 %v339
  %v419 = vunpack.c.l.b16 %v340
  %v420 = vunpack.c.h.b16 %v340
  %v421 = vunpack.c.l.b16 %v341
  %v422 = vpack.c.b16 %v377, %v374
  %v423 = vpack.c.b16 %v378, %v375
  %v424 = vpack.c.b16 %v379, %v376
  %v425 = vpack.c.b16 %v383, %v380
  %v426 = vpack.c.b16 %v384, %v381
  %v427 = vpack.c.b16 %v385, %v382
  %v428 = vpack.c.b16 %v389, %v386
  %v429 = vpack.c.b16 %v390, %v387
  %v430 = vpack.c.b16 %v391, %v388
  %v431 = vpack.c.b16 %v395, %v392
  %v432 = vpack.c.b16 %v396, %v393
  %v433 = vpack.c.b16 %v397, %v394
  %v434 = vpack.c.b16 %v401, %v398
  %v435 = vpack.c.b16 %v402, %v399
  %v436 = vpack.c.b16 %v403, %v400
  %v437 = vpack.c.b16 %v407, %v404
  %v438 = vpack.c.b16 %v408, %v405
  %v439 = vpack.c.b16 %v409, %v406
  %v440 = vpack.c.b16 %v413, %v410
  %v441 = vpack.c.b16 %v414, %v411
  %v442 = vpack.c.b16 %v415, %v412
  %v443 = vpack.c.b16 %v419, %v416
  %v444 = vpack.c.b16 %v420, %v417
  %v445 = vpack.c.b16 %v421, %v418
  %470 = vmatprep.subr.bf16.mxu0 %v423
  %471 = vmatpush1.bf16.msra.mxu0 %v422
  %472 = vmatprep.subr.bf16.mxu0 %v426
  %473 = vmatpush1.bf16.msra.mxu0 %v425
  %474 = vmatprep.subr.bf16.mxu0 %v429
  %475 = vmatpush1.bf16.msra.mxu0 %v428
  %476 = vmatprep.subr.bf16.mxu0 %v432
  %477 = vmatpush1.bf16.msra.mxu0 %v431
  %478 = vmatprep.subr.bf16.mxu0 %v435
  %479 = vmatpush1.bf16.msra.mxu0 %v434
  %480 = vmatprep.subr.bf16.mxu0 %v438
  %481 = vmatpush1.bf16.msra.mxu0 %v437
  %482 = vmatprep.subr.bf16.mxu0 %v441
  %483 = vmatpush1.bf16.msra.mxu0 %v440
  %484 = vmatprep.subr.bf16.mxu0 %v444
  %485 = vmatpush1.bf16.msra.mxu0 %v443
  %486 = vmatprep.subr.bf16.mxu0 0
  %487 = vmatpush1.bf16.msra.mxu0 0
  %488 = vmatprep.subr.bf16.mxu0 0
  %489 = vmatpush1.bf16.msra.mxu0 0
  %490 = vmatprep.subr.bf16.mxu0 0
  %491 = vmatpush1.bf16.msra.mxu0 0
  %492 = vmatprep.subr.bf16.mxu0 0
  %493 = vmatpush1.bf16.msra.mxu0 0
  %494 = vmatprep.subr.bf16.mxu0 0
  %495 = vmatpush1.bf16.msra.mxu0 0
  %496 = vmatprep.subr.bf16.mxu0 0
  %497 = vmatpush1.bf16.msra.mxu0 0
  %498 = vmatprep.subr.bf16.mxu0 0
  %499 = vmatpush1.bf16.msra.mxu0 0
  %500 = vmatprep.subr.bf16.mxu0 0
  %501 = vmatpush1.bf16.msra.mxu0 0
  %502 = vmatprep.mubr.bf16.mxu0 0
  %503 = vmatmul.mubr.bf16.gmra.mrb[0].mxu0 %v82
  %v504 = vpop.f32.mrb[0].mxu0
  %v505 = vadd.f32 %v66, %v504
  %v506 = vpop.f32.mrb[0].mxu0
  %v507 = vadd.f32 %v70, %v506
  %v508 = vpop.f32.mrb[0].mxu0
  %v509 = vadd.f32 %v66, %v508
  %v510 = vpop.f32.mrb[0].mxu0
  %v511 = vadd.f32 %v70, %v510
  %512 = vdwg.mxu0
  %513 = vmatprep.subr.bf16.mxu0 0
  %514 = vmatpush1.bf16.msra.mxu0 %v424
  %515 = vmatprep.subr.bf16.mxu0 0
  %516 = vmatpush1.bf16.msra.mxu0 %v427
  %517 = vmatprep.subr.bf16.mxu0 0
  %518 = vmatpush1.bf16.msra.mxu0 %v430
  %519 = vmatprep.subr.bf16.mxu0 0
  %520 = vmatpush1.bf16.msra.mxu0 %v433
  %521 = vmatprep.subr.bf16.mxu0 0
  %522 = vmatpush1.bf16.msra.mxu0 %v436
  %523 = vmatprep.subr.bf16.mxu0 0
  %524 = vmatpush1.bf16.msra.mxu0 %v439
  %525 = vmatprep.subr.bf16.mxu0 0
  %526 = vmatpush1.bf16.msra.mxu0 %v442
  %527 = vmatprep.subr.bf16.mxu0 0
  %528 = vmatpush1.bf16.msra.mxu0 %v445
  %529 = vmatprep.subr.bf16.mxu0 0
  %530 = vmatpush1.bf16.msra.mxu0 0
  %531 = vmatprep.subr.bf16.mxu0 0
  %532 = vmatpush1.bf16.msra.mxu0 0
  %533 = vmatprep.subr.bf16.mxu0 0
  %534 = vmatpush1.bf16.msra.mxu0 0
  %535 = vmatprep.subr.bf16.mxu0 0
  %536 = vmatpush1.bf16.msra.mxu0 0
  %537 = vmatprep.subr.bf16.mxu0 0
  %538 = vmatpush1.bf16.msra.mxu0 0
  %539 = vmatprep.subr.bf16.mxu0 0
  %540 = vmatpush1.bf16.msra.mxu0 0
  %541 = vmatprep.subr.bf16.mxu0 0
  %542 = vmatpush1.bf16.msra.mxu0 0
  %543 = vmatprep.subr.bf16.mxu0 0
  %544 = vmatpush1.bf16.msra.mxu0 0
  %545 = vmatprep.mubr.bf16.mxu0 0
  %546 = vmatmul.mubr.bf16.gmra.mrb[0].mxu0 %v82
  %v547 = vpop.f32.mrb[0].mxu0
  %v548 = vadd.f32 %v74, %v547
  %v549 = vpop.f32.mrb[0].mxu0
  %v550 = vpop.f32.mrb[0].mxu0
  %v551 = vadd.f32 %v74, %v550
  %v552 = vpop.f32.mrb[0].mxu0
  %553 = vdwg.mxu0
  %v554 = vtanh.pop %v505
  %v555 = vtanh.pop %v507
  %v556 = vtanh.pop %v548
  %v557 = vtanh.pop %v509
  %v558 = vtanh.pop %v511
  %v559 = vtanh.pop %v551
  %v560 = vpack.c.bf16 %v557, %v554
  %v561 = vpack.c.bf16 %v558, %v555
  %v562 = vpack.c.bf16 %v559, %v556
  %563 = vst [vmem:[#allocation2 + $0x18] sm:$0xff] %v560
  %564 = vst [vmem:[#allocation2 + $0x20] sm:$0xff] %v561
  %565 = vst.msk [vmem:[#allocation2 + $0x28] sm:$0xff] %vm307, %v562
  %s566 = scalar_lea.vmem %s1, 384
  %v567 = vld [vmem:[%s566] sm:$0xff]
  %v568 = vld [vmem:[%s566 + $0x8] sm:$0xf]
  %v569 = vld [vmem:[%s566 + $0xc] sm:$0xff]
  %v570 = vld [vmem:[%s566 + $0x14] sm:$0xf]
  %v571 = vld [vmem:[%s566 + $0x18] sm:$0xff]
  %v572 = vld [vmem:[%s566 + $0x20] sm:$0xf]
  %v573 = vld [vmem:[%s566 + $0x24] sm:$0xff]
  %v574 = vld [vmem:[%s566 + $0x2c] sm:$0xf]
  %v575 = vld [vmem:[%s566 + $0x30] sm:$0xff]
  %v576 = vld [vmem:[%s566 + $0x38] sm:$0xf]
  %v577 = vld [vmem:[%s566 + $0x3c] sm:$0xff]
  %v578 = vld [vmem:[%s566 + $0x44] sm:$0xf]
  %v579 = vld [vmem:[%s566 + $0x48] sm:$0xff]
  %v580 = vld [vmem:[%s566 + $0x50] sm:$0xf]
  %v581 = vld [vmem:[%s566 + $0x54] sm:$0xff]
  %v582 = vld [vmem:[%s566 + $0x5c] sm:$0xf]
  %v583 = vld [vmem:[%s566 + $0x60] sm:$0xff]
  %v584 = vld [vmem:[%s566 + $0x68] sm:$0xf]
  %v585 = vld [vmem:[%s566 + $0x6c] sm:$0xff]
  %v586 = vld [vmem:[%s566 + $0x74] sm:$0xf]
  %v587 = vld [vmem:[%s566 + $0x78] sm:$0xff]
  %v588 = vld [vmem:[%s566 + $0x80] sm:$0xf]
  %v589 = vld [vmem:[%s566 + $0x84] sm:$0xff]
  %v590 = vld [vmem:[%s566 + $0x8c] sm:$0xf]
  %v591 = vld [vmem:[%s566 + $0x90] sm:$0xff]
  %v592 = vld [vmem:[%s566 + $0x98] sm:$0xf]
  %v593 = vld [vmem:[%s566 + $0x9c] sm:$0xff]
  %v594 = vld [vmem:[%s566 + $0xa4] sm:$0xf]
  %v595 = vld [vmem:[%s566 + $0xa8] sm:$0xff]
  %v596 = vld [vmem:[%s566 + $0xb0] sm:$0xf]
  %v597 = vld [vmem:[%s566 + $0xb4] sm:$0xff]
  %v598 = vld [vmem:[%s566 + $0xbc] sm:$0xf]
  %v631 = vunpack.c.l.b16 %v567
  %v632 = vunpack.c.h.b16 %v567
  %v633 = vunpack.c.l.b16 %v568
  %v634 = vunpack.c.l.b16 %v569
  %v635 = vunpack.c.h.b16 %v569
  %v636 = vunpack.c.l.b16 %v570
  %v637 = vunpack.c.l.b16 %v571
  %v638 = vunpack.c.h.b16 %v571
  %v639 = vunpack.c.l.b16 %v572
  %v640 = vunpack.c.l.b16 %v573
  %v641 = vunpack.c.h.b16 %v573
  %v642 = vunpack.c.l.b16 %v574
  %v643 = vunpack.c.l.b16 %v575
  %v644 = vunpack.c.h.b16 %v575
  %v645 = vunpack.c.l.b16 %v576
  %v646 = vunpack.c.l.b16 %v577
  %v647 = vunpack.c.h.b16 %v577
  %v648 = vunpack.c.l.b16 %v578
  %v649 = vunpack.c.l.b16 %v579
  %v650 = vunpack.c.h.b16 %v579
  %v651 = vunpack.c.l.b16 %v580
  %v652 = vunpack.c.l.b16 %v581
  %v653 = vunpack.c.h.b16 %v581
  %v654 = vunpack.c.l.b16 %v582
  %v655 = vunpack.c.l.b16 %v583
  %v656 = vunpack.c.h.b16 %v583
  %v657 = vunpack.c.l.b16 %v584
  %v658 = vunpack.c.l.b16 %v585
  %v659 = vunpack.c.h.b16 %v585
  %v660 = vunpack.c.l.b16 %v586
  %v661 = vunpack.c.l.b16 %v587
  %v662 = vunpack.c.h.b16 %v587
  %v663 = vunpack.c.l.b16 %v588
  %v664 = vunpack.c.l.b16 %v589
  %v665 = vunpack.c.h.b16 %v589
  %v666 = vunpack.c.l.b16 %v590
  %v667 = vunpack.c.l.b16 %v591
  %v668 = vunpack.c.h.b16 %v591
  %v669 = vunpack.c.l.b16 %v592
  %v670 = vunpack.c.l.b16 %v593
  %v671 = vunpack.c.h.b16 %v593
  %v672 = vunpack.c.l.b16 %v594
  %v673 = vunpack.c.l.b16 %v595
  %v674 = vunpack.c.h.b16 %v595
  %v675 = vunpack.c.l.b16 %v596
  %v676 = vunpack.c.l.b16 %v597
  %v677 = vunpack.c.h.b16 %v597
  %v678 = vunpack.c.l.b16 %v598
  %v679 = vpack.c.b16 %v634, %v631
  %v680 = vpack.c.b16 %v635, %v632
  %v681 = vpack.c.b16 %v636, %v633
  %v682 = vpack.c.b16 %v640, %v637
  %v683 = vpack.c.b16 %v641, %v638
  %v684 = vpack.c.b16 %v642, %v639
  %v685 = vpack.c.b16 %v646, %v643
  %v686 = vpack.c.b16 %v647, %v644
  %v687 = vpack.c.b16 %v648, %v645
  %v688 = vpack.c.b16 %v652, %v649
  %v689 = vpack.c.b16 %v653, %v650
  %v690 = vpack.c.b16 %v654, %v651
  %v691 = vpack.c.b16 %v658, %v655
  %v692 = vpack.c.b16 %v659, %v656
  %v693 = vpack.c.b16 %v660, %v657
  %v694 = vpack.c.b16 %v664, %v661
  %v695 = vpack.c.b16 %v665, %v662
  %v696 = vpack.c.b16 %v666, %v663
  %v697 = vpack.c.b16 %v670, %v667
  %v698 = vpack.c.b16 %v671, %v668
  %v699 = vpack.c.b16 %v672, %v669
  %v700 = vpack.c.b16 %v676, %v673
  %v701 = vpack.c.b16 %v677, %v674
  %v702 = vpack.c.b16 %v678, %v675
  %727 = vmatprep.subr.bf16.mxu0 %v680
  %728 = vmatpush1.bf16.msra.mxu0 %v679
  %729 = vmatprep.subr.bf16.mxu0 %v683
  %730 = vmatpush1.bf16.msra.mxu0 %v682
  %731 = vmatprep.subr.bf16.mxu0 %v686
  %732 = vmatpush1.bf16.msra.mxu0 %v685
  %733 = vmatprep.subr.bf16.mxu0 %v689
  %734 = vmatpush1.bf16.msra.mxu0 %v688
  %735 = vmatprep.subr.bf16.mxu0 %v692
  %736 = vmatpush1.bf16.msra.mxu0 %v691
  %737 = vmatprep.subr.bf16.mxu0 %v695
  %738 = vmatpush1.bf16.msra.mxu0 %v694
  %739 = vmatprep.subr.bf16.mxu0 %v698
  %740 = vmatpush1.bf16.msra.mxu0 %v697
  %741 = vmatprep.subr.bf16.mxu0 %v701
  %742 = vmatpush1.bf16.msra.mxu0 %v700
  %743 = vmatprep.subr.bf16.mxu0 0
  %744 = vmatpush1.bf16.msra.mxu0 0
  %745 = vmatprep.subr.bf16.mxu0 0
  %746 = vmatpush1.bf16.msra.mxu0 0
  %747 = vmatprep.subr.bf16.mxu0 0
  %748 = vmatpush1.bf16.msra.mxu0 0
  %749 = vmatprep.subr.bf16.mxu0 0
  %750 = vmatpush1.bf16.msra.mxu0 0
  %751 = vmatprep.subr.bf16.mxu0 0
  %752 = vmatpush1.bf16.msra.mxu0 0
  %753 = vmatprep.subr.bf16.mxu0 0
  %754 = vmatpush1.bf16.msra.mxu0 0
  %755 = vmatprep.subr.bf16.mxu0 0
  %756 = vmatpush1.bf16.msra.mxu0 0
  %757 = vmatprep.subr.bf16.mxu0 0
  %758 = vmatpush1.bf16.msra.mxu0 0
  %759 = vmatprep.mubr.bf16.mxu0 0
  %760 = vmatmul.mubr.bf16.gmra.mrb[0].mxu0 %v82
  %v761 = vpop.f32.mrb[0].mxu0
  %v762 = vadd.f32 %v66, %v761
  %v763 = vpop.f32.mrb[0].mxu0
  %v764 = vadd.f32 %v70, %v763
  %v765 = vpop.f32.mrb[0].mxu0
  %v766 = vadd.f32 %v66, %v765
  %v767 = vpop.f32.mrb[0].mxu0
  %v768 = vadd.f32 %v70, %v767
  %769 = vdwg.mxu0
  %770 = vmatprep.subr.bf16.mxu0 0
  %771 = vmatpush1.bf16.msra.mxu0 %v681
  %772 = vmatprep.subr.bf16.mxu0 0
  %773 = vmatpush1.bf16.msra.mxu0 %v684
  %774 = vmatprep.subr.bf16.mxu0 0
  %775 = vmatpush1.bf16.msra.mxu0 %v687
  %776 = vmatprep.subr.bf16.mxu0 0
  %777 = vmatpush1.bf16.msra.mxu0 %v690
  %778 = vmatprep.subr.bf16.mxu0 0
  %779 = vmatpush1.bf16.msra.mxu0 %v693
  %780 = vmatprep.subr.bf16.mxu0 0
  %781 = vmatpush1.bf16.msra.mxu0 %v696
  %782 = vmatprep.subr.bf16.mxu0 0
  %783 = vmatpush1.bf16.msra.mxu0 %v699
  %784 = vmatprep.subr.bf16.mxu0 0
  %785 = vmatpush1.bf16.msra.mxu0 %v702
  %786 = vmatprep.subr.bf16.mxu0 0
  %787 = vmatpush1.bf16.msra.mxu0 0
  %788 = vmatprep.subr.bf16.mxu0 0
  %789 = vmatpush1.bf16.msra.mxu0 0
  %790 = vmatprep.subr.bf16.mxu0 0
  %791 = vmatpush1.bf16.msra.mxu0 0
  %792 = vmatprep.subr.bf16.mxu0 0
  %793 = vmatpush1.bf16.msra.mxu0 0
  %794 = vmatprep.subr.bf16.mxu0 0
  %795 = vmatpush1.bf16.msra.mxu0 0
  %796 = vmatprep.subr.bf16.mxu0 0
  %797 = vmatpush1.bf16.msra.mxu0 0
  %798 = vmatprep.subr.bf16.mxu0 0
  %799 = vmatpush1.bf16.msra.mxu0 0
  %800 = vmatprep.subr.bf16.mxu0 0
  %801 = vmatpush1.bf16.msra.mxu0 0
  %802 = vmatprep.mubr.bf16.mxu0 0
  %803 = vmatmul.mubr.bf16.gmra.mrb[0].mxu0 %v82
  %v804 = vpop.f32.mrb[0].mxu0
  %v805 = vadd.f32 %v74, %v804
  %v806 = vpop.f32.mrb[0].mxu0
  %v807 = vpop.f32.mrb[0].mxu0
  %v808 = vadd.f32 %v74, %v807
  %v809 = vpop.f32.mrb[0].mxu0
  %810 = vdwg.mxu0
  %v811 = vtanh.pop %v762
  %v812 = vtanh.pop %v764
  %v813 = vtanh.pop %v805
  %v814 = vtanh.pop %v766
  %v815 = vtanh.pop %v768
  %v816 = vtanh.pop %v808
  %v817 = vpack.c.bf16 %v814, %v811
  %v818 = vpack.c.bf16 %v815, %v812
  %v819 = vpack.c.bf16 %v816, %v813
  %820 = vst [vmem:[#allocation2 + $0x30] sm:$0xff] %v817
  %821 = vst [vmem:[#allocation2 + $0x38] sm:$0xff] %v818
  %822 = vst.msk [vmem:[#allocation2 + $0x40] sm:$0xff] %vm307, %v819
  %s823 = scalar_lea.vmem %s1, 576
  %v824 = vld [vmem:[%s823] sm:$0xff]
  %v825 = vld [vmem:[%s823 + $0x8] sm:$0xf]
  %v826 = vld [vmem:[%s823 + $0xc] sm:$0xff]
  %v827 = vld [vmem:[%s823 + $0x14] sm:$0xf]
  %v828 = vld [vmem:[%s823 + $0x18] sm:$0xff]
  %v829 = vld [vmem:[%s823 + $0x20] sm:$0xf]
  %v830 = vld [vmem:[%s823 + $0x24] sm:$0xff]
  %v831 = vld [vmem:[%s823 + $0x2c] sm:$0xf]
  %v832 = vld [vmem:[%s823 + $0x30] sm:$0xff]
  %v833 = vld [vmem:[%s823 + $0x38] sm:$0xf]
  %v834 = vld [vmem:[%s823 + $0x3c] sm:$0xff]
  %v835 = vld [vmem:[%s823 + $0x44] sm:$0xf]
  %v836 = vld [vmem:[%s823 + $0x48] sm:$0xff]
  %v837 = vld [vmem:[%s823 + $0x50] sm:$0xf]
  %v838 = vld [vmem:[%s823 + $0x54] sm:$0xff]
  %v839 = vld [vmem:[%s823 + $0x5c] sm:$0xf]
  %v840 = vld [vmem:[%s823 + $0x60] sm:$0xff]
  %v841 = vld [vmem:[%s823 + $0x68] sm:$0xf]
  %v842 = vld [vmem:[%s823 + $0x6c] sm:$0xff]
  %v843 = vld [vmem:[%s823 + $0x74] sm:$0xf]
  %v844 = vld [vmem:[%s823 + $0x78] sm:$0xff]
  %v845 = vld [vmem:[%s823 + $0x80] sm:$0xf]
  %v846 = vld [vmem:[%s823 + $0x84] sm:$0xff]
  %v847 = vld [vmem:[%s823 + $0x8c] sm:$0xf]
  %v848 = vld [vmem:[%s823 + $0x90] sm:$0xff]
  %v849 = vld [vmem:[%s823 + $0x98] sm:$0xf]
  %v850 = vld [vmem:[%s823 + $0x9c] sm:$0xff]
  %v851 = vld [vmem:[%s823 + $0xa4] sm:$0xf]
  %v852 = vld [vmem:[%s823 + $0xa8] sm:$0xff]
  %v853 = vld [vmem:[%s823 + $0xb0] sm:$0xf]
  %v854 = vld [vmem:[%s823 + $0xb4] sm:$0xff]
  %v855 = vld [vmem:[%s823 + $0xbc] sm:$0xf]
  %v888 = vunpack.c.l.b16 %v824
  %v889 = vunpack.c.h.b16 %v824
  %v890 = vunpack.c.l.b16 %v825
  %v891 = vunpack.c.l.b16 %v826
  %v892 = vunpack.c.h.b16 %v826
  %v893 = vunpack.c.l.b16 %v827
  %v894 = vunpack.c.l.b16 %v828
  %v895 = vunpack.c.h.b16 %v828
  %v896 = vunpack.c.l.b16 %v829
  %v897 = vunpack.c.l.b16 %v830
  %v898 = vunpack.c.h.b16 %v830
  %v899 = vunpack.c.l.b16 %v831
  %v900 = vunpack.c.l.b16 %v832
  %v901 = vunpack.c.h.b16 %v832
  %v902 = vunpack.c.l.b16 %v833
  %v903 = vunpack.c.l.b16 %v834
  %v904 = vunpack.c.h.b16 %v834
  %v905 = vunpack.c.l.b16 %v835
  %v906 = vunpack.c.l.b16 %v836
  %v907 = vunpack.c.h.b16 %v836
  %v908 = vunpack.c.l.b16 %v837
  %v909 = vunpack.c.l.b16 %v838
  %v910 = vunpack.c.h.b16 %v838
  %v911 = vunpack.c.l.b16 %v839
  %v912 = vunpack.c.l.b16 %v840
  %v913 = vunpack.c.h.b16 %v840
  %v914 = vunpack.c.l.b16 %v841
  %v915 = vunpack.c.l.b16 %v842
  %v916 = vunpack.c.h.b16 %v842
  %v917 = vunpack.c.l.b16 %v843
  %v918 = vunpack.c.l.b16 %v844
  %v919 = vunpack.c.h.b16 %v844
  %v920 = vunpack.c.l.b16 %v845
  %v921 = vunpack.c.l.b16 %v846
  %v922 = vunpack.c.h.b16 %v846
  %v923 = vunpack.c.l.b16 %v847
  %v924 = vunpack.c.l.b16 %v848
  %v925 = vunpack.c.h.b16 %v848
  %v926 = vunpack.c.l.b16 %v849
  %v927 = vunpack.c.l.b16 %v850
  %v928 = vunpack.c.h.b16 %v850
  %v929 = vunpack.c.l.b16 %v851
  %v930 = vunpack.c.l.b16 %v852
  %v931 = vunpack.c.h.b16 %v852
  %v932 = vunpack.c.l.b16 %v853
  %v933 = vunpack.c.l.b16 %v854
  %v934 = vunpack.c.h.b16 %v854
  %v935 = vunpack.c.l.b16 %v855
  %v936 = vpack.c.b16 %v891, %v888
  %v937 = vpack.c.b16 %v892, %v889
  %v938 = vpack.c.b16 %v893, %v890
  %v939 = vpack.c.b16 %v897, %v894
  %v940 = vpack.c.b16 %v898, %v895
  %v941 = vpack.c.b16 %v899, %v896
  %v942 = vpack.c.b16 %v903, %v900
  %v943 = vpack.c.b16 %v904, %v901
  %v944 = vpack.c.b16 %v905, %v902
  %v945 = vpack.c.b16 %v909, %v906
  %v946 = vpack.c.b16 %v910, %v907
  %v947 = vpack.c.b16 %v911, %v908
  %v948 = vpack.c.b16 %v915, %v912
  %v949 = vpack.c.b16 %v916, %v913
  %v950 = vpack.c.b16 %v917, %v914
  %v951 = vpack.c.b16 %v921, %v918
  %v952 = vpack.c.b16 %v922, %v919
  %v953 = vpack.c.b16 %v923, %v920
  %v954 = vpack.c.b16 %v927, %v924
  %v955 = vpack.c.b16 %v928, %v925
  %v956 = vpack.c.b16 %v929, %v926
  %v957 = vpack.c.b16 %v933, %v930
  %v958 = vpack.c.b16 %v934, %v931
  %v959 = vpack.c.b16 %v935, %v932
  %984 = vmatprep.subr.bf16.mxu0 %v937
  %985 = vmatpush1.bf16.msra.mxu0 %v936
  %986 = vmatprep.subr.bf16.mxu0 %v940
  %987 = vmatpush1.bf16.msra.mxu0 %v939
  %988 = vmatprep.subr.bf16.mxu0 %v943
  %989 = vmatpush1.bf16.msra.mxu0 %v942
  %990 = vmatprep.subr.bf16.mxu0 %v946
  %991 = vmatpush1.bf16.msra.mxu0 %v945
  %992 = vmatprep.subr.bf16.mxu0 %v949
  %993 = vmatpush1.bf16.msra.mxu0 %v948
  %994 = vmatprep.subr.bf16.mxu0 %v952
  %995 = vmatpush1.bf16.msra.mxu0 %v951
  %996 = vmatprep.subr.bf16.mxu0 %v955
  %997 = vmatpush1.bf16.msra.mxu0 %v954
  %998 = vmatprep.subr.bf16.mxu0 %v958
  %999 = vmatpush1.bf16.msra.mxu0 %v957
  %1000 = vmatprep.subr.bf16.mxu0 0
  %1001 = vmatpush1.bf16.msra.mxu0 0
  %1002 = vmatprep.subr.bf16.mxu0 0
  %1003 = vmatpush1.bf16.msra.mxu0 0
  %1004 = vmatprep.subr.bf16.mxu0 0
  %1005 = vmatpush1.bf16.msra.mxu0 0
  %1006 = vmatprep.subr.bf16.mxu0 0
  %1007 = vmatpush1.bf16.msra.mxu0 0
  %1008 = vmatprep.subr.bf16.mxu0 0
  %1009 = vmatpush1.bf16.msra.mxu0 0
  %1010 = vmatprep.subr.bf16.mxu0 0
  %1011 = vmatpush1.bf16.msra.mxu0 0
  %1012 = vmatprep.subr.bf16.mxu0 0
  %1013 = vmatpush1.bf16.msra.mxu0 0
  %1014 = vmatprep.subr.bf16.mxu0 0
  %1015 = vmatpush1.bf16.msra.mxu0 0
  %1016 = vmatprep.mubr.bf16.mxu0 0
  %1017 = vmatmul.mubr.bf16.gmra.mrb[0].mxu0 %v82
  %v1018 = vpop.f32.mrb[0].mxu0
  %v1019 = vadd.f32 %v66, %v1018
  %v1020 = vpop.f32.mrb[0].mxu0
  %v1021 = vadd.f32 %v70, %v1020
  %v1022 = vpop.f32.mrb[0].mxu0
  %v1023 = vadd.f32 %v66, %v1022
  %v1024 = vpop.f32.mrb[0].mxu0
  %v1025 = vadd.f32 %v70, %v1024
  %1026 = vdwg.mxu0
  %1027 = vmatprep.subr.bf16.mxu0 0
  %1028 = vmatpush1.bf16.msra.mxu0 %v938
  %1029 = vmatprep.subr.bf16.mxu0 0
  %1030 = vmatpush1.bf16.msra.mxu0 %v941
  %1031 = vmatprep.subr.bf16.mxu0 0
  %1032 = vmatpush1.bf16.msra.mxu0 %v944
  %1033 = vmatprep.subr.bf16.mxu0 0
  %1034 = vmatpush1.bf16.msra.mxu0 %v947
  %1035 = vmatprep.subr.bf16.mxu0 0
  %1036 = vmatpush1.bf16.msra.mxu0 %v950
  %1037 = vmatprep.subr.bf16.mxu0 0
  %1038 = vmatpush1.bf16.msra.mxu0 %v953
  %1039 = vmatprep.subr.bf16.mxu0 0
  %1040 = vmatpush1.bf16.msra.mxu0 %v956
  %1041 = vmatprep.subr.bf16.mxu0 0
  %1042 = vmatpush1.bf16.msra.mxu0 %v959
  %1043 = vmatprep.subr.bf16.mxu0 0
  %1044 = vmatpush1.bf16.msra.mxu0 0
  %1045 = vmatprep.subr.bf16.mxu0 0
  %1046 = vmatpush1.bf16.msra.mxu0 0
  %1047 = vmatprep.subr.bf16.mxu0 0
  %1048 = vmatpush1.bf16.msra.mxu0 0
  %1049 = vmatprep.subr.bf16.mxu0 0
  %1050 = vmatpush1.bf16.msra.mxu0 0
  %1051 = vmatprep.subr.bf16.mxu0 0
  %1052 = vmatpush1.bf16.msra.mxu0 0
  %1053 = vmatprep.subr.bf16.mxu0 0
  %1054 = vmatpush1.bf16.msra.mxu0 0
  %1055 = vmatprep.subr.bf16.mxu0 0
  %1056 = vmatpush1.bf16.msra.mxu0 0
  %1057 = vmatprep.subr.bf16.mxu0 0
  %1058 = vmatpush1.bf16.msra.mxu0 0
  %1059 = vmatprep.mubr.bf16.mxu0 0
  %1060 = vmatmul.mubr.bf16.gmra.mrb[0].mxu0 %v82
  %v1061 = vpop.f32.mrb[0].mxu0
  %v1062 = vadd.f32 %v74, %v1061
  %v1063 = vpop.f32.mrb[0].mxu0
  %v1064 = vpop.f32.mrb[0].mxu0
  %v1065 = vadd.f32 %v74, %v1064
  %v1066 = vpop.f32.mrb[0].mxu0
  %1067 = vdwg.mxu0
  %v1068 = vtanh.pop %v1019
  %v1069 = vtanh.pop %v1021
  %v1070 = vtanh.pop %v1062
  %v1071 = vtanh.pop %v1023
  %v1072 = vtanh.pop %v1025
  %v1073 = vtanh.pop %v1065
  %v1074 = vpack.c.bf16 %v1071, %v1068
  %v1075 = vpack.c.bf16 %v1072, %v1069
  %v1076 = vpack.c.bf16 %v1073, %v1070
  %1077 = vst [vmem:[#allocation2 + $0x48] sm:$0xff] %v1074
  %1078 = vst [vmem:[#allocation2 + $0x50] sm:$0xff] %v1075
  %1079 = vst.msk [vmem:[#allocation2 + $0x58] sm:$0xff] %vm307, %v1076
  %s1080 = scalar_lea.vmem %s1, 768
  %v1081 = vld [vmem:[%s1080] sm:$0xff]
  %v1082 = vld [vmem:[%s1080 + $0x8] sm:$0xf]
  %v1083 = vld [vmem:[%s1080 + $0xc] sm:$0xff]
  %v1084 = vld [vmem:[%s1080 + $0x14] sm:$0xf]
  %v1085 = vld [vmem:[%s1080 + $0x18] sm:$0xff]
  %v1086 = vld [vmem:[%s1080 + $0x20] sm:$0xf]
  %v1087 = vld [vmem:[%s1080 + $0x24] sm:$0xff]
  %v1088 = vld [vmem:[%s1080 + $0x2c] sm:$0xf]
  %v1089 = vld [vmem:[%s1080 + $0x30] sm:$0xff]
  %v1090 = vld [vmem:[%s1080 + $0x38] sm:$0xf]
  %v1091 = vld [vmem:[%s1080 + $0x3c] sm:$0xff]
  %v1092 = vld [vmem:[%s1080 + $0x44] sm:$0xf]
  %v1093 = vld [vmem:[%s1080 + $0x48] sm:$0xff]
  %v1094 = vld [vmem:[%s1080 + $0x50] sm:$0xf]
  %v1095 = vld [vmem:[%s1080 + $0x54] sm:$0xff]
  %v1096 = vld [vmem:[%s1080 + $0x5c] sm:$0xf]
  %v1097 = vld [vmem:[%s1080 + $0x60] sm:$0xff]
  %v1098 = vld [vmem:[%s1080 + $0x68] sm:$0xf]
  %v1099 = vld [vmem:[%s1080 + $0x6c] sm:$0xff]
  %v1100 = vld [vmem:[%s1080 + $0x74] sm:$0xf]
  %v1101 = vld [vmem:[%s1080 + $0x78] sm:$0xff]
  %v1102 = vld [vmem:[%s1080 + $0x80] sm:$0xf]
  %v1103 = vld [vmem:[%s1080 + $0x84] sm:$0xff]
  %v1104 = vld [vmem:[%s1080 + $0x8c] sm:$0xf]
  %v1105 = vld [vmem:[%s1080 + $0x90] sm:$0xff]
  %v1106 = vld [vmem:[%s1080 + $0x98] sm:$0xf]
  %v1107 = vld [vmem:[%s1080 + $0x9c] sm:$0xff]
  %v1108 = vld [vmem:[%s1080 + $0xa4] sm:$0xf]
  %v1109 = vld [vmem:[%s1080 + $0xa8] sm:$0xff]
  %v1110 = vld [vmem:[%s1080 + $0xb0] sm:$0xf]
  %v1111 = vld [vmem:[%s1080 + $0xb4] sm:$0xff]
  %v1112 = vld [vmem:[%s1080 + $0xbc] sm:$0xf]
  %v1145 = vunpack.c.l.b16 %v1081
  %v1146 = vunpack.c.h.b16 %v1081
  %v1147 = vunpack.c.l.b16 %v1082
  %v1148 = vunpack.c.l.b16 %v1083
  %v1149 = vunpack.c.h.b16 %v1083
  %v1150 = vunpack.c.l.b16 %v1084
  %v1151 = vunpack.c.l.b16 %v1085
  %v1152 = vunpack.c.h.b16 %v1085
  %v1153 = vunpack.c.l.b16 %v1086
  %v1154 = vunpack.c.l.b16 %v1087
  %v1155 = vunpack.c.h.b16 %v1087
  %v1156 = vunpack.c.l.b16 %v1088
  %v1157 = vunpack.c.l.b16 %v1089
  %v1158 = vunpack.c.h.b16 %v1089
  %v1159 = vunpack.c.l.b16 %v1090
  %v1160 = vunpack.c.l.b16 %v1091
  %v1161 = vunpack.c.h.b16 %v1091
  %v1162 = vunpack.c.l.b16 %v1092
  %v1163 = vunpack.c.l.b16 %v1093
  %v1164 = vunpack.c.h.b16 %v1093
  %v1165 = vunpack.c.l.b16 %v1094
  %v1166 = vunpack.c.l.b16 %v1095
  %v1167 = vunpack.c.h.b16 %v1095
  %v1168 = vunpack.c.l.b16 %v1096
  %v1169 = vunpack.c.l.b16 %v1097
  %v1170 = vunpack.c.h.b16 %v1097
  %v1171 = vunpack.c.l.b16 %v1098
  %v1172 = vunpack.c.l.b16 %v1099
  %v1173 = vunpack.c.h.b16 %v1099
  %v1174 = vunpack.c.l.b16 %v1100
  %v1175 = vunpack.c.l.b16 %v1101
  %v1176 = vunpack.c.h.b16 %v1101
  %v1177 = vunpack.c.l.b16 %v1102
  %v1178 = vunpack.c.l.b16 %v1103
  %v1179 = vunpack.c.h.b16 %v1103
  %v1180 = vunpack.c.l.b16 %v1104
  %v1181 = vunpack.c.l.b16 %v1105
  %v1182 = vunpack.c.h.b16 %v1105
  %v1183 = vunpack.c.l.b16 %v1106
  %v1184 = vunpack.c.l.b16 %v1107
  %v1185 = vunpack.c.h.b16 %v1107
  %v1186 = vunpack.c.l.b16 %v1108
  %v1187 = vunpack.c.l.b16 %v1109
  %v1188 = vunpack.c.h.b16 %v1109
  %v1189 = vunpack.c.l.b16 %v1110
  %v1190 = vunpack.c.l.b16 %v1111
  %v1191 = vunpack.c.h.b16 %v1111
  %v1192 = vunpack.c.l.b16 %v1112
  %v1193 = vpack.c.b16 %v1148, %v1145
  %v1194 = vpack.c.b16 %v1149, %v1146
  %v1195 = vpack.c.b16 %v1150, %v1147
  %v1196 = vpack.c.b16 %v1154, %v1151
  %v1197 = vpack.c.b16 %v1155, %v1152
  %v1198 = vpack.c.b16 %v1156, %v1153
  %v1199 = vpack.c.b16 %v1160, %v1157
  %v1200 = vpack.c.b16 %v1161, %v1158
  %v1201 = vpack.c.b16 %v1162, %v1159
  %v1202 = vpack.c.b16 %v1166, %v1163
  %v1203 = vpack.c.b16 %v1167, %v1164
  %v1204 = vpack.c.b16 %v1168, %v1165
  %v1205 = vpack.c.b16 %v1172, %v1169
  %v1206 = vpack.c.b16 %v1173, %v1170
  %v1207 = vpack.c.b16 %v1174, %v1171
  %v1208 = vpack.c.b16 %v1178, %v1175
  %v1209 = vpack.c.b16 %v1179, %v1176
  %v1210 = vpack.c.b16 %v1180, %v1177
  %v1211 = vpack.c.b16 %v1184, %v1181
  %v1212 = vpack.c.b16 %v1185, %v1182
  %v1213 = vpack.c.b16 %v1186, %v1183
  %v1214 = vpack.c.b16 %v1190, %v1187
  %v1215 = vpack.c.b16 %v1191, %v1188
  %v1216 = vpack.c.b16 %v1192, %v1189
  %1241 = vmatprep.subr.bf16.mxu0 %v1194
  %1242 = vmatpush1.bf16.msra.mxu0 %v1193
  %1243 = vmatprep.subr.bf16.mxu0 %v1197
  %1244 = vmatpush1.bf16.msra.mxu0 %v1196
  %1245 = vmatprep.subr.bf16.mxu0 %v1200
  %1246 = vmatpush1.bf16.msra.mxu0 %v1199
  %1247 = vmatprep.subr.bf16.mxu0 %v1203
  %1248 = vmatpush1.bf16.msra.mxu0 %v1202
  %1249 = vmatprep.subr.bf16.mxu0 %v1206
  %1250 = vmatpush1.bf16.msra.mxu0 %v1205
  %1251 = vmatprep.subr.bf16.mxu0 %v1209
  %1252 = vmatpush1.bf16.msra.mxu0 %v1208
  %1253 = vmatprep.subr.bf16.mxu0 %v1212
  %1254 = vmatpush1.bf16.msra.mxu0 %v1211
  %1255 = vmatprep.subr.bf16.mxu0 %v1215
  %1256 = vmatpush1.bf16.msra.mxu0 %v1214
  %1257 = vmatprep.subr.bf16.mxu0 0
  %1258 = vmatpush1.bf16.msra.mxu0 0
  %1259 = vmatprep.subr.bf16.mxu0 0
  %1260 = vmatpush1.bf16.msra.mxu0 0
  %1261 = vmatprep.subr.bf16.mxu0 0
  %1262 = vmatpush1.bf16.msra.mxu0 0
  %1263 = vmatprep.subr.bf16.mxu0 0
  %1264 = vmatpush1.bf16.msra.mxu0 0
  %1265 = vmatprep.subr.bf16.mxu0 0
  %1266 = vmatpush1.bf16.msra.mxu0 0
  %1267 = vmatprep.subr.bf16.mxu0 0
  %1268 = vmatpush1.bf16.msra.mxu0 0
  %1269 = vmatprep.subr.bf16.mxu0 0
  %1270 = vmatpush1.bf16.msra.mxu0 0
  %1271 = vmatprep.subr.bf16.mxu0 0
  %1272 = vmatpush1.bf16.msra.mxu0 0
  %1273 = vmatprep.mubr.bf16.mxu0 0
  %1274 = vmatmul.mubr.bf16.gmra.mrb[0].mxu0 %v82
  %v1275 = vpop.f32.mrb[0].mxu0
  %v1276 = vadd.f32 %v66, %v1275
  %v1277 = vpop.f32.mrb[0].mxu0
  %v1278 = vadd.f32 %v70, %v1277
  %v1279 = vpop.f32.mrb[0].mxu0
  %v1280 = vadd.f32 %v66, %v1279
  %v1281 = vpop.f32.mrb[0].mxu0
  %v1282 = vadd.f32 %v70, %v1281
  %1283 = vdwg.mxu0
  %1284 = vmatprep.subr.bf16.mxu0 0
  %1285 = vmatpush1.bf16.msra.mxu0 %v1195
  %1286 = vmatprep.subr.bf16.mxu0 0
  %1287 = vmatpush1.bf16.msra.mxu0 %v1198
  %1288 = vmatprep.subr.bf16.mxu0 0
  %1289 = vmatpush1.bf16.msra.mxu0 %v1201
  %1290 = vmatprep.subr.bf16.mxu0 0
  %1291 = vmatpush1.bf16.msra.mxu0 %v1204
  %1292 = vmatprep.subr.bf16.mxu0 0
  %1293 = vmatpush1.bf16.msra.mxu0 %v1207
  %1294 = vmatprep.subr.bf16.mxu0 0
  %1295 = vmatpush1.bf16.msra.mxu0 %v1210
  %1296 = vmatprep.subr.bf16.mxu0 0
  %1297 = vmatpush1.bf16.msra.mxu0 %v1213
  %1298 = vmatprep.subr.bf16.mxu0 0
  %1299 = vmatpush1.bf16.msra.mxu0 %v1216
  %1300 = vmatprep.subr.bf16.mxu0 0
  %1301 = vmatpush1.bf16.msra.mxu0 0
  %1302 = vmatprep.subr.bf16.mxu0 0
  %1303 = vmatpush1.bf16.msra.mxu0 0
  %1304 = vmatprep.subr.bf16.mxu0 0
  %1305 = vmatpush1.bf16.msra.mxu0 0
  %1306 = vmatprep.subr.bf16.mxu0 0
  %1307 = vmatpush1.bf16.msra.mxu0 0
  %1308 = vmatprep.subr.bf16.mxu0 0
  %1309 = vmatpush1.bf16.msra.mxu0 0
  %1310 = vmatprep.subr.bf16.mxu0 0
  %1311 = vmatpush1.bf16.msra.mxu0 0
  %1312 = vmatprep.subr.bf16.mxu0 0
  %1313 = vmatpush1.bf16.msra.mxu0 0
  %1314 = vmatprep.subr.bf16.mxu0 0
  %1315 = vmatpush1.bf16.msra.mxu0 0
  %1316 = vmatprep.mubr.bf16.mxu0 0
  %1317 = vmatmul.mubr.bf16.gmra.mrb[0].mxu0 %v82
  %v1318 = vpop.f32.mrb[0].mxu0
  %v1319 = vadd.f32 %v74, %v1318
  %v1320 = vpop.f32.mrb[0].mxu0
  %v1321 = vpop.f32.mrb[0].mxu0
  %v1322 = vadd.f32 %v74, %v1321
  %v1323 = vpop.f32.mrb[0].mxu0
  %1324 = vdwg.mxu0
  %v1325 = vtanh.pop %v1276
  %v1326 = vtanh.pop %v1278
  %v1327 = vtanh.pop %v1319
  %v1328 = vtanh.pop %v1280
  %v1329 = vtanh.pop %v1282
  %v1330 = vtanh.pop %v1322
  %v1331 = vpack.c.bf16 %v1328, %v1325
  %v1332 = vpack.c.bf16 %v1329, %v1326
  %v1333 = vpack.c.bf16 %v1330, %v1327
  %1334 = vst [vmem:[#allocation2 + $0x60] sm:$0xff] %v1331
  %1335 = vst [vmem:[#allocation2 + $0x68] sm:$0xff] %v1332
  %1336 = vst.msk [vmem:[#allocation2 + $0x70] sm:$0xff] %vm307, %v1333
  %v1337 = vld [vmem:[#allocation2] sm:$0xff]
  %v1338 = vld [vmem:[#allocation2 + $0x8] sm:$0xff]
  %v1339 = vld [vmem:[#allocation2 + $0x10] sm:$0xff]
  %v1340 = vld [vmem:[#allocation2 + $0x18] sm:$0xff]
  %v1341 = vld [vmem:[#allocation2 + $0x20] sm:$0xff]
  %v1342 = vld [vmem:[#allocation2 + $0x28] sm:$0xff]
  %v1343 = vld [vmem:[#allocation2 + $0x30] sm:$0xff]
  %v1344 = vld [vmem:[#allocation2 + $0x38] sm:$0xff]
  %v1345 = vld [vmem:[#allocation2 + $0x40] sm:$0xff]
  %v1346 = vld [vmem:[#allocation2 + $0x48] sm:$0xff]
  %v1347 = vld [vmem:[#allocation2 + $0x50] sm:$0xff]
  %v1348 = vld [vmem:[#allocation2 + $0x58] sm:$0xff]
  %v1349 = vld [vmem:[#allocation2 + $0x60] sm:$0xff]
  %v1350 = vld [vmem:[#allocation2 + $0x68] sm:$0xff]
  %v1351 = vld [vmem:[#allocation2 + $0x70] sm:$0xff]
  %v1352 = vld [vmem:[%s4] sm:$0xf]
  %v1354 = vlaneseq
  %v1355 = vshrl.u32 %v1354, 7
  %v1356 = vsub.s32 0, %v1355
  %v1357 = vrot.slane %v1352, %v1356
  %v1358 = vlaneseq
  %v1359 = vshrl.u32 %v1358, 7
  %v1360 = vsub.s32 1, %v1359
  %v1361 = vrot.slane %v1352, %v1360
  %v1362 = vlaneseq
  %v1363 = vshrl.u32 %v1362, 7
  %v1364 = vsub.s32 2, %v1363
  %v1365 = vrot.slane %v1352, %v1364
  %v1366 = vlaneseq
  %v1367 = vshrl.u32 %v1366, 7
  %v1368 = vsub.s32 3, %v1367
  %v1369 = vrot.slane %v1352, %v1368
  %1374 = vst [vmem:[#allocation3] sm:$0xff] %v1357
  %1375 = vst [vmem:[#allocation3 + $0x8] sm:$0xff] %v1361
  %1376 = vst [vmem:[#allocation3 + $0x10] sm:$0xff] %v1365
  %vm1377 = vcmask 261120
  %1378 = vst.msk [vmem:[#allocation3 + $0x18] sm:$0xff] %vm1377, %v1369
  %1379 = vst [vmem:[#allocation3 + $0x20] sm:$0xff] %v1357
  %1380 = vst [vmem:[#allocation3 + $0x28] sm:$0xff] %v1361
  %1381 = vst [vmem:[#allocation3 + $0x30] sm:$0xff] %v1365
  %1382 = vst.msk [vmem:[#allocation3 + $0x38] sm:$0xff] %vm1377, %v1369
  %1383 = vst [vmem:[#allocation3 + $0x40] sm:$0xff] %v1357
  %1384 = vst [vmem:[#allocation3 + $0x48] sm:$0xff] %v1361
  %1385 = vst [vmem:[#allocation3 + $0x50] sm:$0xff] %v1365
  %1386 = vst.msk [vmem:[#allocation3 + $0x58] sm:$0xff] %vm1377, %v1369
  %1387 = vst [vmem:[#allocation3 + $0x60] sm:$0xff] %v1357
  %1388 = vst [vmem:[#allocation3 + $0x68] sm:$0xff] %v1361
  %1389 = vst [vmem:[#allocation3 + $0x70] sm:$0xff] %v1365
  %1390 = vst.msk [vmem:[#allocation3 + $0x78] sm:$0xff] %vm1377, %v1369
  %1391 = vst [vmem:[#allocation3 + $0x80] sm:$0xff] %v1357
  %1392 = vst [vmem:[#allocation3 + $0x88] sm:$0xff] %v1361
  %1393 = vst [vmem:[#allocation3 + $0x90] sm:$0xff] %v1365
  %1394 = vst.msk [vmem:[#allocation3 + $0x98] sm:$0xff] %vm1377, %v1369
  %1395 = vst [vmem:[#allocation3 + $0xa0] sm:$0xff] %v1357
  %1396 = vst [vmem:[#allocation3 + $0xa8] sm:$0xff] %v1361
  %1397 = vst [vmem:[#allocation3 + $0xb0] sm:$0xff] %v1365
  %1398 = vst.msk [vmem:[#allocation3 + $0xb8] sm:$0xff] %vm1377, %v1369
  %1399 = vst [vmem:[#allocation3 + $0xc0] sm:$0xff] %v1357
  %1400 = vst [vmem:[#allocation3 + $0xc8] sm:$0xff] %v1361
  %1401 = vst [vmem:[#allocation3 + $0xd0] sm:$0xff] %v1365
  %1402 = vst.msk [vmem:[#allocation3 + $0xd8] sm:$0xff] %vm1377, %v1369
  %1403 = vst [vmem:[#allocation3 + $0xe0] sm:$0xff] %v1357
  %1404 = vst [vmem:[#allocation3 + $0xe8] sm:$0xff] %v1361
  %1405 = vst [vmem:[#allocation3 + $0xf0] sm:$0xff] %v1365
  %1406 = vst.msk [vmem:[#allocation3 + $0xf8] sm:$0xff] %vm1377, %v1369
  %1407 = vst [vmem:[#allocation3 + $0x100] sm:$0xff] %v1357
  %1408 = vst [vmem:[#allocation3 + $0x108] sm:$0xff] %v1361
  %1409 = vst [vmem:[#allocation3 + $0x110] sm:$0xff] %v1365
  %1410 = vst.msk [vmem:[#allocation3 + $0x118] sm:$0xff] %vm1377, %v1369
  %1411 = vst [vmem:[#allocation3 + $0x120] sm:$0xff] %v1357
  %1412 = vst [vmem:[#allocation3 + $0x128] sm:$0xff] %v1361
  %1413 = vst [vmem:[#allocation3 + $0x130] sm:$0xff] %v1365
  %1414 = vst.msk [vmem:[#allocation3 + $0x138] sm:$0xff] %vm1377, %v1369
  %1415 = vst [vmem:[#allocation3 + $0x140] sm:$0xff] %v1357
  %1416 = vst [vmem:[#allocation3 + $0x148] sm:$0xff] %v1361
  %1417 = vst [vmem:[#allocation3 + $0x150] sm:$0xff] %v1365
  %1418 = vst.msk [vmem:[#allocation3 + $0x158] sm:$0xff] %vm1377, %v1369
  %1419 = vst [vmem:[#allocation3 + $0x160] sm:$0xff] %v1357
  %1420 = vst [vmem:[#allocation3 + $0x168] sm:$0xff] %v1361
  %1421 = vst [vmem:[#allocation3 + $0x170] sm:$0xff] %v1365
  %1422 = vst.msk [vmem:[#allocation3 + $0x178] sm:$0xff] %vm1377, %v1369
  %1423 = vst [vmem:[#allocation3 + $0x180] sm:$0xff] %v1357
  %1424 = vst [vmem:[#allocation3 + $0x188] sm:$0xff] %v1361
  %1425 = vst [vmem:[#allocation3 + $0x190] sm:$0xff] %v1365
  %1426 = vst.msk [vmem:[#allocation3 + $0x198] sm:$0xff] %vm1377, %v1369
  %1427 = vst [vmem:[#allocation3 + $0x1a0] sm:$0xff] %v1357
  %1428 = vst [vmem:[#allocation3 + $0x1a8] sm:$0xff] %v1361
  %1429 = vst [vmem:[#allocation3 + $0x1b0] sm:$0xff] %v1365
  %1430 = vst.msk [vmem:[#allocation3 + $0x1b8] sm:$0xff] %vm1377, %v1369
  %1431 = vst [vmem:[#allocation4] sm:$0xff] %v1357
  %1432 = vst [vmem:[#allocation4 + $0x8] sm:$0xff] %v1361
  %1433 = vst [vmem:[#allocation4 + $0x10] sm:$0xff] %v1365
  %1434 = vst.msk [vmem:[#allocation4 + $0x18] sm:$0xff] %vm1377, %v1369
  %1435 = vst [vmem:[#allocation4 + $0x20] sm:$0xff] %v1357
  %1436 = vst [vmem:[#allocation4 + $0x28] sm:$0xff] %v1361
  %1437 = vst [vmem:[#allocation4 + $0x30] sm:$0xff] %v1365
  %1438 = vst.msk [vmem:[#allocation4 + $0x38] sm:$0xff] %vm1377, %v1369
  %1439 = vst [vmem:[#allocation4 + $0x40] sm:$0xff] %v1357
  %1440 = vst [vmem:[#allocation4 + $0x48] sm:$0xff] %v1361
  %1441 = vst [vmem:[#allocation4 + $0x50] sm:$0xff] %v1365
  %1442 = vst.msk [vmem:[#allocation4 + $0x58] sm:$0xff] %vm1377, %v1369
  %1443 = vst [vmem:[#allocation4 + $0x60] sm:$0xff] %v1357
  %1444 = vst [vmem:[#allocation4 + $0x68] sm:$0xff] %v1361
  %1445 = vst [vmem:[#allocation4 + $0x70] sm:$0xff] %v1365
  %1446 = vst.msk [vmem:[#allocation4 + $0x78] sm:$0xff] %vm1377, %v1369
  %1447 = vst [vmem:[#allocation4 + $0x80] sm:$0xff] %v1357
  %1448 = vst [vmem:[#allocation4 + $0x88] sm:$0xff] %v1361
  %1449 = vst [vmem:[#allocation4 + $0x90] sm:$0xff] %v1365
  %1450 = vst.msk [vmem:[#allocation4 + $0x98] sm:$0xff] %vm1377, %v1369
  %1451 = vst [vmem:[#allocation4 + $0xa0] sm:$0xff] %v1357
  %1452 = vst [vmem:[#allocation4 + $0xa8] sm:$0xff] %v1361
  %1453 = vst [vmem:[#allocation4 + $0xb0] sm:$0xff] %v1365
  %1454 = vst.msk [vmem:[#allocation4 + $0xb8] sm:$0xff] %vm1377, %v1369
  %1455 = vst [vmem:[#allocation4 + $0xc0] sm:$0xff] %v1357
  %1456 = vst [vmem:[#allocation4 + $0xc8] sm:$0xff] %v1361
  %1457 = vst [vmem:[#allocation4 + $0xd0] sm:$0xff] %v1365
  %1458 = vst.msk [vmem:[#allocation4 + $0xd8] sm:$0xff] %vm1377, %v1369
  %1459 = vst [vmem:[#allocation4 + $0xe0] sm:$0xff] %v1357
  %1460 = vst [vmem:[#allocation4 + $0xe8] sm:$0xff] %v1361
  %1461 = vst [vmem:[#allocation4 + $0xf0] sm:$0xff] %v1365
  %1462 = vst.msk [vmem:[#allocation4 + $0xf8] sm:$0xff] %vm1377, %v1369
  %1463 = vst [vmem:[#allocation4 + $0x100] sm:$0xff] %v1357
  %1464 = vst [vmem:[#allocation4 + $0x108] sm:$0xff] %v1361
  %1465 = vst [vmem:[#allocation4 + $0x110] sm:$0xff] %v1365
  %1466 = vst.msk [vmem:[#allocation4 + $0x118] sm:$0xff] %vm1377, %v1369
  %1467 = vst [vmem:[#allocation4 + $0x120] sm:$0xff] %v1357
  %1468 = vst [vmem:[#allocation4 + $0x128] sm:$0xff] %v1361
  %1469 = vst [vmem:[#allocation4 + $0x130] sm:$0xff] %v1365
  %1470 = vst.msk [vmem:[#allocation4 + $0x138] sm:$0xff] %vm1377, %v1369
  %1471 = vst [vmem:[#allocation4 + $0x140] sm:$0xff] %v1357
  %1472 = vst [vmem:[#allocation4 + $0x148] sm:$0xff] %v1361
  %1473 = vst [vmem:[#allocation4 + $0x150] sm:$0xff] %v1365
  %1474 = vst.msk [vmem:[#allocation4 + $0x158] sm:$0xff] %vm1377, %v1369
  %1475 = vst [vmem:[#allocation4 + $0x160] sm:$0xff] %v1357
  %1476 = vst [vmem:[#allocation4 + $0x168] sm:$0xff] %v1361
  %1477 = vst [vmem:[#allocation4 + $0x170] sm:$0xff] %v1365
  %1478 = vst.msk [vmem:[#allocation4 + $0x178] sm:$0xff] %vm1377, %v1369
  %v1479 = vld [vmem:[%s3] sm:$0xff]
  %v1480 = vld [vmem:[%s3 + $0x8] sm:$0xff]
  %v1481 = vld [vmem:[%s3 + $0x10] sm:$0xff]
  %v1482 = vld [vmem:[%s3 + $0x18] sm:$0xff]
  %v1483 = vld [vmem:[%s3 + $0x20] sm:$0xff]
  %v1484 = vld [vmem:[%s3 + $0x28] sm:$0xff]
  %v1485 = vld [vmem:[%s3 + $0x30] sm:$0xff]
  %v1486 = vld [vmem:[%s3 + $0x38] sm:$0xff]
  %v1487 = vld [vmem:[%s3 + $0x40] sm:$0xff]
  %v1488 = vld [vmem:[%s3 + $0x48] sm:$0xff]
  %v1489 = vld [vmem:[%s3 + $0x50] sm:$0xff]
  %v1490 = vld [vmem:[%s3 + $0x58] sm:$0xff]
  %v1491 = vld [vmem:[%s3 + $0x60] sm:$0xff]
  %v1492 = vld [vmem:[%s3 + $0x68] sm:$0xff]
  %v1493 = vld [vmem:[%s3 + $0x70] sm:$0xff]
  %v1494 = vld [vmem:[%s3 + $0x78] sm:$0xff]
  %v1495 = vld [vmem:[%s3 + $0x80] sm:$0xff]
  %v1496 = vld [vmem:[%s3 + $0x88] sm:$0xff]
  %v1497 = vld [vmem:[%s3 + $0x90] sm:$0xff]
  %v1498 = vld [vmem:[%s3 + $0x98] sm:$0xff]
  %v1499 = vld [vmem:[%s3 + $0xa0] sm:$0xff]
  %v1500 = vld [vmem:[%s3 + $0xa8] sm:$0xff]
  %v1501 = vld [vmem:[%s3 + $0xb0] sm:$0xff]
  %v1502 = vld [vmem:[%s3 + $0xb8] sm:$0xff]
  %v1503 = vld [vmem:[%s3 + $0xc0] sm:$0xff]
  %v1504 = vld [vmem:[%s3 + $0xc8] sm:$0xff]
  %v1505 = vld [vmem:[%s3 + $0xd0] sm:$0xff]
  %v1506 = vld [vmem:[%s3 + $0xd8] sm:$0xff]
  %v1507 = vld [vmem:[%s3 + $0xe0] sm:$0xff]
  %v1508 = vld [vmem:[%s3 + $0xe8] sm:$0xff]
  %v1509 = vld [vmem:[%s3 + $0xf0] sm:$0xff]
  %v1510 = vld [vmem:[%s3 + $0xf8] sm:$0xff]
  %v1511 = vld [vmem:[%s3 + $0x100] sm:$0xff]
  %v1512 = vld [vmem:[%s3 + $0x108] sm:$0xff]
  %v1513 = vld [vmem:[%s3 + $0x110] sm:$0xff]
  %v1514 = vld [vmem:[%s3 + $0x118] sm:$0xff]
  %v1515 = vld [vmem:[%s3 + $0x120] sm:$0xff]
  %v1516 = vld [vmem:[%s3 + $0x128] sm:$0xff]
  %v1517 = vld [vmem:[%s3 + $0x130] sm:$0xff]
  %v1518 = vld [vmem:[%s3 + $0x138] sm:$0xff]
  %v1519 = vld [vmem:[%s3 + $0x140] sm:$0xff]
  %v1520 = vld [vmem:[%s3 + $0x148] sm:$0xff]
  %v1521 = vld [vmem:[%s3 + $0x150] sm:$0xff]
  %v1522 = vld [vmem:[%s3 + $0x158] sm:$0xff]
  %v1523 = vld [vmem:[%s3 + $0x160] sm:$0xff]
  %v1524 = vld [vmem:[%s3 + $0x168] sm:$0xff]
  %v1525 = vld [vmem:[%s3 + $0x170] sm:$0xff]
  %v1526 = vld [vmem:[%s3 + $0x178] sm:$0xff]
  %v1527 = vld [vmem:[%s3 + $0x180] sm:$0xff]
  %v1528 = vld [vmem:[%s3 + $0x188] sm:$0xff]
  %v1529 = vld [vmem:[%s3 + $0x190] sm:$0xff]
  %v1530 = vld [vmem:[%s3 + $0x198] sm:$0xff]
  %v1531 = vld [vmem:[%s3 + $0x1a0] sm:$0xff]
  %v1532 = vld [vmem:[%s3 + $0x1a8] sm:$0xff]
  %v1533 = vld [vmem:[%s3 + $0x1b0] sm:$0xff]
  %v1534 = vld [vmem:[%s3 + $0x1b8] sm:$0xff]
  %v1535 = vld [vmem:[%s3 + $0x1c0] sm:$0xff]
  %v1536 = vld [vmem:[%s3 + $0x1c8] sm:$0xff]
  %v1537 = vld [vmem:[%s3 + $0x1d0] sm:$0xff]
  %v1538 = vld [vmem:[%s3 + $0x1d8] sm:$0xff]
  %v1539 = vld [vmem:[%s3 + $0x1e0] sm:$0xff]
  %v1540 = vld [vmem:[%s3 + $0x1e8] sm:$0xff]
  %v1541 = vld [vmem:[%s3 + $0x1f0] sm:$0xff]
  %v1542 = vld [vmem:[%s3 + $0x1f8] sm:$0xff]
  %v1543 = vld [vmem:[%s3 + $0x200] sm:$0xff]
  %v1544 = vld [vmem:[%s3 + $0x208] sm:$0xff]
  %v1545 = vld [vmem:[%s3 + $0x210] sm:$0xff]
  %v1546 = vld [vmem:[%s3 + $0x218] sm:$0xff]
  %v1547 = vld [vmem:[%s3 + $0x220] sm:$0xff]
  %v1548 = vld [vmem:[%s3 + $0x228] sm:$0xff]
  %v1549 = vld [vmem:[%s3 + $0x230] sm:$0xff]
  %v1550 = vld [vmem:[%s3 + $0x238] sm:$0xff]
  %v1551 = vld [vmem:[%s3 + $0x240] sm:$0xff]
  %v1552 = vld [vmem:[%s3 + $0x248] sm:$0xff]
  %v1553 = vld [vmem:[%s3 + $0x250] sm:$0xff]
  %v1554 = vld [vmem:[%s3 + $0x258] sm:$0xff]
  %v1555 = vld [vmem:[%s3 + $0x260] sm:$0xff]
  %v1556 = vld [vmem:[%s3 + $0x268] sm:$0xff]
  %v1557 = vld [vmem:[%s3 + $0x270] sm:$0xff]
  %v1558 = vld [vmem:[%s3 + $0x278] sm:$0xff]
  %v1639 = vunpack.c.l.b16 %v1479
  %v1640 = vunpack.c.h.b16 %v1479
  %v1641 = vunpack.c.l.b16 %v1480
  %v1642 = vunpack.c.h.b16 %v1480
  %v1643 = vunpack.c.l.b16 %v1481
  %v1644 = vunpack.c.h.b16 %v1481
  %v1645 = vunpack.c.l.b16 %v1482
  %v1646 = vunpack.c.h.b16 %v1482
  %v1647 = vunpack.c.l.b16 %v1483
  %v1648 = vunpack.c.h.b16 %v1483
  %v1649 = vunpack.c.l.b16 %v1484
  %v1650 = vunpack.c.h.b16 %v1484
  %v1651 = vunpack.c.l.b16 %v1485
  %v1652 = vunpack.c.h.b16 %v1485
  %v1653 = vunpack.c.l.b16 %v1486
  %v1654 = vunpack.c.h.b16 %v1486
  %v1655 = vunpack.c.l.b16 %v1487
  %v1656 = vunpack.c.h.b16 %v1487
  %v1657 = vunpack.c.l.b16 %v1488
  %v1658 = vunpack.c.h.b16 %v1488
  %v1659 = vunpack.c.l.b16 %v1489
  %v1660 = vunpack.c.h.b16 %v1489
  %v1661 = vunpack.c.l.b16 %v1490
  %v1662 = vunpack.c.h.b16 %v1490
  %v1663 = vunpack.c.l.b16 %v1491
  %v1664 = vunpack.c.h.b16 %v1491
  %v1665 = vunpack.c.l.b16 %v1492
  %v1666 = vunpack.c.h.b16 %v1492
  %v1667 = vunpack.c.l.b16 %v1493
  %v1668 = vunpack.c.h.b16 %v1493
  %v1669 = vunpack.c.l.b16 %v1494
  %v1670 = vunpack.c.h.b16 %v1494
  %v1671 = vunpack.c.l.b16 %v1495
  %v1672 = vunpack.c.h.b16 %v1495
  %v1673 = vunpack.c.l.b16 %v1496
  %v1674 = vunpack.c.h.b16 %v1496
  %v1675 = vunpack.c.l.b16 %v1497
  %v1676 = vunpack.c.h.b16 %v1497
  %v1677 = vunpack.c.l.b16 %v1498
  %v1678 = vunpack.c.h.b16 %v1498
  %v1679 = vunpack.c.l.b16 %v1499
  %v1680 = vunpack.c.h.b16 %v1499
  %v1681 = vunpack.c.l.b16 %v1500
  %v1682 = vunpack.c.h.b16 %v1500
  %v1683 = vunpack.c.l.b16 %v1501
  %v1684 = vunpack.c.h.b16 %v1501
  %v1685 = vunpack.c.l.b16 %v1502
  %v1686 = vunpack.c.h.b16 %v1502
  %v1687 = vunpack.c.l.b16 %v1503
  %v1688 = vunpack.c.h.b16 %v1503
  %v1689 = vunpack.c.l.b16 %v1504
  %v1690 = vunpack.c.h.b16 %v1504
  %v1691 = vunpack.c.l.b16 %v1505
  %v1692 = vunpack.c.h.b16 %v1505
  %v1693 = vunpack.c.l.b16 %v1506
  %v1694 = vunpack.c.h.b16 %v1506
  %v1695 = vunpack.c.l.b16 %v1507
  %v1696 = vunpack.c.h.b16 %v1507
  %v1697 = vunpack.c.l.b16 %v1508
  %v1698 = vunpack.c.h.b16 %v1508
  %v1699 = vunpack.c.l.b16 %v1509
  %v1700 = vunpack.c.h.b16 %v1509
  %v1701 = vunpack.c.l.b16 %v1510
  %v1702 = vunpack.c.h.b16 %v1510
  %v1703 = vunpack.c.l.b16 %v1511
  %v1704 = vunpack.c.h.b16 %v1511
  %v1705 = vunpack.c.l.b16 %v1512
  %v1706 = vunpack.c.h.b16 %v1512
  %v1707 = vunpack.c.l.b16 %v1513
  %v1708 = vunpack.c.h.b16 %v1513
  %v1709 = vunpack.c.l.b16 %v1514
  %v1710 = vunpack.c.h.b16 %v1514
  %v1711 = vunpack.c.l.b16 %v1515
  %v1712 = vunpack.c.h.b16 %v1515
  %v1713 = vunpack.c.l.b16 %v1516
  %v1714 = vunpack.c.h.b16 %v1516
  %v1715 = vunpack.c.l.b16 %v1517
  %v1716 = vunpack.c.h.b16 %v1517
  %v1717 = vunpack.c.l.b16 %v1518
  %v1718 = vunpack.c.h.b16 %v1518
  %v1719 = vunpack.c.l.b16 %v1519
  %v1720 = vunpack.c.h.b16 %v1519
  %v1721 = vunpack.c.l.b16 %v1520
  %v1722 = vunpack.c.h.b16 %v1520
  %v1723 = vunpack.c.l.b16 %v1521
  %v1724 = vunpack.c.h.b16 %v1521
  %v1725 = vunpack.c.l.b16 %v1522
  %v1726 = vunpack.c.h.b16 %v1522
  %v1727 = vunpack.c.l.b16 %v1523
  %v1728 = vunpack.c.h.b16 %v1523
  %v1729 = vunpack.c.l.b16 %v1524
  %v1730 = vunpack.c.h.b16 %v1524
  %v1731 = vunpack.c.l.b16 %v1525
  %v1732 = vunpack.c.h.b16 %v1525
  %v1733 = vunpack.c.l.b16 %v1526
  %v1734 = vunpack.c.h.b16 %v1526
  %v1735 = vunpack.c.l.b16 %v1527
  %v1736 = vunpack.c.h.b16 %v1527
  %v1737 = vunpack.c.l.b16 %v1528
  %v1738 = vunpack.c.h.b16 %v1528
  %v1739 = vunpack.c.l.b16 %v1529
  %v1740 = vunpack.c.h.b16 %v1529
  %v1741 = vunpack.c.l.b16 %v1530
  %v1742 = vunpack.c.h.b16 %v1530
  %v1743 = vunpack.c.l.b16 %v1531
  %v1744 = vunpack.c.h.b16 %v1531
  %v1745 = vunpack.c.l.b16 %v1532
  %v1746 = vunpack.c.h.b16 %v1532
  %v1747 = vunpack.c.l.b16 %v1533
  %v1748 = vunpack.c.h.b16 %v1533
  %v1749 = vunpack.c.l.b16 %v1534
  %v1750 = vunpack.c.h.b16 %v1534
  %v1751 = vunpack.c.l.b16 %v1535
  %v1752 = vunpack.c.h.b16 %v1535
  %v1753 = vunpack.c.l.b16 %v1536
  %v1754 = vunpack.c.h.b16 %v1536
  %v1755 = vunpack.c.l.b16 %v1537
  %v1756 = vunpack.c.h.b16 %v1537
  %v1757 = vunpack.c.l.b16 %v1538
  %v1758 = vunpack.c.h.b16 %v1538
  %v1759 = vunpack.c.l.b16 %v1539
  %v1760 = vunpack.c.h.b16 %v1539
  %v1761 = vunpack.c.l.b16 %v1540
  %v1762 = vunpack.c.h.b16 %v1540
  %v1763 = vunpack.c.l.b16 %v1541
  %v1764 = vunpack.c.h.b16 %v1541
  %v1765 = vunpack.c.l.b16 %v1542
  %v1766 = vunpack.c.h.b16 %v1542
  %v1767 = vunpack.c.l.b16 %v1543
  %v1768 = vunpack.c.h.b16 %v1543
  %v1769 = vunpack.c.l.b16 %v1544
  %v1770 = vunpack.c.h.b16 %v1544
  %v1771 = vunpack.c.l.b16 %v1545
  %v1772 = vunpack.c.h.b16 %v1545
  %v1773 = vunpack.c.l.b16 %v1546
  %v1774 = vunpack.c.h.b16 %v1546
  %v1775 = vunpack.c.l.b16 %v1547
  %v1776 = vunpack.c.h.b16 %v1547
  %v1777 = vunpack.c.l.b16 %v1548
  %v1778 = vunpack.c.h.b16 %v1548
  %v1779 = vunpack.c.l.b16 %v1549
  %v1780 = vunpack.c.h.b16 %v1549
  %v1781 = vunpack.c.l.b16 %v1550
  %v1782 = vunpack.c.h.b16 %v1550
  %v1783 = vunpack.c.l.b16 %v1551
  %v1784 = vunpack.c.h.b16 %v1551
  %v1785 = vunpack.c.l.b16 %v1552
  %v1786 = vunpack.c.h.b16 %v1552
  %v1787 = vunpack.c.l.b16 %v1553
  %v1788 = vunpack.c.h.b16 %v1553
  %v1789 = vunpack.c.l.b16 %v1554
  %v1790 = vunpack.c.h.b16 %v1554
  %v1791 = vunpack.c.l.b16 %v1555
  %v1792 = vunpack.c.h.b16 %v1555
  %v1793 = vunpack.c.l.b16 %v1556
  %v1794 = vunpack.c.h.b16 %v1556
  %v1795 = vunpack.c.l.b16 %v1557
  %v1796 = vunpack.c.h.b16 %v1557
  %v1797 = vunpack.c.l.b16 %v1558
  %v1798 = vunpack.c.h.b16 %v1558
  %v1799 = vpack.c.b16 %v1643, %v1639
  %v1800 = vpack.c.b16 %v1644, %v1640
  %v1801 = vpack.c.b16 %v1645, %v1641
  %v1802 = vpack.c.b16 %v1646, %v1642
  %v1803 = vpack.c.b16 %v1651, %v1647
  %v1804 = vpack.c.b16 %v1652, %v1648
  %v1805 = vpack.c.b16 %v1653, %v1649
  %v1806 = vpack.c.b16 %v1654, %v1650
  %v1807 = vpack.c.b16 %v1659, %v1655
  %v1808 = vpack.c.b16 %v1660, %v1656
  %v1809 = vpack.c.b16 %v1661, %v1657
  %v1810 = vpack.c.b16 %v1662, %v1658
  %v1811 = vpack.c.b16 %v1667, %v1663
  %v1812 = vpack.c.b16 %v1668, %v1664
  %v1813 = vpack.c.b16 %v1669, %v1665
  %v1814 = vpack.c.b16 %v1670, %v1666
  %v1815 = vpack.c.b16 %v1675, %v1671
  %v1816 = vpack.c.b16 %v1676, %v1672
  %v1817 = vpack.c.b16 %v1677, %v1673
  %v1818 = vpack.c.b16 %v1678, %v1674
  %v1819 = vpack.c.b16 %v1683, %v1679
  %v1820 = vpack.c.b16 %v1684, %v1680
  %v1821 = vpack.c.b16 %v1685, %v1681
  %v1822 = vpack.c.b16 %v1686, %v1682
  %v1823 = vpack.c.b16 %v1691, %v1687
  %v1824 = vpack.c.b16 %v1692, %v1688
  %v1825 = vpack.c.b16 %v1693, %v1689
  %v1826 = vpack.c.b16 %v1694, %v1690
  %v1827 = vpack.c.b16 %v1699, %v1695
  %v1828 = vpack.c.b16 %v1700, %v1696
  %v1829 = vpack.c.b16 %v1701, %v1697
  %v1830 = vpack.c.b16 %v1702, %v1698
  %v1831 = vpack.c.b16 %v1707, %v1703
  %v1832 = vpack.c.b16 %v1708, %v1704
  %v1833 = vpack.c.b16 %v1709, %v1705
  %v1834 = vpack.c.b16 %v1710, %v1706
  %v1835 = vpack.c.b16 %v1715, %v1711
  %v1836 = vpack.c.b16 %v1716, %v1712
  %v1837 = vpack.c.b16 %v1717, %v1713
  %v1838 = vpack.c.b16 %v1718, %v1714
  %v1839 = vpack.c.b16 %v1723, %v1719
  %v1840 = vpack.c.b16 %v1724, %v1720
  %v1841 = vpack.c.b16 %v1725, %v1721
  %v1842 = vpack.c.b16 %v1726, %v1722
  %v1843 = vpack.c.b16 %v1731, %v1727
  %v1844 = vpack.c.b16 %v1732, %v1728
  %v1845 = vpack.c.b16 %v1733, %v1729
  %v1846 = vpack.c.b16 %v1734, %v1730
  %v1847 = vpack.c.b16 %v1739, %v1735
  %v1848 = vpack.c.b16 %v1740, %v1736
  %v1849 = vpack.c.b16 %v1741, %v1737
  %v1850 = vpack.c.b16 %v1742, %v1738
  %v1851 = vpack.c.b16 %v1747, %v1743
  %v1852 = vpack.c.b16 %v1748, %v1744
  %v1853 = vpack.c.b16 %v1749, %v1745
  %v1854 = vpack.c.b16 %v1750, %v1746
  %v1855 = vpack.c.b16 %v1755, %v1751
  %v1856 = vpack.c.b16 %v1756, %v1752
  %v1857 = vpack.c.b16 %v1757, %v1753
  %v1858 = vpack.c.b16 %v1758, %v1754
  %v1859 = vpack.c.b16 %v1763, %v1759
  %v1860 = vpack.c.b16 %v1764, %v1760
  %v1861 = vpack.c.b16 %v1765, %v1761
  %v1862 = vpack.c.b16 %v1766, %v1762
  %v1863 = vpack.c.b16 %v1771, %v1767
  %v1864 = vpack.c.b16 %v1772, %v1768
  %v1865 = vpack.c.b16 %v1773, %v1769
  %v1866 = vpack.c.b16 %v1774, %v1770
  %v1867 = vpack.c.b16 %v1779, %v1775
  %v1868 = vpack.c.b16 %v1780, %v1776
  %v1869 = vpack.c.b16 %v1781, %v1777
  %v1870 = vpack.c.b16 %v1782, %v1778
  %v1871 = vpack.c.b16 %v1787, %v1783
  %v1872 = vpack.c.b16 %v1788, %v1784
  %v1873 = vpack.c.b16 %v1789, %v1785
  %v1874 = vpack.c.b16 %v1790, %v1786
  %v1875 = vpack.c.b16 %v1795, %v1791
  %v1876 = vpack.c.b16 %v1796, %v1792
  %v1877 = vpack.c.b16 %v1797, %v1793
  %v1878 = vpack.c.b16 %v1798, %v1794
  %v1960 = vsel %vm307, %v1339, 0
  %v1963 = vsel %vm307, %v1342, 0
  %v1966 = vsel %vm307, %v1345, 0
  %v1969 = vsel %vm307, %v1348, 0
  %v1972 = vsel %vm307, %v1351, 0
  %1974 = vmatprep.subr.bf16.mxu0 %v1800
  %1975 = vmatpush1.bf16.msra.mxu0 %v1799
  %1976 = vmatprep.subr.bf16.mxu0 %v1804
  %1977 = vmatpush1.bf16.msra.mxu0 %v1803
  %1978 = vmatprep.subr.bf16.mxu0 %v1808
  %1979 = vmatpush1.bf16.msra.mxu0 %v1807
  %1980 = vmatprep.subr.bf16.mxu0 %v1812
  %1981 = vmatpush1.bf16.msra.mxu0 %v1811
  %1982 = vmatprep.subr.bf16.mxu0 %v1816
  %1983 = vmatpush1.bf16.msra.mxu0 %v1815
  %1984 = vmatprep.subr.bf16.mxu0 %v1820
  %1985 = vmatpush1.bf16.msra.mxu0 %v1819
  %1986 = vmatprep.subr.bf16.mxu0 %v1824
  %1987 = vmatpush1.bf16.msra.mxu0 %v1823
  %1988 = vmatprep.subr.bf16.mxu0 %v1828
  %1989 = vmatpush1.bf16.msra.mxu0 %v1827
  %1990 = vmatprep.subr.bf16.mxu0 %v1832
  %1991 = vmatpush1.bf16.msra.mxu0 %v1831
  %1992 = vmatprep.subr.bf16.mxu0 %v1836
  %1993 = vmatpush1.bf16.msra.mxu0 %v1835
  %1994 = vmatprep.subr.bf16.mxu0 %v1840
  %1995 = vmatpush1.bf16.msra.mxu0 %v1839
  %1996 = vmatprep.subr.bf16.mxu0 %v1844
  %1997 = vmatpush1.bf16.msra.mxu0 %v1843
  %1998 = vmatprep.subr.bf16.mxu0 %v1848
  %1999 = vmatpush1.bf16.msra.mxu0 %v1847
  %2000 = vmatprep.subr.bf16.mxu0 %v1852
  %2001 = vmatpush1.bf16.msra.mxu0 %v1851
  %2002 = vmatprep.subr.bf16.mxu0 %v1856
  %2003 = vmatpush1.bf16.msra.mxu0 %v1855
  %2004 = vmatprep.subr.bf16.mxu0 %v1860
  %2005 = vmatpush1.bf16.msra.mxu0 %v1859
  %2006 = vmatprep.mubr.bf16.mxu0 %v1338
  %2007 = vmatmul.mubr.bf16.gmra.mrb[0].mxu0 %v1337
  %v2008 = vpop.f32.mrb[0].mxu0
  %v2009 = vadd.f32 0.0, %v2008
  %v2010 = vpop.f32.mrb[0].mxu0
  %v2011 = vadd.f32 0.0, %v2010
  %v2012 = vpop.f32.mrb[0].mxu0
  %v2013 = vadd.f32 0.0, %v2012
  %v2014 = vpop.f32.mrb[0].mxu0
  %v2015 = vadd.f32 0.0, %v2014
  %2016 = vmatprep.mubr.bf16.mxu0 %v1341
  %2017 = vmatmul.mubr.bf16.gmra.mrb[0].mxu0 %v1340
  %v2018 = vpop.f32.mrb[0].mxu0
  %v2019 = vadd.f32 0.0, %v2018
  %v2020 = vpop.f32.mrb[0].mxu0
  %v2021 = vadd.f32 0.0, %v2020
  %v2022 = vpop.f32.mrb[0].mxu0
  %v2023 = vadd.f32 0.0, %v2022
  %v2024 = vpop.f32.mrb[0].mxu0
  %v2025 = vadd.f32 0.0, %v2024
  %2026 = vmatprep.mubr.bf16.mxu0 %v1344
  %2027 = vmatmul.mubr.bf16.gmra.mrb[0].mxu0 %v1343
  %v2028 = vpop.f32.mrb[0].mxu0
  %v2029 = vadd.f32 0.0, %v2028
  %v2030 = vpop.f32.mrb[0].mxu0
  %v2031 = vadd.f32 0.0, %v2030
  %v2032 = vpop.f32.mrb[0].mxu0
  %v2033 = vadd.f32 0.0, %v2032
  %v2034 = vpop.f32.mrb[0].mxu0
  %v2035 = vadd.f32 0.0, %v2034
  %2036 = vmatprep.mubr.bf16.mxu0 %v1347
  %2037 = vmatmul.mubr.bf16.gmra.mrb[0].mxu0 %v1346
  %v2038 = vpop.f32.mrb[0].mxu0
  %v2039 = vadd.f32 0.0, %v2038
  %v2040 = vpop.f32.mrb[0].mxu0
  %v2041 = vadd.f32 0.0, %v2040
  %v2042 = vpop.f32.mrb[0].mxu0
  %v2043 = vadd.f32 0.0, %v2042
  %v2044 = vpop.f32.mrb[0].mxu0
  %v2045 = vadd.f32 0.0, %v2044
  %2046 = vmatprep.mubr.bf16.mxu0 %v1350
  %2047 = vmatmul.mubr.bf16.gmra.mrb[0].mxu0 %v1349
  %v2048 = vpop.f32.mrb[0].mxu0
  %v2049 = vadd.f32 0.0, %v2048
  %v2050 = vpop.f32.mrb[0].mxu0
  %v2051 = vadd.f32 0.0, %v2050
  %v2052 = vpop.f32.mrb[0].mxu0
  %v2053 = vadd.f32 0.0, %v2052
  %v2054 = vpop.f32.mrb[0].mxu0
  %v2055 = vadd.f32 0.0, %v2054
  %2056 = vdwg.mxu0
  %2057 = vmatprep.subr.bf16.mxu0 %v1864
  %2058 = vmatpush1.bf16.msra.mxu0 %v1863
  %2059 = vmatprep.subr.bf16.mxu0 %v1868
  %2060 = vmatpush1.bf16.msra.mxu0 %v1867
  %2061 = vmatprep.subr.bf16.mxu0 %v1872
  %2062 = vmatpush1.bf16.msra.mxu0 %v1871
  %2063 = vmatprep.subr.bf16.mxu0 %v1876
  %2064 = vmatpush1.bf16.msra.mxu0 %v1875
  %2065 = vmatprep.subr.bf16.mxu0 0
  %2066 = vmatpush1.bf16.msra.mxu0 0
  %2067 = vmatprep.subr.bf16.mxu0 0
  %2068 = vmatpush1.bf16.msra.mxu0 0
  %2069 = vmatprep.subr.bf16.mxu0 0
  %2070 = vmatpush1.bf16.msra.mxu0 0
  %2071 = vmatprep.subr.bf16.mxu0 0
  %2072 = vmatpush1.bf16.msra.mxu0 0
  %2073 = vmatprep.subr.bf16.mxu0 0
  %2074 = vmatpush1.bf16.msra.mxu0 0
  %2075 = vmatprep.subr.bf16.mxu0 0
  %2076 = vmatpush1.bf16.msra.mxu0 0
  %2077 = vmatprep.subr.bf16.mxu0 0
  %2078 = vmatpush1.bf16.msra.mxu0 0
  %2079 = vmatprep.subr.bf16.mxu0 0
  %2080 = vmatpush1.bf16.msra.mxu0 0
  %2081 = vmatprep.subr.bf16.mxu0 0
  %2082 = vmatpush1.bf16.msra.mxu0 0
  %2083 = vmatprep.subr.bf16.mxu0 0
  %2084 = vmatpush1.bf16.msra.mxu0 0
  %2085 = vmatprep.subr.bf16.mxu0 0
  %2086 = vmatpush1.bf16.msra.mxu0 0
  %2087 = vmatprep.subr.bf16.mxu0 0
  %2088 = vmatpush1.bf16.msra.mxu0 0
  %2089 = vmatprep.mubr.bf16.mxu0 0
  %2090 = vmatmul.mubr.bf16.gmra.mrb[0].mxu0 %v1960
  %v2091 = vpop.f32.mrb[0].mxu0
  %v2092 = vadd.f32 %v2009, %v2091
  %v2093 = vpop.f32.mrb[0].mxu0
  %v2094 = vadd.f32 %v2011, %v2093
  %v2095 = vpop.f32.mrb[0].mxu0
  %v2096 = vadd.f32 %v2013, %v2095
  %v2097 = vpop.f32.mrb[0].mxu0
  %v2098 = vadd.f32 %v2015, %v2097
  %2099 = vmatprep.mubr.bf16.mxu0 0
  %2100 = vmatmul.mubr.bf16.gmra.mrb[0].mxu0 %v1963
  %v2101 = vpop.f32.mrb[0].mxu0
  %v2102 = vadd.f32 %v2019, %v2101
  %v2103 = vpop.f32.mrb[0].mxu0
  %v2104 = vadd.f32 %v2021, %v2103
  %v2105 = vpop.f32.mrb[0].mxu0
  %v2106 = vadd.f32 %v2023, %v2105
  %v2107 = vpop.f32.mrb[0].mxu0
  %v2108 = vadd.f32 %v2025, %v2107
  %2109 = vmatprep.mubr.bf16.mxu0 0
  %2110 = vmatmul.mubr.bf16.gmra.mrb[0].mxu0 %v1966
  %v2111 = vpop.f32.mrb[0].mxu0
  %v2112 = vadd.f32 %v2029, %v2111
  %v2113 = vpop.f32.mrb[0].mxu0
  %v2114 = vadd.f32 %v2031, %v2113
  %v2115 = vpop.f32.mrb[0].mxu0
  %v2116 = vadd.f32 %v2033, %v2115
  %v2117 = vpop.f32.mrb[0].mxu0
  %v2118 = vadd.f32 %v2035, %v2117
  %2119 = vmatprep.mubr.bf16.mxu0 0
  %2120 = vmatmul.mubr.bf16.gmra.mrb[0].mxu0 %v1969
  %v2121 = vpop.f32.mrb[0].mxu0
  %v2122 = vadd.f32 %v2039, %v2121
  %v2123 = vpop.f32.mrb[0].mxu0
  %v2124 = vadd.f32 %v2041, %v2123
  %v2125 = vpop.f32.mrb[0].mxu0
  %v2126 = vadd.f32 %v2043, %v2125
  %v2127 = vpop.f32.mrb[0].mxu0
  %v2128 = vadd.f32 %v2045, %v2127
  %2129 = vmatprep.mubr.bf16.mxu0 0
  %2130 = vmatmul.mubr.bf16.gmra.mrb[0].mxu0 %v1972
  %v2131 = vpop.f32.mrb[0].mxu0
  %v2132 = vadd.f32 %v2049, %v2131
  %v2133 = vpop.f32.mrb[0].mxu0
  %v2134 = vadd.f32 %v2051, %v2133
  %v2135 = vpop.f32.mrb[0].mxu0
  %v2136 = vadd.f32 %v2053, %v2135
  %v2137 = vpop.f32.mrb[0].mxu0
  %v2138 = vadd.f32 %v2055, %v2137
  %2139 = vdwg.mxu0
  %2140 = vmatprep.subr.bf16.mxu0 %v1802
  %2141 = vmatpush1.bf16.msra.mxu0 %v1801
  %2142 = vmatprep.subr.bf16.mxu0 %v1806
  %2143 = vmatpush1.bf16.msra.mxu0 %v1805
  %2144 = vmatprep.subr.bf16.mxu0 %v1810
  %2145 = vmatpush1.bf16.msra.mxu0 %v1809
  %2146 = vmatprep.subr.bf16.mxu0 %v1814
  %2147 = vmatpush1.bf16.msra.mxu0 %v1813
  %2148 = vmatprep.subr.bf16.mxu0 %v1818
  %2149 = vmatpush1.bf16.msra.mxu0 %v1817
  %2150 = vmatprep.subr.bf16.mxu0 %v1822
  %2151 = vmatpush1.bf16.msra.mxu0 %v1821
  %2152 = vmatprep.subr.bf16.mxu0 %v1826
  %2153 = vmatpush1.bf16.msra.mxu0 %v1825
  %2154 = vmatprep.subr.bf16.mxu0 %v1830
  %2155 = vmatpush1.bf16.msra.mxu0 %v1829
  %2156 = vmatprep.subr.bf16.mxu0 %v1834
  %2157 = vmatpush1.bf16.msra.mxu0 %v1833
  %2158 = vmatprep.subr.bf16.mxu0 %v1838
  %2159 = vmatpush1.bf16.msra.mxu0 %v1837
  %2160 = vmatprep.subr.bf16.mxu0 %v1842
  %2161 = vmatpush1.bf16.msra.mxu0 %v1841
  %2162 = vmatprep.subr.bf16.mxu0 %v1846
  %2163 = vmatpush1.bf16.msra.mxu0 %v1845
  %2164 = vmatprep.subr.bf16.mxu0 %v1850
  %2165 = vmatpush1.bf16.msra.mxu0 %v1849
  %2166 = vmatprep.subr.bf16.mxu0 %v1854
  %2167 = vmatpush1.bf16.msra.mxu0 %v1853
  %2168 = vmatprep.subr.bf16.mxu0 %v1858
  %2169 = vmatpush1.bf16.msra.mxu0 %v1857
  %2170 = vmatprep.subr.bf16.mxu0 %v1862
  %2171 = vmatpush1.bf16.msra.mxu0 %v1861
  %2172 = vmatprep.mubr.bf16.mxu0 %v1338
  %2173 = vmatmul.mubr.bf16.gmra.mrb[0].mxu0 %v1337
  %v2174 = vpop.f32.mrb[0].mxu0
  %v2175 = vadd.f32 0.0, %v2174
  %v2176 = vpop.f32.mrb[0].mxu0
  %v2177 = vadd.f32 0.0, %v2176
  %v2178 = vpop.f32.mrb[0].mxu0
  %v2179 = vadd.f32 0.0, %v2178
  %v2180 = vpop.f32.mrb[0].mxu0
  %v2181 = vadd.f32 0.0, %v2180
  %2182 = vmatprep.mubr.bf16.mxu0 %v1341
  %2183 = vmatmul.mubr.bf16.gmra.mrb[0].mxu0 %v1340
  %v2184 = vpop.f32.mrb[0].mxu0
  %v2185 = vadd.f32 0.0, %v2184
  %v2186 = vpop.f32.mrb[0].mxu0
  %v2187 = vadd.f32 0.0, %v2186
  %v2188 = vpop.f32.mrb[0].mxu0
  %v2189 = vadd.f32 0.0, %v2188
  %v2190 = vpop.f32.mrb[0].mxu0
  %v2191 = vadd.f32 0.0, %v2190
  %2192 = vmatprep.mubr.bf16.mxu0 %v1344
  %2193 = vmatmul.mubr.bf16.gmra.mrb[0].mxu0 %v1343
  %v2194 = vpop.f32.mrb[0].mxu0
  %v2195 = vadd.f32 0.0, %v2194
  %v2196 = vpop.f32.mrb[0].mxu0
  %v2197 = vadd.f32 0.0, %v2196
  %v2198 = vpop.f32.mrb[0].mxu0
  %v2199 = vadd.f32 0.0, %v2198
  %v2200 = vpop.f32.mrb[0].mxu0
  %v2201 = vadd.f32 0.0, %v2200
  %2202 = vmatprep.mubr.bf16.mxu0 %v1347
  %2203 = vmatmul.mubr.bf16.gmra.mrb[0].mxu0 %v1346
  %v2204 = vpop.f32.mrb[0].mxu0
  %v2205 = vadd.f32 0.0, %v2204
  %v2206 = vpop.f32.mrb[0].mxu0
  %v2207 = vadd.f32 0.0, %v2206
  %v2208 = vpop.f32.mrb[0].mxu0
  %v2209 = vadd.f32 0.0, %v2208
  %v2210 = vpop.f32.mrb[0].mxu0
  %v2211 = vadd.f32 0.0, %v2210
  %2212 = vmatprep.mubr.bf16.mxu0 %v1350
  %2213 = vmatmul.mubr.bf16.gmra.mrb[0].mxu0 %v1349
  %v2214 = vpop.f32.mrb[0].mxu0
  %v2215 = vadd.f32 0.0, %v2214
  %v2216 = vpop.f32.mrb[0].mxu0
  %v2217 = vadd.f32 0.0, %v2216
  %v2218 = vpop.f32.mrb[0].mxu0
  %v2219 = vadd.f32 0.0, %v2218
  %v2220 = vpop.f32.mrb[0].mxu0
  %v2221 = vadd.f32 0.0, %v2220
  %2222 = vdwg.mxu0
  %2223 = vmatprep.subr.bf16.mxu0 %v1866
  %2224 = vmatpush1.bf16.msra.mxu0 %v1865
  %2225 = vmatprep.subr.bf16.mxu0 %v1870
  %2226 = vmatpush1.bf16.msra.mxu0 %v1869
  %2227 = vmatprep.subr.bf16.mxu0 %v1874
  %2228 = vmatpush1.bf16.msra.mxu0 %v1873
  %2229 = vmatprep.subr.bf16.mxu0 %v1878
  %2230 = vmatpush1.bf16.msra.mxu0 %v1877
  %2231 = vmatprep.subr.bf16.mxu0 0
  %2232 = vmatpush1.bf16.msra.mxu0 0
  %2233 = vmatprep.subr.bf16.mxu0 0
  %2234 = vmatpush1.bf16.msra.mxu0 0
  %2235 = vmatprep.subr.bf16.mxu0 0
  %2236 = vmatpush1.bf16.msra.mxu0 0
  %2237 = vmatprep.subr.bf16.mxu0 0
  %2238 = vmatpush1.bf16.msra.mxu0 0
  %2239 = vmatprep.subr.bf16.mxu0 0
  %2240 = vmatpush1.bf16.msra.mxu0 0
  %2241 = vmatprep.subr.bf16.mxu0 0
  %2242 = vmatpush1.bf16.msra.mxu0 0
  %2243 = vmatprep.subr.bf16.mxu0 0
  %2244 = vmatpush1.bf16.msra.mxu0 0
  %2245 = vmatprep.subr.bf16.mxu0 0
  %2246 = vmatpush1.bf16.msra.mxu0 0
  %2247 = vmatprep.subr.bf16.mxu0 0
  %2248 = vmatpush1.bf16.msra.mxu0 0
  %2249 = vmatprep.subr.bf16.mxu0 0
  %2250 = vmatpush1.bf16.msra.mxu0 0
  %2251 = vmatprep.subr.bf16.mxu0 0
  %2252 = vmatpush1.bf16.msra.mxu0 0
  %2253 = vmatprep.subr.bf16.mxu0 0
  %2254 = vmatpush1.bf16.msra.mxu0 0
  %2255 = vmatprep.mubr.bf16.mxu0 0
  %2256 = vmatmul.mubr.bf16.gmra.mrb[0].mxu0 %v1960
  %v2257 = vpop.f32.mrb[0].mxu0
  %v2258 = vadd.f32 %v2175, %v2257
  %v2259 = vpop.f32.mrb[0].mxu0
  %v2260 = vadd.f32 %v2177, %v2259
  %v2261 = vpop.f32.mrb[0].mxu0
  %v2262 = vadd.f32 %v2179, %v2261
  %v2263 = vpop.f32.mrb[0].mxu0
  %v2264 = vadd.f32 %v2181, %v2263
  %2265 = vmatprep.mubr.bf16.mxu0 0
  %2266 = vmatmul.mubr.bf16.gmra.mrb[0].mxu0 %v1963
  %v2267 = vpop.f32.mrb[0].mxu0
  %v2268 = vadd.f32 %v2185, %v2267
  %v2269 = vpop.f32.mrb[0].mxu0
  %v2270 = vadd.f32 %v2187, %v2269
  %v2271 = vpop.f32.mrb[0].mxu0
  %v2272 = vadd.f32 %v2189, %v2271
  %v2273 = vpop.f32.mrb[0].mxu0
  %v2274 = vadd.f32 %v2191, %v2273
  %2275 = vmatprep.mubr.bf16.mxu0 0
  %2276 = vmatmul.mubr.bf16.gmra.mrb[0].mxu0 %v1966
  %v2277 = vpop.f32.mrb[0].mxu0
  %v2278 = vadd.f32 %v2195, %v2277
  %v2279 = vpop.f32.mrb[0].mxu0
  %v2280 = vadd.f32 %v2197, %v2279
  %v2281 = vpop.f32.mrb[0].mxu0
  %v2282 = vadd.f32 %v2199, %v2281
  %v2283 = vpop.f32.mrb[0].mxu0
  %v2284 = vadd.f32 %v2201, %v2283
  %2285 = vmatprep.mubr.bf16.mxu0 0
  %2286 = vmatmul.mubr.bf16.gmra.mrb[0].mxu0 %v1969
  %v2287 = vpop.f32.mrb[0].mxu0
  %v2288 = vadd.f32 %v2205, %v2287
  %v2289 = vpop.f32.mrb[0].mxu0
  %v2290 = vadd.f32 %v2207, %v2289
  %v2291 = vpop.f32.mrb[0].mxu0
  %v2292 = vadd.f32 %v2209, %v2291
  %v2293 = vpop.f32.mrb[0].mxu0
  %v2294 = vadd.f32 %v2211, %v2293
  %2295 = vmatprep.mubr.bf16.mxu0 0
  %2296 = vmatmul.mubr.bf16.gmra.mrb[0].mxu0 %v1972
  %v2297 = vpop.f32.mrb[0].mxu0
  %v2298 = vadd.f32 %v2215, %v2297
  %v2299 = vpop.f32.mrb[0].mxu0
  %v2300 = vadd.f32 %v2217, %v2299
  %v2301 = vpop.f32.mrb[0].mxu0
  %v2302 = vadd.f32 %v2219, %v2301
  %v2303 = vpop.f32.mrb[0].mxu0
  %v2304 = vadd.f32 %v2221, %v2303
  %2305 = vdwg.mxu0
  %v2306 = vld [vmem:[#allocation3] sm:$0xff]
  %v2307 = vld [vmem:[#allocation3 + $0x8] sm:$0xff]
  %v2308 = vld [vmem:[#allocation3 + $0x10] sm:$0xff]
  %v2309 = vld [vmem:[#allocation3 + $0x18] sm:$0xff]
  %v2310 = vld [vmem:[#allocation3 + $0x20] sm:$0xff]
  %v2311 = vld [vmem:[#allocation3 + $0x28] sm:$0xff]
  %v2312 = vld [vmem:[#allocation3 + $0x30] sm:$0xff]
  %v2313 = vld [vmem:[#allocation3 + $0x38] sm:$0xff]
  %v2314 = vld [vmem:[#allocation3 + $0x40] sm:$0xff]
  %v2315 = vld [vmem:[#allocation3 + $0x48] sm:$0xff]
  %v2316 = vld [vmem:[#allocation3 + $0x50] sm:$0xff]
  %v2317 = vld [vmem:[#allocation3 + $0x58] sm:$0xff]
  %v2318 = vld [vmem:[#allocation3 + $0x60] sm:$0xff]
  %v2319 = vld [vmem:[#allocation3 + $0x68] sm:$0xff]
  %v2320 = vld [vmem:[#allocation3 + $0x70] sm:$0xff]
  %v2321 = vld [vmem:[#allocation3 + $0x78] sm:$0xff]
  %v2322 = vld [vmem:[#allocation3 + $0x80] sm:$0xff]
  %v2323 = vld [vmem:[#allocation3 + $0x88] sm:$0xff]
  %v2324 = vld [vmem:[#allocation3 + $0x90] sm:$0xff]
  %v2325 = vld [vmem:[#allocation3 + $0x98] sm:$0xff]
  %v2326 = vld [vmem:[#allocation3 + $0xa0] sm:$0xff]
  %v2327 = vld [vmem:[#allocation3 + $0xa8] sm:$0xff]
  %v2328 = vld [vmem:[#allocation3 + $0xb0] sm:$0xff]
  %v2329 = vld [vmem:[#allocation3 + $0xb8] sm:$0xff]
  %v2330 = vld [vmem:[#allocation3 + $0xc0] sm:$0xff]
  %v2331 = vld [vmem:[#allocation3 + $0xc8] sm:$0xff]
  %v2332 = vld [vmem:[#allocation3 + $0xd0] sm:$0xff]
  %v2333 = vld [vmem:[#allocation3 + $0xd8] sm:$0xff]
  %v2334 = vld [vmem:[#allocation3 + $0xe0] sm:$0xff]
  %v2335 = vld [vmem:[#allocation3 + $0xe8] sm:$0xff]
  %v2336 = vld [vmem:[#allocation3 + $0xf0] sm:$0xff]
  %v2337 = vld [vmem:[#allocation3 + $0xf8] sm:$0xff]
  %v2338 = vld [vmem:[#allocation3 + $0x100] sm:$0xff]
  %v2339 = vld [vmem:[#allocation3 + $0x108] sm:$0xff]
  %v2340 = vld [vmem:[#allocation3 + $0x110] sm:$0xff]
  %v2341 = vld [vmem:[#allocation3 + $0x118] sm:$0xff]
  %v2342 = vld [vmem:[#allocation3 + $0x120] sm:$0xff]
  %v2343 = vld [vmem:[#allocation3 + $0x128] sm:$0xff]
  %v2344 = vld [vmem:[#allocation3 + $0x130] sm:$0xff]
  %v2345 = vld [vmem:[#allocation3 + $0x138] sm:$0xff]
  %v2346 = vadd.f32 %v2306, %v2092
  %v2347 = vadd.f32 %v2307, %v2094
  %v2348 = vadd.f32 %v2308, %v2258
  %v2349 = vadd.f32 %v2309, %v2260
  %v2350 = vadd.f32 %v2310, %v2096
  %v2351 = vadd.f32 %v2311, %v2098
  %v2352 = vadd.f32 %v2312, %v2262
  %v2353 = vadd.f32 %v2313, %v2264
  %v2354 = vadd.f32 %v2314, %v2102
  %v2355 = vadd.f32 %v2315, %v2104
  %v2356 = vadd.f32 %v2316, %v2268
  %v2357 = vadd.f32 %v2317, %v2270
  %v2358 = vadd.f32 %v2318, %v2106
  %v2359 = vadd.f32 %v2319, %v2108
  %v2360 = vadd.f32 %v2320, %v2272
  %v2361 = vadd.f32 %v2321, %v2274
  %v2362 = vadd.f32 %v2322, %v2112
  %v2363 = vadd.f32 %v2323, %v2114
  %v2364 = vadd.f32 %v2324, %v2278
  %v2365 = vadd.f32 %v2325, %v2280
  %v2366 = vadd.f32 %v2326, %v2116
  %v2367 = vadd.f32 %v2327, %v2118
  %v2368 = vadd.f32 %v2328, %v2282
  %v2369 = vadd.f32 %v2329, %v2284
  %v2370 = vadd.f32 %v2330, %v2122
  %v2371 = vadd.f32 %v2331, %v2124
  %v2372 = vadd.f32 %v2332, %v2288
  %v2373 = vadd.f32 %v2333, %v2290
  %v2374 = vadd.f32 %v2334, %v2126
  %v2375 = vadd.f32 %v2335, %v2128
  %v2376 = vadd.f32 %v2336, %v2292
  %v2377 = vadd.f32 %v2337, %v2294
  %v2378 = vadd.f32 %v2338, %v2132
  %v2379 = vadd.f32 %v2339, %v2134
  %v2380 = vadd.f32 %v2340, %v2298
  %v2381 = vadd.f32 %v2341, %v2300
  %v2382 = vadd.f32 %v2342, %v2136
  %v2383 = vadd.f32 %v2343, %v2138
  %v2384 = vadd.f32 %v2344, %v2302
  %v2385 = vadd.f32 %v2345, %v2304
  %2386 = vst [vmem:[#allocation3] sm:$0xff] %v2346
  %2387 = vst [vmem:[#allocation3 + $0x8] sm:$0xff] %v2347
  %2388 = vst [vmem:[#allocation3 + $0x10] sm:$0xff] %v2348
  %2389 = vst.msk [vmem:[#allocation3 + $0x18] sm:$0xff] %vm1377, %v2349
  %2390 = vst [vmem:[#allocation3 + $0x20] sm:$0xff] %v2350
  %2391 = vst [vmem:[#allocation3 + $0x28] sm:$0xff] %v2351
  %2392 = vst [vmem:[#allocation3 + $0x30] sm:$0xff] %v2352
  %2393 = vst.msk [vmem:[#allocation3 + $0x38] sm:$0xff] %vm1377, %v2353
  %2394 = vst [vmem:[#allocation3 + $0x40] sm:$0xff] %v2354
  %2395 = vst [vmem:[#allocation3 + $0x48] sm:$0xff] %v2355
  %2396 = vst [vmem:[#allocation3 + $0x50] sm:$0xff] %v2356
  %2397 = vst.msk [vmem:[#allocation3 + $0x58] sm:$0xff] %vm1377, %v2357
  %2398 = vst [vmem:[#allocation3 + $0x60] sm:$0xff] %v2358
  %2399 = vst [vmem:[#allocation3 + $0x68] sm:$0xff] %v2359
  %2400 = vst [vmem:[#allocation3 + $0x70] sm:$0xff] %v2360
  %2401 = vst.msk [vmem:[#allocation3 + $0x78] sm:$0xff] %vm1377, %v2361
  %2402 = vst [vmem:[#allocation3 + $0x80] sm:$0xff] %v2362
  %2403 = vst [vmem:[#allocation3 + $0x88] sm:$0xff] %v2363
  %2404 = vst [vmem:[#allocation3 + $0x90] sm:$0xff] %v2364
  %2405 = vst.msk [vmem:[#allocation3 + $0x98] sm:$0xff] %vm1377, %v2365
  %2406 = vst [vmem:[#allocation3 + $0xa0] sm:$0xff] %v2366
  %2407 = vst [vmem:[#allocation3 + $0xa8] sm:$0xff] %v2367
  %2408 = vst [vmem:[#allocation3 + $0xb0] sm:$0xff] %v2368
  %2409 = vst.msk [vmem:[#allocation3 + $0xb8] sm:$0xff] %vm1377, %v2369
  %2410 = vst [vmem:[#allocation3 + $0xc0] sm:$0xff] %v2370
  %2411 = vst [vmem:[#allocation3 + $0xc8] sm:$0xff] %v2371
  %2412 = vst [vmem:[#allocation3 + $0xd0] sm:$0xff] %v2372
  %2413 = vst.msk [vmem:[#allocation3 + $0xd8] sm:$0xff] %vm1377, %v2373
  %2414 = vst [vmem:[#allocation3 + $0xe0] sm:$0xff] %v2374
  %2415 = vst [vmem:[#allocation3 + $0xe8] sm:$0xff] %v2375
  %2416 = vst [vmem:[#allocation3 + $0xf0] sm:$0xff] %v2376
  %2417 = vst.msk [vmem:[#allocation3 + $0xf8] sm:$0xff] %vm1377, %v2377
  %2418 = vst [vmem:[#allocation3 + $0x100] sm:$0xff] %v2378
  %2419 = vst [vmem:[#allocation3 + $0x108] sm:$0xff] %v2379
  %2420 = vst [vmem:[#allocation3 + $0x110] sm:$0xff] %v2380
  %2421 = vst.msk [vmem:[#allocation3 + $0x118] sm:$0xff] %vm1377, %v2381
  %2422 = vst [vmem:[#allocation3 + $0x120] sm:$0xff] %v2382
  %2423 = vst [vmem:[#allocation3 + $0x128] sm:$0xff] %v2383
  %2424 = vst [vmem:[#allocation3 + $0x130] sm:$0xff] %v2384
  %2425 = vst.msk [vmem:[#allocation3 + $0x138] sm:$0xff] %vm1377, %v2385
  %s2426 = scalar_lea.vmem %s3, 640
  %v2427 = vld [vmem:[%s2426] sm:$0xff]
  %v2428 = vld [vmem:[%s2426 + $0x8] sm:$0xff]
  %v2429 = vld [vmem:[%s2426 + $0x10] sm:$0xff]
  %v2430 = vld [vmem:[%s2426 + $0x18] sm:$0xff]
  %v2431 = vld [vmem:[%s2426 + $0x20] sm:$0xff]
  %v2432 = vld [vmem:[%s2426 + $0x28] sm:$0xff]
  %v2433 = vld [vmem:[%s2426 + $0x30] sm:$0xff]
  %v2434 = vld [vmem:[%s2426 + $0x38] sm:$0xff]
  %v2435 = vld [vmem:[%s2426 + $0x40] sm:$0xff]
  %v2436 = vld [vmem:[%s2426 + $0x48] sm:$0xff]
  %v2437 = vld [vmem:[%s2426 + $0x50] sm:$0xff]
  %v2438 = vld [vmem:[%s2426 + $0x58] sm:$0xff]
  %v2439 = vld [vmem:[%s2426 + $0x60] sm:$0xff]
  %v2440 = vld [vmem:[%s2426 + $0x68] sm:$0xff]
  %v2441 = vld [vmem:[%s2426 + $0x70] sm:$0xff]
  %v2442 = vld [vmem:[%s2426 + $0x78] sm:$0xff]
  %v2443 = vld [vmem:[%s2426 + $0x80] sm:$0xff]
  %v2444 = vld [vmem:[%s2426 + $0x88] sm:$0xff]
  %v2445 = vld [vmem:[%s2426 + $0x90] sm:$0xff]
  %v2446 = vld [vmem:[%s2426 + $0x98] sm:$0xff]
  %v2447 = vld [vmem:[%s2426 + $0xa0] sm:$0xff]
  %v2448 = vld [vmem:[%s2426 + $0xa8] sm:$0xff]
  %v2449 = vld [vmem:[%s2426 + $0xb0] sm:$0xff]
  %v2450 = vld [vmem:[%s2426 + $0xb8] sm:$0xff]
  %v2451 = vld [vmem:[%s2426 + $0xc0] sm:$0xff]
  %v2452 = vld [vmem:[%s2426 + $0xc8] sm:$0xff]
  %v2453 = vld [vmem:[%s2426 + $0xd0] sm:$0xff]
  %v2454 = vld [vmem:[%s2426 + $0xd8] sm:$0xff]
  %v2455 = vld [vmem:[%s2426 + $0xe0] sm:$0xff]
  %v2456 = vld [vmem:[%s2426 + $0xe8] sm:$0xff]
  %v2457 = vld [vmem:[%s2426 + $0xf0] sm:$0xff]
  %v2458 = vld [vmem:[%s2426 + $0xf8] sm:$0xff]
  %v2459 = vld [vmem:[%s2426 + $0x100] sm:$0xff]
  %v2460 = vld [vmem:[%s2426 + $0x108] sm:$0xff]
  %v2461 = vld [vmem:[%s2426 + $0x110] sm:$0xff]
  %v2462 = vld [vmem:[%s2426 + $0x118] sm:$0xff]
  %v2463 = vld [vmem:[%s2426 + $0x120] sm:$0xff]
  %v2464 = vld [vmem:[%s2426 + $0x128] sm:$0xff]
  %v2465 = vld [vmem:[%s2426 + $0x130] sm:$0xff]
  %v2466 = vld [vmem:[%s2426 + $0x138] sm:$0xff]
  %v2467 = vld [vmem:[%s2426 + $0x140] sm:$0xff]
  %v2468 = vld [vmem:[%s2426 + $0x148] sm:$0xff]
  %v2469 = vld [vmem:[%s2426 + $0x150] sm:$0xff]
  %v2470 = vld [vmem:[%s2426 + $0x158] sm:$0xff]
  %v2471 = vld [vmem:[%s2426 + $0x160] sm:$0xff]
  %v2472 = vld [vmem:[%s2426 + $0x168] sm:$0xff]
  %v2473 = vld [vmem:[%s2426 + $0x170] sm:$0xff]
  %v2474 = vld [vmem:[%s2426 + $0x178] sm:$0xff]
  %v2475 = vld [vmem:[%s2426 + $0x180] sm:$0xff]
  %v2476 = vld [vmem:[%s2426 + $0x188] sm:$0xff]
  %v2477 = vld [vmem:[%s2426 + $0x190] sm:$0xff]
  %v2478 = vld [vmem:[%s2426 + $0x198] sm:$0xff]
  %v2479 = vld [vmem:[%s2426 + $0x1a0] sm:$0xff]
  %v2480 = vld [vmem:[%s2426 + $0x1a8] sm:$0xff]
  %v2481 = vld [vmem:[%s2426 + $0x1b0] sm:$0xff]
  %v2482 = vld [vmem:[%s2426 + $0x1b8] sm:$0xff]
  %v2483 = vld [vmem:[%s2426 + $0x1c0] sm:$0xff]
  %v2484 = vld [vmem:[%s2426 + $0x1c8] sm:$0xff]
  %v2485 = vld [vmem:[%s2426 + $0x1d0] sm:$0xff]
  %v2486 = vld [vmem:[%s2426 + $0x1d8] sm:$0xff]
  %v2487 = vld [vmem:[%s2426 + $0x1e0] sm:$0xff]
  %v2488 = vld [vmem:[%s2426 + $0x1e8] sm:$0xff]
  %v2489 = vld [vmem:[%s2426 + $0x1f0] sm:$0xff]
  %v2490 = vld [vmem:[%s2426 + $0x1f8] sm:$0xff]
  %v2491 = vld [vmem:[%s2426 + $0x200] sm:$0xff]
  %v2492 = vld [vmem:[%s2426 + $0x208] sm:$0xff]
  %v2493 = vld [vmem:[%s2426 + $0x210] sm:$0xff]
  %v2494 = vld [vmem:[%s2426 + $0x218] sm:$0xff]
  %v2495 = vld [vmem:[%s2426 + $0x220] sm:$0xff]
  %v2496 = vld [vmem:[%s2426 + $0x228] sm:$0xff]
  %v2497 = vld [vmem:[%s2426 + $0x230] sm:$0xff]
  %v2498 = vld [vmem:[%s2426 + $0x238] sm:$0xff]
  %v2499 = vld [vmem:[%s2426 + $0x240] sm:$0xff]
  %v2500 = vld [vmem:[%s2426 + $0x248] sm:$0xff]
  %v2501 = vld [vmem:[%s2426 + $0x250] sm:$0xff]
  %v2502 = vld [vmem:[%s2426 + $0x258] sm:$0xff]
  %v2503 = vld [vmem:[%s2426 + $0x260] sm:$0xff]
  %v2504 = vld [vmem:[%s2426 + $0x268] sm:$0xff]
  %v2505 = vld [vmem:[%s2426 + $0x270] sm:$0xff]
  %v2506 = vld [vmem:[%s2426 + $0x278] sm:$0xff]
  %v2587 = vunpack.c.l.b16 %v2427
  %v2588 = vunpack.c.h.b16 %v2427
  %v2589 = vunpack.c.l.b16 %v2428
  %v2590 = vunpack.c.h.b16 %v2428
  %v2591 = vunpack.c.l.b16 %v2429
  %v2592 = vunpack.c.h.b16 %v2429
  %v2593 = vunpack.c.l.b16 %v2430
  %v2594 = vunpack.c.h.b16 %v2430
  %v2595 = vunpack.c.l.b16 %v2431
  %v2596 = vunpack.c.h.b16 %v2431
  %v2597 = vunpack.c.l.b16 %v2432
  %v2598 = vunpack.c.h.b16 %v2432
  %v2599 = vunpack.c.l.b16 %v2433
  %v2600 = vunpack.c.h.b16 %v2433
  %v2601 = vunpack.c.l.b16 %v2434
  %v2602 = vunpack.c.h.b16 %v2434
  %v2603 = vunpack.c.l.b16 %v2435
  %v2604 = vunpack.c.h.b16 %v2435
  %v2605 = vunpack.c.l.b16 %v2436
  %v2606 = vunpack.c.h.b16 %v2436
  %v2607 = vunpack.c.l.b16 %v2437
  %v2608 = vunpack.c.h.b16 %v2437
  %v2609 = vunpack.c.l.b16 %v2438
  %v2610 = vunpack.c.h.b16 %v2438
  %v2611 = vunpack.c.l.b16 %v2439
  %v2612 = vunpack.c.h.b16 %v2439
  %v2613 = vunpack.c.l.b16 %v2440
  %v2614 = vunpack.c.h.b16 %v2440
  %v2615 = vunpack.c.l.b16 %v2441
  %v2616 = vunpack.c.h.b16 %v2441
  %v2617 = vunpack.c.l.b16 %v2442
  %v2618 = vunpack.c.h.b16 %v2442
  %v2619 = vunpack.c.l.b16 %v2443
  %v2620 = vunpack.c.h.b16 %v2443
  %v2621 = vunpack.c.l.b16 %v2444
  %v2622 = vunpack.c.h.b16 %v2444
  %v2623 = vunpack.c.l.b16 %v2445
  %v2624 = vunpack.c.h.b16 %v2445
  %v2625 = vunpack.c.l.b16 %v2446
  %v2626 = vunpack.c.h.b16 %v2446
  %v2627 = vunpack.c.l.b16 %v2447
  %v2628 = vunpack.c.h.b16 %v2447
  %v2629 = vunpack.c.l.b16 %v2448
  %v2630 = vunpack.c.h.b16 %v2448
  %v2631 = vunpack.c.l.b16 %v2449
  %v2632 = vunpack.c.h.b16 %v2449
  %v2633 = vunpack.c.l.b16 %v2450
  %v2634 = vunpack.c.h.b16 %v2450
  %v2635 = vunpack.c.l.b16 %v2451
  %v2636 = vunpack.c.h.b16 %v2451
  %v2637 = vunpack.c.l.b16 %v2452
  %v2638 = vunpack.c.h.b16 %v2452
  %v2639 = vunpack.c.l.b16 %v2453
  %v2640 = vunpack.c.h.b16 %v2453
  %v2641 = vunpack.c.l.b16 %v2454
  %v2642 = vunpack.c.h.b16 %v2454
  %v2643 = vunpack.c.l.b16 %v2455
  %v2644 = vunpack.c.h.b16 %v2455
  %v2645 = vunpack.c.l.b16 %v2456
  %v2646 = vunpack.c.h.b16 %v2456
  %v2647 = vunpack.c.l.b16 %v2457
  %v2648 = vunpack.c.h.b16 %v2457
  %v2649 = vunpack.c.l.b16 %v2458
  %v2650 = vunpack.c.h.b16 %v2458
  %v2651 = vunpack.c.l.b16 %v2459
  %v2652 = vunpack.c.h.b16 %v2459
  %v2653 = vunpack.c.l.b16 %v2460
  %v2654 = vunpack.c.h.b16 %v2460
  %v2655 = vunpack.c.l.b16 %v2461
  %v2656 = vunpack.c.h.b16 %v2461
  %v2657 = vunpack.c.l.b16 %v2462
  %v2658 = vunpack.c.h.b16 %v2462
  %v2659 = vunpack.c.l.b16 %v2463
  %v2660 = vunpack.c.h.b16 %v2463
  %v2661 = vunpack.c.l.b16 %v2464
  %v2662 = vunpack.c.h.b16 %v2464
  %v2663 = vunpack.c.l.b16 %v2465
  %v2664 = vunpack.c.h.b16 %v2465
  %v2665 = vunpack.c.l.b16 %v2466
  %v2666 = vunpack.c.h.b16 %v2466
  %v2667 = vunpack.c.l.b16 %v2467
  %v2668 = vunpack.c.h.b16 %v2467
  %v2669 = vunpack.c.l.b16 %v2468
  %v2670 = vunpack.c.h.b16 %v2468
  %v2671 = vunpack.c.l.b16 %v2469
  %v2672 = vunpack.c.h.b16 %v2469
  %v2673 = vunpack.c.l.b16 %v2470
  %v2674 = vunpack.c.h.b16 %v2470
  %v2675 = vunpack.c.l.b16 %v2471
  %v2676 = vunpack.c.h.b16 %v2471
  %v2677 = vunpack.c.l.b16 %v2472
  %v2678 = vunpack.c.h.b16 %v2472
  %v2679 = vunpack.c.l.b16 %v2473
  %v2680 = vunpack.c.h.b16 %v2473
  %v2681 = vunpack.c.l.b16 %v2474
  %v2682 = vunpack.c.h.b16 %v2474
  %v2683 = vunpack.c.l.b16 %v2475
  %v2684 = vunpack.c.h.b16 %v2475
  %v2685 = vunpack.c.l.b16 %v2476
  %v2686 = vunpack.c.h.b16 %v2476
  %v2687 = vunpack.c.l.b16 %v2477
  %v2688 = vunpack.c.h.b16 %v2477
  %v2689 = vunpack.c.l.b16 %v2478
  %v2690 = vunpack.c.h.b16 %v2478
  %v2691 = vunpack.c.l.b16 %v2479
  %v2692 = vunpack.c.h.b16 %v2479
  %v2693 = vunpack.c.l.b16 %v2480
  %v2694 = vunpack.c.h.b16 %v2480
  %v2695 = vunpack.c.l.b16 %v2481
  %v2696 = vunpack.c.h.b16 %v2481
  %v2697 = vunpack.c.l.b16 %v2482
  %v2698 = vunpack.c.h.b16 %v2482
  %v2699 = vunpack.c.l.b16 %v2483
  %v2700 = vunpack.c.h.b16 %v2483
  %v2701 = vunpack.c.l.b16 %v2484
  %v2702 = vunpack.c.h.b16 %v2484
  %v2703 = vunpack.c.l.b16 %v2485
  %v2704 = vunpack.c.h.b16 %v2485
  %v2705 = vunpack.c.l.b16 %v2486
  %v2706 = vunpack.c.h.b16 %v2486
  %v2707 = vunpack.c.l.b16 %v2487
  %v2708 = vunpack.c.h.b16 %v2487
  %v2709 = vunpack.c.l.b16 %v2488
  %v2710 = vunpack.c.h.b16 %v2488
  %v2711 = vunpack.c.l.b16 %v2489
  %v2712 = vunpack.c.h.b16 %v2489
  %v2713 = vunpack.c.l.b16 %v2490
  %v2714 = vunpack.c.h.b16 %v2490
  %v2715 = vunpack.c.l.b16 %v2491
  %v2716 = vunpack.c.h.b16 %v2491
  %v2717 = vunpack.c.l.b16 %v2492
  %v2718 = vunpack.c.h.b16 %v2492
  %v2719 = vunpack.c.l.b16 %v2493
  %v2720 = vunpack.c.h.b16 %v2493
  %v2721 = vunpack.c.l.b16 %v2494
  %v2722 = vunpack.c.h.b16 %v2494
  %v2723 = vunpack.c.l.b16 %v2495
  %v2724 = vunpack.c.h.b16 %v2495
  %v2725 = vunpack.c.l.b16 %v2496
  %v2726 = vunpack.c.h.b16 %v2496
  %v2727 = vunpack.c.l.b16 %v2497
  %v2728 = vunpack.c.h.b16 %v2497
  %v2729 = vunpack.c.l.b16 %v2498
  %v2730 = vunpack.c.h.b16 %v2498
  %v2731 = vunpack.c.l.b16 %v2499
  %v2732 = vunpack.c.h.b16 %v2499
  %v2733 = vunpack.c.l.b16 %v2500
  %v2734 = vunpack.c.h.b16 %v2500
  %v2735 = vunpack.c.l.b16 %v2501
  %v2736 = vunpack.c.h.b16 %v2501
  %v2737 = vunpack.c.l.b16 %v2502
  %v2738 = vunpack.c.h.b16 %v2502
  %v2739 = vunpack.c.l.b16 %v2503
  %v2740 = vunpack.c.h.b16 %v2503
  %v2741 = vunpack.c.l.b16 %v2504
  %v2742 = vunpack.c.h.b16 %v2504
  %v2743 = vunpack.c.l.b16 %v2505
  %v2744 = vunpack.c.h.b16 %v2505
  %v2745 = vunpack.c.l.b16 %v2506
  %v2746 = vunpack.c.h.b16 %v2506
  %v2747 = vpack.c.b16 %v2591, %v2587
  %v2748 = vpack.c.b16 %v2592, %v2588
  %v2749 = vpack.c.b16 %v2593, %v2589
  %v2750 = vpack.c.b16 %v2594, %v2590
  %v2751 = vpack.c.b16 %v2599, %v2595
  %v2752 = vpack.c.b16 %v2600, %v2596
  %v2753 = vpack.c.b16 %v2601, %v2597
  %v2754 = vpack.c.b16 %v2602, %v2598
  %v2755 = vpack.c.b16 %v2607, %v2603
  %v2756 = vpack.c.b16 %v2608, %v2604
  %v2757 = vpack.c.b16 %v2609, %v2605
  %v2758 = vpack.c.b16 %v2610, %v2606
  %v2759 = vpack.c.b16 %v2615, %v2611
  %v2760 = vpack.c.b16 %v2616, %v2612
  %v2761 = vpack.c.b16 %v2617, %v2613
  %v2762 = vpack.c.b16 %v2618, %v2614
  %v2763 = vpack.c.b16 %v2623, %v2619
  %v2764 = vpack.c.b16 %v2624, %v2620
  %v2765 = vpack.c.b16 %v2625, %v2621
  %v2766 = vpack.c.b16 %v2626, %v2622
  %v2767 = vpack.c.b16 %v2631, %v2627
  %v2768 = vpack.c.b16 %v2632, %v2628
  %v2769 = vpack.c.b16 %v2633, %v2629
  %v2770 = vpack.c.b16 %v2634, %v2630
  %v2771 = vpack.c.b16 %v2639, %v2635
  %v2772 = vpack.c.b16 %v2640, %v2636
  %v2773 = vpack.c.b16 %v2641, %v2637
  %v2774 = vpack.c.b16 %v2642, %v2638
  %v2775 = vpack.c.b16 %v2647, %v2643
  %v2776 = vpack.c.b16 %v2648, %v2644
  %v2777 = vpack.c.b16 %v2649, %v2645
  %v2778 = vpack.c.b16 %v2650, %v2646
  %v2779 = vpack.c.b16 %v2655, %v2651
  %v2780 = vpack.c.b16 %v2656, %v2652
  %v2781 = vpack.c.b16 %v2657, %v2653
  %v2782 = vpack.c.b16 %v2658, %v2654
  %v2783 = vpack.c.b16 %v2663, %v2659
  %v2784 = vpack.c.b16 %v2664, %v2660
  %v2785 = vpack.c.b16 %v2665, %v2661
  %v2786 = vpack.c.b16 %v2666, %v2662
  %v2787 = vpack.c.b16 %v2671, %v2667
  %v2788 = vpack.c.b16 %v2672, %v2668
  %v2789 = vpack.c.b16 %v2673, %v2669
  %v2790 = vpack.c.b16 %v2674, %v2670
  %v2791 = vpack.c.b16 %v2679, %v2675
  %v2792 = vpack.c.b16 %v2680, %v2676
  %v2793 = vpack.c.b16 %v2681, %v2677
  %v2794 = vpack.c.b16 %v2682, %v2678
  %v2795 = vpack.c.b16 %v2687, %v2683
  %v2796 = vpack.c.b16 %v2688, %v2684
  %v2797 = vpack.c.b16 %v2689, %v2685
  %v2798 = vpack.c.b16 %v2690, %v2686
  %v2799 = vpack.c.b16 %v2695, %v2691
  %v2800 = vpack.c.b16 %v2696, %v2692
  %v2801 = vpack.c.b16 %v2697, %v2693
  %v2802 = vpack.c.b16 %v2698, %v2694
  %v2803 = vpack.c.b16 %v2703, %v2699
  %v2804 = vpack.c.b16 %v2704, %v2700
  %v2805 = vpack.c.b16 %v2705, %v2701
  %v2806 = vpack.c.b16 %v2706, %v2702
  %v2807 = vpack.c.b16 %v2711, %v2707
  %v2808 = vpack.c.b16 %v2712, %v2708
  %v2809 = vpack.c.b16 %v2713, %v2709
  %v2810 = vpack.c.b16 %v2714, %v2710
  %v2811 = vpack.c.b16 %v2719, %v2715
  %v2812 = vpack.c.b16 %v2720, %v2716
  %v2813 = vpack.c.b16 %v2721, %v2717
  %v2814 = vpack.c.b16 %v2722, %v2718
  %v2815 = vpack.c.b16 %v2727, %v2723
  %v2816 = vpack.c.b16 %v2728, %v2724
  %v2817 = vpack.c.b16 %v2729, %v2725
  %v2818 = vpack.c.b16 %v2730, %v2726
  %v2819 = vpack.c.b16 %v2735, %v2731
  %v2820 = vpack.c.b16 %v2736, %v2732
  %v2821 = vpack.c.b16 %v2737, %v2733
  %v2822 = vpack.c.b16 %v2738, %v2734
  %v2823 = vpack.c.b16 %v2743, %v2739
  %v2824 = vpack.c.b16 %v2744, %v2740
  %v2825 = vpack.c.b16 %v2745, %v2741
  %v2826 = vpack.c.b16 %v2746, %v2742
  %2907 = vmatprep.subr.bf16.mxu0 %v2748
  %2908 = vmatpush1.bf16.msra.mxu0 %v2747
  %2909 = vmatprep.subr.bf16.mxu0 %v2752
  %2910 = vmatpush1.bf16.msra.mxu0 %v2751
  %2911 = vmatprep.subr.bf16.mxu0 %v2756
  %2912 = vmatpush1.bf16.msra.mxu0 %v2755
  %2913 = vmatprep.subr.bf16.mxu0 %v2760
  %2914 = vmatpush1.bf16.msra.mxu0 %v2759
  %2915 = vmatprep.subr.bf16.mxu0 %v2764
  %2916 = vmatpush1.bf16.msra.mxu0 %v2763
  %2917 = vmatprep.subr.bf16.mxu0 %v2768
  %2918 = vmatpush1.bf16.msra.mxu0 %v2767
  %2919 = vmatprep.subr.bf16.mxu0 %v2772
  %2920 = vmatpush1.bf16.msra.mxu0 %v2771
  %2921 = vmatprep.subr.bf16.mxu0 %v2776
  %2922 = vmatpush1.bf16.msra.mxu0 %v2775
  %2923 = vmatprep.subr.bf16.mxu0 %v2780
  %2924 = vmatpush1.bf16.msra.mxu0 %v2779
  %2925 = vmatprep.subr.bf16.mxu0 %v2784
  %2926 = vmatpush1.bf16.msra.mxu0 %v2783
  %2927 = vmatprep.subr.bf16.mxu0 %v2788
  %2928 = vmatpush1.bf16.msra.mxu0 %v2787
  %2929 = vmatprep.subr.bf16.mxu0 %v2792
  %2930 = vmatpush1.bf16.msra.mxu0 %v2791
  %2931 = vmatprep.subr.bf16.mxu0 %v2796
  %2932 = vmatpush1.bf16.msra.mxu0 %v2795
  %2933 = vmatprep.subr.bf16.mxu0 %v2800
  %2934 = vmatpush1.bf16.msra.mxu0 %v2799
  %2935 = vmatprep.subr.bf16.mxu0 %v2804
  %2936 = vmatpush1.bf16.msra.mxu0 %v2803
  %2937 = vmatprep.subr.bf16.mxu0 %v2808
  %2938 = vmatpush1.bf16.msra.mxu0 %v2807
  %2939 = vmatprep.mubr.bf16.mxu0 %v1338
  %2940 = vmatmul.mubr.bf16.gmra.mrb[0].mxu0 %v1337
  %v2941 = vpop.f32.mrb[0].mxu0
  %v2942 = vadd.f32 0.0, %v2941
  %v2943 = vpop.f32.mrb[0].mxu0
  %v2944 = vadd.f32 0.0, %v2943
  %v2945 = vpop.f32.mrb[0].mxu0
  %v2946 = vadd.f32 0.0, %v2945
  %v2947 = vpop.f32.mrb[0].mxu0
  %v2948 = vadd.f32 0.0, %v2947
  %2949 = vmatprep.mubr.bf16.mxu0 %v1341
  %2950 = vmatmul.mubr.bf16.gmra.mrb[0].mxu0 %v1340
  %v2951 = vpop.f32.mrb[0].mxu0
  %v2952 = vadd.f32 0.0, %v2951
  %v2953 = vpop.f32.mrb[0].mxu0
  %v2954 = vadd.f32 0.0, %v2953
  %v2955 = vpop.f32.mrb[0].mxu0
  %v2956 = vadd.f32 0.0, %v2955
  %v2957 = vpop.f32.mrb[0].mxu0
  %v2958 = vadd.f32 0.0, %v2957
  %2959 = vmatprep.mubr.bf16.mxu0 %v1344
  %2960 = vmatmul.mubr.bf16.gmra.mrb[0].mxu0 %v1343
  %v2961 = vpop.f32.mrb[0].mxu0
  %v2962 = vadd.f32 0.0, %v2961
  %v2963 = vpop.f32.mrb[0].mxu0
  %v2964 = vadd.f32 0.0, %v2963
  %v2965 = vpop.f32.mrb[0].mxu0
  %v2966 = vadd.f32 0.0, %v2965
  %v2967 = vpop.f32.mrb[0].mxu0
  %v2968 = vadd.f32 0.0, %v2967
  %2969 = vmatprep.mubr.bf16.mxu0 %v1347
  %2970 = vmatmul.mubr.bf16.gmra.mrb[0].mxu0 %v1346
  %v2971 = vpop.f32.mrb[0].mxu0
  %v2972 = vadd.f32 0.0, %v2971
  %v2973 = vpop.f32.mrb[0].mxu0
  %v2974 = vadd.f32 0.0, %v2973
  %v2975 = vpop.f32.mrb[0].mxu0
  %v2976 = vadd.f32 0.0, %v2975
  %v2977 = vpop.f32.mrb[0].mxu0
  %v2978 = vadd.f32 0.0, %v2977
  %2979 = vmatprep.mubr.bf16.mxu0 %v1350
  %2980 = vmatmul.mubr.bf16.gmra.mrb[0].mxu0 %v1349
  %v2981 = vpop.f32.mrb[0].mxu0
  %v2982 = vadd.f32 0.0, %v2981
  %v2983 = vpop.f32.mrb[0].mxu0
  %v2984 = vadd.f32 0.0, %v2983
  %v2985 = vpop.f32.mrb[0].mxu0
  %v2986 = vadd.f32 0.0, %v2985
  %v2987 = vpop.f32.mrb[0].mxu0
  %v2988 = vadd.f32 0.0, %v2987
  %2989 = vdwg.mxu0
  %2990 = vmatprep.subr.bf16.mxu0 %v2812
  %2991 = vmatpush1.bf16.msra.mxu0 %v2811
  %2992 = vmatprep.subr.bf16.mxu0 %v2816
  %2993 = vmatpush1.bf16.msra.mxu0 %v2815
  %2994 = vmatprep.subr.bf16.mxu0 %v2820
  %2995 = vmatpush1.bf16.msra.mxu0 %v2819
  %2996 = vmatprep.subr.bf16.mxu0 %v2824
  %2997 = vmatpush1.bf16.msra.mxu0 %v2823
  %2998 = vmatprep.subr.bf16.mxu0 0
  %2999 = vmatpush1.bf16.msra.mxu0 0
  %3000 = vmatprep.subr.bf16.mxu0 0
  %3001 = vmatpush1.bf16.msra.mxu0 0
  %3002 = vmatprep.subr.bf16.mxu0 0
  %3003 = vmatpush1.bf16.msra.mxu0 0
  %3004 = vmatprep.subr.bf16.mxu0 0
  %3005 = vmatpush1.bf16.msra.mxu0 0
  %3006 = vmatprep.subr.bf16.mxu0 0
  %3007 = vmatpush1.bf16.msra.mxu0 0
  %3008 = vmatprep.subr.bf16.mxu0 0
  %3009 = vmatpush1.bf16.msra.mxu0 0
  %3010 = vmatprep.subr.bf16.mxu0 0
  %3011 = vmatpush1.bf16.msra.mxu0 0
  %3012 = vmatprep.subr.bf16.mxu0 0
  %3013 = vmatpush1.bf16.msra.mxu0 0
  %3014 = vmatprep.subr.bf16.mxu0 0
  %3015 = vmatpush1.bf16.msra.mxu0 0
  %3016 = vmatprep.subr.bf16.mxu0 0
  %3017 = vmatpush1.bf16.msra.mxu0 0
  %3018 = vmatprep.subr.bf16.mxu0 0
  %3019 = vmatpush1.bf16.msra.mxu0 0
  %3020 = vmatprep.subr.bf16.mxu0 0
  %3021 = vmatpush1.bf16.msra.mxu0 0
  %3022 = vmatprep.mubr.bf16.mxu0 0
  %3023 = vmatmul.mubr.bf16.gmra.mrb[0].mxu0 %v1960
  %v3024 = vpop.f32.mrb[0].mxu0
  %v3025 = vadd.f32 %v2942, %v3024
  %v3026 = vpop.f32.mrb[0].mxu0
  %v3027 = vadd.f32 %v2944, %v3026
  %v3028 = vpop.f32.mrb[0].mxu0
  %v3029 = vadd.f32 %v2946, %v3028
  %v3030 = vpop.f32.mrb[0].mxu0
  %v3031 = vadd.f32 %v2948, %v3030
  %3032 = vmatprep.mubr.bf16.mxu0 0
  %3033 = vmatmul.mubr.bf16.gmra.mrb[0].mxu0 %v1963
  %v3034 = vpop.f32.mrb[0].mxu0
  %v3035 = vadd.f32 %v2952, %v3034
  %v3036 = vpop.f32.mrb[0].mxu0
  %v3037 = vadd.f32 %v2954, %v3036
  %v3038 = vpop.f32.mrb[0].mxu0
  %v3039 = vadd.f32 %v2956, %v3038
  %v3040 = vpop.f32.mrb[0].mxu0
  %v3041 = vadd.f32 %v2958, %v3040
  %3042 = vmatprep.mubr.bf16.mxu0 0
  %3043 = vmatmul.mubr.bf16.gmra.mrb[0].mxu0 %v1966
  %v3044 = vpop.f32.mrb[0].mxu0
  %v3045 = vadd.f32 %v2962, %v3044
  %v3046 = vpop.f32.mrb[0].mxu0
  %v3047 = vadd.f32 %v2964, %v3046
  %v3048 = vpop.f32.mrb[0].mxu0
  %v3049 = vadd.f32 %v2966, %v3048
  %v3050 = vpop.f32.mrb[0].mxu0
  %v3051 = vadd.f32 %v2968, %v3050
  %3052 = vmatprep.mubr.bf16.mxu0 0
  %3053 = vmatmul.mubr.bf16.gmra.mrb[0].mxu0 %v1969
  %v3054 = vpop.f32.mrb[0].mxu0
  %v3055 = vadd.f32 %v2972, %v3054
  %v3056 = vpop.f32.mrb[0].mxu0
  %v3057 = vadd.f32 %v2974, %v3056
  %v3058 = vpop.f32.mrb[0].mxu0
  %v3059 = vadd.f32 %v2976, %v3058
  %v3060 = vpop.f32.mrb[0].mxu0
  %v3061 = vadd.f32 %v2978, %v3060
  %3062 = vmatprep.mubr.bf16.mxu0 0
  %3063 = vmatmul.mubr.bf16.gmra.mrb[0].mxu0 %v1972
  %v3064 = vpop.f32.mrb[0].mxu0
  %v3065 = vadd.f32 %v2982, %v3064
  %v3066 = vpop.f32.mrb[0].mxu0
  %v3067 = vadd.f32 %v2984, %v3066
  %v3068 = vpop.f32.mrb[0].mxu0
  %v3069 = vadd.f32 %v2986, %v3068
  %v3070 = vpop.f32.mrb[0].mxu0
  %v3071 = vadd.f32 %v2988, %v3070
  %3072 = vdwg.mxu0
  %3073 = vmatprep.subr.bf16.mxu0 %v2750
  %3074 = vmatpush1.bf16.msra.mxu0 %v2749
  %3075 = vmatprep.subr.bf16.mxu0 %v2754
  %3076 = vmatpush1.bf16.msra.mxu0 %v2753
  %3077 = vmatprep.subr.bf16.mxu0 %v2758
  %3078 = vmatpush1.bf16.msra.mxu0 %v2757
  %3079 = vmatprep.subr.bf16.mxu0 %v2762
  %3080 = vmatpush1.bf16.msra.mxu0 %v2761
  %3081 = vmatprep.subr.bf16.mxu0 %v2766
  %3082 = vmatpush1.bf16.msra.mxu0 %v2765
  %3083 = vmatprep.subr.bf16.mxu0 %v2770
  %3084 = vmatpush1.bf16.msra.mxu0 %v2769
  %3085 = vmatprep.subr.bf16.mxu0 %v2774
  %3086 = vmatpush1.bf16.msra.mxu0 %v2773
  %3087 = vmatprep.subr.bf16.mxu0 %v2778
  %3088 = vmatpush1.bf16.msra.mxu0 %v2777
  %3089 = vmatprep.subr.bf16.mxu0 %v2782
  %3090 = vmatpush1.bf16.msra.mxu0 %v2781
  %3091 = vmatprep.subr.bf16.mxu0 %v2786
  %3092 = vmatpush1.bf16.msra.mxu0 %v2785
  %3093 = vmatprep.subr.bf16.mxu0 %v2790
  %3094 = vmatpush1.bf16.msra.mxu0 %v2789
  %3095 = vmatprep.subr.bf16.mxu0 %v2794
  %3096 = vmatpush1.bf16.msra.mxu0 %v2793
  %3097 = vmatprep.subr.bf16.mxu0 %v2798
  %3098 = vmatpush1.bf16.msra.mxu0 %v2797
  %3099 = vmatprep.subr.bf16.mxu0 %v2802
  %3100 = vmatpush1.bf16.msra.mxu0 %v2801
  %3101 = vmatprep.subr.bf16.mxu0 %v2806
  %3102 = vmatpush1.bf16.msra.mxu0 %v2805
  %3103 = vmatprep.subr.bf16.mxu0 %v2810
  %3104 = vmatpush1.bf16.msra.mxu0 %v2809
  %3105 = vmatprep.mubr.bf16.mxu0 %v1338
  %3106 = vmatmul.mubr.bf16.gmra.mrb[0].mxu0 %v1337
  %v3107 = vpop.f32.mrb[0].mxu0
  %v3108 = vadd.f32 0.0, %v3107
  %v3109 = vpop.f32.mrb[0].mxu0
  %v3110 = vadd.f32 0.0, %v3109
  %v3111 = vpop.f32.mrb[0].mxu0
  %v3112 = vadd.f32 0.0, %v3111
  %v3113 = vpop.f32.mrb[0].mxu0
  %v3114 = vadd.f32 0.0, %v3113
  %3115 = vmatprep.mubr.bf16.mxu0 %v1341
  %3116 = vmatmul.mubr.bf16.gmra.mrb[0].mxu0 %v1340
  %v3117 = vpop.f32.mrb[0].mxu0
  %v3118 = vadd.f32 0.0, %v3117
  %v3119 = vpop.f32.mrb[0].mxu0
  %v3120 = vadd.f32 0.0, %v3119
  %v3121 = vpop.f32.mrb[0].mxu0
  %v3122 = vadd.f32 0.0, %v3121
  %v3123 = vpop.f32.mrb[0].mxu0
  %v3124 = vadd.f32 0.0, %v3123
  %3125 = vmatprep.mubr.bf16.mxu0 %v1344
  %3126 = vmatmul.mubr.bf16.gmra.mrb[0].mxu0 %v1343
  %v3127 = vpop.f32.mrb[0].mxu0
  %v3128 = vadd.f32 0.0, %v3127
  %v3129 = vpop.f32.mrb[0].mxu0
  %v3130 = vadd.f32 0.0, %v3129
  %v3131 = vpop.f32.mrb[0].mxu0
  %v3132 = vadd.f32 0.0, %v3131
  %v3133 = vpop.f32.mrb[0].mxu0
  %v3134 = vadd.f32 0.0, %v3133
  %3135 = vmatprep.mubr.bf16.mxu0 %v1347
  %3136 = vmatmul.mubr.bf16.gmra.mrb[0].mxu0 %v1346
  %v3137 = vpop.f32.mrb[0].mxu0
  %v3138 = vadd.f32 0.0, %v3137
  %v3139 = vpop.f32.mrb[0].mxu0
  %v3140 = vadd.f32 0.0, %v3139
  %v3141 = vpop.f32.mrb[0].mxu0
  %v3142 = vadd.f32 0.0, %v3141
  %v3143 = vpop.f32.mrb[0].mxu0
  %v3144 = vadd.f32 0.0, %v3143
  %3145 = vmatprep.mubr.bf16.mxu0 %v1350
  %3146 = vmatmul.mubr.bf16.gmra.mrb[0].mxu0 %v1349
  %v3147 = vpop.f32.mrb[0].mxu0
  %v3148 = vadd.f32 0.0, %v3147
  %v3149 = vpop.f32.mrb[0].mxu0
  %v3150 = vadd.f32 0.0, %v3149
  %v3151 = vpop.f32.mrb[0].mxu0
  %v3152 = vadd.f32 0.0, %v3151
  %v3153 = vpop.f32.mrb[0].mxu0
  %v3154 = vadd.f32 0.0, %v3153
  %3155 = vdwg.mxu0
  %3156 = vmatprep.subr.bf16.mxu0 %v2814
  %3157 = vmatpush1.bf16.msra.mxu0 %v2813
  %3158 = vmatprep.subr.bf16.mxu0 %v2818
  %3159 = vmatpush1.bf16.msra.mxu0 %v2817
  %3160 = vmatprep.subr.bf16.mxu0 %v2822
  %3161 = vmatpush1.bf16.msra.mxu0 %v2821
  %3162 = vmatprep.subr.bf16.mxu0 %v2826
  %3163 = vmatpush1.bf16.msra.mxu0 %v2825
  %3164 = vmatprep.subr.bf16.mxu0 0
  %3165 = vmatpush1.bf16.msra.mxu0 0
  %3166 = vmatprep.subr.bf16.mxu0 0
  %3167 = vmatpush1.bf16.msra.mxu0 0
  %3168 = vmatprep.subr.bf16.mxu0 0
  %3169 = vmatpush1.bf16.msra.mxu0 0
  %3170 = vmatprep.subr.bf16.mxu0 0
  %3171 = vmatpush1.bf16.msra.mxu0 0
  %3172 = vmatprep.subr.bf16.mxu0 0
  %3173 = vmatpush1.bf16.msra.mxu0 0
  %3174 = vmatprep.subr.bf16.mxu0 0
  %3175 = vmatpush1.bf16.msra.mxu0 0
  %3176 = vmatprep.subr.bf16.mxu0 0
  %3177 = vmatpush1.bf16.msra.mxu0 0
  %3178 = vmatprep.subr.bf16.mxu0 0
  %3179 = vmatpush1.bf16.msra.mxu0 0
  %3180 = vmatprep.subr.bf16.mxu0 0
  %3181 = vmatpush1.bf16.msra.mxu0 0
  %3182 = vmatprep.subr.bf16.mxu0 0
  %3183 = vmatpush1.bf16.msra.mxu0 0
  %3184 = vmatprep.subr.bf16.mxu0 0
  %3185 = vmatpush1.bf16.msra.mxu0 0
  %3186 = vmatprep.subr.bf16.mxu0 0
  %3187 = vmatpush1.bf16.msra.mxu0 0
  %3188 = vmatprep.mubr.bf16.mxu0 0
  %3189 = vmatmul.mubr.bf16.gmra.mrb[0].mxu0 %v1960
  %v3190 = vpop.f32.mrb[0].mxu0
  %v3191 = vadd.f32 %v3108, %v3190
  %v3192 = vpop.f32.mrb[0].mxu0
  %v3193 = vadd.f32 %v3110, %v3192
  %v3194 = vpop.f32.mrb[0].mxu0
  %v3195 = vadd.f32 %v3112, %v3194
  %v3196 = vpop.f32.mrb[0].mxu0
  %v3197 = vadd.f32 %v3114, %v3196
  %3198 = vmatprep.mubr.bf16.mxu0 0
  %3199 = vmatmul.mubr.bf16.gmra.mrb[0].mxu0 %v1963
  %v3200 = vpop.f32.mrb[0].mxu0
  %v3201 = vadd.f32 %v3118, %v3200
  %v3202 = vpop.f32.mrb[0].mxu0
  %v3203 = vadd.f32 %v3120, %v3202
  %v3204 = vpop.f32.mrb[0].mxu0
  %v3205 = vadd.f32 %v3122, %v3204
  %v3206 = vpop.f32.mrb[0].mxu0
  %v3207 = vadd.f32 %v3124, %v3206
  %3208 = vmatprep.mubr.bf16.mxu0 0
  %3209 = vmatmul.mubr.bf16.gmra.mrb[0].mxu0 %v1966
  %v3210 = vpop.f32.mrb[0].mxu0
  %v3211 = vadd.f32 %v3128, %v3210
  %v3212 = vpop.f32.mrb[0].mxu0
  %v3213 = vadd.f32 %v3130, %v3212
  %v3214 = vpop.f32.mrb[0].mxu0
  %v3215 = vadd.f32 %v3132, %v3214
  %v3216 = vpop.f32.mrb[0].mxu0
  %v3217 = vadd.f32 %v3134, %v3216
  %3218 = vmatprep.mubr.bf16.mxu0 0
  %3219 = vmatmul.mubr.bf16.gmra.mrb[0].mxu0 %v1969
  %v3220 = vpop.f32.mrb[0].mxu0
  %v3221 = vadd.f32 %v3138, %v3220
  %v3222 = vpop.f32.mrb[0].mxu0
  %v3223 = vadd.f32 %v3140, %v3222
  %v3224 = vpop.f32.mrb[0].mxu0
  %v3225 = vadd.f32 %v3142, %v3224
  %v3226 = vpop.f32.mrb[0].mxu0
  %v3227 = vadd.f32 %v3144, %v3226
  %3228 = vmatprep.mubr.bf16.mxu0 0
  %3229 = vmatmul.mubr.bf16.gmra.mrb[0].mxu0 %v1972
  %v3230 = vpop.f32.mrb[0].mxu0
  %v3231 = vadd.f32 %v3148, %v3230
  %v3232 = vpop.f32.mrb[0].mxu0
  %v3233 = vadd.f32 %v3150, %v3232
  %v3234 = vpop.f32.mrb[0].mxu0
  %v3235 = vadd.f32 %v3152, %v3234
  %v3236 = vpop.f32.mrb[0].mxu0
  %v3237 = vadd.f32 %v3154, %v3236
  %3238 = vdwg.mxu0
  %v3239 = vld [vmem:[#allocation4] sm:$0xff]
  %v3240 = vld [vmem:[#allocation4 + $0x8] sm:$0xff]
  %v3241 = vld [vmem:[#allocation4 + $0x10] sm:$0xff]
  %v3242 = vld [vmem:[#allocation4 + $0x18] sm:$0xff]
  %v3243 = vld [vmem:[#allocation4 + $0x20] sm:$0xff]
  %v3244 = vld [vmem:[#allocation4 + $0x28] sm:$0xff]
  %v3245 = vld [vmem:[#allocation4 + $0x30] sm:$0xff]
  %v3246 = vld [vmem:[#allocation4 + $0x38] sm:$0xff]
  %v3247 = vld [vmem:[#allocation4 + $0x40] sm:$0xff]
  %v3248 = vld [vmem:[#allocation4 + $0x48] sm:$0xff]
  %v3249 = vld [vmem:[#allocation4 + $0x50] sm:$0xff]
  %v3250 = vld [vmem:[#allocation4 + $0x58] sm:$0xff]
  %v3251 = vld [vmem:[#allocation4 + $0x60] sm:$0xff]
  %v3252 = vld [vmem:[#allocation4 + $0x68] sm:$0xff]
  %v3253 = vld [vmem:[#allocation4 + $0x70] sm:$0xff]
  %v3254 = vld [vmem:[#allocation4 + $0x78] sm:$0xff]
  %v3255 = vld [vmem:[#allocation4 + $0x80] sm:$0xff]
  %v3256 = vld [vmem:[#allocation4 + $0x88] sm:$0xff]
  %v3257 = vld [vmem:[#allocation4 + $0x90] sm:$0xff]
  %v3258 = vld [vmem:[#allocation4 + $0x98] sm:$0xff]
  %v3259 = vld [vmem:[#allocation4 + $0xa0] sm:$0xff]
  %v3260 = vld [vmem:[#allocation4 + $0xa8] sm:$0xff]
  %v3261 = vld [vmem:[#allocation4 + $0xb0] sm:$0xff]
  %v3262 = vld [vmem:[#allocation4 + $0xb8] sm:$0xff]
  %v3263 = vld [vmem:[#allocation4 + $0xc0] sm:$0xff]
  %v3264 = vld [vmem:[#allocation4 + $0xc8] sm:$0xff]
  %v3265 = vld [vmem:[#allocation4 + $0xd0] sm:$0xff]
  %v3266 = vld [vmem:[#allocation4 + $0xd8] sm:$0xff]
  %v3267 = vld [vmem:[#allocation4 + $0xe0] sm:$0xff]
  %v3268 = vld [vmem:[#allocation4 + $0xe8] sm:$0xff]
  %v3269 = vld [vmem:[#allocation4 + $0xf0] sm:$0xff]
  %v3270 = vld [vmem:[#allocation4 + $0xf8] sm:$0xff]
  %v3271 = vld [vmem:[#allocation4 + $0x100] sm:$0xff]
  %v3272 = vld [vmem:[#allocation4 + $0x108] sm:$0xff]
  %v3273 = vld [vmem:[#allocation4 + $0x110] sm:$0xff]
  %v3274 = vld [vmem:[#allocation4 + $0x118] sm:$0xff]
  %v3275 = vld [vmem:[#allocation4 + $0x120] sm:$0xff]
  %v3276 = vld [vmem:[#allocation4 + $0x128] sm:$0xff]
  %v3277 = vld [vmem:[#allocation4 + $0x130] sm:$0xff]
  %v3278 = vld [vmem:[#allocation4 + $0x138] sm:$0xff]
  %v3279 = vadd.f32 %v3239, %v3025
  %v3280 = vadd.f32 %v3240, %v3027
  %v3281 = vadd.f32 %v3241, %v3191
  %v3282 = vadd.f32 %v3242, %v3193
  %v3283 = vadd.f32 %v3243, %v3029
  %v3284 = vadd.f32 %v3244, %v3031
  %v3285 = vadd.f32 %v3245, %v3195
  %v3286 = vadd.f32 %v3246, %v3197
  %v3287 = vadd.f32 %v3247, %v3035
  %v3288 = vadd.f32 %v3248, %v3037
  %v3289 = vadd.f32 %v3249, %v3201
  %v3290 = vadd.f32 %v3250, %v3203
  %v3291 = vadd.f32 %v3251, %v3039
  %v3292 = vadd.f32 %v3252, %v3041
  %v3293 = vadd.f32 %v3253, %v3205
  %v3294 = vadd.f32 %v3254, %v3207
  %v3295 = vadd.f32 %v3255, %v3045
  %v3296 = vadd.f32 %v3256, %v3047
  %v3297 = vadd.f32 %v3257, %v3211
  %v3298 = vadd.f32 %v3258, %v3213
  %v3299 = vadd.f32 %v3259, %v3049
  %v3300 = vadd.f32 %v3260, %v3051
  %v3301 = vadd.f32 %v3261, %v3215
  %v3302 = vadd.f32 %v3262, %v3217
  %v3303 = vadd.f32 %v3263, %v3055
  %v3304 = vadd.f32 %v3264, %v3057
  %v3305 = vadd.f32 %v3265, %v3221
  %v3306 = vadd.f32 %v3266, %v3223
  %v3307 = vadd.f32 %v3267, %v3059
  %v3308 = vadd.f32 %v3268, %v3061
  %v3309 = vadd.f32 %v3269, %v3225
  %v3310 = vadd.f32 %v3270, %v3227
  %v3311 = vadd.f32 %v3271, %v3065
  %v3312 = vadd.f32 %v3272, %v3067
  %v3313 = vadd.f32 %v3273, %v3231
  %v3314 = vadd.f32 %v3274, %v3233
  %v3315 = vadd.f32 %v3275, %v3069
  %v3316 = vadd.f32 %v3276, %v3071
  %v3317 = vadd.f32 %v3277, %v3235
  %v3318 = vadd.f32 %v3278, %v3237
  %3319 = vst [vmem:[#allocation4] sm:$0xff] %v3279
  %3320 = vst [vmem:[#allocation4 + $0x8] sm:$0xff] %v3280
  %3321 = vst [vmem:[#allocation4 + $0x10] sm:$0xff] %v3281
  %3322 = vst.msk [vmem:[#allocation4 + $0x18] sm:$0xff] %vm1377, %v3282
  %3323 = vst [vmem:[#allocation4 + $0x20] sm:$0xff] %v3283
  %3324 = vst [vmem:[#allocation4 + $0x28] sm:$0xff] %v3284
  %3325 = vst [vmem:[#allocation4 + $0x30] sm:$0xff] %v3285
  %3326 = vst.msk [vmem:[#allocation4 + $0x38] sm:$0xff] %vm1377, %v3286
  %3327 = vst [vmem:[#allocation4 + $0x40] sm:$0xff] %v3287
  %3328 = vst [vmem:[#allocation4 + $0x48] sm:$0xff] %v3288
  %3329 = vst [vmem:[#allocation4 + $0x50] sm:$0xff] %v3289
  %3330 = vst.msk [vmem:[#allocation4 + $0x58] sm:$0xff] %vm1377, %v3290
  %3331 = vst [vmem:[#allocation4 + $0x60] sm:$0xff] %v3291
  %3332 = vst [vmem:[#allocation4 + $0x68] sm:$0xff] %v3292
  %3333 = vst [vmem:[#allocation4 + $0x70] sm:$0xff] %v3293
  %3334 = vst.msk [vmem:[#allocation4 + $0x78] sm:$0xff] %vm1377, %v3294
  %3335 = vst [vmem:[#allocation4 + $0x80] sm:$0xff] %v3295
  %3336 = vst [vmem:[#allocation4 + $0x88] sm:$0xff] %v3296
  %3337 = vst [vmem:[#allocation4 + $0x90] sm:$0xff] %v3297
  %3338 = vst.msk [vmem:[#allocation4 + $0x98] sm:$0xff] %vm1377, %v3298
  %3339 = vst [vmem:[#allocation4 + $0xa0] sm:$0xff] %v3299
  %3340 = vst [vmem:[#allocation4 + $0xa8] sm:$0xff] %v3300
  %3341 = vst [vmem:[#allocation4 + $0xb0] sm:$0xff] %v3301
  %3342 = vst.msk [vmem:[#allocation4 + $0xb8] sm:$0xff] %vm1377, %v3302
  %3343 = vst [vmem:[#allocation4 + $0xc0] sm:$0xff] %v3303
  %3344 = vst [vmem:[#allocation4 + $0xc8] sm:$0xff] %v3304
  %3345 = vst [vmem:[#allocation4 + $0xd0] sm:$0xff] %v3305
  %3346 = vst.msk [vmem:[#allocation4 + $0xd8] sm:$0xff] %vm1377, %v3306
  %3347 = vst [vmem:[#allocation4 + $0xe0] sm:$0xff] %v3307
  %3348 = vst [vmem:[#allocation4 + $0xe8] sm:$0xff] %v3308
  %3349 = vst [vmem:[#allocation4 + $0xf0] sm:$0xff] %v3309
  %3350 = vst.msk [vmem:[#allocation4 + $0xf8] sm:$0xff] %vm1377, %v3310
  %3351 = vst [vmem:[#allocation4 + $0x100] sm:$0xff] %v3311
  %3352 = vst [vmem:[#allocation4 + $0x108] sm:$0xff] %v3312
  %3353 = vst [vmem:[#allocation4 + $0x110] sm:$0xff] %v3313
  %3354 = vst.msk [vmem:[#allocation4 + $0x118] sm:$0xff] %vm1377, %v3314
  %3355 = vst [vmem:[#allocation4 + $0x120] sm:$0xff] %v3315
  %3356 = vst [vmem:[#allocation4 + $0x128] sm:$0xff] %v3316
  %3357 = vst [vmem:[#allocation4 + $0x130] sm:$0xff] %v3317
  %3358 = vst.msk [vmem:[#allocation4 + $0x138] sm:$0xff] %vm1377, %v3318
  %s3359 = scalar_lea.vmem %s3, 1280
  %v3360 = vld [vmem:[%s3359] sm:$0xff]
  %v3361 = vld [vmem:[%s3359 + $0x8] sm:$0xff]
  %v3362 = vld [vmem:[%s3359 + $0x10] sm:$0xff]
  %v3363 = vld [vmem:[%s3359 + $0x18] sm:$0xff]
  %v3364 = vld [vmem:[%s3359 + $0x20] sm:$0xff]
  %v3365 = vld [vmem:[%s3359 + $0x28] sm:$0xff]
  %v3366 = vld [vmem:[%s3359 + $0x30] sm:$0xff]
  %v3367 = vld [vmem:[%s3359 + $0x38] sm:$0xff]
  %v3368 = vld [vmem:[%s3359 + $0x40] sm:$0xff]
  %v3369 = vld [vmem:[%s3359 + $0x48] sm:$0xff]
  %v3370 = vld [vmem:[%s3359 + $0x50] sm:$0xff]
  %v3371 = vld [vmem:[%s3359 + $0x58] sm:$0xff]
  %v3372 = vld [vmem:[%s3359 + $0x60] sm:$0xff]
  %v3373 = vld [vmem:[%s3359 + $0x68] sm:$0xff]
  %v3374 = vld [vmem:[%s3359 + $0x70] sm:$0xff]
  %v3375 = vld [vmem:[%s3359 + $0x78] sm:$0xff]
  %v3376 = vld [vmem:[%s3359 + $0x80] sm:$0xff]
  %v3377 = vld [vmem:[%s3359 + $0x88] sm:$0xff]
  %v3378 = vld [vmem:[%s3359 + $0x90] sm:$0xff]
  %v3379 = vld [vmem:[%s3359 + $0x98] sm:$0xff]
  %v3380 = vld [vmem:[%s3359 + $0xa0] sm:$0xff]
  %v3381 = vld [vmem:[%s3359 + $0xa8] sm:$0xff]
  %v3382 = vld [vmem:[%s3359 + $0xb0] sm:$0xff]
  %v3383 = vld [vmem:[%s3359 + $0xb8] sm:$0xff]
  %v3384 = vld [vmem:[%s3359 + $0xc0] sm:$0xff]
  %v3385 = vld [vmem:[%s3359 + $0xc8] sm:$0xff]
  %v3386 = vld [vmem:[%s3359 + $0xd0] sm:$0xff]
  %v3387 = vld [vmem:[%s3359 + $0xd8] sm:$0xff]
  %v3388 = vld [vmem:[%s3359 + $0xe0] sm:$0xff]
  %v3389 = vld [vmem:[%s3359 + $0xe8] sm:$0xff]
  %v3390 = vld [vmem:[%s3359 + $0xf0] sm:$0xff]
  %v3391 = vld [vmem:[%s3359 + $0xf8] sm:$0xff]
  %v3392 = vld [vmem:[%s3359 + $0x100] sm:$0xff]
  %v3393 = vld [vmem:[%s3359 + $0x108] sm:$0xff]
  %v3394 = vld [vmem:[%s3359 + $0x110] sm:$0xff]
  %v3395 = vld [vmem:[%s3359 + $0x118] sm:$0xff]
  %v3396 = vld [vmem:[%s3359 + $0x120] sm:$0xff]
  %v3397 = vld [vmem:[%s3359 + $0x128] sm:$0xff]
  %v3398 = vld [vmem:[%s3359 + $0x130] sm:$0xff]
  %v3399 = vld [vmem:[%s3359 + $0x138] sm:$0xff]
  %v3400 = vld [vmem:[%s3359 + $0x140] sm:$0xff]
  %v3401 = vld [vmem:[%s3359 + $0x148] sm:$0xff]
  %v3402 = vld [vmem:[%s3359 + $0x150] sm:$0xff]
  %v3403 = vld [vmem:[%s3359 + $0x158] sm:$0xff]
  %v3404 = vld [vmem:[%s3359 + $0x160] sm:$0xff]
  %v3405 = vld [vmem:[%s3359 + $0x168] sm:$0xff]
  %v3406 = vld [vmem:[%s3359 + $0x170] sm:$0xff]
  %v3407 = vld [vmem:[%s3359 + $0x178] sm:$0xff]
  %v3408 = vld [vmem:[%s3359 + $0x180] sm:$0xff]
  %v3409 = vld [vmem:[%s3359 + $0x188] sm:$0xff]
  %v3410 = vld [vmem:[%s3359 + $0x190] sm:$0xff]
  %v3411 = vld [vmem:[%s3359 + $0x198] sm:$0xff]
  %v3412 = vld [vmem:[%s3359 + $0x1a0] sm:$0xff]
  %v3413 = vld [vmem:[%s3359 + $0x1a8] sm:$0xff]
  %v3414 = vld [vmem:[%s3359 + $0x1b0] sm:$0xff]
  %v3415 = vld [vmem:[%s3359 + $0x1b8] sm:$0xff]
  %v3416 = vld [vmem:[%s3359 + $0x1c0] sm:$0xff]
  %v3417 = vld [vmem:[%s3359 + $0x1c8] sm:$0xff]
  %v3418 = vld [vmem:[%s3359 + $0x1d0] sm:$0xff]
  %v3419 = vld [vmem:[%s3359 + $0x1d8] sm:$0xff]
  %v3420 = vld [vmem:[%s3359 + $0x1e0] sm:$0xff]
  %v3421 = vld [vmem:[%s3359 + $0x1e8] sm:$0xff]
  %v3422 = vld [vmem:[%s3359 + $0x1f0] sm:$0xff]
  %v3423 = vld [vmem:[%s3359 + $0x1f8] sm:$0xff]
  %v3424 = vld [vmem:[%s3359 + $0x200] sm:$0xff]
  %v3425 = vld [vmem:[%s3359 + $0x208] sm:$0xff]
  %v3426 = vld [vmem:[%s3359 + $0x210] sm:$0xff]
  %v3427 = vld [vmem:[%s3359 + $0x218] sm:$0xff]
  %v3428 = vld [vmem:[%s3359 + $0x220] sm:$0xff]
  %v3429 = vld [vmem:[%s3359 + $0x228] sm:$0xff]
  %v3430 = vld [vmem:[%s3359 + $0x230] sm:$0xff]
  %v3431 = vld [vmem:[%s3359 + $0x238] sm:$0xff]
  %v3432 = vld [vmem:[%s3359 + $0x240] sm:$0xff]
  %v3433 = vld [vmem:[%s3359 + $0x248] sm:$0xff]
  %v3434 = vld [vmem:[%s3359 + $0x250] sm:$0xff]
  %v3435 = vld [vmem:[%s3359 + $0x258] sm:$0xff]
  %v3436 = vld [vmem:[%s3359 + $0x260] sm:$0xff]
  %v3437 = vld [vmem:[%s3359 + $0x268] sm:$0xff]
  %v3438 = vld [vmem:[%s3359 + $0x270] sm:$0xff]
  %v3439 = vld [vmem:[%s3359 + $0x278] sm:$0xff]
  %v3520 = vunpack.c.l.b16 %v3360
  %v3521 = vunpack.c.h.b16 %v3360
  %v3522 = vunpack.c.l.b16 %v3361
  %v3523 = vunpack.c.h.b16 %v3361
  %v3524 = vunpack.c.l.b16 %v3362
  %v3525 = vunpack.c.h.b16 %v3362
  %v3526 = vunpack.c.l.b16 %v3363
  %v3527 = vunpack.c.h.b16 %v3363
  %v3528 = vunpack.c.l.b16 %v3364
  %v3529 = vunpack.c.h.b16 %v3364
  %v3530 = vunpack.c.l.b16 %v3365
  %v3531 = vunpack.c.h.b16 %v3365
  %v3532 = vunpack.c.l.b16 %v3366
  %v3533 = vunpack.c.h.b16 %v3366
  %v3534 = vunpack.c.l.b16 %v3367
  %v3535 = vunpack.c.h.b16 %v3367
  %v3536 = vunpack.c.l.b16 %v3368
  %v3537 = vunpack.c.h.b16 %v3368
  %v3538 = vunpack.c.l.b16 %v3369
  %v3539 = vunpack.c.h.b16 %v3369
  %v3540 = vunpack.c.l.b16 %v3370
  %v3541 = vunpack.c.h.b16 %v3370
  %v3542 = vunpack.c.l.b16 %v3371
  %v3543 = vunpack.c.h.b16 %v3371
  %v3544 = vunpack.c.l.b16 %v3372
  %v3545 = vunpack.c.h.b16 %v3372
  %v3546 = vunpack.c.l.b16 %v3373
  %v3547 = vunpack.c.h.b16 %v3373
  %v3548 = vunpack.c.l.b16 %v3374
  %v3549 = vunpack.c.h.b16 %v3374
  %v3550 = vunpack.c.l.b16 %v3375
  %v3551 = vunpack.c.h.b16 %v3375
  %v3552 = vunpack.c.l.b16 %v3376
  %v3553 = vunpack.c.h.b16 %v3376
  %v3554 = vunpack.c.l.b16 %v3377
  %v3555 = vunpack.c.h.b16 %v3377
  %v3556 = vunpack.c.l.b16 %v3378
  %v3557 = vunpack.c.h.b16 %v3378
  %v3558 = vunpack.c.l.b16 %v3379
  %v3559 = vunpack.c.h.b16 %v3379
  %v3560 = vunpack.c.l.b16 %v3380
  %v3561 = vunpack.c.h.b16 %v3380
  %v3562 = vunpack.c.l.b16 %v3381
  %v3563 = vunpack.c.h.b16 %v3381
  %v3564 = vunpack.c.l.b16 %v3382
  %v3565 = vunpack.c.h.b16 %v3382
  %v3566 = vunpack.c.l.b16 %v3383
  %v3567 = vunpack.c.h.b16 %v3383
  %v3568 = vunpack.c.l.b16 %v3384
  %v3569 = vunpack.c.h.b16 %v3384
  %v3570 = vunpack.c.l.b16 %v3385
  %v3571 = vunpack.c.h.b16 %v3385
  %v3572 = vunpack.c.l.b16 %v3386
  %v3573 = vunpack.c.h.b16 %v3386
  %v3574 = vunpack.c.l.b16 %v3387
  %v3575 = vunpack.c.h.b16 %v3387
  %v3576 = vunpack.c.l.b16 %v3388
  %v3577 = vunpack.c.h.b16 %v3388
  %v3578 = vunpack.c.l.b16 %v3389
  %v3579 = vunpack.c.h.b16 %v3389
  %v3580 = vunpack.c.l.b16 %v3390
  %v3581 = vunpack.c.h.b16 %v3390
  %v3582 = vunpack.c.l.b16 %v3391
  %v3583 = vunpack.c.h.b16 %v3391
  %v3584 = vunpack.c.l.b16 %v3392
  %v3585 = vunpack.c.h.b16 %v3392
  %v3586 = vunpack.c.l.b16 %v3393
  %v3587 = vunpack.c.h.b16 %v3393
  %v3588 = vunpack.c.l.b16 %v3394
  %v3589 = vunpack.c.h.b16 %v3394
  %v3590 = vunpack.c.l.b16 %v3395
  %v3591 = vunpack.c.h.b16 %v3395
  %v3592 = vunpack.c.l.b16 %v3396
  %v3593 = vunpack.c.h.b16 %v3396
  %v3594 = vunpack.c.l.b16 %v3397
  %v3595 = vunpack.c.h.b16 %v3397
  %v3596 = vunpack.c.l.b16 %v3398
  %v3597 = vunpack.c.h.b16 %v3398
  %v3598 = vunpack.c.l.b16 %v3399
  %v3599 = vunpack.c.h.b16 %v3399
  %v3600 = vunpack.c.l.b16 %v3400
  %v3601 = vunpack.c.h.b16 %v3400
  %v3602 = vunpack.c.l.b16 %v3401
  %v3603 = vunpack.c.h.b16 %v3401
  %v3604 = vunpack.c.l.b16 %v3402
  %v3605 = vunpack.c.h.b16 %v3402
  %v3606 = vunpack.c.l.b16 %v3403
  %v3607 = vunpack.c.h.b16 %v3403
  %v3608 = vunpack.c.l.b16 %v3404
  %v3609 = vunpack.c.h.b16 %v3404
  %v3610 = vunpack.c.l.b16 %v3405
  %v3611 = vunpack.c.h.b16 %v3405
  %v3612 = vunpack.c.l.b16 %v3406
  %v3613 = vunpack.c.h.b16 %v3406
  %v3614 = vunpack.c.l.b16 %v3407
  %v3615 = vunpack.c.h.b16 %v3407
  %v3616 = vunpack.c.l.b16 %v3408
  %v3617 = vunpack.c.h.b16 %v3408
  %v3618 = vunpack.c.l.b16 %v3409
  %v3619 = vunpack.c.h.b16 %v3409
  %v3620 = vunpack.c.l.b16 %v3410
  %v3621 = vunpack.c.h.b16 %v3410
  %v3622 = vunpack.c.l.b16 %v3411
  %v3623 = vunpack.c.h.b16 %v3411
  %v3624 = vunpack.c.l.b16 %v3412
  %v3625 = vunpack.c.h.b16 %v3412
  %v3626 = vunpack.c.l.b16 %v3413
  %v3627 = vunpack.c.h.b16 %v3413
  %v3628 = vunpack.c.l.b16 %v3414
  %v3629 = vunpack.c.h.b16 %v3414
  %v3630 = vunpack.c.l.b16 %v3415
  %v3631 = vunpack.c.h.b16 %v3415
  %v3632 = vunpack.c.l.b16 %v3416
  %v3633 = vunpack.c.h.b16 %v3416
  %v3634 = vunpack.c.l.b16 %v3417
  %v3635 = vunpack.c.h.b16 %v3417
  %v3636 = vunpack.c.l.b16 %v3418
  %v3637 = vunpack.c.h.b16 %v3418
  %v3638 = vunpack.c.l.b16 %v3419
  %v3639 = vunpack.c.h.b16 %v3419
  %v3640 = vunpack.c.l.b16 %v3420
  %v3641 = vunpack.c.h.b16 %v3420
  %v3642 = vunpack.c.l.b16 %v3421
  %v3643 = vunpack.c.h.b16 %v3421
  %v3644 = vunpack.c.l.b16 %v3422
  %v3645 = vunpack.c.h.b16 %v3422
  %v3646 = vunpack.c.l.b16 %v3423
  %v3647 = vunpack.c.h.b16 %v3423
  %v3648 = vunpack.c.l.b16 %v3424
  %v3649 = vunpack.c.h.b16 %v3424
  %v3650 = vunpack.c.l.b16 %v3425
  %v3651 = vunpack.c.h.b16 %v3425
  %v3652 = vunpack.c.l.b16 %v3426
  %v3653 = vunpack.c.h.b16 %v3426
  %v3654 = vunpack.c.l.b16 %v3427
  %v3655 = vunpack.c.h.b16 %v3427
  %v3656 = vunpack.c.l.b16 %v3428
  %v3657 = vunpack.c.h.b16 %v3428
  %v3658 = vunpack.c.l.b16 %v3429
  %v3659 = vunpack.c.h.b16 %v3429
  %v3660 = vunpack.c.l.b16 %v3430
  %v3661 = vunpack.c.h.b16 %v3430
  %v3662 = vunpack.c.l.b16 %v3431
  %v3663 = vunpack.c.h.b16 %v3431
  %v3664 = vunpack.c.l.b16 %v3432
  %v3665 = vunpack.c.h.b16 %v3432
  %v3666 = vunpack.c.l.b16 %v3433
  %v3667 = vunpack.c.h.b16 %v3433
  %v3668 = vunpack.c.l.b16 %v3434
  %v3669 = vunpack.c.h.b16 %v3434
  %v3670 = vunpack.c.l.b16 %v3435
  %v3671 = vunpack.c.h.b16 %v3435
  %v3672 = vunpack.c.l.b16 %v3436
  %v3673 = vunpack.c.h.b16 %v3436
  %v3674 = vunpack.c.l.b16 %v3437
  %v3675 = vunpack.c.h.b16 %v3437
  %v3676 = vunpack.c.l.b16 %v3438
  %v3677 = vunpack.c.h.b16 %v3438
  %v3678 = vunpack.c.l.b16 %v3439
  %v3679 = vunpack.c.h.b16 %v3439
  %v3680 = vpack.c.b16 %v3524, %v3520
  %v3681 = vpack.c.b16 %v3525, %v3521
  %v3682 = vpack.c.b16 %v3526, %v3522
  %v3683 = vpack.c.b16 %v3527, %v3523
  %v3684 = vpack.c.b16 %v3532, %v3528
  %v3685 = vpack.c.b16 %v3533, %v3529
  %v3686 = vpack.c.b16 %v3534, %v3530
  %v3687 = vpack.c.b16 %v3535, %v3531
  %v3688 = vpack.c.b16 %v3540, %v3536
  %v3689 = vpack.c.b16 %v3541, %v3537
  %v3690 = vpack.c.b16 %v3542, %v3538
  %v3691 = vpack.c.b16 %v3543, %v3539
  %v3692 = vpack.c.b16 %v3548, %v3544
  %v3693 = vpack.c.b16 %v3549, %v3545
  %v3694 = vpack.c.b16 %v3550, %v3546
  %v3695 = vpack.c.b16 %v3551, %v3547
  %v3696 = vpack.c.b16 %v3556, %v3552
  %v3697 = vpack.c.b16 %v3557, %v3553
  %v3698 = vpack.c.b16 %v3558, %v3554
  %v3699 = vpack.c.b16 %v3559, %v3555
  %v3700 = vpack.c.b16 %v3564, %v3560
  %v3701 = vpack.c.b16 %v3565, %v3561
  %v3702 = vpack.c.b16 %v3566, %v3562
  %v3703 = vpack.c.b16 %v3567, %v3563
  %v3704 = vpack.c.b16 %v3572, %v3568
  %v3705 = vpack.c.b16 %v3573, %v3569
  %v3706 = vpack.c.b16 %v3574, %v3570
  %v3707 = vpack.c.b16 %v3575, %v3571
  %v3708 = vpack.c.b16 %v3580, %v3576
  %v3709 = vpack.c.b16 %v3581, %v3577
  %v3710 = vpack.c.b16 %v3582, %v3578
  %v3711 = vpack.c.b16 %v3583, %v3579
  %v3712 = vpack.c.b16 %v3588, %v3584
  %v3713 = vpack.c.b16 %v3589, %v3585
  %v3714 = vpack.c.b16 %v3590, %v3586
  %v3715 = vpack.c.b16 %v3591, %v3587
  %v3716 = vpack.c.b16 %v3596, %v3592
  %v3717 = vpack.c.b16 %v3597, %v3593
  %v3718 = vpack.c.b16 %v3598, %v3594
  %v3719 = vpack.c.b16 %v3599, %v3595
  %v3720 = vpack.c.b16 %v3604, %v3600
  %v3721 = vpack.c.b16 %v3605, %v3601
  %v3722 = vpack.c.b16 %v3606, %v3602
  %v3723 = vpack.c.b16 %v3607, %v3603
  %v3724 = vpack.c.b16 %v3612, %v3608
  %v3725 = vpack.c.b16 %v3613, %v3609
  %v3726 = vpack.c.b16 %v3614, %v3610
  %v3727 = vpack.c.b16 %v3615, %v3611
  %v3728 = vpack.c.b16 %v3620, %v3616
  %v3729 = vpack.c.b16 %v3621, %v3617
  %v3730 = vpack.c.b16 %v3622, %v3618
  %v3731 = vpack.c.b16 %v3623, %v3619
  %v3732 = vpack.c.b16 %v3628, %v3624
  %v3733 = vpack.c.b16 %v3629, %v3625
  %v3734 = vpack.c.b16 %v3630, %v3626
  %v3735 = vpack.c.b16 %v3631, %v3627
  %v3736 = vpack.c.b16 %v3636, %v3632
  %v3737 = vpack.c.b16 %v3637, %v3633
  %v3738 = vpack.c.b16 %v3638, %v3634
  %v3739 = vpack.c.b16 %v3639, %v3635
  %v3740 = vpack.c.b16 %v3644, %v3640
  %v3741 = vpack.c.b16 %v3645, %v3641
  %v3742 = vpack.c.b16 %v3646, %v3642
  %v3743 = vpack.c.b16 %v3647, %v3643
  %v3744 = vpack.c.b16 %v3652, %v3648
  %v3745 = vpack.c.b16 %v3653, %v3649
  %v3746 = vpack.c.b16 %v3654, %v3650
  %v3747 = vpack.c.b16 %v3655, %v3651
  %v3748 = vpack.c.b16 %v3660, %v3656
  %v3749 = vpack.c.b16 %v3661, %v3657
  %v3750 = vpack.c.b16 %v3662, %v3658
  %v3751 = vpack.c.b16 %v3663, %v3659
  %v3752 = vpack.c.b16 %v3668, %v3664
  %v3753 = vpack.c.b16 %v3669, %v3665
  %v3754 = vpack.c.b16 %v3670, %v3666
  %v3755 = vpack.c.b16 %v3671, %v3667
  %v3756 = vpack.c.b16 %v3676, %v3672
  %v3757 = vpack.c.b16 %v3677, %v3673
  %v3758 = vpack.c.b16 %v3678, %v3674
  %v3759 = vpack.c.b16 %v3679, %v3675
  %3840 = vmatprep.subr.bf16.mxu0 %v3681
  %3841 = vmatpush1.bf16.msra.mxu0 %v3680
  %3842 = vmatprep.subr.bf16.mxu0 %v3685
  %3843 = vmatpush1.bf16.msra.mxu0 %v3684
  %3844 = vmatprep.subr.bf16.mxu0 %v3689
  %3845 = vmatpush1.bf16.msra.mxu0 %v3688
  %3846 = vmatprep.subr.bf16.mxu0 %v3693
  %3847 = vmatpush1.bf16.msra.mxu0 %v3692
  %3848 = vmatprep.subr.bf16.mxu0 %v3697
  %3849 = vmatpush1.bf16.msra.mxu0 %v3696
  %3850 = vmatprep.subr.bf16.mxu0 %v3701
  %3851 = vmatpush1.bf16.msra.mxu0 %v3700
  %3852 = vmatprep.subr.bf16.mxu0 %v3705
  %3853 = vmatpush1.bf16.msra.mxu0 %v3704
  %3854 = vmatprep.subr.bf16.mxu0 %v3709
  %3855 = vmatpush1.bf16.msra.mxu0 %v3708
  %3856 = vmatprep.subr.bf16.mxu0 %v3713
  %3857 = vmatpush1.bf16.msra.mxu0 %v3712
  %3858 = vmatprep.subr.bf16.mxu0 %v3717
  %3859 = vmatpush1.bf16.msra.mxu0 %v3716
  %3860 = vmatprep.subr.bf16.mxu0 %v3721
  %3861 = vmatpush1.bf16.msra.mxu0 %v3720
  %3862 = vmatprep.subr.bf16.mxu0 %v3725
  %3863 = vmatpush1.bf16.msra.mxu0 %v3724
  %3864 = vmatprep.subr.bf16.mxu0 %v3729
  %3865 = vmatpush1.bf16.msra.mxu0 %v3728
  %3866 = vmatprep.subr.bf16.mxu0 %v3733
  %3867 = vmatpush1.bf16.msra.mxu0 %v3732
  %3868 = vmatprep.subr.bf16.mxu0 %v3737
  %3869 = vmatpush1.bf16.msra.mxu0 %v3736
  %3870 = vmatprep.subr.bf16.mxu0 %v3741
  %3871 = vmatpush1.bf16.msra.mxu0 %v3740
  %3872 = vmatprep.mubr.bf16.mxu0 %v1338
  %3873 = vmatmul.mubr.bf16.gmra.mrb[0].mxu0 %v1337
  %v3874 = vpop.f32.mrb[0].mxu0
  %v3875 = vadd.f32 0.0, %v3874
  %v3876 = vpop.f32.mrb[0].mxu0
  %v3877 = vadd.f32 0.0, %v3876
  %v3878 = vpop.f32.mrb[0].mxu0
  %v3879 = vadd.f32 0.0, %v3878
  %v3880 = vpop.f32.mrb[0].mxu0
  %v3881 = vadd.f32 0.0, %v3880
  %3882 = vmatprep.mubr.bf16.mxu0 %v1341
  %3883 = vmatmul.mubr.bf16.gmra.mrb[0].mxu0 %v1340
  %v3884 = vpop.f32.mrb[0].mxu0
  %v3885 = vadd.f32 0.0, %v3884
  %v3886 = vpop.f32.mrb[0].mxu0
  %v3887 = vadd.f32 0.0, %v3886
  %v3888 = vpop.f32.mrb[0].mxu0
  %v3889 = vadd.f32 0.0, %v3888
  %v3890 = vpop.f32.mrb[0].mxu0
  %v3891 = vadd.f32 0.0, %v3890
  %3892 = vmatprep.mubr.bf16.mxu0 %v1344
  %3893 = vmatmul.mubr.bf16.gmra.mrb[0].mxu0 %v1343
  %v3894 = vpop.f32.mrb[0].mxu0
  %v3895 = vadd.f32 0.0, %v3894
  %v3896 = vpop.f32.mrb[0].mxu0
  %v3897 = vadd.f32 0.0, %v3896
  %v3898 = vpop.f32.mrb[0].mxu0
  %v3899 = vadd.f32 0.0, %v3898
  %v3900 = vpop.f32.mrb[0].mxu0
  %v3901 = vadd.f32 0.0, %v3900
  %3902 = vmatprep.mubr.bf16.mxu0 %v1347
  %3903 = vmatmul.mubr.bf16.gmra.mrb[0].mxu0 %v1346
  %v3904 = vpop.f32.mrb[0].mxu0
  %v3905 = vadd.f32 0.0, %v3904
  %v3906 = vpop.f32.mrb[0].mxu0
  %v3907 = vadd.f32 0.0, %v3906
  %v3908 = vpop.f32.mrb[0].mxu0
  %v3909 = vadd.f32 0.0, %v3908
  %v3910 = vpop.f32.mrb[0].mxu0
  %v3911 = vadd.f32 0.0, %v3910
  %3912 = vmatprep.mubr.bf16.mxu0 %v1350
  %3913 = vmatmul.mubr.bf16.gmra.mrb[0].mxu0 %v1349
  %v3914 = vpop.f32.mrb[0].mxu0
  %v3915 = vadd.f32 0.0, %v3914
  %v3916 = vpop.f32.mrb[0].mxu0
  %v3917 = vadd.f32 0.0, %v3916
  %v3918 = vpop.f32.mrb[0].mxu0
  %v3919 = vadd.f32 0.0, %v3918
  %v3920 = vpop.f32.mrb[0].mxu0
  %v3921 = vadd.f32 0.0, %v3920
  %3922 = vdwg.mxu0
  %3923 = vmatprep.subr.bf16.mxu0 %v3745
  %3924 = vmatpush1.bf16.msra.mxu0 %v3744
  %3925 = vmatprep.subr.bf16.mxu0 %v3749
  %3926 = vmatpush1.bf16.msra.mxu0 %v3748
  %3927 = vmatprep.subr.bf16.mxu0 %v3753
  %3928 = vmatpush1.bf16.msra.mxu0 %v3752
  %3929 = vmatprep.subr.bf16.mxu0 %v3757
  %3930 = vmatpush1.bf16.msra.mxu0 %v3756
  %3931 = vmatprep.subr.bf16.mxu0 0
  %3932 = vmatpush1.bf16.msra.mxu0 0
  %3933 = vmatprep.subr.bf16.mxu0 0
  %3934 = vmatpush1.bf16.msra.mxu0 0
  %3935 = vmatprep.subr.bf16.mxu0 0
  %3936 = vmatpush1.bf16.msra.mxu0 0
  %3937 = vmatprep.subr.bf16.mxu0 0
  %3938 = vmatpush1.bf16.msra.mxu0 0
  %3939 = vmatprep.subr.bf16.mxu0 0
  %3940 = vmatpush1.bf16.msra.mxu0 0
  %3941 = vmatprep.subr.bf16.mxu0 0
  %3942 = vmatpush1.bf16.msra.mxu0 0
  %3943 = vmatprep.subr.bf16.mxu0 0
  %3944 = vmatpush1.bf16.msra.mxu0 0
  %3945 = vmatprep.subr.bf16.mxu0 0
  %3946 = vmatpush1.bf16.msra.mxu0 0
  %3947 = vmatprep.subr.bf16.mxu0 0
  %3948 = vmatpush1.bf16.msra.mxu0 0
  %3949 = vmatprep.subr.bf16.mxu0 0
  %3950 = vmatpush1.bf16.msra.mxu0 0
  %3951 = vmatprep.subr.bf16.mxu0 0
  %3952 = vmatpush1.bf16.msra.mxu0 0
  %3953 = vmatprep.subr.bf16.mxu0 0
  %3954 = vmatpush1.bf16.msra.mxu0 0
  %3955 = vmatprep.mubr.bf16.mxu0 0
  %3956 = vmatmul.mubr.bf16.gmra.mrb[0].mxu0 %v1960
  %v3957 = vpop.f32.mrb[0].mxu0
  %v3958 = vadd.f32 %v3875, %v3957
  %v3959 = vpop.f32.mrb[0].mxu0
  %v3960 = vadd.f32 %v3877, %v3959
  %v3961 = vpop.f32.mrb[0].mxu0
  %v3962 = vadd.f32 %v3879, %v3961
  %v3963 = vpop.f32.mrb[0].mxu0
  %v3964 = vadd.f32 %v3881, %v3963
  %3965 = vmatprep.mubr.bf16.mxu0 0
  %3966 = vmatmul.mubr.bf16.gmra.mrb[0].mxu0 %v1963
  %v3967 = vpop.f32.mrb[0].mxu0
  %v3968 = vadd.f32 %v3885, %v3967
  %v3969 = vpop.f32.mrb[0].mxu0
  %v3970 = vadd.f32 %v3887, %v3969
  %v3971 = vpop.f32.mrb[0].mxu0
  %v3972 = vadd.f32 %v3889, %v3971
  %v3973 = vpop.f32.mrb[0].mxu0
  %v3974 = vadd.f32 %v3891, %v3973
  %3975 = vmatprep.mubr.bf16.mxu0 0
  %3976 = vmatmul.mubr.bf16.gmra.mrb[0].mxu0 %v1966
  %v3977 = vpop.f32.mrb[0].mxu0
  %v3978 = vadd.f32 %v3895, %v3977
  %v3979 = vpop.f32.mrb[0].mxu0
  %v3980 = vadd.f32 %v3897, %v3979
  %v3981 = vpop.f32.mrb[0].mxu0
  %v3982 = vadd.f32 %v3899, %v3981
  %v3983 = vpop.f32.mrb[0].mxu0
  %v3984 = vadd.f32 %v3901, %v3983
  %3985 = vmatprep.mubr.bf16.mxu0 0
  %3986 = vmatmul.mubr.bf16.gmra.mrb[0].mxu0 %v1969
  %v3987 = vpop.f32.mrb[0].mxu0
  %v3988 = vadd.f32 %v3905, %v3987
  %v3989 = vpop.f32.mrb[0].mxu0
  %v3990 = vadd.f32 %v3907, %v3989
  %v3991 = vpop.f32.mrb[0].mxu0
  %v3992 = vadd.f32 %v3909, %v3991
  %v3993 = vpop.f32.mrb[0].mxu0
  %v3994 = vadd.f32 %v3911, %v3993
  %3995 = vmatprep.mubr.bf16.mxu0 0
  %3996 = vmatmul.mubr.bf16.gmra.mrb[0].mxu0 %v1972
  %v3997 = vpop.f32.mrb[0].mxu0
  %v3998 = vadd.f32 %v3915, %v3997
  %v3999 = vpop.f32.mrb[0].mxu0
  %v4000 = vadd.f32 %v3917, %v3999
  %v4001 = vpop.f32.mrb[0].mxu0
  %v4002 = vadd.f32 %v3919, %v4001
  %v4003 = vpop.f32.mrb[0].mxu0
  %v4004 = vadd.f32 %v3921, %v4003
  %4005 = vdwg.mxu0
  %4006 = vmatprep.subr.bf16.mxu0 %v3683
  %4007 = vmatpush1.bf16.msra.mxu0 %v3682
  %4008 = vmatprep.subr.bf16.mxu0 %v3687
  %4009 = vmatpush1.bf16.msra.mxu0 %v3686
  %4010 = vmatprep.subr.bf16.mxu0 %v3691
  %4011 = vmatpush1.bf16.msra.mxu0 %v3690
  %4012 = vmatprep.subr.bf16.mxu0 %v3695
  %4013 = vmatpush1.bf16.msra.mxu0 %v3694
  %4014 = vmatprep.subr.bf16.mxu0 %v3699
  %4015 = vmatpush1.bf16.msra.mxu0 %v3698
  %4016 = vmatprep.subr.bf16.mxu0 %v3703
  %4017 = vmatpush1.bf16.msra.mxu0 %v3702
  %4018 = vmatprep.subr.bf16.mxu0 %v3707
  %4019 = vmatpush1.bf16.msra.mxu0 %v3706
  %4020 = vmatprep.subr.bf16.mxu0 %v3711
  %4021 = vmatpush1.bf16.msra.mxu0 %v3710
  %4022 = vmatprep.subr.bf16.mxu0 %v3715
  %4023 = vmatpush1.bf16.msra.mxu0 %v3714
  %4024 = vmatprep.subr.bf16.mxu0 %v3719
  %4025 = vmatpush1.bf16.msra.mxu0 %v3718
  %4026 = vmatprep.subr.bf16.mxu0 %v3723
  %4027 = vmatpush1.bf16.msra.mxu0 %v3722
  %4028 = vmatprep.subr.bf16.mxu0 %v3727
  %4029 = vmatpush1.bf16.msra.mxu0 %v3726
  %4030 = vmatprep.subr.bf16.mxu0 %v3731
  %4031 = vmatpush1.bf16.msra.mxu0 %v3730
  %4032 = vmatprep.subr.bf16.mxu0 %v3735
  %4033 = vmatpush1.bf16.msra.mxu0 %v3734
  %4034 = vmatprep.subr.bf16.mxu0 %v3739
  %4035 = vmatpush1.bf16.msra.mxu0 %v3738
  %4036 = vmatprep.subr.bf16.mxu0 %v3743
  %4037 = vmatpush1.bf16.msra.mxu0 %v3742
  %4038 = vmatprep.mubr.bf16.mxu0 %v1338
  %4039 = vmatmul.mubr.bf16.gmra.mrb[0].mxu0 %v1337
  %v4040 = vpop.f32.mrb[0].mxu0
  %v4041 = vadd.f32 0.0, %v4040
  %v4042 = vpop.f32.mrb[0].mxu0
  %v4043 = vadd.f32 0.0, %v4042
  %v4044 = vpop.f32.mrb[0].mxu0
  %v4045 = vadd.f32 0.0, %v4044
  %v4046 = vpop.f32.mrb[0].mxu0
  %v4047 = vadd.f32 0.0, %v4046
  %4048 = vmatprep.mubr.bf16.mxu0 %v1341
  %4049 = vmatmul.mubr.bf16.gmra.mrb[0].mxu0 %v1340
  %v4050 = vpop.f32.mrb[0].mxu0
  %v4051 = vadd.f32 0.0, %v4050
  %v4052 = vpop.f32.mrb[0].mxu0
  %v4053 = vadd.f32 0.0, %v4052
  %v4054 = vpop.f32.mrb[0].mxu0
  %v4055 = vadd.f32 0.0, %v4054
  %v4056 = vpop.f32.mrb[0].mxu0
  %v4057 = vadd.f32 0.0, %v4056
  %4058 = vmatprep.mubr.bf16.mxu0 %v1344
  %4059 = vmatmul.mubr.bf16.gmra.mrb[0].mxu0 %v1343
  %v4060 = vpop.f32.mrb[0].mxu0
  %v4061 = vadd.f32 0.0, %v4060
  %v4062 = vpop.f32.mrb[0].mxu0
  %v4063 = vadd.f32 0.0, %v4062
  %v4064 = vpop.f32.mrb[0].mxu0
  %v4065 = vadd.f32 0.0, %v4064
  %v4066 = vpop.f32.mrb[0].mxu0
  %v4067 = vadd.f32 0.0, %v4066
  %4068 = vmatprep.mubr.bf16.mxu0 %v1347
  %4069 = vmatmul.mubr.bf16.gmra.mrb[0].mxu0 %v1346
  %v4070 = vpop.f32.mrb[0].mxu0
  %v4071 = vadd.f32 0.0, %v4070
  %v4072 = vpop.f32.mrb[0].mxu0
  %v4073 = vadd.f32 0.0, %v4072
  %v4074 = vpop.f32.mrb[0].mxu0
  %v4075 = vadd.f32 0.0, %v4074
  %v4076 = vpop.f32.mrb[0].mxu0
  %v4077 = vadd.f32 0.0, %v4076
  %4078 = vmatprep.mubr.bf16.mxu0 %v1350
  %4079 = vmatmul.mubr.bf16.gmra.mrb[0].mxu0 %v1349
  %v4080 = vpop.f32.mrb[0].mxu0
  %v4081 = vadd.f32 0.0, %v4080
  %v4082 = vpop.f32.mrb[0].mxu0
  %v4083 = vadd.f32 0.0, %v4082
  %v4084 = vpop.f32.mrb[0].mxu0
  %v4085 = vadd.f32 0.0, %v4084
  %v4086 = vpop.f32.mrb[0].mxu0
  %v4087 = vadd.f32 0.0, %v4086
  %4088 = vdwg.mxu0
  %4089 = vmatprep.subr.bf16.mxu0 %v3747
  %4090 = vmatpush1.bf16.msra.mxu0 %v3746
  %4091 = vmatprep.subr.bf16.mxu0 %v3751
  %4092 = vmatpush1.bf16.msra.mxu0 %v3750
  %4093 = vmatprep.subr.bf16.mxu0 %v3755
  %4094 = vmatpush1.bf16.msra.mxu0 %v3754
  %4095 = vmatprep.subr.bf16.mxu0 %v3759
  %4096 = vmatpush1.bf16.msra.mxu0 %v3758
  %4097 = vmatprep.subr.bf16.mxu0 0
  %4098 = vmatpush1.bf16.msra.mxu0 0
  %4099 = vmatprep.subr.bf16.mxu0 0
  %4100 = vmatpush1.bf16.msra.mxu0 0
  %4101 = vmatprep.subr.bf16.mxu0 0
  %4102 = vmatpush1.bf16.msra.mxu0 0
  %4103 = vmatprep.subr.bf16.mxu0 0
  %4104 = vmatpush1.bf16.msra.mxu0 0
  %4105 = vmatprep.subr.bf16.mxu0 0
  %4106 = vmatpush1.bf16.msra.mxu0 0
  %4107 = vmatprep.subr.bf16.mxu0 0
  %4108 = vmatpush1.bf16.msra.mxu0 0
  %4109 = vmatprep.subr.bf16.mxu0 0
  %4110 = vmatpush1.bf16.msra.mxu0 0
  %4111 = vmatprep.subr.bf16.mxu0 0
  %4112 = vmatpush1.bf16.msra.mxu0 0
  %4113 = vmatprep.subr.bf16.mxu0 0
  %4114 = vmatpush1.bf16.msra.mxu0 0
  %4115 = vmatprep.subr.bf16.mxu0 0
  %4116 = vmatpush1.bf16.msra.mxu0 0
  %4117 = vmatprep.subr.bf16.mxu0 0
  %4118 = vmatpush1.bf16.msra.mxu0 0
  %4119 = vmatprep.subr.bf16.mxu0 0
  %4120 = vmatpush1.bf16.msra.mxu0 0
  %4121 = vmatprep.mubr.bf16.mxu0 0
  %4122 = vmatmul.mubr.bf16.gmra.mrb[0].mxu0 %v1960
  %v4123 = vpop.f32.mrb[0].mxu0
  %v4124 = vadd.f32 %v4041, %v4123
  %v4125 = vpop.f32.mrb[0].mxu0
  %v4126 = vadd.f32 %v4043, %v4125
  %v4127 = vpop.f32.mrb[0].mxu0
  %v4128 = vadd.f32 %v4045, %v4127
  %v4129 = vpop.f32.mrb[0].mxu0
  %v4130 = vadd.f32 %v4047, %v4129
  %4131 = vmatprep.mubr.bf16.mxu0 0
  %4132 = vmatmul.mubr.bf16.gmra.mrb[0].mxu0 %v1963
  %v4133 = vpop.f32.mrb[0].mxu0
  %v4134 = vadd.f32 %v4051, %v4133
  %v4135 = vpop.f32.mrb[0].mxu0
  %v4136 = vadd.f32 %v4053, %v4135
  %v4137 = vpop.f32.mrb[0].mxu0
  %v4138 = vadd.f32 %v4055, %v4137
  %v4139 = vpop.f32.mrb[0].mxu0
  %v4140 = vadd.f32 %v4057, %v4139
  %4141 = vmatprep.mubr.bf16.mxu0 0
  %4142 = vmatmul.mubr.bf16.gmra.mrb[0].mxu0 %v1966
  %v4143 = vpop.f32.mrb[0].mxu0
  %v4144 = vadd.f32 %v4061, %v4143
  %v4145 = vpop.f32.mrb[0].mxu0
  %v4146 = vadd.f32 %v4063, %v4145
  %v4147 = vpop.f32.mrb[0].mxu0
  %v4148 = vadd.f32 %v4065, %v4147
  %v4149 = vpop.f32.mrb[0].mxu0
  %v4150 = vadd.f32 %v4067, %v4149
  %4151 = vmatprep.mubr.bf16.mxu0 0
  %4152 = vmatmul.mubr.bf16.gmra.mrb[0].mxu0 %v1969
  %v4153 = vpop.f32.mrb[0].mxu0
  %v4154 = vadd.f32 %v4071, %v4153
  %v4155 = vpop.f32.mrb[0].mxu0
  %v4156 = vadd.f32 %v4073, %v4155
  %v4157 = vpop.f32.mrb[0].mxu0
  %v4158 = vadd.f32 %v4075, %v4157
  %v4159 = vpop.f32.mrb[0].mxu0
  %v4160 = vadd.f32 %v4077, %v4159
  %4161 = vmatprep.mubr.bf16.mxu0 0
  %4162 = vmatmul.mubr.bf16.gmra.mrb[0].mxu0 %v1972
  %v4163 = vpop.f32.mrb[0].mxu0
  %v4164 = vadd.f32 %v4081, %v4163
  %v4165 = vpop.f32.mrb[0].mxu0
  %v4166 = vadd.f32 %v4083, %v4165
  %v4167 = vpop.f32.mrb[0].mxu0
  %v4168 = vadd.f32 %v4085, %v4167
  %v4169 = vpop.f32.mrb[0].mxu0
  %v4170 = vadd.f32 %v4087, %v4169
  %4171 = vdwg.mxu0
  %v4172 = vld [vmem:[#allocation3 + $0x40] sm:$0xff]
  %v4173 = vld [vmem:[#allocation3 + $0x48] sm:$0xff]
  %v4174 = vld [vmem:[#allocation3 + $0x50] sm:$0xff]
  %v4175 = vld [vmem:[#allocation3 + $0x58] sm:$0xff]
  %v4176 = vld [vmem:[#allocation3 + $0x60] sm:$0xff]
  %v4177 = vld [vmem:[#allocation3 + $0x68] sm:$0xff]
  %v4178 = vld [vmem:[#allocation3 + $0x70] sm:$0xff]
  %v4179 = vld [vmem:[#allocation3 + $0x78] sm:$0xff]
  %v4180 = vld [vmem:[#allocation3 + $0x80] sm:$0xff]
  %v4181 = vld [vmem:[#allocation3 + $0x88] sm:$0xff]
  %v4182 = vld [vmem:[#allocation3 + $0x90] sm:$0xff]
  %v4183 = vld [vmem:[#allocation3 + $0x98] sm:$0xff]
  %v4184 = vld [vmem:[#allocation3 + $0xa0] sm:$0xff]
  %v4185 = vld [vmem:[#allocation3 + $0xa8] sm:$0xff]
  %v4186 = vld [vmem:[#allocation3 + $0xb0] sm:$0xff]
  %v4187 = vld [vmem:[#allocation3 + $0xb8] sm:$0xff]
  %v4188 = vld [vmem:[#allocation3 + $0xc0] sm:$0xff]
  %v4189 = vld [vmem:[#allocation3 + $0xc8] sm:$0xff]
  %v4190 = vld [vmem:[#allocation3 + $0xd0] sm:$0xff]
  %v4191 = vld [vmem:[#allocation3 + $0xd8] sm:$0xff]
  %v4192 = vld [vmem:[#allocation3 + $0xe0] sm:$0xff]
  %v4193 = vld [vmem:[#allocation3 + $0xe8] sm:$0xff]
  %v4194 = vld [vmem:[#allocation3 + $0xf0] sm:$0xff]
  %v4195 = vld [vmem:[#allocation3 + $0xf8] sm:$0xff]
  %v4196 = vld [vmem:[#allocation3 + $0x100] sm:$0xff]
  %v4197 = vld [vmem:[#allocation3 + $0x108] sm:$0xff]
  %v4198 = vld [vmem:[#allocation3 + $0x110] sm:$0xff]
  %v4199 = vld [vmem:[#allocation3 + $0x118] sm:$0xff]
  %v4200 = vld [vmem:[#allocation3 + $0x120] sm:$0xff]
  %v4201 = vld [vmem:[#allocation3 + $0x128] sm:$0xff]
  %v4202 = vld [vmem:[#allocation3 + $0x130] sm:$0xff]
  %v4203 = vld [vmem:[#allocation3 + $0x138] sm:$0xff]
  %v4204 = vld [vmem:[#allocation3 + $0x140] sm:$0xff]
  %v4205 = vld [vmem:[#allocation3 + $0x148] sm:$0xff]
  %v4206 = vld [vmem:[#allocation3 + $0x150] sm:$0xff]
  %v4207 = vld [vmem:[#allocation3 + $0x158] sm:$0xff]
  %v4208 = vld [vmem:[#allocation3 + $0x160] sm:$0xff]
  %v4209 = vld [vmem:[#allocation3 + $0x168] sm:$0xff]
  %v4210 = vld [vmem:[#allocation3 + $0x170] sm:$0xff]
  %v4211 = vld [vmem:[#allocation3 + $0x178] sm:$0xff]
  %v4212 = vadd.f32 %v4172, %v3958
  %v4213 = vadd.f32 %v4173, %v3960
  %v4214 = vadd.f32 %v4174, %v4124
  %v4215 = vadd.f32 %v4175, %v4126
  %v4216 = vadd.f32 %v4176, %v3962
  %v4217 = vadd.f32 %v4177, %v3964
  %v4218 = vadd.f32 %v4178, %v4128
  %v4219 = vadd.f32 %v4179, %v4130
  %v4220 = vadd.f32 %v4180, %v3968
  %v4221 = vadd.f32 %v4181, %v3970
  %v4222 = vadd.f32 %v4182, %v4134
  %v4223 = vadd.f32 %v4183, %v4136
  %v4224 = vadd.f32 %v4184, %v3972
  %v4225 = vadd.f32 %v4185, %v3974
  %v4226 = vadd.f32 %v4186, %v4138
  %v4227 = vadd.f32 %v4187, %v4140
  %v4228 = vadd.f32 %v4188, %v3978
  %v4229 = vadd.f32 %v4189, %v3980
  %v4230 = vadd.f32 %v4190, %v4144
  %v4231 = vadd.f32 %v4191, %v4146
  %v4232 = vadd.f32 %v4192, %v3982
  %v4233 = vadd.f32 %v4193, %v3984
  %v4234 = vadd.f32 %v4194, %v4148
  %v4235 = vadd.f32 %v4195, %v4150
  %v4236 = vadd.f32 %v4196, %v3988
  %v4237 = vadd.f32 %v4197, %v3990
  %v4238 = vadd.f32 %v4198, %v4154
  %v4239 = vadd.f32 %v4199, %v4156
  %v4240 = vadd.f32 %v4200, %v3992
  %v4241 = vadd.f32 %v4201, %v3994
  %v4242 = vadd.f32 %v4202, %v4158
  %v4243 = vadd.f32 %v4203, %v4160
  %v4244 = vadd.f32 %v4204, %v3998
  %v4245 = vadd.f32 %v4205, %v4000
  %v4246 = vadd.f32 %v4206, %v4164
  %v4247 = vadd.f32 %v4207, %v4166
  %v4248 = vadd.f32 %v4208, %v4002
  %v4249 = vadd.f32 %v4209, %v4004
  %v4250 = vadd.f32 %v4210, %v4168
  %v4251 = vadd.f32 %v4211, %v4170
  %4252 = vst [vmem:[#allocation3 + $0x40] sm:$0xff] %v4212
  %4253 = vst [vmem:[#allocation3 + $0x48] sm:$0xff] %v4213
  %4254 = vst [vmem:[#allocation3 + $0x50] sm:$0xff] %v4214
  %4255 = vst.msk [vmem:[#allocation3 + $0x58] sm:$0xff] %vm1377, %v4215
  %4256 = vst [vmem:[#allocation3 + $0x60] sm:$0xff] %v4216
  %4257 = vst [vmem:[#allocation3 + $0x68] sm:$0xff] %v4217
  %4258 = vst [vmem:[#allocation3 + $0x70] sm:$0xff] %v4218
  %4259 = vst.msk [vmem:[#allocation3 + $0x78] sm:$0xff] %vm1377, %v4219
  %4260 = vst [vmem:[#allocation3 + $0x80] sm:$0xff] %v4220
  %4261 = vst [vmem:[#allocation3 + $0x88] sm:$0xff] %v4221
  %4262 = vst [vmem:[#allocation3 + $0x90] sm:$0xff] %v4222
  %4263 = vst.msk [vmem:[#allocation3 + $0x98] sm:$0xff] %vm1377, %v4223
  %4264 = vst [vmem:[#allocation3 + $0xa0] sm:$0xff] %v4224
  %4265 = vst [vmem:[#allocation3 + $0xa8] sm:$0xff] %v4225
  %4266 = vst [vmem:[#allocation3 + $0xb0] sm:$0xff] %v4226
  %4267 = vst.msk [vmem:[#allocation3 + $0xb8] sm:$0xff] %vm1377, %v4227
  %4268 = vst [vmem:[#allocation3 + $0xc0] sm:$0xff] %v4228
  %4269 = vst [vmem:[#allocation3 + $0xc8] sm:$0xff] %v4229
  %4270 = vst [vmem:[#allocation3 + $0xd0] sm:$0xff] %v4230
  %4271 = vst.msk [vmem:[#allocation3 + $0xd8] sm:$0xff] %vm1377, %v4231
  %4272 = vst [vmem:[#allocation3 + $0xe0] sm:$0xff] %v4232
  %4273 = vst [vmem:[#allocation3 + $0xe8] sm:$0xff] %v4233
  %4274 = vst [vmem:[#allocation3 + $0xf0] sm:$0xff] %v4234
  %4275 = vst.msk [vmem:[#allocation3 + $0xf8] sm:$0xff] %vm1377, %v4235
  %4276 = vst [vmem:[#allocation3 + $0x100] sm:$0xff] %v4236
  %4277 = vst [vmem:[#allocation3 + $0x108] sm:$0xff] %v4237
  %4278 = vst [vmem:[#allocation3 + $0x110] sm:$0xff] %v4238
  %4279 = vst.msk [vmem:[#allocation3 + $0x118] sm:$0xff] %vm1377, %v4239
  %4280 = vst [vmem:[#allocation3 + $0x120] sm:$0xff] %v4240
  %4281 = vst [vmem:[#allocation3 + $0x128] sm:$0xff] %v4241
  %4282 = vst [vmem:[#allocation3 + $0x130] sm:$0xff] %v4242
  %4283 = vst.msk [vmem:[#allocation3 + $0x138] sm:$0xff] %vm1377, %v4243
  %4284 = vst [vmem:[#allocation3 + $0x140] sm:$0xff] %v4244
  %4285 = vst [vmem:[#allocation3 + $0x148] sm:$0xff] %v4245
  %4286 = vst [vmem:[#allocation3 + $0x150] sm:$0xff] %v4246
  %4287 = vst.msk [vmem:[#allocation3 + $0x158] sm:$0xff] %vm1377, %v4247
  %4288 = vst [vmem:[#allocation3 + $0x160] sm:$0xff] %v4248
  %4289 = vst [vmem:[#allocation3 + $0x168] sm:$0xff] %v4249
  %4290 = vst [vmem:[#allocation3 + $0x170] sm:$0xff] %v4250
  %4291 = vst.msk [vmem:[#allocation3 + $0x178] sm:$0xff] %vm1377, %v4251
  %s4292 = scalar_lea.vmem %s3, 1920
  %v4293 = vld [vmem:[%s4292] sm:$0xff]
  %v4294 = vld [vmem:[%s4292 + $0x8] sm:$0xff]
  %v4295 = vld [vmem:[%s4292 + $0x10] sm:$0xff]
  %v4296 = vld [vmem:[%s4292 + $0x18] sm:$0xff]
  %v4297 = vld [vmem:[%s4292 + $0x20] sm:$0xff]
  %v4298 = vld [vmem:[%s4292 + $0x28] sm:$0xff]
  %v4299 = vld [vmem:[%s4292 + $0x30] sm:$0xff]
  %v4300 = vld [vmem:[%s4292 + $0x38] sm:$0xff]
  %v4301 = vld [vmem:[%s4292 + $0x40] sm:$0xff]
  %v4302 = vld [vmem:[%s4292 + $0x48] sm:$0xff]
  %v4303 = vld [vmem:[%s4292 + $0x50] sm:$0xff]
  %v4304 = vld [vmem:[%s4292 + $0x58] sm:$0xff]
  %v4305 = vld [vmem:[%s4292 + $0x60] sm:$0xff]
  %v4306 = vld [vmem:[%s4292 + $0x68] sm:$0xff]
  %v4307 = vld [vmem:[%s4292 + $0x70] sm:$0xff]
  %v4308 = vld [vmem:[%s4292 + $0x78] sm:$0xff]
  %v4309 = vld [vmem:[%s4292 + $0x80] sm:$0xff]
  %v4310 = vld [vmem:[%s4292 + $0x88] sm:$0xff]
  %v4311 = vld [vmem:[%s4292 + $0x90] sm:$0xff]
  %v4312 = vld [vmem:[%s4292 + $0x98] sm:$0xff]
  %v4313 = vld [vmem:[%s4292 + $0xa0] sm:$0xff]
  %v4314 = vld [vmem:[%s4292 + $0xa8] sm:$0xff]
  %v4315 = vld [vmem:[%s4292 + $0xb0] sm:$0xff]
  %v4316 = vld [vmem:[%s4292 + $0xb8] sm:$0xff]
  %v4317 = vld [vmem:[%s4292 + $0xc0] sm:$0xff]
  %v4318 = vld [vmem:[%s4292 + $0xc8] sm:$0xff]
  %v4319 = vld [vmem:[%s4292 + $0xd0] sm:$0xff]
  %v4320 = vld [vmem:[%s4292 + $0xd8] sm:$0xff]
  %v4321 = vld [vmem:[%s4292 + $0xe0] sm:$0xff]
  %v4322 = vld [vmem:[%s4292 + $0xe8] sm:$0xff]
  %v4323 = vld [vmem:[%s4292 + $0xf0] sm:$0xff]
  %v4324 = vld [vmem:[%s4292 + $0xf8] sm:$0xff]
  %v4325 = vld [vmem:[%s4292 + $0x100] sm:$0xff]
  %v4326 = vld [vmem:[%s4292 + $0x108] sm:$0xff]
  %v4327 = vld [vmem:[%s4292 + $0x110] sm:$0xff]
  %v4328 = vld [vmem:[%s4292 + $0x118] sm:$0xff]
  %v4329 = vld [vmem:[%s4292 + $0x120] sm:$0xff]
  %v4330 = vld [vmem:[%s4292 + $0x128] sm:$0xff]
  %v4331 = vld [vmem:[%s4292 + $0x130] sm:$0xff]
  %v4332 = vld [vmem:[%s4292 + $0x138] sm:$0xff]
  %v4333 = vld [vmem:[%s4292 + $0x140] sm:$0xff]
  %v4334 = vld [vmem:[%s4292 + $0x148] sm:$0xff]
  %v4335 = vld [vmem:[%s4292 + $0x150] sm:$0xff]
  %v4336 = vld [vmem:[%s4292 + $0x158] sm:$0xff]
  %v4337 = vld [vmem:[%s4292 + $0x160] sm:$0xff]
  %v4338 = vld [vmem:[%s4292 + $0x168] sm:$0xff]
  %v4339 = vld [vmem:[%s4292 + $0x170] sm:$0xff]
  %v4340 = vld [vmem:[%s4292 + $0x178] sm:$0xff]
  %v4341 = vld [vmem:[%s4292 + $0x180] sm:$0xff]
  %v4342 = vld [vmem:[%s4292 + $0x188] sm:$0xff]
  %v4343 = vld [vmem:[%s4292 + $0x190] sm:$0xff]
  %v4344 = vld [vmem:[%s4292 + $0x198] sm:$0xff]
  %v4345 = vld [vmem:[%s4292 + $0x1a0] sm:$0xff]
  %v4346 = vld [vmem:[%s4292 + $0x1a8] sm:$0xff]
  %v4347 = vld [vmem:[%s4292 + $0x1b0] sm:$0xff]
  %v4348 = vld [vmem:[%s4292 + $0x1b8] sm:$0xff]
  %v4349 = vld [vmem:[%s4292 + $0x1c0] sm:$0xff]
  %v4350 = vld [vmem:[%s4292 + $0x1c8] sm:$0xff]
  %v4351 = vld [vmem:[%s4292 + $0x1d0] sm:$0xff]
  %v4352 = vld [vmem:[%s4292 + $0x1d8] sm:$0xff]
  %v4353 = vld [vmem:[%s4292 + $0x1e0] sm:$0xff]
  %v4354 = vld [vmem:[%s4292 + $0x1e8] sm:$0xff]
  %v4355 = vld [vmem:[%s4292 + $0x1f0] sm:$0xff]
  %v4356 = vld [vmem:[%s4292 + $0x1f8] sm:$0xff]
  %v4357 = vld [vmem:[%s4292 + $0x200] sm:$0xff]
  %v4358 = vld [vmem:[%s4292 + $0x208] sm:$0xff]
  %v4359 = vld [vmem:[%s4292 + $0x210] sm:$0xff]
  %v4360 = vld [vmem:[%s4292 + $0x218] sm:$0xff]
  %v4361 = vld [vmem:[%s4292 + $0x220] sm:$0xff]
  %v4362 = vld [vmem:[%s4292 + $0x228] sm:$0xff]
  %v4363 = vld [vmem:[%s4292 + $0x230] sm:$0xff]
  %v4364 = vld [vmem:[%s4292 + $0x238] sm:$0xff]
  %v4365 = vld [vmem:[%s4292 + $0x240] sm:$0xff]
  %v4366 = vld [vmem:[%s4292 + $0x248] sm:$0xff]
  %v4367 = vld [vmem:[%s4292 + $0x250] sm:$0xff]
  %v4368 = vld [vmem:[%s4292 + $0x258] sm:$0xff]
  %v4369 = vld [vmem:[%s4292 + $0x260] sm:$0xff]
  %v4370 = vld [vmem:[%s4292 + $0x268] sm:$0xff]
  %v4371 = vld [vmem:[%s4292 + $0x270] sm:$0xff]
  %v4372 = vld [vmem:[%s4292 + $0x278] sm:$0xff]
  %v4453 = vunpack.c.l.b16 %v4293
  %v4454 = vunpack.c.h.b16 %v4293
  %v4455 = vunpack.c.l.b16 %v4294
  %v4456 = vunpack.c.h.b16 %v4294
  %v4457 = vunpack.c.l.b16 %v4295
  %v4458 = vunpack.c.h.b16 %v4295
  %v4459 = vunpack.c.l.b16 %v4296
  %v4460 = vunpack.c.h.b16 %v4296
  %v4461 = vunpack.c.l.b16 %v4297
  %v4462 = vunpack.c.h.b16 %v4297
  %v4463 = vunpack.c.l.b16 %v4298
  %v4464 = vunpack.c.h.b16 %v4298
  %v4465 = vunpack.c.l.b16 %v4299
  %v4466 = vunpack.c.h.b16 %v4299
  %v4467 = vunpack.c.l.b16 %v4300
  %v4468 = vunpack.c.h.b16 %v4300
  %v4469 = vunpack.c.l.b16 %v4301
  %v4470 = vunpack.c.h.b16 %v4301
  %v4471 = vunpack.c.l.b16 %v4302
  %v4472 = vunpack.c.h.b16 %v4302
  %v4473 = vunpack.c.l.b16 %v4303
  %v4474 = vunpack.c.h.b16 %v4303
  %v4475 = vunpack.c.l.b16 %v4304
  %v4476 = vunpack.c.h.b16 %v4304
  %v4477 = vunpack.c.l.b16 %v4305
  %v4478 = vunpack.c.h.b16 %v4305
  %v4479 = vunpack.c.l.b16 %v4306
  %v4480 = vunpack.c.h.b16 %v4306
  %v4481 = vunpack.c.l.b16 %v4307
  %v4482 = vunpack.c.h.b16 %v4307
  %v4483 = vunpack.c.l.b16 %v4308
  %v4484 = vunpack.c.h.b16 %v4308
  %v4485 = vunpack.c.l.b16 %v4309
  %v4486 = vunpack.c.h.b16 %v4309
  %v4487 = vunpack.c.l.b16 %v4310
  %v4488 = vunpack.c.h.b16 %v4310
  %v4489 = vunpack.c.l.b16 %v4311
  %v4490 = vunpack.c.h.b16 %v4311
  %v4491 = vunpack.c.l.b16 %v4312
  %v4492 = vunpack.c.h.b16 %v4312
  %v4493 = vunpack.c.l.b16 %v4313
  %v4494 = vunpack.c.h.b16 %v4313
  %v4495 = vunpack.c.l.b16 %v4314
  %v4496 = vunpack.c.h.b16 %v4314
  %v4497 = vunpack.c.l.b16 %v4315
  %v4498 = vunpack.c.h.b16 %v4315
  %v4499 = vunpack.c.l.b16 %v4316
  %v4500 = vunpack.c.h.b16 %v4316
  %v4501 = vunpack.c.l.b16 %v4317
  %v4502 = vunpack.c.h.b16 %v4317
  %v4503 = vunpack.c.l.b16 %v4318
  %v4504 = vunpack.c.h.b16 %v4318
  %v4505 = vunpack.c.l.b16 %v4319
  %v4506 = vunpack.c.h.b16 %v4319
  %v4507 = vunpack.c.l.b16 %v4320
  %v4508 = vunpack.c.h.b16 %v4320
  %v4509 = vunpack.c.l.b16 %v4321
  %v4510 = vunpack.c.h.b16 %v4321
  %v4511 = vunpack.c.l.b16 %v4322
  %v4512 = vunpack.c.h.b16 %v4322
  %v4513 = vunpack.c.l.b16 %v4323
  %v4514 = vunpack.c.h.b16 %v4323
  %v4515 = vunpack.c.l.b16 %v4324
  %v4516 = vunpack.c.h.b16 %v4324
  %v4517 = vunpack.c.l.b16 %v4325
  %v4518 = vunpack.c.h.b16 %v4325
  %v4519 = vunpack.c.l.b16 %v4326
  %v4520 = vunpack.c.h.b16 %v4326
  %v4521 = vunpack.c.l.b16 %v4327
  %v4522 = vunpack.c.h.b16 %v4327
  %v4523 = vunpack.c.l.b16 %v4328
  %v4524 = vunpack.c.h.b16 %v4328
  %v4525 = vunpack.c.l.b16 %v4329
  %v4526 = vunpack.c.h.b16 %v4329
  %v4527 = vunpack.c.l.b16 %v4330
  %v4528 = vunpack.c.h.b16 %v4330
  %v4529 = vunpack.c.l.b16 %v4331
  %v4530 = vunpack.c.h.b16 %v4331
  %v4531 = vunpack.c.l.b16 %v4332
  %v4532 = vunpack.c.h.b16 %v4332
  %v4533 = vunpack.c.l.b16 %v4333
  %v4534 = vunpack.c.h.b16 %v4333
  %v4535 = vunpack.c.l.b16 %v4334
  %v4536 = vunpack.c.h.b16 %v4334
  %v4537 = vunpack.c.l.b16 %v4335
  %v4538 = vunpack.c.h.b16 %v4335
  %v4539 = vunpack.c.l.b16 %v4336
  %v4540 = vunpack.c.h.b16 %v4336
  %v4541 = vunpack.c.l.b16 %v4337
  %v4542 = vunpack.c.h.b16 %v4337
  %v4543 = vunpack.c.l.b16 %v4338
  %v4544 = vunpack.c.h.b16 %v4338
  %v4545 = vunpack.c.l.b16 %v4339
  %v4546 = vunpack.c.h.b16 %v4339
  %v4547 = vunpack.c.l.b16 %v4340
  %v4548 = vunpack.c.h.b16 %v4340
  %v4549 = vunpack.c.l.b16 %v4341
  %v4550 = vunpack.c.h.b16 %v4341
  %v4551 = vunpack.c.l.b16 %v4342
  %v4552 = vunpack.c.h.b16 %v4342
  %v4553 = vunpack.c.l.b16 %v4343
  %v4554 = vunpack.c.h.b16 %v4343
  %v4555 = vunpack.c.l.b16 %v4344
  %v4556 = vunpack.c.h.b16 %v4344
  %v4557 = vunpack.c.l.b16 %v4345
  %v4558 = vunpack.c.h.b16 %v4345
  %v4559 = vunpack.c.l.b16 %v4346
  %v4560 = vunpack.c.h.b16 %v4346
  %v4561 = vunpack.c.l.b16 %v4347
  %v4562 = vunpack.c.h.b16 %v4347
  %v4563 = vunpack.c.l.b16 %v4348
  %v4564 = vunpack.c.h.b16 %v4348
  %v4565 = vunpack.c.l.b16 %v4349
  %v4566 = vunpack.c.h.b16 %v4349
  %v4567 = vunpack.c.l.b16 %v4350
  %v4568 = vunpack.c.h.b16 %v4350
  %v4569 = vunpack.c.l.b16 %v4351
  %v4570 = vunpack.c.h.b16 %v4351
  %v4571 = vunpack.c.l.b16 %v4352
  %v4572 = vunpack.c.h.b16 %v4352
  %v4573 = vunpack.c.l.b16 %v4353
  %v4574 = vunpack.c.h.b16 %v4353
  %v4575 = vunpack.c.l.b16 %v4354
  %v4576 = vunpack.c.h.b16 %v4354
  %v4577 = vunpack.c.l.b16 %v4355
  %v4578 = vunpack.c.h.b16 %v4355
  %v4579 = vunpack.c.l.b16 %v4356
  %v4580 = vunpack.c.h.b16 %v4356
  %v4581 = vunpack.c.l.b16 %v4357
  %v4582 = vunpack.c.h.b16 %v4357
  %v4583 = vunpack.c.l.b16 %v4358
  %v4584 = vunpack.c.h.b16 %v4358
  %v4585 = vunpack.c.l.b16 %v4359
  %v4586 = vunpack.c.h.b16 %v4359
  %v4587 = vunpack.c.l.b16 %v4360
  %v4588 = vunpack.c.h.b16 %v4360
  %v4589 = vunpack.c.l.b16 %v4361
  %v4590 = vunpack.c.h.b16 %v4361
  %v4591 = vunpack.c.l.b16 %v4362
  %v4592 = vunpack.c.h.b16 %v4362
  %v4593 = vunpack.c.l.b16 %v4363
  %v4594 = vunpack.c.h.b16 %v4363
  %v4595 = vunpack.c.l.b16 %v4364
  %v4596 = vunpack.c.h.b16 %v4364
  %v4597 = vunpack.c.l.b16 %v4365
  %v4598 = vunpack.c.h.b16 %v4365
  %v4599 = vunpack.c.l.b16 %v4366
  %v4600 = vunpack.c.h.b16 %v4366
  %v4601 = vunpack.c.l.b16 %v4367
  %v4602 = vunpack.c.h.b16 %v4367
  %v4603 = vunpack.c.l.b16 %v4368
  %v4604 = vunpack.c.h.b16 %v4368
  %v4605 = vunpack.c.l.b16 %v4369
  %v4606 = vunpack.c.h.b16 %v4369
  %v4607 = vunpack.c.l.b16 %v4370
  %v4608 = vunpack.c.h.b16 %v4370
  %v4609 = vunpack.c.l.b16 %v4371
  %v4610 = vunpack.c.h.b16 %v4371
  %v4611 = vunpack.c.l.b16 %v4372
  %v4612 = vunpack.c.h.b16 %v4372
  %v4613 = vpack.c.b16 %v4457, %v4453
  %v4614 = vpack.c.b16 %v4458, %v4454
  %v4615 = vpack.c.b16 %v4459, %v4455
  %v4616 = vpack.c.b16 %v4460, %v4456
  %v4617 = vpack.c.b16 %v4465, %v4461
  %v4618 = vpack.c.b16 %v4466, %v4462
  %v4619 = vpack.c.b16 %v4467, %v4463
  %v4620 = vpack.c.b16 %v4468, %v4464
  %v4621 = vpack.c.b16 %v4473, %v4469
  %v4622 = vpack.c.b16 %v4474, %v4470
  %v4623 = vpack.c.b16 %v4475, %v4471
  %v4624 = vpack.c.b16 %v4476, %v4472
  %v4625 = vpack.c.b16 %v4481, %v4477
  %v4626 = vpack.c.b16 %v4482, %v4478
  %v4627 = vpack.c.b16 %v4483, %v4479
  %v4628 = vpack.c.b16 %v4484, %v4480
  %v4629 = vpack.c.b16 %v4489, %v4485
  %v4630 = vpack.c.b16 %v4490, %v4486
  %v4631 = vpack.c.b16 %v4491, %v4487
  %v4632 = vpack.c.b16 %v4492, %v4488
  %v4633 = vpack.c.b16 %v4497, %v4493
  %v4634 = vpack.c.b16 %v4498, %v4494
  %v4635 = vpack.c.b16 %v4499, %v4495
  %v4636 = vpack.c.b16 %v4500, %v4496
  %v4637 = vpack.c.b16 %v4505, %v4501
  %v4638 = vpack.c.b16 %v4506, %v4502
  %v4639 = vpack.c.b16 %v4507, %v4503
  %v4640 = vpack.c.b16 %v4508, %v4504
  %v4641 = vpack.c.b16 %v4513, %v4509
  %v4642 = vpack.c.b16 %v4514, %v4510
  %v4643 = vpack.c.b16 %v4515, %v4511
  %v4644 = vpack.c.b16 %v4516, %v4512
  %v4645 = vpack.c.b16 %v4521, %v4517
  %v4646 = vpack.c.b16 %v4522, %v4518
  %v4647 = vpack.c.b16 %v4523, %v4519
  %v4648 = vpack.c.b16 %v4524, %v4520
  %v4649 = vpack.c.b16 %v4529, %v4525
  %v4650 = vpack.c.b16 %v4530, %v4526
  %v4651 = vpack.c.b16 %v4531, %v4527
  %v4652 = vpack.c.b16 %v4532, %v4528
  %v4653 = vpack.c.b16 %v4537, %v4533
  %v4654 = vpack.c.b16 %v4538, %v4534
  %v4655 = vpack.c.b16 %v4539, %v4535
  %v4656 = vpack.c.b16 %v4540, %v4536
  %v4657 = vpack.c.b16 %v4545, %v4541
  %v4658 = vpack.c.b16 %v4546, %v4542
  %v4659 = vpack.c.b16 %v4547, %v4543
  %v4660 = vpack.c.b16 %v4548, %v4544
  %v4661 = vpack.c.b16 %v4553, %v4549
  %v4662 = vpack.c.b16 %v4554, %v4550
  %v4663 = vpack.c.b16 %v4555, %v4551
  %v4664 = vpack.c.b16 %v4556, %v4552
  %v4665 = vpack.c.b16 %v4561, %v4557
  %v4666 = vpack.c.b16 %v4562, %v4558
  %v4667 = vpack.c.b16 %v4563, %v4559
  %v4668 = vpack.c.b16 %v4564, %v4560
  %v4669 = vpack.c.b16 %v4569, %v4565
  %v4670 = vpack.c.b16 %v4570, %v4566
  %v4671 = vpack.c.b16 %v4571, %v4567
  %v4672 = vpack.c.b16 %v4572, %v4568
  %v4673 = vpack.c.b16 %v4577, %v4573
  %v4674 = vpack.c.b16 %v4578, %v4574
  %v4675 = vpack.c.b16 %v4579, %v4575
  %v4676 = vpack.c.b16 %v4580, %v4576
  %v4677 = vpack.c.b16 %v4585, %v4581
  %v4678 = vpack.c.b16 %v4586, %v4582
  %v4679 = vpack.c.b16 %v4587, %v4583
  %v4680 = vpack.c.b16 %v4588, %v4584
  %v4681 = vpack.c.b16 %v4593, %v4589
  %v4682 = vpack.c.b16 %v4594, %v4590
  %v4683 = vpack.c.b16 %v4595, %v4591
  %v4684 = vpack.c.b16 %v4596, %v4592
  %v4685 = vpack.c.b16 %v4601, %v4597
  %v4686 = vpack.c.b16 %v4602, %v4598
  %v4687 = vpack.c.b16 %v4603, %v4599
  %v4688 = vpack.c.b16 %v4604, %v4600
  %v4689 = vpack.c.b16 %v4609, %v4605
  %v4690 = vpack.c.b16 %v4610, %v4606
  %v4691 = vpack.c.b16 %v4611, %v4607
  %v4692 = vpack.c.b16 %v4612, %v4608
  %4773 = vmatprep.subr.bf16.mxu0 %v4614
  %4774 = vmatpush1.bf16.msra.mxu0 %v4613
  %4775 = vmatprep.subr.bf16.mxu0 %v4618
  %4776 = vmatpush1.bf16.msra.mxu0 %v4617
  %4777 = vmatprep.subr.bf16.mxu0 %v4622
  %4778 = vmatpush1.bf16.msra.mxu0 %v4621
  %4779 = vmatprep.subr.bf16.mxu0 %v4626
  %4780 = vmatpush1.bf16.msra.mxu0 %v4625
  %4781 = vmatprep.subr.bf16.mxu0 %v4630
  %4782 = vmatpush1.bf16.msra.mxu0 %v4629
  %4783 = vmatprep.subr.bf16.mxu0 %v4634
  %4784 = vmatpush1.bf16.msra.mxu0 %v4633
  %4785 = vmatprep.subr.bf16.mxu0 %v4638
  %4786 = vmatpush1.bf16.msra.mxu0 %v4637
  %4787 = vmatprep.subr.bf16.mxu0 %v4642
  %4788 = vmatpush1.bf16.msra.mxu0 %v4641
  %4789 = vmatprep.subr.bf16.mxu0 %v4646
  %4790 = vmatpush1.bf16.msra.mxu0 %v4645
  %4791 = vmatprep.subr.bf16.mxu0 %v4650
  %4792 = vmatpush1.bf16.msra.mxu0 %v4649
  %4793 = vmatprep.subr.bf16.mxu0 %v4654
  %4794 = vmatpush1.bf16.msra.mxu0 %v4653
  %4795 = vmatprep.subr.bf16.mxu0 %v4658
  %4796 = vmatpush1.bf16.msra.mxu0 %v4657
  %4797 = vmatprep.subr.bf16.mxu0 %v4662
  %4798 = vmatpush1.bf16.msra.mxu0 %v4661
  %4799 = vmatprep.subr.bf16.mxu0 %v4666
  %4800 = vmatpush1.bf16.msra.mxu0 %v4665
  %4801 = vmatprep.subr.bf16.mxu0 %v4670
  %4802 = vmatpush1.bf16.msra.mxu0 %v4669
  %4803 = vmatprep.subr.bf16.mxu0 %v4674
  %4804 = vmatpush1.bf16.msra.mxu0 %v4673
  %4805 = vmatprep.mubr.bf16.mxu0 %v1338
  %4806 = vmatmul.mubr.bf16.gmra.mrb[0].mxu0 %v1337
  %v4807 = vpop.f32.mrb[0].mxu0
  %v4808 = vadd.f32 0.0, %v4807
  %v4809 = vpop.f32.mrb[0].mxu0
  %v4810 = vadd.f32 0.0, %v4809
  %v4811 = vpop.f32.mrb[0].mxu0
  %v4812 = vadd.f32 0.0, %v4811
  %v4813 = vpop.f32.mrb[0].mxu0
  %v4814 = vadd.f32 0.0, %v4813
  %4815 = vmatprep.mubr.bf16.mxu0 %v1341
  %4816 = vmatmul.mubr.bf16.gmra.mrb[0].mxu0 %v1340
  %v4817 = vpop.f32.mrb[0].mxu0
  %v4818 = vadd.f32 0.0, %v4817
  %v4819 = vpop.f32.mrb[0].mxu0
  %v4820 = vadd.f32 0.0, %v4819
  %v4821 = vpop.f32.mrb[0].mxu0
  %v4822 = vadd.f32 0.0, %v4821
  %v4823 = vpop.f32.mrb[0].mxu0
  %v4824 = vadd.f32 0.0, %v4823
  %4825 = vmatprep.mubr.bf16.mxu0 %v1344
  %4826 = vmatmul.mubr.bf16.gmra.mrb[0].mxu0 %v1343
  %v4827 = vpop.f32.mrb[0].mxu0
  %v4828 = vadd.f32 0.0, %v4827
  %v4829 = vpop.f32.mrb[0].mxu0
  %v4830 = vadd.f32 0.0, %v4829
  %v4831 = vpop.f32.mrb[0].mxu0
  %v4832 = vadd.f32 0.0, %v4831
  %v4833 = vpop.f32.mrb[0].mxu0
  %v4834 = vadd.f32 0.0, %v4833
  %4835 = vmatprep.mubr.bf16.mxu0 %v1347
  %4836 = vmatmul.mubr.bf16.gmra.mrb[0].mxu0 %v1346
  %v4837 = vpop.f32.mrb[0].mxu0
  %v4838 = vadd.f32 0.0, %v4837
  %v4839 = vpop.f32.mrb[0].mxu0
  %v4840 = vadd.f32 0.0, %v4839
  %v4841 = vpop.f32.mrb[0].mxu0
  %v4842 = vadd.f32 0.0, %v4841
  %v4843 = vpop.f32.mrb[0].mxu0
  %v4844 = vadd.f32 0.0, %v4843
  %4845 = vmatprep.mubr.bf16.mxu0 %v1350
  %4846 = vmatmul.mubr.bf16.gmra.mrb[0].mxu0 %v1349
  %v4847 = vpop.f32.mrb[0].mxu0
  %v4848 = vadd.f32 0.0, %v4847
  %v4849 = vpop.f32.mrb[0].mxu0
  %v4850 = vadd.f32 0.0, %v4849
  %v4851 = vpop.f32.mrb[0].mxu0
  %v4852 = vadd.f32 0.0, %v4851
  %v4853 = vpop.f32.mrb[0].mxu0
  %v4854 = vadd.f32 0.0, %v4853
  %4855 = vdwg.mxu0
  %4856 = vmatprep.subr.bf16.mxu0 %v4678
  %4857 = vmatpush1.bf16.msra.mxu0 %v4677
  %4858 = vmatprep.subr.bf16.mxu0 %v4682
  %4859 = vmatpush1.bf16.msra.mxu0 %v4681
  %4860 = vmatprep.subr.bf16.mxu0 %v4686
  %4861 = vmatpush1.bf16.msra.mxu0 %v4685
  %4862 = vmatprep.subr.bf16.mxu0 %v4690
  %4863 = vmatpush1.bf16.msra.mxu0 %v4689
  %4864 = vmatprep.subr.bf16.mxu0 0
  %4865 = vmatpush1.bf16.msra.mxu0 0
  %4866 = vmatprep.subr.bf16.mxu0 0
  %4867 = vmatpush1.bf16.msra.mxu0 0
  %4868 = vmatprep.subr.bf16.mxu0 0
  %4869 = vmatpush1.bf16.msra.mxu0 0
  %4870 = vmatprep.subr.bf16.mxu0 0
  %4871 = vmatpush1.bf16.msra.mxu0 0
  %4872 = vmatprep.subr.bf16.mxu0 0
  %4873 = vmatpush1.bf16.msra.mxu0 0
  %4874 = vmatprep.subr.bf16.mxu0 0
  %4875 = vmatpush1.bf16.msra.mxu0 0
  %4876 = vmatprep.subr.bf16.mxu0 0
  %4877 = vmatpush1.bf16.msra.mxu0 0
  %4878 = vmatprep.subr.bf16.mxu0 0
  %4879 = vmatpush1.bf16.msra.mxu0 0
  %4880 = vmatprep.subr.bf16.mxu0 0
  %4881 = vmatpush1.bf16.msra.mxu0 0
  %4882 = vmatprep.subr.bf16.mxu0 0
  %4883 = vmatpush1.bf16.msra.mxu0 0
  %4884 = vmatprep.subr.bf16.mxu0 0
  %4885 = vmatpush1.bf16.msra.mxu0 0
  %4886 = vmatprep.subr.bf16.mxu0 0
  %4887 = vmatpush1.bf16.msra.mxu0 0
  %4888 = vmatprep.mubr.bf16.mxu0 0
  %4889 = vmatmul.mubr.bf16.gmra.mrb[0].mxu0 %v1960
  %v4890 = vpop.f32.mrb[0].mxu0
  %v4891 = vadd.f32 %v4808, %v4890
  %v4892 = vpop.f32.mrb[0].mxu0
  %v4893 = vadd.f32 %v4810, %v4892
  %v4894 = vpop.f32.mrb[0].mxu0
  %v4895 = vadd.f32 %v4812, %v4894
  %v4896 = vpop.f32.mrb[0].mxu0
  %v4897 = vadd.f32 %v4814, %v4896
  %4898 = vmatprep.mubr.bf16.mxu0 0
  %4899 = vmatmul.mubr.bf16.gmra.mrb[0].mxu0 %v1963
  %v4900 = vpop.f32.mrb[0].mxu0
  %v4901 = vadd.f32 %v4818, %v4900
  %v4902 = vpop.f32.mrb[0].mxu0
  %v4903 = vadd.f32 %v4820, %v4902
  %v4904 = vpop.f32.mrb[0].mxu0
  %v4905 = vadd.f32 %v4822, %v4904
  %v4906 = vpop.f32.mrb[0].mxu0
  %v4907 = vadd.f32 %v4824, %v4906
  %4908 = vmatprep.mubr.bf16.mxu0 0
  %4909 = vmatmul.mubr.bf16.gmra.mrb[0].mxu0 %v1966
  %v4910 = vpop.f32.mrb[0].mxu0
  %v4911 = vadd.f32 %v4828, %v4910
  %v4912 = vpop.f32.mrb[0].mxu0
  %v4913 = vadd.f32 %v4830, %v4912
  %v4914 = vpop.f32.mrb[0].mxu0
  %v4915 = vadd.f32 %v4832, %v4914
  %v4916 = vpop.f32.mrb[0].mxu0
  %v4917 = vadd.f32 %v4834, %v4916
  %4918 = vmatprep.mubr.bf16.mxu0 0
  %4919 = vmatmul.mubr.bf16.gmra.mrb[0].mxu0 %v1969
  %v4920 = vpop.f32.mrb[0].mxu0
  %v4921 = vadd.f32 %v4838, %v4920
  %v4922 = vpop.f32.mrb[0].mxu0
  %v4923 = vadd.f32 %v4840, %v4922
  %v4924 = vpop.f32.mrb[0].mxu0
  %v4925 = vadd.f32 %v4842, %v4924
  %v4926 = vpop.f32.mrb[0].mxu0
  %v4927 = vadd.f32 %v4844, %v4926
  %4928 = vmatprep.mubr.bf16.mxu0 0
  %4929 = vmatmul.mubr.bf16.gmra.mrb[0].mxu0 %v1972
  %v4930 = vpop.f32.mrb[0].mxu0
  %v4931 = vadd.f32 %v4848, %v4930
  %v4932 = vpop.f32.mrb[0].mxu0
  %v4933 = vadd.f32 %v4850, %v4932
  %v4934 = vpop.f32.mrb[0].mxu0
  %v4935 = vadd.f32 %v4852, %v4934
  %v4936 = vpop.f32.mrb[0].mxu0
  %v4937 = vadd.f32 %v4854, %v4936
  %4938 = vdwg.mxu0
  %4939 = vmatprep.subr.bf16.mxu0 %v4616
  %4940 = vmatpush1.bf16.msra.mxu0 %v4615
  %4941 = vmatprep.subr.bf16.mxu0 %v4620
  %4942 = vmatpush1.bf16.msra.mxu0 %v4619
  %4943 = vmatprep.subr.bf16.mxu0 %v4624
  %4944 = vmatpush1.bf16.msra.mxu0 %v4623
  %4945 = vmatprep.subr.bf16.mxu0 %v4628
  %4946 = vmatpush1.bf16.msra.mxu0 %v4627
  %4947 = vmatprep.subr.bf16.mxu0 %v4632
  %4948 = vmatpush1.bf16.msra.mxu0 %v4631
  %4949 = vmatprep.subr.bf16.mxu0 %v4636
  %4950 = vmatpush1.bf16.msra.mxu0 %v4635
  %4951 = vmatprep.subr.bf16.mxu0 %v4640
  %4952 = vmatpush1.bf16.msra.mxu0 %v4639
  %4953 = vmatprep.subr.bf16.mxu0 %v4644
  %4954 = vmatpush1.bf16.msra.mxu0 %v4643
  %4955 = vmatprep.subr.bf16.mxu0 %v4648
  %4956 = vmatpush1.bf16.msra.mxu0 %v4647
  %4957 = vmatprep.subr.bf16.mxu0 %v4652
  %4958 = vmatpush1.bf16.msra.mxu0 %v4651
  %4959 = vmatprep.subr.bf16.mxu0 %v4656
  %4960 = vmatpush1.bf16.msra.mxu0 %v4655
  %4961 = vmatprep.subr.bf16.mxu0 %v4660
  %4962 = vmatpush1.bf16.msra.mxu0 %v4659
  %4963 = vmatprep.subr.bf16.mxu0 %v4664
  %4964 = vmatpush1.bf16.msra.mxu0 %v4663
  %4965 = vmatprep.subr.bf16.mxu0 %v4668
  %4966 = vmatpush1.bf16.msra.mxu0 %v4667
  %4967 = vmatprep.subr.bf16.mxu0 %v4672
  %4968 = vmatpush1.bf16.msra.mxu0 %v4671
  %4969 = vmatprep.subr.bf16.mxu0 %v4676
  %4970 = vmatpush1.bf16.msra.mxu0 %v4675
  %4971 = vmatprep.mubr.bf16.mxu0 %v1338
  %4972 = vmatmul.mubr.bf16.gmra.mrb[0].mxu0 %v1337
  %v4973 = vpop.f32.mrb[0].mxu0
  %v4974 = vadd.f32 0.0, %v4973
  %v4975 = vpop.f32.mrb[0].mxu0
  %v4976 = vadd.f32 0.0, %v4975
  %v4977 = vpop.f32.mrb[0].mxu0
  %v4978 = vadd.f32 0.0, %v4977
  %v4979 = vpop.f32.mrb[0].mxu0
  %v4980 = vadd.f32 0.0, %v4979
  %4981 = vmatprep.mubr.bf16.mxu0 %v1341
  %4982 = vmatmul.mubr.bf16.gmra.mrb[0].mxu0 %v1340
  %v4983 = vpop.f32.mrb[0].mxu0
  %v4984 = vadd.f32 0.0, %v4983
  %v4985 = vpop.f32.mrb[0].mxu0
  %v4986 = vadd.f32 0.0, %v4985
  %v4987 = vpop.f32.mrb[0].mxu0
  %v4988 = vadd.f32 0.0, %v4987
  %v4989 = vpop.f32.mrb[0].mxu0
  %v4990 = vadd.f32 0.0, %v4989
  %4991 = vmatprep.mubr.bf16.mxu0 %v1344
  %4992 = vmatmul.mubr.bf16.gmra.mrb[0].mxu0 %v1343
  %v4993 = vpop.f32.mrb[0].mxu0
  %v4994 = vadd.f32 0.0, %v4993
  %v4995 = vpop.f32.mrb[0].mxu0
  %v4996 = vadd.f32 0.0, %v4995
  %v4997 = vpop.f32.mrb[0].mxu0
  %v4998 = vadd.f32 0.0, %v4997
  %v4999 = vpop.f32.mrb[0].mxu0
  %v5000 = vadd.f32 0.0, %v4999
  %5001 = vmatprep.mubr.bf16.mxu0 %v1347
  %5002 = vmatmul.mubr.bf16.gmra.mrb[0].mxu0 %v1346
  %v5003 = vpop.f32.mrb[0].mxu0
  %v5004 = vadd.f32 0.0, %v5003
  %v5005 = vpop.f32.mrb[0].mxu0
  %v5006 = vadd.f32 0.0, %v5005
  %v5007 = vpop.f32.mrb[0].mxu0
  %v5008 = vadd.f32 0.0, %v5007
  %v5009 = vpop.f32.mrb[0].mxu0
  %v5010 = vadd.f32 0.0, %v5009
  %5011 = vmatprep.mubr.bf16.mxu0 %v1350
  %5012 = vmatmul.mubr.bf16.gmra.mrb[0].mxu0 %v1349
  %v5013 = vpop.f32.mrb[0].mxu0
  %v5014 = vadd.f32 0.0, %v5013
  %v5015 = vpop.f32.mrb[0].mxu0
  %v5016 = vadd.f32 0.0, %v5015
  %v5017 = vpop.f32.mrb[0].mxu0
  %v5018 = vadd.f32 0.0, %v5017
  %v5019 = vpop.f32.mrb[0].mxu0
  %v5020 = vadd.f32 0.0, %v5019
  %5021 = vdwg.mxu0
  %5022 = vmatprep.subr.bf16.mxu0 %v4680
  %5023 = vmatpush1.bf16.msra.mxu0 %v4679
  %5024 = vmatprep.subr.bf16.mxu0 %v4684
  %5025 = vmatpush1.bf16.msra.mxu0 %v4683
  %5026 = vmatprep.subr.bf16.mxu0 %v4688
  %5027 = vmatpush1.bf16.msra.mxu0 %v4687
  %5028 = vmatprep.subr.bf16.mxu0 %v4692
  %5029 = vmatpush1.bf16.msra.mxu0 %v4691
  %5030 = vmatprep.subr.bf16.mxu0 0
  %5031 = vmatpush1.bf16.msra.mxu0 0
  %5032 = vmatprep.subr.bf16.mxu0 0
  %5033 = vmatpush1.bf16.msra.mxu0 0
  %5034 = vmatprep.subr.bf16.mxu0 0
  %5035 = vmatpush1.bf16.msra.mxu0 0
  %5036 = vmatprep.subr.bf16.mxu0 0
  %5037 = vmatpush1.bf16.msra.mxu0 0
  %5038 = vmatprep.subr.bf16.mxu0 0
  %5039 = vmatpush1.bf16.msra.mxu0 0
  %5040 = vmatprep.subr.bf16.mxu0 0
  %5041 = vmatpush1.bf16.msra.mxu0 0
  %5042 = vmatprep.subr.bf16.mxu0 0
  %5043 = vmatpush1.bf16.msra.mxu0 0
  %5044 = vmatprep.subr.bf16.mxu0 0
  %5045 = vmatpush1.bf16.msra.mxu0 0
  %5046 = vmatprep.subr.bf16.mxu0 0
  %5047 = vmatpush1.bf16.msra.mxu0 0
  %5048 = vmatprep.subr.bf16.mxu0 0
  %5049 = vmatpush1.bf16.msra.mxu0 0
  %5050 = vmatprep.subr.bf16.mxu0 0
  %5051 = vmatpush1.bf16.msra.mxu0 0
  %5052 = vmatprep.subr.bf16.mxu0 0
  %5053 = vmatpush1.bf16.msra.mxu0 0
  %5054 = vmatprep.mubr.bf16.mxu0 0
  %5055 = vmatmul.mubr.bf16.gmra.mrb[0].mxu0 %v1960
  %v5056 = vpop.f32.mrb[0].mxu0
  %v5057 = vadd.f32 %v4974, %v5056
  %v5058 = vpop.f32.mrb[0].mxu0
  %v5059 = vadd.f32 %v4976, %v5058
  %v5060 = vpop.f32.mrb[0].mxu0
  %v5061 = vadd.f32 %v4978, %v5060
  %v5062 = vpop.f32.mrb[0].mxu0
  %v5063 = vadd.f32 %v4980, %v5062
  %5064 = vmatprep.mubr.bf16.mxu0 0
  %5065 = vmatmul.mubr.bf16.gmra.mrb[0].mxu0 %v1963
  %v5066 = vpop.f32.mrb[0].mxu0
  %v5067 = vadd.f32 %v4984, %v5066
  %v5068 = vpop.f32.mrb[0].mxu0
  %v5069 = vadd.f32 %v4986, %v5068
  %v5070 = vpop.f32.mrb[0].mxu0
  %v5071 = vadd.f32 %v4988, %v5070
  %v5072 = vpop.f32.mrb[0].mxu0
  %v5073 = vadd.f32 %v4990, %v5072
  %5074 = vmatprep.mubr.bf16.mxu0 0
  %5075 = vmatmul.mubr.bf16.gmra.mrb[0].mxu0 %v1966
  %v5076 = vpop.f32.mrb[0].mxu0
  %v5077 = vadd.f32 %v4994, %v5076
  %v5078 = vpop.f32.mrb[0].mxu0
  %v5079 = vadd.f32 %v4996, %v5078
  %v5080 = vpop.f32.mrb[0].mxu0
  %v5081 = vadd.f32 %v4998, %v5080
  %v5082 = vpop.f32.mrb[0].mxu0
  %v5083 = vadd.f32 %v5000, %v5082
  %5084 = vmatprep.mubr.bf16.mxu0 0
  %5085 = vmatmul.mubr.bf16.gmra.mrb[0].mxu0 %v1969
  %v5086 = vpop.f32.mrb[0].mxu0
  %v5087 = vadd.f32 %v5004, %v5086
  %v5088 = vpop.f32.mrb[0].mxu0
  %v5089 = vadd.f32 %v5006, %v5088
  %v5090 = vpop.f32.mrb[0].mxu0
  %v5091 = vadd.f32 %v5008, %v5090
  %v5092 = vpop.f32.mrb[0].mxu0
  %v5093 = vadd.f32 %v5010, %v5092
  %5094 = vmatprep.mubr.bf16.mxu0 0
  %5095 = vmatmul.mubr.bf16.gmra.mrb[0].mxu0 %v1972
  %v5096 = vpop.f32.mrb[0].mxu0
  %v5097 = vadd.f32 %v5014, %v5096
  %v5098 = vpop.f32.mrb[0].mxu0
  %v5099 = vadd.f32 %v5016, %v5098
  %v5100 = vpop.f32.mrb[0].mxu0
  %v5101 = vadd.f32 %v5018, %v5100
  %v5102 = vpop.f32.mrb[0].mxu0
  %v5103 = vadd.f32 %v5020, %v5102
  %5104 = vdwg.mxu0
  %v5105 = vld [vmem:[#allocation4 + $0x40] sm:$0xff]
  %v5106 = vld [vmem:[#allocation4 + $0x48] sm:$0xff]
  %v5107 = vld [vmem:[#allocation4 + $0x50] sm:$0xff]
  %v5108 = vld [vmem:[#allocation4 + $0x58] sm:$0xff]
  %v5109 = vld [vmem:[#allocation4 + $0x60] sm:$0xff]
  %v5110 = vld [vmem:[#allocation4 + $0x68] sm:$0xff]
  %v5111 = vld [vmem:[#allocation4 + $0x70] sm:$0xff]
  %v5112 = vld [vmem:[#allocation4 + $0x78] sm:$0xff]
  %v5113 = vld [vmem:[#allocation4 + $0x80] sm:$0xff]
  %v5114 = vld [vmem:[#allocation4 + $0x88] sm:$0xff]
  %v5115 = vld [vmem:[#allocation4 + $0x90] sm:$0xff]
  %v5116 = vld [vmem:[#allocation4 + $0x98] sm:$0xff]
  %v5117 = vld [vmem:[#allocation4 + $0xa0] sm:$0xff]
  %v5118 = vld [vmem:[#allocation4 + $0xa8] sm:$0xff]
  %v5119 = vld [vmem:[#allocation4 + $0xb0] sm:$0xff]
  %v5120 = vld [vmem:[#allocation4 + $0xb8] sm:$0xff]
  %v5121 = vld [vmem:[#allocation4 + $0xc0] sm:$0xff]
  %v5122 = vld [vmem:[#allocation4 + $0xc8] sm:$0xff]
  %v5123 = vld [vmem:[#allocation4 + $0xd0] sm:$0xff]
  %v5124 = vld [vmem:[#allocation4 + $0xd8] sm:$0xff]
  %v5125 = vld [vmem:[#allocation4 + $0xe0] sm:$0xff]
  %v5126 = vld [vmem:[#allocation4 + $0xe8] sm:$0xff]
  %v5127 = vld [vmem:[#allocation4 + $0xf0] sm:$0xff]
  %v5128 = vld [vmem:[#allocation4 + $0xf8] sm:$0xff]
  %v5129 = vld [vmem:[#allocation4 + $0x100] sm:$0xff]
  %v5130 = vld [vmem:[#allocation4 + $0x108] sm:$0xff]
  %v5131 = vld [vmem:[#allocation4 + $0x110] sm:$0xff]
  %v5132 = vld [vmem:[#allocation4 + $0x118] sm:$0xff]
  %v5133 = vld [vmem:[#allocation4 + $0x120] sm:$0xff]
  %v5134 = vld [vmem:[#allocation4 + $0x128] sm:$0xff]
  %v5135 = vld [vmem:[#allocation4 + $0x130] sm:$0xff]
  %v5136 = vld [vmem:[#allocation4 + $0x138] sm:$0xff]
  %v5137 = vld [vmem:[#allocation4 + $0x140] sm:$0xff]
  %v5138 = vld [vmem:[#allocation4 + $0x148] sm:$0xff]
  %v5139 = vld [vmem:[#allocation4 + $0x150] sm:$0xff]
  %v5140 = vld [vmem:[#allocation4 + $0x158] sm:$0xff]
  %v5141 = vld [vmem:[#allocation4 + $0x160] sm:$0xff]
  %v5142 = vld [vmem:[#allocation4 + $0x168] sm:$0xff]
  %v5143 = vld [vmem:[#allocation4 + $0x170] sm:$0xff]
  %v5144 = vld [vmem:[#allocation4 + $0x178] sm:$0xff]
  %v5145 = vadd.f32 %v5105, %v4891
  %v5146 = vadd.f32 %v5106, %v4893
  %v5147 = vadd.f32 %v5107, %v5057
  %v5148 = vadd.f32 %v5108, %v5059
  %v5149 = vadd.f32 %v5109, %v4895
  %v5150 = vadd.f32 %v5110, %v4897
  %v5151 = vadd.f32 %v5111, %v5061
  %v5152 = vadd.f32 %v5112, %v5063
  %v5153 = vadd.f32 %v5113, %v4901
  %v5154 = vadd.f32 %v5114, %v4903
  %v5155 = vadd.f32 %v5115, %v5067
  %v5156 = vadd.f32 %v5116, %v5069
  %v5157 = vadd.f32 %v5117, %v4905
  %v5158 = vadd.f32 %v5118, %v4907
  %v5159 = vadd.f32 %v5119, %v5071
  %v5160 = vadd.f32 %v5120, %v5073
  %v5161 = vadd.f32 %v5121, %v4911
  %v5162 = vadd.f32 %v5122, %v4913
  %v5163 = vadd.f32 %v5123, %v5077
  %v5164 = vadd.f32 %v5124, %v5079
  %v5165 = vadd.f32 %v5125, %v4915
  %v5166 = vadd.f32 %v5126, %v4917
  %v5167 = vadd.f32 %v5127, %v5081
  %v5168 = vadd.f32 %v5128, %v5083
  %v5169 = vadd.f32 %v5129, %v4921
  %v5170 = vadd.f32 %v5130, %v4923
  %v5171 = vadd.f32 %v5131, %v5087
  %v5172 = vadd.f32 %v5132, %v5089
  %v5173 = vadd.f32 %v5133, %v4925
  %v5174 = vadd.f32 %v5134, %v4927
  %v5175 = vadd.f32 %v5135, %v5091
  %v5176 = vadd.f32 %v5136, %v5093
  %v5177 = vadd.f32 %v5137, %v4931
  %v5178 = vadd.f32 %v5138, %v4933
  %v5179 = vadd.f32 %v5139, %v5097
  %v5180 = vadd.f32 %v5140, %v5099
  %v5181 = vadd.f32 %v5141, %v4935
  %v5182 = vadd.f32 %v5142, %v4937
  %v5183 = vadd.f32 %v5143, %v5101
  %v5184 = vadd.f32 %v5144, %v5103
  %5185 = vst [vmem:[#allocation4 + $0x40] sm:$0xff] %v5145
  %5186 = vst [vmem:[#allocation4 + $0x48] sm:$0xff] %v5146
  %5187 = vst [vmem:[#allocation4 + $0x50] sm:$0xff] %v5147
  %5188 = vst.msk [vmem:[#allocation4 + $0x58] sm:$0xff] %vm1377, %v5148
  %5189 = vst [vmem:[#allocation4 + $0x60] sm:$0xff] %v5149
  %5190 = vst [vmem:[#allocation4 + $0x68] sm:$0xff] %v5150
  %5191 = vst [vmem:[#allocation4 + $0x70] sm:$0xff] %v5151
  %5192 = vst.msk [vmem:[#allocation4 + $0x78] sm:$0xff] %vm1377, %v5152
  %5193 = vst [vmem:[#allocation4 + $0x80] sm:$0xff] %v5153
  %5194 = vst [vmem:[#allocation4 + $0x88] sm:$0xff] %v5154
  %5195 = vst [vmem:[#allocation4 + $0x90] sm:$0xff] %v5155
  %5196 = vst.msk [vmem:[#allocation4 + $0x98] sm:$0xff] %vm1377, %v5156
  %5197 = vst [vmem:[#allocation4 + $0xa0] sm:$0xff] %v5157
  %5198 = vst [vmem:[#allocation4 + $0xa8] sm:$0xff] %v5158
  %5199 = vst [vmem:[#allocation4 + $0xb0] sm:$0xff] %v5159
  %5200 = vst.msk [vmem:[#allocation4 + $0xb8] sm:$0xff] %vm1377, %v5160
  %5201 = vst [vmem:[#allocation4 + $0xc0] sm:$0xff] %v5161
  %5202 = vst [vmem:[#allocation4 + $0xc8] sm:$0xff] %v5162
  %5203 = vst [vmem:[#allocation4 + $0xd0] sm:$0xff] %v5163
  %5204 = vst.msk [vmem:[#allocation4 + $0xd8] sm:$0xff] %vm1377, %v5164
  %5205 = vst [vmem:[#allocation4 + $0xe0] sm:$0xff] %v5165
  %5206 = vst [vmem:[#allocation4 + $0xe8] sm:$0xff] %v5166
  %5207 = vst [vmem:[#allocation4 + $0xf0] sm:$0xff] %v5167
  %5208 = vst.msk [vmem:[#allocation4 + $0xf8] sm:$0xff] %vm1377, %v5168
  %5209 = vst [vmem:[#allocation4 + $0x100] sm:$0xff] %v5169
  %5210 = vst [vmem:[#allocation4 + $0x108] sm:$0xff] %v5170
  %5211 = vst [vmem:[#allocation4 + $0x110] sm:$0xff] %v5171
  %5212 = vst.msk [vmem:[#allocation4 + $0x118] sm:$0xff] %vm1377, %v5172
  %5213 = vst [vmem:[#allocation4 + $0x120] sm:$0xff] %v5173
  %5214 = vst [vmem:[#allocation4 + $0x128] sm:$0xff] %v5174
  %5215 = vst [vmem:[#allocation4 + $0x130] sm:$0xff] %v5175
  %5216 = vst.msk [vmem:[#allocation4 + $0x138] sm:$0xff] %vm1377, %v5176
  %5217 = vst [vmem:[#allocation4 + $0x140] sm:$0xff] %v5177
  %5218 = vst [vmem:[#allocation4 + $0x148] sm:$0xff] %v5178
  %5219 = vst [vmem:[#allocation4 + $0x150] sm:$0xff] %v5179
  %5220 = vst.msk [vmem:[#allocation4 + $0x158] sm:$0xff] %vm1377, %v5180
  %5221 = vst [vmem:[#allocation4 + $0x160] sm:$0xff] %v5181
  %5222 = vst [vmem:[#allocation4 + $0x168] sm:$0xff] %v5182
  %5223 = vst [vmem:[#allocation4 + $0x170] sm:$0xff] %v5183
  %5224 = vst.msk [vmem:[#allocation4 + $0x178] sm:$0xff] %vm1377, %v5184
  %s5225 = scalar_lea.vmem %s3, 2560
  %v5226 = vld [vmem:[%s5225] sm:$0xff]
  %v5227 = vld [vmem:[%s5225 + $0x8] sm:$0xff]
  %v5228 = vld [vmem:[%s5225 + $0x10] sm:$0xff]
  %v5229 = vld [vmem:[%s5225 + $0x18] sm:$0xff]
  %v5230 = vld [vmem:[%s5225 + $0x20] sm:$0xff]
  %v5231 = vld [vmem:[%s5225 + $0x28] sm:$0xff]
  %v5232 = vld [vmem:[%s5225 + $0x30] sm:$0xff]
  %v5233 = vld [vmem:[%s5225 + $0x38] sm:$0xff]
  %v5234 = vld [vmem:[%s5225 + $0x40] sm:$0xff]
  %v5235 = vld [vmem:[%s5225 + $0x48] sm:$0xff]
  %v5236 = vld [vmem:[%s5225 + $0x50] sm:$0xff]
  %v5237 = vld [vmem:[%s5225 + $0x58] sm:$0xff]
  %v5238 = vld [vmem:[%s5225 + $0x60] sm:$0xff]
  %v5239 = vld [vmem:[%s5225 + $0x68] sm:$0xff]
  %v5240 = vld [vmem:[%s5225 + $0x70] sm:$0xff]
  %v5241 = vld [vmem:[%s5225 + $0x78] sm:$0xff]
  %v5242 = vld [vmem:[%s5225 + $0x80] sm:$0xff]
  %v5243 = vld [vmem:[%s5225 + $0x88] sm:$0xff]
  %v5244 = vld [vmem:[%s5225 + $0x90] sm:$0xff]
  %v5245 = vld [vmem:[%s5225 + $0x98] sm:$0xff]
  %v5246 = vld [vmem:[%s5225 + $0xa0] sm:$0xff]
  %v5247 = vld [vmem:[%s5225 + $0xa8] sm:$0xff]
  %v5248 = vld [vmem:[%s5225 + $0xb0] sm:$0xff]
  %v5249 = vld [vmem:[%s5225 + $0xb8] sm:$0xff]
  %v5250 = vld [vmem:[%s5225 + $0xc0] sm:$0xff]
  %v5251 = vld [vmem:[%s5225 + $0xc8] sm:$0xff]
  %v5252 = vld [vmem:[%s5225 + $0xd0] sm:$0xff]
  %v5253 = vld [vmem:[%s5225 + $0xd8] sm:$0xff]
  %v5254 = vld [vmem:[%s5225 + $0xe0] sm:$0xff]
  %v5255 = vld [vmem:[%s5225 + $0xe8] sm:$0xff]
  %v5256 = vld [vmem:[%s5225 + $0xf0] sm:$0xff]
  %v5257 = vld [vmem:[%s5225 + $0xf8] sm:$0xff]
  %v5258 = vld [vmem:[%s5225 + $0x100] sm:$0xff]
  %v5259 = vld [vmem:[%s5225 + $0x108] sm:$0xff]
  %v5260 = vld [vmem:[%s5225 + $0x110] sm:$0xff]
  %v5261 = vld [vmem:[%s5225 + $0x118] sm:$0xff]
  %v5262 = vld [vmem:[%s5225 + $0x120] sm:$0xff]
  %v5263 = vld [vmem:[%s5225 + $0x128] sm:$0xff]
  %v5264 = vld [vmem:[%s5225 + $0x130] sm:$0xff]
  %v5265 = vld [vmem:[%s5225 + $0x138] sm:$0xff]
  %v5266 = vld [vmem:[%s5225 + $0x140] sm:$0xff]
  %v5267 = vld [vmem:[%s5225 + $0x148] sm:$0xff]
  %v5268 = vld [vmem:[%s5225 + $0x150] sm:$0xff]
  %v5269 = vld [vmem:[%s5225 + $0x158] sm:$0xff]
  %v5270 = vld [vmem:[%s5225 + $0x160] sm:$0xff]
  %v5271 = vld [vmem:[%s5225 + $0x168] sm:$0xff]
  %v5272 = vld [vmem:[%s5225 + $0x170] sm:$0xff]
  %v5273 = vld [vmem:[%s5225 + $0x178] sm:$0xff]
  %v5274 = vld [vmem:[%s5225 + $0x180] sm:$0xff]
  %v5275 = vld [vmem:[%s5225 + $0x188] sm:$0xff]
  %v5276 = vld [vmem:[%s5225 + $0x190] sm:$0xff]
  %v5277 = vld [vmem:[%s5225 + $0x198] sm:$0xff]
  %v5278 = vld [vmem:[%s5225 + $0x1a0] sm:$0xff]
  %v5279 = vld [vmem:[%s5225 + $0x1a8] sm:$0xff]
  %v5280 = vld [vmem:[%s5225 + $0x1b0] sm:$0xff]
  %v5281 = vld [vmem:[%s5225 + $0x1b8] sm:$0xff]
  %v5282 = vld [vmem:[%s5225 + $0x1c0] sm:$0xff]
  %v5283 = vld [vmem:[%s5225 + $0x1c8] sm:$0xff]
  %v5284 = vld [vmem:[%s5225 + $0x1d0] sm:$0xff]
  %v5285 = vld [vmem:[%s5225 + $0x1d8] sm:$0xff]
  %v5286 = vld [vmem:[%s5225 + $0x1e0] sm:$0xff]
  %v5287 = vld [vmem:[%s5225 + $0x1e8] sm:$0xff]
  %v5288 = vld [vmem:[%s5225 + $0x1f0] sm:$0xff]
  %v5289 = vld [vmem:[%s5225 + $0x1f8] sm:$0xff]
  %v5290 = vld [vmem:[%s5225 + $0x200] sm:$0xff]
  %v5291 = vld [vmem:[%s5225 + $0x208] sm:$0xff]
  %v5292 = vld [vmem:[%s5225 + $0x210] sm:$0xff]
  %v5293 = vld [vmem:[%s5225 + $0x218] sm:$0xff]
  %v5294 = vld [vmem:[%s5225 + $0x220] sm:$0xff]
  %v5295 = vld [vmem:[%s5225 + $0x228] sm:$0xff]
  %v5296 = vld [vmem:[%s5225 + $0x230] sm:$0xff]
  %v5297 = vld [vmem:[%s5225 + $0x238] sm:$0xff]
  %v5298 = vld [vmem:[%s5225 + $0x240] sm:$0xff]
  %v5299 = vld [vmem:[%s5225 + $0x248] sm:$0xff]
  %v5300 = vld [vmem:[%s5225 + $0x250] sm:$0xff]
  %v5301 = vld [vmem:[%s5225 + $0x258] sm:$0xff]
  %v5302 = vld [vmem:[%s5225 + $0x260] sm:$0xff]
  %v5303 = vld [vmem:[%s5225 + $0x268] sm:$0xff]
  %v5304 = vld [vmem:[%s5225 + $0x270] sm:$0xff]
  %v5305 = vld [vmem:[%s5225 + $0x278] sm:$0xff]
  %v5386 = vunpack.c.l.b16 %v5226
  %v5387 = vunpack.c.h.b16 %v5226
  %v5388 = vunpack.c.l.b16 %v5227
  %v5389 = vunpack.c.h.b16 %v5227
  %v5390 = vunpack.c.l.b16 %v5228
  %v5391 = vunpack.c.h.b16 %v5228
  %v5392 = vunpack.c.l.b16 %v5229
  %v5393 = vunpack.c.h.b16 %v5229
  %v5394 = vunpack.c.l.b16 %v5230
  %v5395 = vunpack.c.h.b16 %v5230
  %v5396 = vunpack.c.l.b16 %v5231
  %v5397 = vunpack.c.h.b16 %v5231
  %v5398 = vunpack.c.l.b16 %v5232
  %v5399 = vunpack.c.h.b16 %v5232
  %v5400 = vunpack.c.l.b16 %v5233
  %v5401 = vunpack.c.h.b16 %v5233
  %v5402 = vunpack.c.l.b16 %v5234
  %v5403 = vunpack.c.h.b16 %v5234
  %v5404 = vunpack.c.l.b16 %v5235
  %v5405 = vunpack.c.h.b16 %v5235
  %v5406 = vunpack.c.l.b16 %v5236
  %v5407 = vunpack.c.h.b16 %v5236
  %v5408 = vunpack.c.l.b16 %v5237
  %v5409 = vunpack.c.h.b16 %v5237
  %v5410 = vunpack.c.l.b16 %v5238
  %v5411 = vunpack.c.h.b16 %v5238
  %v5412 = vunpack.c.l.b16 %v5239
  %v5413 = vunpack.c.h.b16 %v5239
  %v5414 = vunpack.c.l.b16 %v5240
  %v5415 = vunpack.c.h.b16 %v5240
  %v5416 = vunpack.c.l.b16 %v5241
  %v5417 = vunpack.c.h.b16 %v5241
  %v5418 = vunpack.c.l.b16 %v5242
  %v5419 = vunpack.c.h.b16 %v5242
  %v5420 = vunpack.c.l.b16 %v5243
  %v5421 = vunpack.c.h.b16 %v5243
  %v5422 = vunpack.c.l.b16 %v5244
  %v5423 = vunpack.c.h.b16 %v5244
  %v5424 = vunpack.c.l.b16 %v5245
  %v5425 = vunpack.c.h.b16 %v5245
  %v5426 = vunpack.c.l.b16 %v5246
  %v5427 = vunpack.c.h.b16 %v5246
  %v5428 = vunpack.c.l.b16 %v5247
  %v5429 = vunpack.c.h.b16 %v5247
  %v5430 = vunpack.c.l.b16 %v5248
  %v5431 = vunpack.c.h.b16 %v5248
  %v5432 = vunpack.c.l.b16 %v5249
  %v5433 = vunpack.c.h.b16 %v5249
  %v5434 = vunpack.c.l.b16 %v5250
  %v5435 = vunpack.c.h.b16 %v5250
  %v5436 = vunpack.c.l.b16 %v5251
  %v5437 = vunpack.c.h.b16 %v5251
  %v5438 = vunpack.c.l.b16 %v5252
  %v5439 = vunpack.c.h.b16 %v5252
  %v5440 = vunpack.c.l.b16 %v5253
  %v5441 = vunpack.c.h.b16 %v5253
  %v5442 = vunpack.c.l.b16 %v5254
  %v5443 = vunpack.c.h.b16 %v5254
  %v5444 = vunpack.c.l.b16 %v5255
  %v5445 = vunpack.c.h.b16 %v5255
  %v5446 = vunpack.c.l.b16 %v5256
  %v5447 = vunpack.c.h.b16 %v5256
  %v5448 = vunpack.c.l.b16 %v5257
  %v5449 = vunpack.c.h.b16 %v5257
  %v5450 = vunpack.c.l.b16 %v5258
  %v5451 = vunpack.c.h.b16 %v5258
  %v5452 = vunpack.c.l.b16 %v5259
  %v5453 = vunpack.c.h.b16 %v5259
  %v5454 = vunpack.c.l.b16 %v5260
  %v5455 = vunpack.c.h.b16 %v5260
  %v5456 = vunpack.c.l.b16 %v5261
  %v5457 = vunpack.c.h.b16 %v5261
  %v5458 = vunpack.c.l.b16 %v5262
  %v5459 = vunpack.c.h.b16 %v5262
  %v5460 = vunpack.c.l.b16 %v5263
  %v5461 = vunpack.c.h.b16 %v5263
  %v5462 = vunpack.c.l.b16 %v5264
  %v5463 = vunpack.c.h.b16 %v5264
  %v5464 = vunpack.c.l.b16 %v5265
  %v5465 = vunpack.c.h.b16 %v5265
  %v5466 = vunpack.c.l.b16 %v5266
  %v5467 = vunpack.c.h.b16 %v5266
  %v5468 = vunpack.c.l.b16 %v5267
  %v5469 = vunpack.c.h.b16 %v5267
  %v5470 = vunpack.c.l.b16 %v5268
  %v5471 = vunpack.c.h.b16 %v5268
  %v5472 = vunpack.c.l.b16 %v5269
  %v5473 = vunpack.c.h.b16 %v5269
  %v5474 = vunpack.c.l.b16 %v5270
  %v5475 = vunpack.c.h.b16 %v5270
  %v5476 = vunpack.c.l.b16 %v5271
  %v5477 = vunpack.c.h.b16 %v5271
  %v5478 = vunpack.c.l.b16 %v5272
  %v5479 = vunpack.c.h.b16 %v5272
  %v5480 = vunpack.c.l.b16 %v5273
  %v5481 = vunpack.c.h.b16 %v5273
  %v5482 = vunpack.c.l.b16 %v5274
  %v5483 = vunpack.c.h.b16 %v5274
  %v5484 = vunpack.c.l.b16 %v5275
  %v5485 = vunpack.c.h.b16 %v5275
  %v5486 = vunpack.c.l.b16 %v5276
  %v5487 = vunpack.c.h.b16 %v5276
  %v5488 = vunpack.c.l.b16 %v5277
  %v5489 = vunpack.c.h.b16 %v5277
  %v5490 = vunpack.c.l.b16 %v5278
  %v5491 = vunpack.c.h.b16 %v5278
  %v5492 = vunpack.c.l.b16 %v5279
  %v5493 = vunpack.c.h.b16 %v5279
  %v5494 = vunpack.c.l.b16 %v5280
  %v5495 = vunpack.c.h.b16 %v5280
  %v5496 = vunpack.c.l.b16 %v5281
  %v5497 = vunpack.c.h.b16 %v5281
  %v5498 = vunpack.c.l.b16 %v5282
  %v5499 = vunpack.c.h.b16 %v5282
  %v5500 = vunpack.c.l.b16 %v5283
  %v5501 = vunpack.c.h.b16 %v5283
  %v5502 = vunpack.c.l.b16 %v5284
  %v5503 = vunpack.c.h.b16 %v5284
  %v5504 = vunpack.c.l.b16 %v5285
  %v5505 = vunpack.c.h.b16 %v5285
  %v5506 = vunpack.c.l.b16 %v5286
  %v5507 = vunpack.c.h.b16 %v5286
  %v5508 = vunpack.c.l.b16 %v5287
  %v5509 = vunpack.c.h.b16 %v5287
  %v5510 = vunpack.c.l.b16 %v5288
  %v5511 = vunpack.c.h.b16 %v5288
  %v5512 = vunpack.c.l.b16 %v5289
  %v5513 = vunpack.c.h.b16 %v5289
  %v5514 = vunpack.c.l.b16 %v5290
  %v5515 = vunpack.c.h.b16 %v5290
  %v5516 = vunpack.c.l.b16 %v5291
  %v5517 = vunpack.c.h.b16 %v5291
  %v5518 = vunpack.c.l.b16 %v5292
  %v5519 = vunpack.c.h.b16 %v5292
  %v5520 = vunpack.c.l.b16 %v5293
  %v5521 = vunpack.c.h.b16 %v5293
  %v5522 = vunpack.c.l.b16 %v5294
  %v5523 = vunpack.c.h.b16 %v5294
  %v5524 = vunpack.c.l.b16 %v5295
  %v5525 = vunpack.c.h.b16 %v5295
  %v5526 = vunpack.c.l.b16 %v5296
  %v5527 = vunpack.c.h.b16 %v5296
  %v5528 = vunpack.c.l.b16 %v5297
  %v5529 = vunpack.c.h.b16 %v5297
  %v5530 = vunpack.c.l.b16 %v5298
  %v5531 = vunpack.c.h.b16 %v5298
  %v5532 = vunpack.c.l.b16 %v5299
  %v5533 = vunpack.c.h.b16 %v5299
  %v5534 = vunpack.c.l.b16 %v5300
  %v5535 = vunpack.c.h.b16 %v5300
  %v5536 = vunpack.c.l.b16 %v5301
  %v5537 = vunpack.c.h.b16 %v5301
  %v5538 = vunpack.c.l.b16 %v5302
  %v5539 = vunpack.c.h.b16 %v5302
  %v5540 = vunpack.c.l.b16 %v5303
  %v5541 = vunpack.c.h.b16 %v5303
  %v5542 = vunpack.c.l.b16 %v5304
  %v5543 = vunpack.c.h.b16 %v5304
  %v5544 = vunpack.c.l.b16 %v5305
  %v5545 = vunpack.c.h.b16 %v5305
  %v5546 = vpack.c.b16 %v5390, %v5386
  %v5547 = vpack.c.b16 %v5391, %v5387
  %v5548 = vpack.c.b16 %v5392, %v5388
  %v5549 = vpack.c.b16 %v5393, %v5389
  %v5550 = vpack.c.b16 %v5398, %v5394
  %v5551 = vpack.c.b16 %v5399, %v5395
  %v5552 = vpack.c.b16 %v5400, %v5396
  %v5553 = vpack.c.b16 %v5401, %v5397
  %v5554 = vpack.c.b16 %v5406, %v5402
  %v5555 = vpack.c.b16 %v5407, %v5403
  %v5556 = vpack.c.b16 %v5408, %v5404
  %v5557 = vpack.c.b16 %v5409, %v5405
  %v5558 = vpack.c.b16 %v5414, %v5410
  %v5559 = vpack.c.b16 %v5415, %v5411
  %v5560 = vpack.c.b16 %v5416, %v5412
  %v5561 = vpack.c.b16 %v5417, %v5413
  %v5562 = vpack.c.b16 %v5422, %v5418
  %v5563 = vpack.c.b16 %v5423, %v5419
  %v5564 = vpack.c.b16 %v5424, %v5420
  %v5565 = vpack.c.b16 %v5425, %v5421
  %v5566 = vpack.c.b16 %v5430, %v5426
  %v5567 = vpack.c.b16 %v5431, %v5427
  %v5568 = vpack.c.b16 %v5432, %v5428
  %v5569 = vpack.c.b16 %v5433, %v5429
  %v5570 = vpack.c.b16 %v5438, %v5434
  %v5571 = vpack.c.b16 %v5439, %v5435
  %v5572 = vpack.c.b16 %v5440, %v5436
  %v5573 = vpack.c.b16 %v5441, %v5437
  %v5574 = vpack.c.b16 %v5446, %v5442
  %v5575 = vpack.c.b16 %v5447, %v5443
  %v5576 = vpack.c.b16 %v5448, %v5444
  %v5577 = vpack.c.b16 %v5449, %v5445
  %v5578 = vpack.c.b16 %v5454, %v5450
  %v5579 = vpack.c.b16 %v5455, %v5451
  %v5580 = vpack.c.b16 %v5456, %v5452
  %v5581 = vpack.c.b16 %v5457, %v5453
  %v5582 = vpack.c.b16 %v5462, %v5458
  %v5583 = vpack.c.b16 %v5463, %v5459
  %v5584 = vpack.c.b16 %v5464, %v5460
  %v5585 = vpack.c.b16 %v5465, %v5461
  %v5586 = vpack.c.b16 %v5470, %v5466
  %v5587 = vpack.c.b16 %v5471, %v5467
  %v5588 = vpack.c.b16 %v5472, %v5468
  %v5589 = vpack.c.b16 %v5473, %v5469
  %v5590 = vpack.c.b16 %v5478, %v5474
  %v5591 = vpack.c.b16 %v5479, %v5475
  %v5592 = vpack.c.b16 %v5480, %v5476
  %v5593 = vpack.c.b16 %v5481, %v5477
  %v5594 = vpack.c.b16 %v5486, %v5482
  %v5595 = vpack.c.b16 %v5487, %v5483
  %v5596 = vpack.c.b16 %v5488, %v5484
  %v5597 = vpack.c.b16 %v5489, %v5485
  %v5598 = vpack.c.b16 %v5494, %v5490
  %v5599 = vpack.c.b16 %v5495, %v5491
  %v5600 = vpack.c.b16 %v5496, %v5492
  %v5601 = vpack.c.b16 %v5497, %v5493
  %v5602 = vpack.c.b16 %v5502, %v5498
  %v5603 = vpack.c.b16 %v5503, %v5499
  %v5604 = vpack.c.b16 %v5504, %v5500
  %v5605 = vpack.c.b16 %v5505, %v5501
  %v5606 = vpack.c.b16 %v5510, %v5506
  %v5607 = vpack.c.b16 %v5511, %v5507
  %v5608 = vpack.c.b16 %v5512, %v5508
  %v5609 = vpack.c.b16 %v5513, %v5509
  %v5610 = vpack.c.b16 %v5518, %v5514
  %v5611 = vpack.c.b16 %v5519, %v5515
  %v5612 = vpack.c.b16 %v5520, %v5516
  %v5613 = vpack.c.b16 %v5521, %v5517
  %v5614 = vpack.c.b16 %v5526, %v5522
  %v5615 = vpack.c.b16 %v5527, %v5523
  %v5616 = vpack.c.b16 %v5528, %v5524
  %v5617 = vpack.c.b16 %v5529, %v5525
  %v5618 = vpack.c.b16 %v5534, %v5530
  %v5619 = vpack.c.b16 %v5535, %v5531
  %v5620 = vpack.c.b16 %v5536, %v5532
  %v5621 = vpack.c.b16 %v5537, %v5533
  %v5622 = vpack.c.b16 %v5542, %v5538
  %v5623 = vpack.c.b16 %v5543, %v5539
  %v5624 = vpack.c.b16 %v5544, %v5540
  %v5625 = vpack.c.b16 %v5545, %v5541
  %5706 = vmatprep.subr.bf16.mxu0 %v5547
  %5707 = vmatpush1.bf16.msra.mxu0 %v5546
  %5708 = vmatprep.subr.bf16.mxu0 %v5551
  %5709 = vmatpush1.bf16.msra.mxu0 %v5550
  %5710 = vmatprep.subr.bf16.mxu0 %v5555
  %5711 = vmatpush1.bf16.msra.mxu0 %v5554
  %5712 = vmatprep.subr.bf16.mxu0 %v5559
  %5713 = vmatpush1.bf16.msra.mxu0 %v5558
  %5714 = vmatprep.subr.bf16.mxu0 %v5563
  %5715 = vmatpush1.bf16.msra.mxu0 %v5562
  %5716 = vmatprep.subr.bf16.mxu0 %v5567
  %5717 = vmatpush1.bf16.msra.mxu0 %v5566
  %5718 = vmatprep.subr.bf16.mxu0 %v5571
  %5719 = vmatpush1.bf16.msra.mxu0 %v5570
  %5720 = vmatprep.subr.bf16.mxu0 %v5575
  %5721 = vmatpush1.bf16.msra.mxu0 %v5574
  %5722 = vmatprep.subr.bf16.mxu0 %v5579
  %5723 = vmatpush1.bf16.msra.mxu0 %v5578
  %5724 = vmatprep.subr.bf16.mxu0 %v5583
  %5725 = vmatpush1.bf16.msra.mxu0 %v5582
  %5726 = vmatprep.subr.bf16.mxu0 %v5587
  %5727 = vmatpush1.bf16.msra.mxu0 %v5586
  %5728 = vmatprep.subr.bf16.mxu0 %v5591
  %5729 = vmatpush1.bf16.msra.mxu0 %v5590
  %5730 = vmatprep.subr.bf16.mxu0 %v5595
  %5731 = vmatpush1.bf16.msra.mxu0 %v5594
  %5732 = vmatprep.subr.bf16.mxu0 %v5599
  %5733 = vmatpush1.bf16.msra.mxu0 %v5598
  %5734 = vmatprep.subr.bf16.mxu0 %v5603
  %5735 = vmatpush1.bf16.msra.mxu0 %v5602
  %5736 = vmatprep.subr.bf16.mxu0 %v5607
  %5737 = vmatpush1.bf16.msra.mxu0 %v5606
  %5738 = vmatprep.mubr.bf16.mxu0 %v1338
  %5739 = vmatmul.mubr.bf16.gmra.mrb[0].mxu0 %v1337
  %v5740 = vpop.f32.mrb[0].mxu0
  %v5741 = vadd.f32 0.0, %v5740
  %v5742 = vpop.f32.mrb[0].mxu0
  %v5743 = vadd.f32 0.0, %v5742
  %v5744 = vpop.f32.mrb[0].mxu0
  %v5745 = vadd.f32 0.0, %v5744
  %v5746 = vpop.f32.mrb[0].mxu0
  %v5747 = vadd.f32 0.0, %v5746
  %5748 = vmatprep.mubr.bf16.mxu0 %v1341
  %5749 = vmatmul.mubr.bf16.gmra.mrb[0].mxu0 %v1340
  %v5750 = vpop.f32.mrb[0].mxu0
  %v5751 = vadd.f32 0.0, %v5750
  %v5752 = vpop.f32.mrb[0].mxu0
  %v5753 = vadd.f32 0.0, %v5752
  %v5754 = vpop.f32.mrb[0].mxu0
  %v5755 = vadd.f32 0.0, %v5754
  %v5756 = vpop.f32.mrb[0].mxu0
  %v5757 = vadd.f32 0.0, %v5756
  %5758 = vmatprep.mubr.bf16.mxu0 %v1344
  %5759 = vmatmul.mubr.bf16.gmra.mrb[0].mxu0 %v1343
  %v5760 = vpop.f32.mrb[0].mxu0
  %v5761 = vadd.f32 0.0, %v5760
  %v5762 = vpop.f32.mrb[0].mxu0
  %v5763 = vadd.f32 0.0, %v5762
  %v5764 = vpop.f32.mrb[0].mxu0
  %v5765 = vadd.f32 0.0, %v5764
  %v5766 = vpop.f32.mrb[0].mxu0
  %v5767 = vadd.f32 0.0, %v5766
  %5768 = vmatprep.mubr.bf16.mxu0 %v1347
  %5769 = vmatmul.mubr.bf16.gmra.mrb[0].mxu0 %v1346
  %v5770 = vpop.f32.mrb[0].mxu0
  %v5771 = vadd.f32 0.0, %v5770
  %v5772 = vpop.f32.mrb[0].mxu0
  %v5773 = vadd.f32 0.0, %v5772
  %v5774 = vpop.f32.mrb[0].mxu0
  %v5775 = vadd.f32 0.0, %v5774
  %v5776 = vpop.f32.mrb[0].mxu0
  %v5777 = vadd.f32 0.0, %v5776
  %5778 = vmatprep.mubr.bf16.mxu0 %v1350
  %5779 = vmatmul.mubr.bf16.gmra.mrb[0].mxu0 %v1349
  %v5780 = vpop.f32.mrb[0].mxu0
  %v5781 = vadd.f32 0.0, %v5780
  %v5782 = vpop.f32.mrb[0].mxu0
  %v5783 = vadd.f32 0.0, %v5782
  %v5784 = vpop.f32.mrb[0].mxu0
  %v5785 = vadd.f32 0.0, %v5784
  %v5786 = vpop.f32.mrb[0].mxu0
  %v5787 = vadd.f32 0.0, %v5786
  %5788 = vdwg.mxu0
  %5789 = vmatprep.subr.bf16.mxu0 %v5611
  %5790 = vmatpush1.bf16.msra.mxu0 %v5610
  %5791 = vmatprep.subr.bf16.mxu0 %v5615
  %5792 = vmatpush1.bf16.msra.mxu0 %v5614
  %5793 = vmatprep.subr.bf16.mxu0 %v5619
  %5794 = vmatpush1.bf16.msra.mxu0 %v5618
  %5795 = vmatprep.subr.bf16.mxu0 %v5623
  %5796 = vmatpush1.bf16.msra.mxu0 %v5622
  %5797 = vmatprep.subr.bf16.mxu0 0
  %5798 = vmatpush1.bf16.msra.mxu0 0
  %5799 = vmatprep.subr.bf16.mxu0 0
  %5800 = vmatpush1.bf16.msra.mxu0 0
  %5801 = vmatprep.subr.bf16.mxu0 0
  %5802 = vmatpush1.bf16.msra.mxu0 0
  %5803 = vmatprep.subr.bf16.mxu0 0
  %5804 = vmatpush1.bf16.msra.mxu0 0
  %5805 = vmatprep.subr.bf16.mxu0 0
  %5806 = vmatpush1.bf16.msra.mxu0 0
  %5807 = vmatprep.subr.bf16.mxu0 0
  %5808 = vmatpush1.bf16.msra.mxu0 0
  %5809 = vmatprep.subr.bf16.mxu0 0
  %5810 = vmatpush1.bf16.msra.mxu0 0
  %5811 = vmatprep.subr.bf16.mxu0 0
  %5812 = vmatpush1.bf16.msra.mxu0 0
  %5813 = vmatprep.subr.bf16.mxu0 0
  %5814 = vmatpush1.bf16.msra.mxu0 0
  %5815 = vmatprep.subr.bf16.mxu0 0
  %5816 = vmatpush1.bf16.msra.mxu0 0
  %5817 = vmatprep.subr.bf16.mxu0 0
  %5818 = vmatpush1.bf16.msra.mxu0 0
  %5819 = vmatprep.subr.bf16.mxu0 0
  %5820 = vmatpush1.bf16.msra.mxu0 0
  %5821 = vmatprep.mubr.bf16.mxu0 0
  %5822 = vmatmul.mubr.bf16.gmra.mrb[0].mxu0 %v1960
  %v5823 = vpop.f32.mrb[0].mxu0
  %v5824 = vadd.f32 %v5741, %v5823
  %v5825 = vpop.f32.mrb[0].mxu0
  %v5826 = vadd.f32 %v5743, %v5825
  %v5827 = vpop.f32.mrb[0].mxu0
  %v5828 = vadd.f32 %v5745, %v5827
  %v5829 = vpop.f32.mrb[0].mxu0
  %v5830 = vadd.f32 %v5747, %v5829
  %5831 = vmatprep.mubr.bf16.mxu0 0
  %5832 = vmatmul.mubr.bf16.gmra.mrb[0].mxu0 %v1963
  %v5833 = vpop.f32.mrb[0].mxu0
  %v5834 = vadd.f32 %v5751, %v5833
  %v5835 = vpop.f32.mrb[0].mxu0
  %v5836 = vadd.f32 %v5753, %v5835
  %v5837 = vpop.f32.mrb[0].mxu0
  %v5838 = vadd.f32 %v5755, %v5837
  %v5839 = vpop.f32.mrb[0].mxu0
  %v5840 = vadd.f32 %v5757, %v5839
  %5841 = vmatprep.mubr.bf16.mxu0 0
  %5842 = vmatmul.mubr.bf16.gmra.mrb[0].mxu0 %v1966
  %v5843 = vpop.f32.mrb[0].mxu0
  %v5844 = vadd.f32 %v5761, %v5843
  %v5845 = vpop.f32.mrb[0].mxu0
  %v5846 = vadd.f32 %v5763, %v5845
  %v5847 = vpop.f32.mrb[0].mxu0
  %v5848 = vadd.f32 %v5765, %v5847
  %v5849 = vpop.f32.mrb[0].mxu0
  %v5850 = vadd.f32 %v5767, %v5849
  %5851 = vmatprep.mubr.bf16.mxu0 0
  %5852 = vmatmul.mubr.bf16.gmra.mrb[0].mxu0 %v1969
  %v5853 = vpop.f32.mrb[0].mxu0
  %v5854 = vadd.f32 %v5771, %v5853
  %v5855 = vpop.f32.mrb[0].mxu0
  %v5856 = vadd.f32 %v5773, %v5855
  %v5857 = vpop.f32.mrb[0].mxu0
  %v5858 = vadd.f32 %v5775, %v5857
  %v5859 = vpop.f32.mrb[0].mxu0
  %v5860 = vadd.f32 %v5777, %v5859
  %5861 = vmatprep.mubr.bf16.mxu0 0
  %5862 = vmatmul.mubr.bf16.gmra.mrb[0].mxu0 %v1972
  %v5863 = vpop.f32.mrb[0].mxu0
  %v5864 = vadd.f32 %v5781, %v5863
  %v5865 = vpop.f32.mrb[0].mxu0
  %v5866 = vadd.f32 %v5783, %v5865
  %v5867 = vpop.f32.mrb[0].mxu0
  %v5868 = vadd.f32 %v5785, %v5867
  %v5869 = vpop.f32.mrb[0].mxu0
  %v5870 = vadd.f32 %v5787, %v5869
  %5871 = vdwg.mxu0
  %5872 = vmatprep.subr.bf16.mxu0 %v5549
  %5873 = vmatpush1.bf16.msra.mxu0 %v5548
  %5874 = vmatprep.subr.bf16.mxu0 %v5553
  %5875 = vmatpush1.bf16.msra.mxu0 %v5552
  %5876 = vmatprep.subr.bf16.mxu0 %v5557
  %5877 = vmatpush1.bf16.msra.mxu0 %v5556
  %5878 = vmatprep.subr.bf16.mxu0 %v5561
  %5879 = vmatpush1.bf16.msra.mxu0 %v5560
  %5880 = vmatprep.subr.bf16.mxu0 %v5565
  %5881 = vmatpush1.bf16.msra.mxu0 %v5564
  %5882 = vmatprep.subr.bf16.mxu0 %v5569
  %5883 = vmatpush1.bf16.msra.mxu0 %v5568
  %5884 = vmatprep.subr.bf16.mxu0 %v5573
  %5885 = vmatpush1.bf16.msra.mxu0 %v5572
  %5886 = vmatprep.subr.bf16.mxu0 %v5577
  %5887 = vmatpush1.bf16.msra.mxu0 %v5576
  %5888 = vmatprep.subr.bf16.mxu0 %v5581
  %5889 = vmatpush1.bf16.msra.mxu0 %v5580
  %5890 = vmatprep.subr.bf16.mxu0 %v5585
  %5891 = vmatpush1.bf16.msra.mxu0 %v5584
  %5892 = vmatprep.subr.bf16.mxu0 %v5589
  %5893 = vmatpush1.bf16.msra.mxu0 %v5588
  %5894 = vmatprep.subr.bf16.mxu0 %v5593
  %5895 = vmatpush1.bf16.msra.mxu0 %v5592
  %5896 = vmatprep.subr.bf16.mxu0 %v5597
  %5897 = vmatpush1.bf16.msra.mxu0 %v5596
  %5898 = vmatprep.subr.bf16.mxu0 %v5601
  %5899 = vmatpush1.bf16.msra.mxu0 %v5600
  %5900 = vmatprep.subr.bf16.mxu0 %v5605
  %5901 = vmatpush1.bf16.msra.mxu0 %v5604
  %5902 = vmatprep.subr.bf16.mxu0 %v5609
  %5903 = vmatpush1.bf16.msra.mxu0 %v5608
  %5904 = vmatprep.mubr.bf16.mxu0 %v1338
  %5905 = vmatmul.mubr.bf16.gmra.mrb[0].mxu0 %v1337
  %v5906 = vpop.f32.mrb[0].mxu0
  %v5907 = vadd.f32 0.0, %v5906
  %v5908 = vpop.f32.mrb[0].mxu0
  %v5909 = vadd.f32 0.0, %v5908
  %v5910 = vpop.f32.mrb[0].mxu0
  %v5911 = vadd.f32 0.0, %v5910
  %v5912 = vpop.f32.mrb[0].mxu0
  %v5913 = vadd.f32 0.0, %v5912
  %5914 = vmatprep.mubr.bf16.mxu0 %v1341
  %5915 = vmatmul.mubr.bf16.gmra.mrb[0].mxu0 %v1340
  %v5916 = vpop.f32.mrb[0].mxu0
  %v5917 = vadd.f32 0.0, %v5916
  %v5918 = vpop.f32.mrb[0].mxu0
  %v5919 = vadd.f32 0.0, %v5918
  %v5920 = vpop.f32.mrb[0].mxu0
  %v5921 = vadd.f32 0.0, %v5920
  %v5922 = vpop.f32.mrb[0].mxu0
  %v5923 = vadd.f32 0.0, %v5922
  %5924 = vmatprep.mubr.bf16.mxu0 %v1344
  %5925 = vmatmul.mubr.bf16.gmra.mrb[0].mxu0 %v1343
  %v5926 = vpop.f32.mrb[0].mxu0
  %v5927 = vadd.f32 0.0, %v5926
  %v5928 = vpop.f32.mrb[0].mxu0
  %v5929 = vadd.f32 0.0, %v5928
  %v5930 = vpop.f32.mrb[0].mxu0
  %v5931 = vadd.f32 0.0, %v5930
  %v5932 = vpop.f32.mrb[0].mxu0
  %v5933 = vadd.f32 0.0, %v5932
  %5934 = vmatprep.mubr.bf16.mxu0 %v1347
  %5935 = vmatmul.mubr.bf16.gmra.mrb[0].mxu0 %v1346
  %v5936 = vpop.f32.mrb[0].mxu0
  %v5937 = vadd.f32 0.0, %v5936
  %v5938 = vpop.f32.mrb[0].mxu0
  %v5939 = vadd.f32 0.0, %v5938
  %v5940 = vpop.f32.mrb[0].mxu0
  %v5941 = vadd.f32 0.0, %v5940
  %v5942 = vpop.f32.mrb[0].mxu0
  %v5943 = vadd.f32 0.0, %v5942
  %5944 = vmatprep.mubr.bf16.mxu0 %v1350
  %5945 = vmatmul.mubr.bf16.gmra.mrb[0].mxu0 %v1349
  %v5946 = vpop.f32.mrb[0].mxu0
  %v5947 = vadd.f32 0.0, %v5946
  %v5948 = vpop.f32.mrb[0].mxu0
  %v5949 = vadd.f32 0.0, %v5948
  %v5950 = vpop.f32.mrb[0].mxu0
  %v5951 = vadd.f32 0.0, %v5950
  %v5952 = vpop.f32.mrb[0].mxu0
  %v5953 = vadd.f32 0.0, %v5952
  %5954 = vdwg.mxu0
  %5955 = vmatprep.subr.bf16.mxu0 %v5613
  %5956 = vmatpush1.bf16.msra.mxu0 %v5612
  %5957 = vmatprep.subr.bf16.mxu0 %v5617
  %5958 = vmatpush1.bf16.msra.mxu0 %v5616
  %5959 = vmatprep.subr.bf16.mxu0 %v5621
  %5960 = vmatpush1.bf16.msra.mxu0 %v5620
  %5961 = vmatprep.subr.bf16.mxu0 %v5625
  %5962 = vmatpush1.bf16.msra.mxu0 %v5624
  %5963 = vmatprep.subr.bf16.mxu0 0
  %5964 = vmatpush1.bf16.msra.mxu0 0
  %5965 = vmatprep.subr.bf16.mxu0 0
  %5966 = vmatpush1.bf16.msra.mxu0 0
  %5967 = vmatprep.subr.bf16.mxu0 0
  %5968 = vmatpush1.bf16.msra.mxu0 0
  %5969 = vmatprep.subr.bf16.mxu0 0
  %5970 = vmatpush1.bf16.msra.mxu0 0
  %5971 = vmatprep.subr.bf16.mxu0 0
  %5972 = vmatpush1.bf16.msra.mxu0 0
  %5973 = vmatprep.subr.bf16.mxu0 0
  %5974 = vmatpush1.bf16.msra.mxu0 0
  %5975 = vmatprep.subr.bf16.mxu0 0
  %5976 = vmatpush1.bf16.msra.mxu0 0
  %5977 = vmatprep.subr.bf16.mxu0 0
  %5978 = vmatpush1.bf16.msra.mxu0 0
  %5979 = vmatprep.subr.bf16.mxu0 0
  %5980 = vmatpush1.bf16.msra.mxu0 0
  %5981 = vmatprep.subr.bf16.mxu0 0
  %5982 = vmatpush1.bf16.msra.mxu0 0
  %5983 = vmatprep.subr.bf16.mxu0 0
  %5984 = vmatpush1.bf16.msra.mxu0 0
  %5985 = vmatprep.subr.bf16.mxu0 0
  %5986 = vmatpush1.bf16.msra.mxu0 0
  %5987 = vmatprep.mubr.bf16.mxu0 0
  %5988 = vmatmul.mubr.bf16.gmra.mrb[0].mxu0 %v1960
  %v5989 = vpop.f32.mrb[0].mxu0
  %v5990 = vadd.f32 %v5907, %v5989
  %v5991 = vpop.f32.mrb[0].mxu0
  %v5992 = vadd.f32 %v5909, %v5991
  %v5993 = vpop.f32.mrb[0].mxu0
  %v5994 = vadd.f32 %v5911, %v5993
  %v5995 = vpop.f32.mrb[0].mxu0
  %v5996 = vadd.f32 %v5913, %v5995
  %5997 = vmatprep.mubr.bf16.mxu0 0
  %5998 = vmatmul.mubr.bf16.gmra.mrb[0].mxu0 %v1963
  %v5999 = vpop.f32.mrb[0].mxu0
  %v6000 = vadd.f32 %v5917, %v5999
  %v6001 = vpop.f32.mrb[0].mxu0
  %v6002 = vadd.f32 %v5919, %v6001
  %v6003 = vpop.f32.mrb[0].mxu0
  %v6004 = vadd.f32 %v5921, %v6003
  %v6005 = vpop.f32.mrb[0].mxu0
  %v6006 = vadd.f32 %v5923, %v6005
  %6007 = vmatprep.mubr.bf16.mxu0 0
  %6008 = vmatmul.mubr.bf16.gmra.mrb[0].mxu0 %v1966
  %v6009 = vpop.f32.mrb[0].mxu0
  %v6010 = vadd.f32 %v5927, %v6009
  %v6011 = vpop.f32.mrb[0].mxu0
  %v6012 = vadd.f32 %v5929, %v6011
  %v6013 = vpop.f32.mrb[0].mxu0
  %v6014 = vadd.f32 %v5931, %v6013
  %v6015 = vpop.f32.mrb[0].mxu0
  %v6016 = vadd.f32 %v5933, %v6015
  %6017 = vmatprep.mubr.bf16.mxu0 0
  %6018 = vmatmul.mubr.bf16.gmra.mrb[0].mxu0 %v1969
  %v6019 = vpop.f32.mrb[0].mxu0
  %v6020 = vadd.f32 %v5937, %v6019
  %v6021 = vpop.f32.mrb[0].mxu0
  %v6022 = vadd.f32 %v5939, %v6021
  %v6023 = vpop.f32.mrb[0].mxu0
  %v6024 = vadd.f32 %v5941, %v6023
  %v6025 = vpop.f32.mrb[0].mxu0
  %v6026 = vadd.f32 %v5943, %v6025
  %6027 = vmatprep.mubr.bf16.mxu0 0
  %6028 = vmatmul.mubr.bf16.gmra.mrb[0].mxu0 %v1972
  %v6029 = vpop.f32.mrb[0].mxu0
  %v6030 = vadd.f32 %v5947, %v6029
  %v6031 = vpop.f32.mrb[0].mxu0
  %v6032 = vadd.f32 %v5949, %v6031
  %v6033 = vpop.f32.mrb[0].mxu0
  %v6034 = vadd.f32 %v5951, %v6033
  %v6035 = vpop.f32.mrb[0].mxu0
  %v6036 = vadd.f32 %v5953, %v6035
  %6037 = vdwg.mxu0
  %v6038 = vld [vmem:[#allocation3 + $0x80] sm:$0xff]
  %v6039 = vld [vmem:[#allocation3 + $0x88] sm:$0xff]
  %v6040 = vld [vmem:[#allocation3 + $0x90] sm:$0xff]
  %v6041 = vld [vmem:[#allocation3 + $0x98] sm:$0xff]
  %v6042 = vld [vmem:[#allocation3 + $0xa0] sm:$0xff]
  %v6043 = vld [vmem:[#allocation3 + $0xa8] sm:$0xff]
  %v6044 = vld [vmem:[#allocation3 + $0xb0] sm:$0xff]
  %v6045 = vld [vmem:[#allocation3 + $0xb8] sm:$0xff]
  %v6046 = vld [vmem:[#allocation3 + $0xc0] sm:$0xff]
  %v6047 = vld [vmem:[#allocation3 + $0xc8] sm:$0xff]
  %v6048 = vld [vmem:[#allocation3 + $0xd0] sm:$0xff]
  %v6049 = vld [vmem:[#allocation3 + $0xd8] sm:$0xff]
  %v6050 = vld [vmem:[#allocation3 + $0xe0] sm:$0xff]
  %v6051 = vld [vmem:[#allocation3 + $0xe8] sm:$0xff]
  %v6052 = vld [vmem:[#allocation3 + $0xf0] sm:$0xff]
  %v6053 = vld [vmem:[#allocation3 + $0xf8] sm:$0xff]
  %v6054 = vld [vmem:[#allocation3 + $0x100] sm:$0xff]
  %v6055 = vld [vmem:[#allocation3 + $0x108] sm:$0xff]
  %v6056 = vld [vmem:[#allocation3 + $0x110] sm:$0xff]
  %v6057 = vld [vmem:[#allocation3 + $0x118] sm:$0xff]
  %v6058 = vld [vmem:[#allocation3 + $0x120] sm:$0xff]
  %v6059 = vld [vmem:[#allocation3 + $0x128] sm:$0xff]
  %v6060 = vld [vmem:[#allocation3 + $0x130] sm:$0xff]
  %v6061 = vld [vmem:[#allocation3 + $0x138] sm:$0xff]
  %v6062 = vld [vmem:[#allocation3 + $0x140] sm:$0xff]
  %v6063 = vld [vmem:[#allocation3 + $0x148] sm:$0xff]
  %v6064 = vld [vmem:[#allocation3 + $0x150] sm:$0xff]
  %v6065 = vld [vmem:[#allocation3 + $0x158] sm:$0xff]
  %v6066 = vld [vmem:[#allocation3 + $0x160] sm:$0xff]
  %v6067 = vld [vmem:[#allocation3 + $0x168] sm:$0xff]
  %v6068 = vld [vmem:[#allocation3 + $0x170] sm:$0xff]
  %v6069 = vld [vmem:[#allocation3 + $0x178] sm:$0xff]
  %v6070 = vld [vmem:[#allocation3 + $0x180] sm:$0xff]
  %v6071 = vld [vmem:[#allocation3 + $0x188] sm:$0xff]
  %v6072 = vld [vmem:[#allocation3 + $0x190] sm:$0xff]
  %v6073 = vld [vmem:[#allocation3 + $0x198] sm:$0xff]
  %v6074 = vld [vmem:[#allocation3 + $0x1a0] sm:$0xff]
  %v6075 = vld [vmem:[#allocation3 + $0x1a8] sm:$0xff]
  %v6076 = vld [vmem:[#allocation3 + $0x1b0] sm:$0xff]
  %v6077 = vld [vmem:[#allocation3 + $0x1b8] sm:$0xff]
  %v6078 = vadd.f32 %v6038, %v5824
  %v6079 = vadd.f32 %v6039, %v5826
  %v6080 = vadd.f32 %v6040, %v5990
  %v6081 = vadd.f32 %v6041, %v5992
  %v6082 = vadd.f32 %v6042, %v5828
  %v6083 = vadd.f32 %v6043, %v5830
  %v6084 = vadd.f32 %v6044, %v5994
  %v6085 = vadd.f32 %v6045, %v5996
  %v6086 = vadd.f32 %v6046, %v5834
  %v6087 = vadd.f32 %v6047, %v5836
  %v6088 = vadd.f32 %v6048, %v6000
  %v6089 = vadd.f32 %v6049, %v6002
  %v6090 = vadd.f32 %v6050, %v5838
  %v6091 = vadd.f32 %v6051, %v5840
  %v6092 = vadd.f32 %v6052, %v6004
  %v6093 = vadd.f32 %v6053, %v6006
  %v6094 = vadd.f32 %v6054, %v5844
  %v6095 = vadd.f32 %v6055, %v5846
  %v6096 = vadd.f32 %v6056, %v6010
  %v6097 = vadd.f32 %v6057, %v6012
  %v6098 = vadd.f32 %v6058, %v5848
  %v6099 = vadd.f32 %v6059, %v5850
  %v6100 = vadd.f32 %v6060, %v6014
  %v6101 = vadd.f32 %v6061, %v6016
  %v6102 = vadd.f32 %v6062, %v5854
  %v6103 = vadd.f32 %v6063, %v5856
  %v6104 = vadd.f32 %v6064, %v6020
  %v6105 = vadd.f32 %v6065, %v6022
  %v6106 = vadd.f32 %v6066, %v5858
  %v6107 = vadd.f32 %v6067, %v5860
  %v6108 = vadd.f32 %v6068, %v6024
  %v6109 = vadd.f32 %v6069, %v6026
  %v6110 = vadd.f32 %v6070, %v5864
  %v6111 = vadd.f32 %v6071, %v5866
  %v6112 = vadd.f32 %v6072, %v6030
  %v6113 = vadd.f32 %v6073, %v6032
  %v6114 = vadd.f32 %v6074, %v5868
  %v6115 = vadd.f32 %v6075, %v5870
  %v6116 = vadd.f32 %v6076, %v6034
  %v6117 = vadd.f32 %v6077, %v6036
  %6118 = vst [vmem:[#allocation3 + $0x80] sm:$0xff] %v6078
  %6119 = vst [vmem:[#allocation3 + $0x88] sm:$0xff] %v6079
  %6120 = vst [vmem:[#allocation3 + $0x90] sm:$0xff] %v6080
  %6121 = vst.msk [vmem:[#allocation3 + $0x98] sm:$0xff] %vm1377, %v6081
  %6122 = vst [vmem:[#allocation3 + $0xa0] sm:$0xff] %v6082
  %6123 = vst [vmem:[#allocation3 + $0xa8] sm:$0xff] %v6083
  %6124 = vst [vmem:[#allocation3 + $0xb0] sm:$0xff] %v6084
  %6125 = vst.msk [vmem:[#allocation3 + $0xb8] sm:$0xff] %vm1377, %v6085
  %6126 = vst [vmem:[#allocation3 + $0xc0] sm:$0xff] %v6086
  %6127 = vst [vmem:[#allocation3 + $0xc8] sm:$0xff] %v6087
  %6128 = vst [vmem:[#allocation3 + $0xd0] sm:$0xff] %v6088
  %6129 = vst.msk [vmem:[#allocation3 + $0xd8] sm:$0xff] %vm1377, %v6089
  %6130 = vst [vmem:[#allocation3 + $0xe0] sm:$0xff] %v6090
  %6131 = vst [vmem:[#allocation3 + $0xe8] sm:$0xff] %v6091
  %6132 = vst [vmem:[#allocation3 + $0xf0] sm:$0xff] %v6092
  %6133 = vst.msk [vmem:[#allocation3 + $0xf8] sm:$0xff] %vm1377, %v6093
  %6134 = vst [vmem:[#allocation3 + $0x100] sm:$0xff] %v6094
  %6135 = vst [vmem:[#allocation3 + $0x108] sm:$0xff] %v6095
  %6136 = vst [vmem:[#allocation3 + $0x110] sm:$0xff] %v6096
  %6137 = vst.msk [vmem:[#allocation3 + $0x118] sm:$0xff] %vm1377, %v6097
  %6138 = vst [vmem:[#allocation3 + $0x120] sm:$0xff] %v6098
  %6139 = vst [vmem:[#allocation3 + $0x128] sm:$0xff] %v6099
  %6140 = vst [vmem:[#allocation3 + $0x130] sm:$0xff] %v6100
  %6141 = vst.msk [vmem:[#allocation3 + $0x138] sm:$0xff] %vm1377, %v6101
  %6142 = vst [vmem:[#allocation3 + $0x140] sm:$0xff] %v6102
  %6143 = vst [vmem:[#allocation3 + $0x148] sm:$0xff] %v6103
  %6144 = vst [vmem:[#allocation3 + $0x150] sm:$0xff] %v6104
  %6145 = vst.msk [vmem:[#allocation3 + $0x158] sm:$0xff] %vm1377, %v6105
  %6146 = vst [vmem:[#allocation3 + $0x160] sm:$0xff] %v6106
  %6147 = vst [vmem:[#allocation3 + $0x168] sm:$0xff] %v6107
  %6148 = vst [vmem:[#allocation3 + $0x170] sm:$0xff] %v6108
  %6149 = vst.msk [vmem:[#allocation3 + $0x178] sm:$0xff] %vm1377, %v6109
  %6150 = vst [vmem:[#allocation3 + $0x180] sm:$0xff] %v6110
  %6151 = vst [vmem:[#allocation3 + $0x188] sm:$0xff] %v6111
  %6152 = vst [vmem:[#allocation3 + $0x190] sm:$0xff] %v6112
  %6153 = vst.msk [vmem:[#allocation3 + $0x198] sm:$0xff] %vm1377, %v6113
  %6154 = vst [vmem:[#allocation3 + $0x1a0] sm:$0xff] %v6114
  %6155 = vst [vmem:[#allocation3 + $0x1a8] sm:$0xff] %v6115
  %6156 = vst [vmem:[#allocation3 + $0x1b0] sm:$0xff] %v6116
  %6157 = vst.msk [vmem:[#allocation3 + $0x1b8] sm:$0xff] %vm1377, %v6117
  %v6158 = vld [vmem:[#allocation3] sm:$0xff]
  %v6159 = vld [vmem:[#allocation3 + $0x8] sm:$0xff]
  %v6160 = vld [vmem:[#allocation3 + $0x10] sm:$0xff]
  %v6161 = vld [vmem:[#allocation3 + $0x18] sm:$0xff]
  %v6162 = vld [vmem:[#allocation3 + $0x20] sm:$0xff]
  %v6163 = vld [vmem:[#allocation3 + $0x28] sm:$0xff]
  %v6164 = vld [vmem:[#allocation3 + $0x30] sm:$0xff]
  %v6165 = vld [vmem:[#allocation3 + $0x38] sm:$0xff]
  %v6166 = vld [vmem:[#allocation3 + $0x40] sm:$0xff]
  %v6167 = vld [vmem:[#allocation3 + $0x48] sm:$0xff]
  %v6168 = vld [vmem:[#allocation3 + $0x50] sm:$0xff]
  %v6169 = vld [vmem:[#allocation3 + $0x58] sm:$0xff]
  %v6170 = vld [vmem:[#allocation3 + $0x60] sm:$0xff]
  %v6171 = vld [vmem:[#allocation3 + $0x68] sm:$0xff]
  %v6172 = vld [vmem:[#allocation3 + $0x70] sm:$0xff]
  %v6173 = vld [vmem:[#allocation3 + $0x78] sm:$0xff]
  %v6174 = vld [vmem:[#allocation3 + $0x80] sm:$0xff]
  %v6175 = vld [vmem:[#allocation3 + $0x88] sm:$0xff]
  %v6176 = vld [vmem:[#allocation3 + $0x90] sm:$0xff]
  %v6177 = vld [vmem:[#allocation3 + $0x98] sm:$0xff]
  %v6178 = vld [vmem:[#allocation3 + $0xa0] sm:$0xff]
  %v6179 = vld [vmem:[#allocation3 + $0xa8] sm:$0xff]
  %v6180 = vld [vmem:[#allocation3 + $0xb0] sm:$0xff]
  %v6181 = vld [vmem:[#allocation3 + $0xb8] sm:$0xff]
  %v6182 = vld [vmem:[#allocation3 + $0xc0] sm:$0xff]
  %v6183 = vld [vmem:[#allocation3 + $0xc8] sm:$0xff]
  %v6184 = vld [vmem:[#allocation3 + $0xd0] sm:$0xff]
  %v6185 = vld [vmem:[#allocation3 + $0xd8] sm:$0xff]
  %v6186 = vld [vmem:[#allocation3 + $0xe0] sm:$0xff]
  %v6187 = vld [vmem:[#allocation3 + $0xe8] sm:$0xff]
  %v6188 = vld [vmem:[#allocation3 + $0xf0] sm:$0xff]
  %v6189 = vld [vmem:[#allocation3 + $0xf8] sm:$0xff]
  %v6190 = vld [vmem:[#allocation3 + $0x100] sm:$0xff]
  %v6191 = vld [vmem:[#allocation3 + $0x108] sm:$0xff]
  %v6192 = vld [vmem:[#allocation3 + $0x110] sm:$0xff]
  %v6193 = vld [vmem:[#allocation3 + $0x118] sm:$0xff]
  %v6194 = vld [vmem:[#allocation3 + $0x120] sm:$0xff]
  %v6195 = vld [vmem:[#allocation3 + $0x128] sm:$0xff]
  %v6196 = vld [vmem:[#allocation3 + $0x130] sm:$0xff]
  %v6197 = vld [vmem:[#allocation3 + $0x138] sm:$0xff]
  %v6198 = vld [vmem:[#allocation3 + $0x140] sm:$0xff]
  %v6199 = vld [vmem:[#allocation3 + $0x148] sm:$0xff]
  %v6200 = vld [vmem:[#allocation3 + $0x150] sm:$0xff]
  %v6201 = vld [vmem:[#allocation3 + $0x158] sm:$0xff]
  %v6202 = vld [vmem:[#allocation3 + $0x160] sm:$0xff]
  %v6203 = vld [vmem:[#allocation3 + $0x168] sm:$0xff]
  %v6204 = vld [vmem:[#allocation3 + $0x170] sm:$0xff]
  %v6205 = vld [vmem:[#allocation3 + $0x178] sm:$0xff]
  %v6206 = vld [vmem:[#allocation3 + $0x180] sm:$0xff]
  %v6207 = vld [vmem:[#allocation3 + $0x188] sm:$0xff]
  %v6208 = vld [vmem:[#allocation3 + $0x190] sm:$0xff]
  %v6209 = vld [vmem:[#allocation3 + $0x198] sm:$0xff]
  %v6210 = vld [vmem:[#allocation3 + $0x1a0] sm:$0xff]
  %v6211 = vld [vmem:[#allocation3 + $0x1a8] sm:$0xff]
  %v6212 = vld [vmem:[#allocation3 + $0x1b0] sm:$0xff]
  %v6213 = vld [vmem:[#allocation3 + $0x1b8] sm:$0xff]
  %v6214 = vtanh.pop %v6158
  %v6215 = vtanh.pop %v6159
  %v6216 = vtanh.pop %v6160
  %v6217 = vtanh.pop %v6161
  %v6218 = vtanh.pop %v6162
  %v6219 = vtanh.pop %v6163
  %v6220 = vtanh.pop %v6164
  %v6221 = vtanh.pop %v6165
  %v6222 = vtanh.pop %v6166
  %v6223 = vtanh.pop %v6167
  %v6224 = vtanh.pop %v6168
  %v6225 = vtanh.pop %v6169
  %v6226 = vtanh.pop %v6170
  %v6227 = vtanh.pop %v6171
  %v6228 = vtanh.pop %v6172
  %v6229 = vtanh.pop %v6173
  %v6230 = vtanh.pop %v6174
  %v6231 = vtanh.pop %v6175
  %v6232 = vtanh.pop %v6176
  %v6233 = vtanh.pop %v6177
  %v6234 = vtanh.pop %v6178
  %v6235 = vtanh.pop %v6179
  %v6236 = vtanh.pop %v6180
  %v6237 = vtanh.pop %v6181
  %v6238 = vtanh.pop %v6182
  %v6239 = vtanh.pop %v6183
  %v6240 = vtanh.pop %v6184
  %v6241 = vtanh.pop %v6185
  %v6242 = vtanh.pop %v6186
  %v6243 = vtanh.pop %v6187
  %v6244 = vtanh.pop %v6188
  %v6245 = vtanh.pop %v6189
  %v6246 = vtanh.pop %v6190
  %v6247 = vtanh.pop %v6191
  %v6248 = vtanh.pop %v6192
  %v6249 = vtanh.pop %v6193
  %v6250 = vtanh.pop %v6194
  %v6251 = vtanh.pop %v6195
  %v6252 = vtanh.pop %v6196
  %v6253 = vtanh.pop %v6197
  %v6254 = vtanh.pop %v6198
  %v6255 = vtanh.pop %v6199
  %v6256 = vtanh.pop %v6200
  %v6257 = vtanh.pop %v6201
  %v6258 = vtanh.pop %v6202
  %v6259 = vtanh.pop %v6203
  %v6260 = vtanh.pop %v6204
  %v6261 = vtanh.pop %v6205
  %v6262 = vtanh.pop %v6206
  %v6263 = vtanh.pop %v6207
  %v6264 = vtanh.pop %v6208
  %v6265 = vtanh.pop %v6209
  %v6266 = vtanh.pop %v6210
  %v6267 = vtanh.pop %v6211
  %v6268 = vtanh.pop %v6212
  %v6269 = vtanh.pop %v6213
  %v6270 = vpack.c.bf16 %v6218, %v6214
  %v6271 = vpack.c.bf16 %v6219, %v6215
  %v6272 = vpack.c.bf16 %v6220, %v6216
  %v6273 = vpack.c.bf16 %v6221, %v6217
  %v6274 = vpack.c.bf16 %v6226, %v6222
  %v6275 = vpack.c.bf16 %v6227, %v6223
  %v6276 = vpack.c.bf16 %v6228, %v6224
  %v6277 = vpack.c.bf16 %v6229, %v6225
  %v6278 = vpack.c.bf16 %v6234, %v6230
  %v6279 = vpack.c.bf16 %v6235, %v6231
  %v6280 = vpack.c.bf16 %v6236, %v6232
  %v6281 = vpack.c.bf16 %v6237, %v6233
  %v6282 = vpack.c.bf16 %v6242, %v6238
  %v6283 = vpack.c.bf16 %v6243, %v6239
  %v6284 = vpack.c.bf16 %v6244, %v6240
  %v6285 = vpack.c.bf16 %v6245, %v6241
  %v6286 = vpack.c.bf16 %v6250, %v6246
  %v6287 = vpack.c.bf16 %v6251, %v6247
  %v6288 = vpack.c.bf16 %v6252, %v6248
  %v6289 = vpack.c.bf16 %v6253, %v6249
  %v6290 = vpack.c.bf16 %v6258, %v6254
  %v6291 = vpack.c.bf16 %v6259, %v6255
  %v6292 = vpack.c.bf16 %v6260, %v6256
  %v6293 = vpack.c.bf16 %v6261, %v6257
  %v6294 = vpack.c.bf16 %v6266, %v6262
  %v6295 = vpack.c.bf16 %v6267, %v6263
  %v6296 = vpack.c.bf16 %v6268, %v6264
  %v6297 = vpack.c.bf16 %v6269, %v6265
  %v6298 = vld [vmem:[#allocation4] sm:$0xff]
  %v6299 = vld [vmem:[#allocation4 + $0x8] sm:$0xff]
  %v6300 = vld [vmem:[#allocation4 + $0x10] sm:$0xff]
  %v6301 = vld [vmem:[#allocation4 + $0x18] sm:$0xff]
  %v6302 = vld [vmem:[#allocation4 + $0x20] sm:$0xff]
  %v6303 = vld [vmem:[#allocation4 + $0x28] sm:$0xff]
  %v6304 = vld [vmem:[#allocation4 + $0x30] sm:$0xff]
  %v6305 = vld [vmem:[#allocation4 + $0x38] sm:$0xff]
  %v6306 = vld [vmem:[#allocation4 + $0x40] sm:$0xff]
  %v6307 = vld [vmem:[#allocation4 + $0x48] sm:$0xff]
  %v6308 = vld [vmem:[#allocation4 + $0x50] sm:$0xff]
  %v6309 = vld [vmem:[#allocation4 + $0x58] sm:$0xff]
  %v6310 = vld [vmem:[#allocation4 + $0x60] sm:$0xff]
  %v6311 = vld [vmem:[#allocation4 + $0x68] sm:$0xff]
  %v6312 = vld [vmem:[#allocation4 + $0x70] sm:$0xff]
  %v6313 = vld [vmem:[#allocation4 + $0x78] sm:$0xff]
  %v6314 = vld [vmem:[#allocation4 + $0x80] sm:$0xff]
  %v6315 = vld [vmem:[#allocation4 + $0x88] sm:$0xff]
  %v6316 = vld [vmem:[#allocation4 + $0x90] sm:$0xff]
  %v6317 = vld [vmem:[#allocation4 + $0x98] sm:$0xff]
  %v6318 = vld [vmem:[#allocation4 + $0xa0] sm:$0xff]
  %v6319 = vld [vmem:[#allocation4 + $0xa8] sm:$0xff]
  %v6320 = vld [vmem:[#allocation4 + $0xb0] sm:$0xff]
  %v6321 = vld [vmem:[#allocation4 + $0xb8] sm:$0xff]
  %v6322 = vld [vmem:[#allocation4 + $0xc0] sm:$0xff]
  %v6323 = vld [vmem:[#allocation4 + $0xc8] sm:$0xff]
  %v6324 = vld [vmem:[#allocation4 + $0xd0] sm:$0xff]
  %v6325 = vld [vmem:[#allocation4 + $0xd8] sm:$0xff]
  %v6326 = vld [vmem:[#allocation4 + $0xe0] sm:$0xff]
  %v6327 = vld [vmem:[#allocation4 + $0xe8] sm:$0xff]
  %v6328 = vld [vmem:[#allocation4 + $0xf0] sm:$0xff]
  %v6329 = vld [vmem:[#allocation4 + $0xf8] sm:$0xff]
  %v6330 = vld [vmem:[#allocation4 + $0x100] sm:$0xff]
  %v6331 = vld [vmem:[#allocation4 + $0x108] sm:$0xff]
  %v6332 = vld [vmem:[#allocation4 + $0x110] sm:$0xff]
  %v6333 = vld [vmem:[#allocation4 + $0x118] sm:$0xff]
  %v6334 = vld [vmem:[#allocation4 + $0x120] sm:$0xff]
  %v6335 = vld [vmem:[#allocation4 + $0x128] sm:$0xff]
  %v6336 = vld [vmem:[#allocation4 + $0x130] sm:$0xff]
  %v6337 = vld [vmem:[#allocation4 + $0x138] sm:$0xff]
  %v6338 = vld [vmem:[#allocation4 + $0x140] sm:$0xff]
  %v6339 = vld [vmem:[#allocation4 + $0x148] sm:$0xff]
  %v6340 = vld [vmem:[#allocation4 + $0x150] sm:$0xff]
  %v6341 = vld [vmem:[#allocation4 + $0x158] sm:$0xff]
  %v6342 = vld [vmem:[#allocation4 + $0x160] sm:$0xff]
  %v6343 = vld [vmem:[#allocation4 + $0x168] sm:$0xff]
  %v6344 = vld [vmem:[#allocation4 + $0x170] sm:$0xff]
  %v6345 = vld [vmem:[#allocation4 + $0x178] sm:$0xff]
  %v6346 = vtanh.pop %v6298
  %v6347 = vtanh.pop %v6299
  %v6348 = vtanh.pop %v6300
  %v6349 = vtanh.pop %v6301
  %v6350 = vtanh.pop %v6302
  %v6351 = vtanh.pop %v6303
  %v6352 = vtanh.pop %v6304
  %v6353 = vtanh.pop %v6305
  %v6354 = vtanh.pop %v6306
  %v6355 = vtanh.pop %v6307
  %v6356 = vtanh.pop %v6308
  %v6357 = vtanh.pop %v6309
  %v6358 = vtanh.pop %v6310
  %v6359 = vtanh.pop %v6311
  %v6360 = vtanh.pop %v6312
  %v6361 = vtanh.pop %v6313
  %v6362 = vtanh.pop %v6314
  %v6363 = vtanh.pop %v6315
  %v6364 = vtanh.pop %v6316
  %v6365 = vtanh.pop %v6317
  %v6366 = vtanh.pop %v6318
  %v6367 = vtanh.pop %v6319
  %v6368 = vtanh.pop %v6320
  %v6369 = vtanh.pop %v6321
  %v6370 = vtanh.pop %v6322
  %v6371 = vtanh.pop %v6323
  %v6372 = vtanh.pop %v6324
  %v6373 = vtanh.pop %v6325
  %v6374 = vtanh.pop %v6326
  %v6375 = vtanh.pop %v6327
  %v6376 = vtanh.pop %v6328
  %v6377 = vtanh.pop %v6329
  %v6378 = vtanh.pop %v6330
  %v6379 = vtanh.pop %v6331
  %v6380 = vtanh.pop %v6332
  %v6381 = vtanh.pop %v6333
  %v6382 = vtanh.pop %v6334
  %v6383 = vtanh.pop %v6335
  %v6384 = vtanh.pop %v6336
  %v6385 = vtanh.pop %v6337
  %v6386 = vtanh.pop %v6338
  %v6387 = vtanh.pop %v6339
  %v6388 = vtanh.pop %v6340
  %v6389 = vtanh.pop %v6341
  %v6390 = vtanh.pop %v6342
  %v6391 = vtanh.pop %v6343
  %v6392 = vtanh.pop %v6344
  %v6393 = vtanh.pop %v6345
  %v6394 = vpack.c.bf16 %v6350, %v6346
  %v6395 = vpack.c.bf16 %v6351, %v6347
  %v6396 = vpack.c.bf16 %v6352, %v6348
  %v6397 = vpack.c.bf16 %v6353, %v6349
  %v6398 = vpack.c.bf16 %v6358, %v6354
  %v6399 = vpack.c.bf16 %v6359, %v6355
  %v6400 = vpack.c.bf16 %v6360, %v6356
  %v6401 = vpack.c.bf16 %v6361, %v6357
  %v6402 = vpack.c.bf16 %v6366, %v6362
  %v6403 = vpack.c.bf16 %v6367, %v6363
  %v6404 = vpack.c.bf16 %v6368, %v6364
  %v6405 = vpack.c.bf16 %v6369, %v6365
  %v6406 = vpack.c.bf16 %v6374, %v6370
  %v6407 = vpack.c.bf16 %v6375, %v6371
  %v6408 = vpack.c.bf16 %v6376, %v6372
  %v6409 = vpack.c.bf16 %v6377, %v6373
  %v6410 = vpack.c.bf16 %v6382, %v6378
  %v6411 = vpack.c.bf16 %v6383, %v6379
  %v6412 = vpack.c.bf16 %v6384, %v6380
  %v6413 = vpack.c.bf16 %v6385, %v6381
  %v6414 = vpack.c.bf16 %v6390, %v6386
  %v6415 = vpack.c.bf16 %v6391, %v6387
  %v6416 = vpack.c.bf16 %v6392, %v6388
  %v6417 = vpack.c.bf16 %v6393, %v6389
  %v6418 = vld [vmem:[%s5] sm:$0xf]
  %v6419 = vld [vmem:[%s5 + $0x4] sm:$0xf]
  %v6420 = vld [vmem:[%s5 + $0x8] sm:$0xf]
  %v6421 = vld [vmem:[%s5 + $0xc] sm:$0xf]
  %v6422 = vld [vmem:[%s5 + $0x10] sm:$0xf]
  %v6423 = vld [vmem:[%s5 + $0x14] sm:$0xf]
  %v6424 = vld [vmem:[%s5 + $0x18] sm:$0xf]
  %v6425 = vld [vmem:[%s5 + $0x1c] sm:$0xf]
  %v6426 = vld [vmem:[%s5 + $0x20] sm:$0xf]
  %v6427 = vld [vmem:[%s5 + $0x24] sm:$0xf]
  %v6428 = vld [vmem:[%s5 + $0x28] sm:$0xf]
  %v6429 = vld [vmem:[%s5 + $0x2c] sm:$0xf]
  %v6430 = vld [vmem:[%s5 + $0x30] sm:$0xf]
  %v6431 = vld [vmem:[%s5 + $0x34] sm:$0xf]
  %v6432 = vld [vmem:[%s5 + $0x38] sm:$0xf]
  %v6433 = vld [vmem:[%s5 + $0x3c] sm:$0xf]
  %v6434 = vld [vmem:[%s5 + $0x40] sm:$0xf]
  %v6435 = vld [vmem:[%s5 + $0x44] sm:$0xf]
  %v6436 = vld [vmem:[%s5 + $0x48] sm:$0xf]
  %v6437 = vld [vmem:[%s5 + $0x4c] sm:$0xf]
  %v6438 = vld [vmem:[%s5 + $0x50] sm:$0xf]
  %v6439 = vld [vmem:[%s5 + $0x54] sm:$0xf]
  %v6440 = vld [vmem:[%s5 + $0x58] sm:$0xf]
  %v6441 = vld [vmem:[%s5 + $0x5c] sm:$0xf]
  %v6442 = vld [vmem:[%s5 + $0x60] sm:$0xf]
  %v6443 = vld [vmem:[%s5 + $0x64] sm:$0xf]
  %v6444 = vld [vmem:[%s5 + $0x68] sm:$0xf]
  %v6445 = vld [vmem:[%s5 + $0x6c] sm:$0xf]
  %v6446 = vld [vmem:[%s5 + $0x70] sm:$0xf]
  %v6447 = vld [vmem:[%s5 + $0x74] sm:$0xf]
  %v6448 = vld [vmem:[%s5 + $0x78] sm:$0xf]
  %v6449 = vld [vmem:[%s5 + $0x7c] sm:$0xf]
  %v6450 = vld [vmem:[%s5 + $0x80] sm:$0xf]
  %v6451 = vld [vmem:[%s5 + $0x84] sm:$0xf]
  %v6452 = vld [vmem:[%s5 + $0x88] sm:$0xf]
  %v6453 = vld [vmem:[%s5 + $0x8c] sm:$0xf]
  %v6454 = vld [vmem:[%s5 + $0x90] sm:$0xf]
  %v6455 = vld [vmem:[%s5 + $0x94] sm:$0xf]
  %v6456 = vld [vmem:[%s5 + $0x98] sm:$0xf]
  %v6457 = vld [vmem:[%s5 + $0x9c] sm:$0xf]
  %v6458 = vld [vmem:[%s5 + $0xa0] sm:$0xf]
  %v6459 = vld [vmem:[%s5 + $0xa4] sm:$0xf]
  %v6460 = vld [vmem:[%s5 + $0xa8] sm:$0xf]
  %v6461 = vld [vmem:[%s5 + $0xac] sm:$0xf]
  %v6462 = vld [vmem:[%s5 + $0xb0] sm:$0xf]
  %v6463 = vld [vmem:[%s5 + $0xb4] sm:$0xf]
  %v6464 = vld [vmem:[%s5 + $0xb8] sm:$0xf]
  %v6465 = vld [vmem:[%s5 + $0xbc] sm:$0xf]
  %v6466 = vld [vmem:[%s5 + $0xc0] sm:$0xf]
  %v6467 = vld [vmem:[%s5 + $0xc4] sm:$0xf]
  %v6468 = vld [vmem:[%s5 + $0xc8] sm:$0xf]
  %v6469 = vld [vmem:[%s5 + $0xcc] sm:$0xf]
  %v6522 = vunpack.c.l.b16 %v6418
  %v6523 = vunpack.c.l.b16 %v6419
  %v6524 = vunpack.c.l.b16 %v6420
  %v6525 = vunpack.c.l.b16 %v6421
  %v6526 = vunpack.c.l.b16 %v6422
  %v6527 = vunpack.c.l.b16 %v6423
  %v6528 = vunpack.c.l.b16 %v6424
  %v6529 = vunpack.c.l.b16 %v6425
  %v6530 = vunpack.c.l.b16 %v6426
  %v6531 = vunpack.c.l.b16 %v6427
  %v6532 = vunpack.c.l.b16 %v6428
  %v6533 = vunpack.c.l.b16 %v6429
  %v6534 = vunpack.c.l.b16 %v6430
  %v6535 = vunpack.c.l.b16 %v6431
  %v6536 = vunpack.c.l.b16 %v6432
  %v6537 = vunpack.c.l.b16 %v6433
  %v6538 = vunpack.c.l.b16 %v6434
  %v6539 = vunpack.c.l.b16 %v6435
  %v6540 = vunpack.c.l.b16 %v6436
  %v6541 = vunpack.c.l.b16 %v6437
  %v6542 = vunpack.c.l.b16 %v6438
  %v6543 = vunpack.c.l.b16 %v6439
  %v6544 = vunpack.c.l.b16 %v6440
  %v6545 = vunpack.c.l.b16 %v6441
  %v6546 = vunpack.c.l.b16 %v6442
  %v6547 = vunpack.c.l.b16 %v6443
  %v6548 = vunpack.c.l.b16 %v6444
  %v6549 = vunpack.c.l.b16 %v6445
  %v6550 = vunpack.c.l.b16 %v6446
  %v6551 = vunpack.c.l.b16 %v6447
  %v6552 = vunpack.c.l.b16 %v6448
  %v6553 = vunpack.c.l.b16 %v6449
  %v6554 = vunpack.c.l.b16 %v6450
  %v6555 = vunpack.c.l.b16 %v6451
  %v6556 = vunpack.c.l.b16 %v6452
  %v6557 = vunpack.c.l.b16 %v6453
  %v6558 = vunpack.c.l.b16 %v6454
  %v6559 = vunpack.c.l.b16 %v6455
  %v6560 = vunpack.c.l.b16 %v6456
  %v6561 = vunpack.c.l.b16 %v6457
  %v6562 = vunpack.c.l.b16 %v6458
  %v6563 = vunpack.c.l.b16 %v6459
  %v6564 = vunpack.c.l.b16 %v6460
  %v6565 = vunpack.c.l.b16 %v6461
  %v6566 = vunpack.c.l.b16 %v6462
  %v6567 = vunpack.c.l.b16 %v6463
  %v6568 = vunpack.c.l.b16 %v6464
  %v6569 = vunpack.c.l.b16 %v6465
  %v6570 = vunpack.c.l.b16 %v6466
  %v6571 = vunpack.c.l.b16 %v6467
  %v6572 = vunpack.c.l.b16 %v6468
  %v6573 = vunpack.c.l.b16 %v6469
  %v6574 = vpack.c.b16 %v6523, %v6522
  %v6575 = vpack.c.b16 %v6525, %v6524
  %v6576 = vpack.c.b16 %v6527, %v6526
  %v6577 = vpack.c.b16 %v6529, %v6528
  %v6578 = vpack.c.b16 %v6531, %v6530
  %v6579 = vpack.c.b16 %v6533, %v6532
  %v6580 = vpack.c.b16 %v6535, %v6534
  %v6581 = vpack.c.b16 %v6537, %v6536
  %v6582 = vpack.c.b16 %v6539, %v6538
  %v6583 = vpack.c.b16 %v6541, %v6540
  %v6584 = vpack.c.b16 %v6543, %v6542
  %v6585 = vpack.c.b16 %v6545, %v6544
  %v6586 = vpack.c.b16 %v6547, %v6546
  %v6587 = vpack.c.b16 %v6549, %v6548
  %v6588 = vpack.c.b16 %v6551, %v6550
  %v6589 = vpack.c.b16 %v6553, %v6552
  %v6590 = vpack.c.b16 %v6555, %v6554
  %v6591 = vpack.c.b16 %v6557, %v6556
  %v6592 = vpack.c.b16 %v6559, %v6558
  %v6593 = vpack.c.b16 %v6561, %v6560
  %v6594 = vpack.c.b16 %v6563, %v6562
  %v6595 = vpack.c.b16 %v6565, %v6564
  %v6596 = vpack.c.b16 %v6567, %v6566
  %v6597 = vpack.c.b16 %v6569, %v6568
  %v6598 = vpack.c.b16 %v6571, %v6570
  %v6599 = vpack.c.b16 %v6573, %v6572
  %v6627 = vsel %vm1377, %v6273, 0
  %v6630 = vsel %vm1377, %v6277, 0
  %v6633 = vsel %vm1377, %v6281, 0
  %v6636 = vsel %vm1377, %v6285, 0
  %v6639 = vsel %vm1377, %v6289, 0
  %v6642 = vsel %vm1377, %v6293, 0
  %v6645 = vsel %vm1377, %v6297, 0
  %6647 = vmatprep.subr.bf16.mxu0 0
  %6648 = vmatpush1.bf16.msra.mxu0 %v6574
  %6649 = vmatprep.subr.bf16.mxu0 0
  %6650 = vmatpush1.bf16.msra.mxu0 %v6575
  %6651 = vmatprep.subr.bf16.mxu0 0
  %6652 = vmatpush1.bf16.msra.mxu0 %v6576
  %6653 = vmatprep.subr.bf16.mxu0 0
  %6654 = vmatpush1.bf16.msra.mxu0 %v6577
  %6655 = vmatprep.subr.bf16.mxu0 0
  %6656 = vmatpush1.bf16.msra.mxu0 %v6578
  %6657 = vmatprep.subr.bf16.mxu0 0
  %6658 = vmatpush1.bf16.msra.mxu0 %v6579
  %6659 = vmatprep.subr.bf16.mxu0 0
  %6660 = vmatpush1.bf16.msra.mxu0 %v6580
  %6661 = vmatprep.subr.bf16.mxu0 0
  %6662 = vmatpush1.bf16.msra.mxu0 %v6581
  %6663 = vmatprep.subr.bf16.mxu0 0
  %6664 = vmatpush1.bf16.msra.mxu0 %v6582
  %6665 = vmatprep.subr.bf16.mxu0 0
  %6666 = vmatpush1.bf16.msra.mxu0 %v6583
  %6667 = vmatprep.subr.bf16.mxu0 0
  %6668 = vmatpush1.bf16.msra.mxu0 %v6584
  %6669 = vmatprep.subr.bf16.mxu0 0
  %6670 = vmatpush1.bf16.msra.mxu0 %v6585
  %6671 = vmatprep.subr.bf16.mxu0 0
  %6672 = vmatpush1.bf16.msra.mxu0 %v6586
  %6673 = vmatprep.subr.bf16.mxu0 0
  %6674 = vmatpush1.bf16.msra.mxu0 %v6587
  %6675 = vmatprep.subr.bf16.mxu0 0
  %6676 = vmatpush1.bf16.msra.mxu0 %v6588
  %6677 = vmatprep.subr.bf16.mxu0 0
  %6678 = vmatpush1.bf16.msra.mxu0 %v6589
  %6679 = vmatprep.mubr.bf16.mxu0 %v6271
  %6680 = vmatmul.mubr.bf16.gmra.mrb[0].mxu0 %v6270
  %v6681 = vpop.f32.mrb[0].mxu0
  %v6682 = vadd.f32 0.0, %v6681
  %v6683 = vpop.f32.mrb[0].mxu0
  %v6684 = vpop.f32.mrb[0].mxu0
  %v6685 = vadd.f32 0.0, %v6684
  %v6686 = vpop.f32.mrb[0].mxu0
  %6687 = vmatprep.mubr.bf16.mxu0 %v6275
  %6688 = vmatmul.mubr.bf16.gmra.mrb[0].mxu0 %v6274
  %v6689 = vpop.f32.mrb[0].mxu0
  %v6690 = vadd.f32 0.0, %v6689
  %v6691 = vpop.f32.mrb[0].mxu0
  %v6692 = vpop.f32.mrb[0].mxu0
  %v6693 = vadd.f32 0.0, %v6692
  %v6694 = vpop.f32.mrb[0].mxu0
  %6695 = vmatprep.mubr.bf16.mxu0 %v6279
  %6696 = vmatmul.mubr.bf16.gmra.mrb[0].mxu0 %v6278
  %v6697 = vpop.f32.mrb[0].mxu0
  %v6698 = vadd.f32 0.0, %v6697
  %v6699 = vpop.f32.mrb[0].mxu0
  %v6700 = vpop.f32.mrb[0].mxu0
  %v6701 = vadd.f32 0.0, %v6700
  %v6702 = vpop.f32.mrb[0].mxu0
  %6703 = vmatprep.mubr.bf16.mxu0 %v6283
  %6704 = vmatmul.mubr.bf16.gmra.mrb[0].mxu0 %v6282
  %v6705 = vpop.f32.mrb[0].mxu0
  %v6706 = vadd.f32 0.0, %v6705
  %v6707 = vpop.f32.mrb[0].mxu0
  %v6708 = vpop.f32.mrb[0].mxu0
  %v6709 = vadd.f32 0.0, %v6708
  %v6710 = vpop.f32.mrb[0].mxu0
  %6711 = vmatprep.mubr.bf16.mxu0 %v6287
  %6712 = vmatmul.mubr.bf16.gmra.mrb[0].mxu0 %v6286
  %v6713 = vpop.f32.mrb[0].mxu0
  %v6714 = vadd.f32 0.0, %v6713
  %v6715 = vpop.f32.mrb[0].mxu0
  %v6716 = vpop.f32.mrb[0].mxu0
  %v6717 = vadd.f32 0.0, %v6716
  %v6718 = vpop.f32.mrb[0].mxu0
  %6719 = vmatprep.mubr.bf16.mxu0 %v6291
  %6720 = vmatmul.mubr.bf16.gmra.mrb[0].mxu0 %v6290
  %v6721 = vpop.f32.mrb[0].mxu0
  %v6722 = vadd.f32 0.0, %v6721
  %v6723 = vpop.f32.mrb[0].mxu0
  %v6724 = vpop.f32.mrb[0].mxu0
  %v6725 = vadd.f32 0.0, %v6724
  %v6726 = vpop.f32.mrb[0].mxu0
  %6727 = vmatprep.mubr.bf16.mxu0 %v6295
  %6728 = vmatmul.mubr.bf16.gmra.mrb[0].mxu0 %v6294
  %v6729 = vpop.f32.mrb[0].mxu0
  %v6730 = vadd.f32 0.0, %v6729
  %v6731 = vpop.f32.mrb[0].mxu0
  %v6732 = vpop.f32.mrb[0].mxu0
  %v6733 = vadd.f32 0.0, %v6732
  %v6734 = vpop.f32.mrb[0].mxu0
  %6735 = vdwg.mxu0
  %6736 = vmatprep.subr.bf16.mxu0 0
  %6737 = vmatpush1.bf16.msra.mxu0 %v6590
  %6738 = vmatprep.subr.bf16.mxu0 0
  %6739 = vmatpush1.bf16.msra.mxu0 %v6591
  %6740 = vmatprep.subr.bf16.mxu0 0
  %6741 = vmatpush1.bf16.msra.mxu0 %v6592
  %6742 = vmatprep.subr.bf16.mxu0 0
  %6743 = vmatpush1.bf16.msra.mxu0 %v6593
  %6744 = vmatprep.subr.bf16.mxu0 0
  %6745 = vmatpush1.bf16.msra.mxu0 %v6594
  %6746 = vmatprep.subr.bf16.mxu0 0
  %6747 = vmatpush1.bf16.msra.mxu0 %v6595
  %6748 = vmatprep.subr.bf16.mxu0 0
  %6749 = vmatpush1.bf16.msra.mxu0 %v6596
  %6750 = vmatprep.subr.bf16.mxu0 0
  %6751 = vmatpush1.bf16.msra.mxu0 %v6597
  %6752 = vmatprep.subr.bf16.mxu0 0
  %6753 = vmatpush1.bf16.msra.mxu0 %v6598
  %6754 = vmatprep.subr.bf16.mxu0 0
  %6755 = vmatpush1.bf16.msra.mxu0 %v6599
  %6756 = vmatprep.subr.bf16.mxu0 0
  %6757 = vmatpush1.bf16.msra.mxu0 0
  %6758 = vmatprep.subr.bf16.mxu0 0
  %6759 = vmatpush1.bf16.msra.mxu0 0
  %6760 = vmatprep.subr.bf16.mxu0 0
  %6761 = vmatpush1.bf16.msra.mxu0 0
  %6762 = vmatprep.subr.bf16.mxu0 0
  %6763 = vmatpush1.bf16.msra.mxu0 0
  %6764 = vmatprep.subr.bf16.mxu0 0
  %6765 = vmatpush1.bf16.msra.mxu0 0
  %6766 = vmatprep.subr.bf16.mxu0 0
  %6767 = vmatpush1.bf16.msra.mxu0 0
  %6768 = vmatprep.mubr.bf16.mxu0 %v6627
  %6769 = vmatmul.mubr.bf16.gmra.mrb[0].mxu0 %v6272
  %v6770 = vpop.f32.mrb[0].mxu0
  %v6771 = vadd.f32 %v6682, %v6770
  %v6772 = vpop.f32.mrb[0].mxu0
  %v6773 = vpop.f32.mrb[0].mxu0
  %v6774 = vadd.f32 %v6685, %v6773
  %v6775 = vpop.f32.mrb[0].mxu0
  %6776 = vmatprep.mubr.bf16.mxu0 %v6630
  %6777 = vmatmul.mubr.bf16.gmra.mrb[0].mxu0 %v6276
  %v6778 = vpop.f32.mrb[0].mxu0
  %v6779 = vadd.f32 %v6690, %v6778
  %v6780 = vpop.f32.mrb[0].mxu0
  %v6781 = vpop.f32.mrb[0].mxu0
  %v6782 = vadd.f32 %v6693, %v6781
  %v6783 = vpop.f32.mrb[0].mxu0
  %6784 = vmatprep.mubr.bf16.mxu0 %v6633
  %6785 = vmatmul.mubr.bf16.gmra.mrb[0].mxu0 %v6280
  %v6786 = vpop.f32.mrb[0].mxu0
  %v6787 = vadd.f32 %v6698, %v6786
  %v6788 = vpop.f32.mrb[0].mxu0
  %v6789 = vpop.f32.mrb[0].mxu0
  %v6790 = vadd.f32 %v6701, %v6789
  %v6791 = vpop.f32.mrb[0].mxu0
  %6792 = vmatprep.mubr.bf16.mxu0 %v6636
  %6793 = vmatmul.mubr.bf16.gmra.mrb[0].mxu0 %v6284
  %v6794 = vpop.f32.mrb[0].mxu0
  %v6795 = vadd.f32 %v6706, %v6794
  %v6796 = vpop.f32.mrb[0].mxu0
  %v6797 = vpop.f32.mrb[0].mxu0
  %v6798 = vadd.f32 %v6709, %v6797
  %v6799 = vpop.f32.mrb[0].mxu0
  %6800 = vmatprep.mubr.bf16.mxu0 %v6639
  %6801 = vmatmul.mubr.bf16.gmra.mrb[0].mxu0 %v6288
  %v6802 = vpop.f32.mrb[0].mxu0
  %v6803 = vadd.f32 %v6714, %v6802
  %v6804 = vpop.f32.mrb[0].mxu0
  %v6805 = vpop.f32.mrb[0].mxu0
  %v6806 = vadd.f32 %v6717, %v6805
  %v6807 = vpop.f32.mrb[0].mxu0
  %6808 = vmatprep.mubr.bf16.mxu0 %v6642
  %6809 = vmatmul.mubr.bf16.gmra.mrb[0].mxu0 %v6292
  %v6810 = vpop.f32.mrb[0].mxu0
  %v6811 = vadd.f32 %v6722, %v6810
  %v6812 = vpop.f32.mrb[0].mxu0
  %v6813 = vpop.f32.mrb[0].mxu0
  %v6814 = vadd.f32 %v6725, %v6813
  %v6815 = vpop.f32.mrb[0].mxu0
  %6816 = vmatprep.mubr.bf16.mxu0 %v6645
  %6817 = vmatmul.mubr.bf16.gmra.mrb[0].mxu0 %v6296
  %v6818 = vpop.f32.mrb[0].mxu0
  %v6819 = vadd.f32 %v6730, %v6818
  %v6820 = vpop.f32.mrb[0].mxu0
  %v6821 = vpop.f32.mrb[0].mxu0
  %v6822 = vadd.f32 %v6733, %v6821
  %v6823 = vpop.f32.mrb[0].mxu0
  %6824 = vdwg.mxu0
  %v6826 = vsel %vm1377, %v6397, 0
  %v6829 = vsel %vm1377, %v6401, 0
  %v6832 = vsel %vm1377, %v6405, 0
  %v6835 = vsel %vm1377, %v6409, 0
  %v6838 = vsel %vm1377, %v6413, 0
  %v6841 = vsel %vm1377, %v6417, 0
  %6843 = vmatprep.subr.bf16.mxu0 0
  %6844 = vmatpush1.bf16.msra.mxu0 %v6574
  %6845 = vmatprep.subr.bf16.mxu0 0
  %6846 = vmatpush1.bf16.msra.mxu0 %v6575
  %6847 = vmatprep.subr.bf16.mxu0 0
  %6848 = vmatpush1.bf16.msra.mxu0 %v6576
  %6849 = vmatprep.subr.bf16.mxu0 0
  %6850 = vmatpush1.bf16.msra.mxu0 %v6577
  %6851 = vmatprep.subr.bf16.mxu0 0
  %6852 = vmatpush1.bf16.msra.mxu0 %v6578
  %6853 = vmatprep.subr.bf16.mxu0 0
  %6854 = vmatpush1.bf16.msra.mxu0 %v6579
  %6855 = vmatprep.subr.bf16.mxu0 0
  %6856 = vmatpush1.bf16.msra.mxu0 %v6580
  %6857 = vmatprep.subr.bf16.mxu0 0
  %6858 = vmatpush1.bf16.msra.mxu0 %v6581
  %6859 = vmatprep.subr.bf16.mxu0 0
  %6860 = vmatpush1.bf16.msra.mxu0 %v6582
  %6861 = vmatprep.subr.bf16.mxu0 0
  %6862 = vmatpush1.bf16.msra.mxu0 %v6583
  %6863 = vmatprep.subr.bf16.mxu0 0
  %6864 = vmatpush1.bf16.msra.mxu0 %v6584
  %6865 = vmatprep.subr.bf16.mxu0 0
  %6866 = vmatpush1.bf16.msra.mxu0 %v6585
  %6867 = vmatprep.subr.bf16.mxu0 0
  %6868 = vmatpush1.bf16.msra.mxu0 %v6586
  %6869 = vmatprep.subr.bf16.mxu0 0
  %6870 = vmatpush1.bf16.msra.mxu0 %v6587
  %6871 = vmatprep.subr.bf16.mxu0 0
  %6872 = vmatpush1.bf16.msra.mxu0 %v6588
  %6873 = vmatprep.subr.bf16.mxu0 0
  %6874 = vmatpush1.bf16.msra.mxu0 %v6589
  %6875 = vmatprep.mubr.bf16.mxu0 %v6395
  %6876 = vmatmul.mubr.bf16.gmra.mrb[0].mxu0 %v6394
  %v6877 = vpop.f32.mrb[0].mxu0
  %v6878 = vadd.f32 0.0, %v6877
  %v6879 = vpop.f32.mrb[0].mxu0
  %v6880 = vpop.f32.mrb[0].mxu0
  %v6881 = vadd.f32 0.0, %v6880
  %v6882 = vpop.f32.mrb[0].mxu0
  %6883 = vmatprep.mubr.bf16.mxu0 %v6399
  %6884 = vmatmul.mubr.bf16.gmra.mrb[0].mxu0 %v6398
  %v6885 = vpop.f32.mrb[0].mxu0
  %v6886 = vadd.f32 0.0, %v6885
  %v6887 = vpop.f32.mrb[0].mxu0
  %v6888 = vpop.f32.mrb[0].mxu0
  %v6889 = vadd.f32 0.0, %v6888
  %v6890 = vpop.f32.mrb[0].mxu0
  %6891 = vmatprep.mubr.bf16.mxu0 %v6403
  %6892 = vmatmul.mubr.bf16.gmra.mrb[0].mxu0 %v6402
  %v6893 = vpop.f32.mrb[0].mxu0
  %v6894 = vadd.f32 0.0, %v6893
  %v6895 = vpop.f32.mrb[0].mxu0
  %v6896 = vpop.f32.mrb[0].mxu0
  %v6897 = vadd.f32 0.0, %v6896
  %v6898 = vpop.f32.mrb[0].mxu0
  %6899 = vmatprep.mubr.bf16.mxu0 %v6407
  %6900 = vmatmul.mubr.bf16.gmra.mrb[0].mxu0 %v6406
  %v6901 = vpop.f32.mrb[0].mxu0
  %v6902 = vadd.f32 0.0, %v6901
  %v6903 = vpop.f32.mrb[0].mxu0
  %v6904 = vpop.f32.mrb[0].mxu0
  %v6905 = vadd.f32 0.0, %v6904
  %v6906 = vpop.f32.mrb[0].mxu0
  %6907 = vmatprep.mubr.bf16.mxu0 %v6411
  %6908 = vmatmul.mubr.bf16.gmra.mrb[0].mxu0 %v6410
  %v6909 = vpop.f32.mrb[0].mxu0
  %v6910 = vadd.f32 0.0, %v6909
  %v6911 = vpop.f32.mrb[0].mxu0
  %v6912 = vpop.f32.mrb[0].mxu0
  %v6913 = vadd.f32 0.0, %v6912
  %v6914 = vpop.f32.mrb[0].mxu0
  %6915 = vmatprep.mubr.bf16.mxu0 %v6415
  %6916 = vmatmul.mubr.bf16.gmra.mrb[0].mxu0 %v6414
  %v6917 = vpop.f32.mrb[0].mxu0
  %v6918 = vadd.f32 0.0, %v6917
  %v6919 = vpop.f32.mrb[0].mxu0
  %v6920 = vpop.f32.mrb[0].mxu0
  %v6921 = vadd.f32 0.0, %v6920
  %v6922 = vpop.f32.mrb[0].mxu0
  %6923 = vdwg.mxu0
  %6924 = vmatprep.subr.bf16.mxu0 0
  %6925 = vmatpush1.bf16.msra.mxu0 %v6590
  %6926 = vmatprep.subr.bf16.mxu0 0
  %6927 = vmatpush1.bf16.msra.mxu0 %v6591
  %6928 = vmatprep.subr.bf16.mxu0 0
  %6929 = vmatpush1.bf16.msra.mxu0 %v6592
  %6930 = vmatprep.subr.bf16.mxu0 0
  %6931 = vmatpush1.bf16.msra.mxu0 %v6593
  %6932 = vmatprep.subr.bf16.mxu0 0
  %6933 = vmatpush1.bf16.msra.mxu0 %v6594
  %6934 = vmatprep.subr.bf16.mxu0 0
  %6935 = vmatpush1.bf16.msra.mxu0 %v6595
  %6936 = vmatprep.subr.bf16.mxu0 0
  %6937 = vmatpush1.bf16.msra.mxu0 %v6596
  %6938 = vmatprep.subr.bf16.mxu0 0
  %6939 = vmatpush1.bf16.msra.mxu0 %v6597
  %6940 = vmatprep.subr.bf16.mxu0 0
  %6941 = vmatpush1.bf16.msra.mxu0 %v6598
  %6942 = vmatprep.subr.bf16.mxu0 0
  %6943 = vmatpush1.bf16.msra.mxu0 %v6599
  %6944 = vmatprep.subr.bf16.mxu0 0
  %6945 = vmatpush1.bf16.msra.mxu0 0
  %6946 = vmatprep.subr.bf16.mxu0 0
  %6947 = vmatpush1.bf16.msra.mxu0 0
  %6948 = vmatprep.subr.bf16.mxu0 0
  %6949 = vmatpush1.bf16.msra.mxu0 0
  %6950 = vmatprep.subr.bf16.mxu0 0
  %6951 = vmatpush1.bf16.msra.mxu0 0
  %6952 = vmatprep.subr.bf16.mxu0 0
  %6953 = vmatpush1.bf16.msra.mxu0 0
  %6954 = vmatprep.subr.bf16.mxu0 0
  %6955 = vmatpush1.bf16.msra.mxu0 0
  %6956 = vmatprep.mubr.bf16.mxu0 %v6826
  %6957 = vmatmul.mubr.bf16.gmra.mrb[0].mxu0 %v6396
  %v6958 = vpop.f32.mrb[0].mxu0
  %v6959 = vadd.f32 %v6878, %v6958
  %v6960 = vpop.f32.mrb[0].mxu0
  %v6961 = vpop.f32.mrb[0].mxu0
  %v6962 = vadd.f32 %v6881, %v6961
  %v6963 = vpop.f32.mrb[0].mxu0
  %6964 = vmatprep.mubr.bf16.mxu0 %v6829
  %6965 = vmatmul.mubr.bf16.gmra.mrb[0].mxu0 %v6400
  %v6966 = vpop.f32.mrb[0].mxu0
  %v6967 = vadd.f32 %v6886, %v6966
  %v6968 = vpop.f32.mrb[0].mxu0
  %v6969 = vpop.f32.mrb[0].mxu0
  %v6970 = vadd.f32 %v6889, %v6969
  %v6971 = vpop.f32.mrb[0].mxu0
  %6972 = vmatprep.mubr.bf16.mxu0 %v6832
  %6973 = vmatmul.mubr.bf16.gmra.mrb[0].mxu0 %v6404
  %v6974 = vpop.f32.mrb[0].mxu0
  %v6975 = vadd.f32 %v6894, %v6974
  %v6976 = vpop.f32.mrb[0].mxu0
  %v6977 = vpop.f32.mrb[0].mxu0
  %v6978 = vadd.f32 %v6897, %v6977
  %v6979 = vpop.f32.mrb[0].mxu0
  %6980 = vmatprep.mubr.bf16.mxu0 %v6835
  %6981 = vmatmul.mubr.bf16.gmra.mrb[0].mxu0 %v6408
  %v6982 = vpop.f32.mrb[0].mxu0
  %v6983 = vadd.f32 %v6902, %v6982
  %v6984 = vpop.f32.mrb[0].mxu0
  %v6985 = vpop.f32.mrb[0].mxu0
  %v6986 = vadd.f32 %v6905, %v6985
  %v6987 = vpop.f32.mrb[0].mxu0
  %6988 = vmatprep.mubr.bf16.mxu0 %v6838
  %6989 = vmatmul.mubr.bf16.gmra.mrb[0].mxu0 %v6412
  %v6990 = vpop.f32.mrb[0].mxu0
  %v6991 = vadd.f32 %v6910, %v6990
  %v6992 = vpop.f32.mrb[0].mxu0
  %v6993 = vpop.f32.mrb[0].mxu0
  %v6994 = vadd.f32 %v6913, %v6993
  %v6995 = vpop.f32.mrb[0].mxu0
  %6996 = vmatprep.mubr.bf16.mxu0 %v6841
  %6997 = vmatmul.mubr.bf16.gmra.mrb[0].mxu0 %v6416
  %v6998 = vpop.f32.mrb[0].mxu0
  %v6999 = vadd.f32 %v6918, %v6998
  %v7000 = vpop.f32.mrb[0].mxu0
  %v7001 = vpop.f32.mrb[0].mxu0
  %v7002 = vadd.f32 %v6921, %v7001
  %v7003 = vpop.f32.mrb[0].mxu0
  %7004 = vdwg.mxu0
  %7005 = vrot.lane.b32.xlu0 %v6959, 64
  %v7006 = vpop.permute.xlu0 %7005
  %7007 = vrot.lane.b32.xlu0 %v6962, 64
  %v7008 = vpop.permute.xlu0 %7007
  %7009 = vrot.lane.b32.xlu0 %v6967, 64
  %v7010 = vpop.permute.xlu0 %7009
  %7011 = vrot.lane.b32.xlu0 %v6970, 64
  %v7012 = vpop.permute.xlu0 %7011
  %7013 = vrot.lane.b32.xlu0 %v6975, 64
  %v7014 = vpop.permute.xlu0 %7013
  %7015 = vrot.lane.b32.xlu0 %v6978, 64
  %v7016 = vpop.permute.xlu0 %7015
  %7017 = vrot.lane.b32.xlu0 %v6983, 64
  %v7018 = vpop.permute.xlu0 %7017
  %7019 = vrot.lane.b32.xlu0 %v6986, 64
  %v7020 = vpop.permute.xlu0 %7019
  %7021 = vrot.lane.b32.xlu0 %v6991, 64
  %v7022 = vpop.permute.xlu0 %7021
  %7023 = vrot.lane.b32.xlu0 %v6994, 64
  %v7024 = vpop.permute.xlu0 %7023
  %7025 = vrot.lane.b32.xlu0 %v6999, 64
  %v7026 = vpop.permute.xlu0 %7025
  %7027 = vrot.lane.b32.xlu0 %v7002, 64
  %v7028 = vpop.permute.xlu0 %7027
  %v7029 = vlaneseq
  %v7030 = vand.u32 %v7029, 127
  %vm7031 = vcmp.lt.s32.totalorder %v7030, 64
  %v7032 = vld [vmem:[%s6] sm:$0x1]
  %v7033 = vsel %vm7031, 0.0, %v7006
  %v7034 = vsel %vm7031, 0.0, %v7008
  %v7035 = vadd.f32 %v6771, %v7033
  %v7036 = vadd.f32 %v6774, %v7034
  %v7038 = vlaneseq
  %v7039 = vshrl.u32 %v7038, 7
  %v7040 = vsub.s32 0, %v7039
  %v7041 = vrot.slane %v7032, %v7040
  %v7043 = vadd.f32 %v7035, %v7041
  %v7044 = vadd.f32 %v7036, %v7041
  %v7045 = vtanh.pop %v7043
  %v7046 = vtanh.pop %v7044
  %7047 = vst [vmem:[%s7] sm:$0xff] %v7045
  %7048 = vst [vmem:[%s7 + $0x8] sm:$0xff] %v7046
  %v7049 = vsel %vm7031, %v7006, %v7010
  %v7050 = vsel %vm7031, %v7008, %v7012
  %v7051 = vadd.f32 %v6779, %v7049
  %v7052 = vadd.f32 %v6782, %v7050
  %v7053 = vadd.f32 %v7051, %v7041
  %v7054 = vadd.f32 %v7052, %v7041
  %v7055 = vtanh.pop %v7053
  %v7056 = vtanh.pop %v7054
  %7057 = vst [vmem:[%s7 + $0x10] sm:$0xff] %v7055
  %7058 = vst [vmem:[%s7 + $0x18] sm:$0xff] %v7056
  %v7059 = vsel %vm7031, %v7010, %v7014
  %v7060 = vsel %vm7031, %v7012, %v7016
  %v7061 = vadd.f32 %v6787, %v7059
  %v7062 = vadd.f32 %v6790, %v7060
  %v7063 = vadd.f32 %v7061, %v7041
  %v7064 = vadd.f32 %v7062, %v7041
  %v7065 = vtanh.pop %v7063
  %v7066 = vtanh.pop %v7064
  %7067 = vst [vmem:[%s7 + $0x20] sm:$0xff] %v7065
  %7068 = vst [vmem:[%s7 + $0x28] sm:$0xff] %v7066
  %v7069 = vsel %vm7031, %v7014, %v7018
  %v7070 = vsel %vm7031, %v7016, %v7020
  %v7071 = vadd.f32 %v6795, %v7069
  %v7072 = vadd.f32 %v6798, %v7070
  %v7073 = vadd.f32 %v7071, %v7041
  %v7074 = vadd.f32 %v7072, %v7041
  %v7075 = vtanh.pop %v7073
  %v7076 = vtanh.pop %v7074
  %7077 = vst [vmem:[%s7 + $0x30] sm:$0xff] %v7075
  %7078 = vst [vmem:[%s7 + $0x38] sm:$0xff] %v7076
  %v7079 = vsel %vm7031, %v7018, %v7022
  %v7080 = vsel %vm7031, %v7020, %v7024
  %v7081 = vadd.f32 %v6803, %v7079
  %v7082 = vadd.f32 %v6806, %v7080
  %v7083 = vadd.f32 %v7081, %v7041
  %v7084 = vadd.f32 %v7082, %v7041
  %v7085 = vtanh.pop %v7083
  %v7086 = vtanh.pop %v7084
  %7087 = vst [vmem:[%s7 + $0x40] sm:$0xff] %v7085
  %7088 = vst [vmem:[%s7 + $0x48] sm:$0xff] %v7086
  %v7089 = vsel %vm7031, %v7022, %v7026
  %v7090 = vsel %vm7031, %v7024, %v7028
  %v7091 = vadd.f32 %v6811, %v7089
  %v7092 = vadd.f32 %v6814, %v7090
  %v7093 = vadd.f32 %v7091, %v7041
  %v7094 = vadd.f32 %v7092, %v7041
  %v7095 = vtanh.pop %v7093
  %v7096 = vtanh.pop %v7094
  %7097 = vst [vmem:[%s7 + $0x50] sm:$0xff] %v7095
  %7098 = vst [vmem:[%s7 + $0x58] sm:$0xff] %v7096
  %v7099 = vsel %vm7031, %v7026, 0.0
  %v7100 = vsel %vm7031, %v7028, 0.0
  %v7101 = vadd.f32 %v6819, %v7099
  %v7102 = vadd.f32 %v6822, %v7100
  %v7103 = vadd.f32 %v7101, %v7041
  %v7104 = vadd.f32 %v7102, %v7041
  %v7105 = vtanh.pop %v7103
  %v7106 = vtanh.pop %v7104
  %7107 = vst [vmem:[%s7 + $0x60] sm:$0xff] %v7105
  %7108 = vst [vmem:[%s7 + $0x68] sm:$0xff] %v7106
  // Predicated region
  $region30: #{deconv_lenet5_forward.1} parent=0 // pred_check
    _
  $region31: #{deconv_lenet5_forward.1} parent=0 // pred_check_branch
    %7110 = sbr.rel (0) target = $region33
  $region32: #{deconv_lenet5_forward.1} parent=0 // pred_region
    _
  $region33: #{deconv_lenet5_forward.1} parent=0 // pred_fallthru
    _
  // Predicated region
  $region34: #{deconv_lenet5_forward.1} parent=0 // pred_check
    _
  $region35: #{deconv_lenet5_forward.1} parent=0 // pred_check_branch
    %7112 = sbr.rel (0) target = $region37
  $region36: #{deconv_lenet5_forward.1} parent=0 // pred_region
    _
  $region37: #{deconv_lenet5_forward.1} parent=0 // pred_fallthru
    _

</llo_original>
